<compile_context>
chip_gen: v6e
topology: v6e:2x2x1
jax: 0.10.0
libtpu: 0.0.40
codegen_flags: <defaults>
</compile_context>

<pallas_src>
import math
import functools

import jax
import jax.numpy as jnp
from jax.experimental import pallas as pl
from jax.experimental.pallas import tpu as pltpu

LN_EPS = 1e-5


# ----------------------------- fused kernel ---------------------------------

def _layer_norm(z):
    # nn.LayerNorm(d_model, elementwise_affine=False): biased variance, eps=1e-5
    mean = jnp.mean(z, axis=-1, keepdims=True)
    var = jnp.mean((z - mean) ** 2, axis=-1, keepdims=True)
    return (z - mean) * jax.lax.rsqrt(var + LN_EPS)


def decoder_kernel(x_ref, enc_ref, pe_ref,
                   s_wq, s_bq, s_wk, s_bk, s_wv, s_bv, s_wo, s_bo,
                   c_wq, c_bq, c_wk, c_bk, c_wv, c_bv, c_wo, c_bo,
                   f_w1, f_b1, f_w2, f_b2,
                   o_ref, *, n_layers, n_heads, d_k, mm_dtype):
    """Whole decoder forward for one batch element, fully VMEM-resident."""
    H = n_heads
    x = x_ref[0] + pe_ref[0]                       # (Lq, D), fp32
    enc = enc_ref[0]                               # (Lk, D)
    Lq, D = x.shape
    Lk = enc.shape[0]
    scale = 1.0 / math.sqrt(d_k)

    def mm(eq, a, b):
        # MXU contraction with fp32 accumulation; mm_dtype=bf16 enables the
        # fast MXU path on v6e/v7x while LN/softmax math stays fp32.
        return jnp.einsum(eq, a.astype(mm_dtype), b.astype(mm_dtype),
                          preferred_element_type=jnp.float32)

    # Encoder K/V stream: broadcast over heads ONCE (reused by every layer's
    # cross-attention) — broadcast_in_dim is not CSE'd, so hoist it here.
    enc_b = jnp.broadcast_to(enc[None], (H, Lk, D))

    def mha(xq_b, kv_b, wq, bq, wk, bk, wv, bv, wo, bo):
        # xq_b: (H, Lq, D)   kv_b: (H, Lk, D)
        # wq/wk: (H, D, d_k), wv: (H, D, d_v), wo: (H, d_v, D)
        q = mm('hqd,hde->hqe', xq_b, wq) + bq                    # (H, Lq, d_k)
        k = mm('hkd,hde->hke', kv_b, wk) + bk                    # (H, Lk, d_k)
        v = mm('hkd,hdv->hkv', kv_b, wv) + bv                    # (H, Lk, d_v)
        s = mm('hqe,hke->hqk', q, k) * scale                     # (H, Lq, Lk)
        s = s - jnp.max(s, axis=-1, keepdims=True)
        e = jnp.exp(s)
        p = e * pl.reciprocal(jnp.sum(e, axis=-1, keepdims=True), approx=True)
        ctx = mm('hqk,hkv->hqv', p, v)                           # (H, Lq, d_v)
        out_h = mm('hqv,hvd->hqd', ctx, wo)                      # (H, Lq, D)
        return jnp.sum(out_h, axis=0) + bo                       # (Lq, D)

    for l in range(n_layers):                                    # static unroll
        # --- decoder self-attention + add & norm ---
        x_b = jnp.broadcast_to(x[None], (H, Lq, D))
        a = mha(x_b, x_b,
                s_wq[l], s_bq[l], s_wk[l], s_bk[l],
                s_wv[l], s_bv[l], s_wo[l], s_bo[l])
        x = _layer_norm(x + a)

        # --- decoder-encoder cross-attention + add & norm ---
        x_b = jnp.broadcast_to(x[None], (H, Lq, D))
        a2 = mha(x_b, enc_b,
                 c_wq[l], c_bq[l], c_wk[l], c_bk[l],
                 c_wv[l], c_bv[l], c_wo[l], c_bo[l])
        x = _layer_norm(x + a2)

        # --- position-wise FFN + add & norm ---
        h = mm('qd,df->qf', x, f_w1[l]) + f_b1[l]
        h = jnp.maximum(h, 0.0)
        f = mm('qf,fd->qd', h, f_w2[l]) + f_b2[l]
        x = _layer_norm(x + f)

    o_ref[0] = x.astype(o_ref.dtype)


# ----------------------------- wrappers --------------------------------------

def _shared_spec(shape):
    """Full-array block whose block index never changes -> fetched once."""
    n = len(shape)
    return pl.BlockSpec(shape, lambda b: (0,) * n)


def _head_split_attn(p, n_heads, d_k, d_v):
    """(Wq,bq,Wk,bk,Wv,bv,Wo,bo) in flat layout -> head-batched layout."""
    wq, bq, wk, bk, wv, bv, wo, bo = p
    D = wq.shape[0]
    return (wq.reshape(D, n_heads, d_k).transpose(1, 0, 2),   # (H, D, d_k)
            bq.reshape(n_heads, 1, d_k),                      # (H, 1, d_k)
            wk.reshape(D, n_heads, d_k).transpose(1, 0, 2),
            bk.reshape(n_heads, 1, d_k),
            wv.reshape(D, n_heads, d_v).transpose(1, 0, 2),   # (H, D, d_v)
            bv.reshape(n_heads, 1, d_v),
            wo.reshape(n_heads, d_v, D),                      # (H, d_v, D)
            bo)                                               # (1, D)


def _stack_layer_params(layer_params, n_heads, d_k, d_v):
    """Stack per-layer params on a leading n_layers axis -> 20 arrays."""
    flats = []
    for (sa, ca, ff) in layer_params:
        flats.append(_head_split_attn(sa, n_heads, d_k, d_v)
                     + _head_split_attn(ca, n_heads, d_k, d_v)
                     + tuple(ff))
    n = len(flats[0])
    return [jnp.stack([f[i] for f in flats], axis=0) for i in range(n)]


def sinusoid_pos_encoding(L, D):
    pos = jnp.arange(L, dtype=jnp.float32)[:, None]          # (L, 1)
    i = jnp.arange(D)[None, :]                                # (1, D)
    denom = jnp.power(10000.0, (2 * (i // 2)).astype(jnp.float32) / D)
    angle = pos / denom
    pe = jnp.where(i % 2 == 0, jnp.sin(angle), jnp.cos(angle))
    return pe[None].astype(jnp.float32)                      # (1, L, D)


def decoder_forward(dec_inputs, enc_outputs, layer_params, *,
                    n_heads, d_k, d_v, mm_dtype=jnp.float32):
    B, Lq, D = dec_inputs.shape
    _, Lk, _ = enc_outputs.shape
    n_layers = len(layer_params)

    pe = sinusoid_pos_encoding(Lq, D).astype(dec_inputs.dtype)   # (1, Lq, D)
    stacked = _stack_layer_params(layer_params, n_heads, d_k, d_v)

    kernel = functools.partial(decoder_kernel, n_layers=n_layers,
                               n_heads=n_heads, d_k=d_k, mm_dtype=mm_dtype)

    in_specs = ([pl.BlockSpec((1, Lq, D), lambda b: (b, 0, 0)),   # dec_inputs
                 pl.BlockSpec((1, Lk, D), lambda b: (b, 0, 0)),   # enc_outputs
                 _shared_spec((1, Lq, D))]                        # PE table
                + [_shared_spec(p.shape) for p in stacked])       # weights

    return pl.pallas_call(
        kernel,
        out_shape=jax.ShapeDtypeStruct((B, Lq, D), dec_inputs.dtype),
        grid=(B,),
        in_specs=in_specs,
        out_specs=pl.BlockSpec((1, Lq, D), lambda b: (b, 0, 0)),
        compiler_params=pltpu.CompilerParams(
            dimension_semantics=("parallel",)),   # batch elems -> separate TCs on v7x
    )(dec_inputs, enc_outputs, pe, *stacked)


# ----------------------------- pure-JAX reference -----------------------------

def decoder_reference(dec_inputs, enc_outputs, layer_params, *, n_heads, d_k, d_v):
    B, Lq, D = dec_inputs.shape
    Lk = enc_outputs.shape[1]
    x = dec_inputs + sinusoid_pos_encoding(Lq, D)

    def ln(z):
        m = z.mean(-1, keepdims=True)
        v = ((z - m) ** 2).mean(-1, keepdims=True)
        return (z - m) / jnp.sqrt(v + LN_EPS)

    def mha(q_in, kv_in, p):
        wq, bq, wk, bk, wv, bv, wo, bo = p
        q = (q_in @ wq + bq).reshape(B, Lq, n_heads, d_k).transpose(0, 2, 1, 3)
        k = (kv_in @ wk + bk).reshape(B, Lk, n_heads, d_k).transpose(0, 2, 1, 3)
        v = (kv_in @ wv + bv).reshape(B, Lk, n_heads, d_v).transpose(0, 2, 1, 3)
        s = jnp.einsum('bhqe,bhke->bhqk', q, k) / math.sqrt(d_k)
        a = jax.nn.softmax(s, axis=-1)
        ctx = jnp.einsum('bhqk,bhkv->bhqv', a, v)
        ctx = ctx.transpose(0, 2, 1, 3).reshape(B, Lq, n_heads * d_v)
        return ctx @ wo + bo

    for (sa, ca, ff) in layer_params:
        x = ln(x + mha(x, x, sa))
        x = ln(x + mha(x, enc_outputs, ca))
        w1, b1, w2, b2 = ff
        x = ln(x + (jnp.maximum(x @ w1 + b1, 0.0) @ w2 + b2))
    return x


# ----------------------------- params ----------------------------------------

def init_decoder_params(key, d_model, d_ff, d_k, d_v, n_heads, n_layers):
    def linear(k, fan_in, fan_out):
        k1, k2 = jax.random.split(k)
        w = jax.random.normal(k1, (fan_in, fan_out), jnp.float32) / math.sqrt(fan_in)
        b = jax.random.normal(k2, (1, fan_out), jnp.float32) * 0.01
        return w, b

    layers = []
    for _ in range(n_layers):
        key, *ks = jax.random.split(key, 11)
        self_attn = (*linear(ks[0], d_model, n_heads * d_k),   # Wq, bq
                     *linear(ks[1], d_model, n_heads * d_k),   # Wk, bk
                     *linear(ks[2], d_model, n_heads * d_v),   # Wv, bv
                     *linear(ks[3], n_heads * d_v, d_model))   # Wo, bo
        cross_attn = (*linear(ks[4], d_model, n_heads * d_k),
                      *linear(ks[5], d_model, n_heads * d_k),
                      *linear(ks[6], d_model, n_heads * d_v),
                      *linear(ks[7], n_heads * d_v, d_model))
        pos_ffn = (*linear(ks[8], d_model, d_ff),              # W1, b1
                   *linear(ks[9], d_ff, d_model))              # W2, b2
        layers.append((self_attn, cross_attn, pos_ffn))
    return layers


# ----------------------------- main -------------------------------------------

if __name__ == "__main__":
    B, L_DEC, L_ENC = 2, 8, 8
    D_MODEL, D_FF = 32, 64
    D_K = D_V = 8
    N_HEADS = 4
    N_LAYERS = 2

    key = jax.random.PRNGKey(0)
    k_dec, k_enc, k_par = jax.random.split(key, 3)

    dec_inputs = jax.random.normal(k_dec, (B, L_DEC, D_MODEL), jnp.float32)
    enc_outputs = jax.random.normal(k_enc, (B, L_ENC, D_MODEL), jnp.float32)

    params = init_decoder_params(k_par, D_MODEL, D_FF, D_K, D_V, N_HEADS, N_LAYERS)

    # mm_dtype=jnp.bfloat16 doubles MXU throughput on v6e/v7x; fp32 default
    # preserves reference numerics.
    fwd = jax.jit(functools.partial(decoder_forward,
                                    n_heads=N_HEADS, d_k=D_K, d_v=D_V,
                                    mm_dtype=jnp.float32))
    out = jax.block_until_ready(fwd(dec_inputs, enc_outputs, params))

    ref = decoder_reference(dec_inputs, enc_outputs, params,
                            n_heads=N_HEADS, d_k=D_K, d_v=D_V)

    assert out.shape == (B, L_DEC, D_MODEL)
    assert bool(jnp.all(jnp.isfinite(out)))
    # loose tolerance: approx-reciprocal softmax denom (~1e-4 rel) is the only
    # intentional deviation from the exact reference math.
    assert bool(jnp.allclose(out, ref, atol=2e-2, rtol=2e-2)), \
        float(jnp.max(jnp.abs(out - ref)))
    print("KERNEL_OK")
</pallas_src>

<mosaic_0001>
module attributes {stable_mosaic.version = 11 : i64} {
  func.func @decoder_kernel(%arg0: i32, %arg1: memref<1x8x32xf32, #tpu.memory_space<vmem>>, %arg2: memref<1x8x32xf32, #tpu.memory_space<vmem>>, %arg3: memref<1x8x32xf32, #tpu.memory_space<vmem>>, %arg4: memref<2x4x32x8xf32, #tpu.memory_space<vmem>>, %arg5: memref<2x4x1x8xf32, #tpu.memory_space<vmem>>, %arg6: memref<2x4x32x8xf32, #tpu.memory_space<vmem>>, %arg7: memref<2x4x1x8xf32, #tpu.memory_space<vmem>>, %arg8: memref<2x4x32x8xf32, #tpu.memory_space<vmem>>, %arg9: memref<2x4x1x8xf32, #tpu.memory_space<vmem>>, %arg10: memref<2x4x8x32xf32, #tpu.memory_space<vmem>>, %arg11: memref<2x1x32xf32, #tpu.memory_space<vmem>>, %arg12: memref<2x4x32x8xf32, #tpu.memory_space<vmem>>, %arg13: memref<2x4x1x8xf32, #tpu.memory_space<vmem>>, %arg14: memref<2x4x32x8xf32, #tpu.memory_space<vmem>>, %arg15: memref<2x4x1x8xf32, #tpu.memory_space<vmem>>, %arg16: memref<2x4x32x8xf32, #tpu.memory_space<vmem>>, %arg17: memref<2x4x1x8xf32, #tpu.memory_space<vmem>>, %arg18: memref<2x4x8x32xf32, #tpu.memory_space<vmem>>, %arg19: memref<2x1x32xf32, #tpu.memory_space<vmem>>, %arg20: memref<2x32x64xf32, #tpu.memory_space<vmem>>, %arg21: memref<2x1x64xf32, #tpu.memory_space<vmem>>, %arg22: memref<2x64x32xf32, #tpu.memory_space<vmem>>, %arg23: memref<2x1x32xf32, #tpu.memory_space<vmem>>, %arg24: memref<1x8x32xf32, #tpu.memory_space<vmem>>) attributes {dimension_semantics = [#tpu.dimension_semantics<parallel>], iteration_bounds = array<i64: 2>, scalar_prefetch = 0 : i64, scratch_operands = 0 : i64, tpu.core_type = #tpu.core_type<tc>, window_params = [{transform_indices = @transform_0, window_bounds = array<i64: 1, 8, 32>}, {transform_indices = @transform_1, window_bounds = array<i64: 1, 8, 32>}, {pipeline_mode = #tpu.pipeline_mode<synchronous>, transform_indices = @transform_2, window_bounds = array<i64: 1, 8, 32>}, {pipeline_mode = #tpu.pipeline_mode<synchronous>, transform_indices = @transform_3, window_bounds = array<i64: 2, 4, 32, 8>}, {pipeline_mode = #tpu.pipeline_mode<synchronous>, transform_indices = @transform_4, window_bounds = array<i64: 2, 4, 1, 8>}, {pipeline_mode = #tpu.pipeline_mode<synchronous>, transform_indices = @transform_5, window_bounds = array<i64: 2, 4, 32, 8>}, {pipeline_mode = #tpu.pipeline_mode<synchronous>, transform_indices = @transform_6, window_bounds = array<i64: 2, 4, 1, 8>}, {pipeline_mode = #tpu.pipeline_mode<synchronous>, transform_indices = @transform_7, window_bounds = array<i64: 2, 4, 32, 8>}, {pipeline_mode = #tpu.pipeline_mode<synchronous>, transform_indices = @transform_8, window_bounds = array<i64: 2, 4, 1, 8>}, {pipeline_mode = #tpu.pipeline_mode<synchronous>, transform_indices = @transform_9, window_bounds = array<i64: 2, 4, 8, 32>}, {pipeline_mode = #tpu.pipeline_mode<synchronous>, transform_indices = @transform_10, window_bounds = array<i64: 2, 1, 32>}, {pipeline_mode = #tpu.pipeline_mode<synchronous>, transform_indices = @transform_11, window_bounds = array<i64: 2, 4, 32, 8>}, {pipeline_mode = #tpu.pipeline_mode<synchronous>, transform_indices = @transform_12, window_bounds = array<i64: 2, 4, 1, 8>}, {pipeline_mode = #tpu.pipeline_mode<synchronous>, transform_indices = @transform_13, window_bounds = array<i64: 2, 4, 32, 8>}, {pipeline_mode = #tpu.pipeline_mode<synchronous>, transform_indices = @transform_14, window_bounds = array<i64: 2, 4, 1, 8>}, {pipeline_mode = #tpu.pipeline_mode<synchronous>, transform_indices = @transform_15, window_bounds = array<i64: 2, 4, 32, 8>}, {pipeline_mode = #tpu.pipeline_mode<synchronous>, transform_indices = @transform_16, window_bounds = array<i64: 2, 4, 1, 8>}, {pipeline_mode = #tpu.pipeline_mode<synchronous>, transform_indices = @transform_17, window_bounds = array<i64: 2, 4, 8, 32>}, {pipeline_mode = #tpu.pipeline_mode<synchronous>, transform_indices = @transform_18, window_bounds = array<i64: 2, 1, 32>}, {pipeline_mode = #tpu.pipeline_mode<synchronous>, transform_indices = @transform_19, window_bounds = array<i64: 2, 32, 64>}, {pipeline_mode = #tpu.pipeline_mode<synchronous>, transform_indices = @transform_20, window_bounds = array<i64: 2, 1, 64>}, {pipeline_mode = #tpu.pipeline_mode<synchronous>, transform_indices = @transform_21, window_bounds = array<i64: 2, 64, 32>}, {pipeline_mode = #tpu.pipeline_mode<synchronous>, transform_indices = @transform_22, window_bounds = array<i64: 2, 1, 32>}, {transform_indices = @transform_23, window_bounds = array<i64: 1, 8, 32>}]} {
    %c0 = arith.constant 0 : index
    %c0_0 = arith.constant 0 : index
    %c0_1 = arith.constant 0 : index
    %0 = vector.load %arg1[%c0, %c0_0, %c0_1] : memref<1x8x32xf32, #tpu.memory_space<vmem>>, vector<1x8x32xf32>
    %1 = vector.shape_cast %0 : vector<1x8x32xf32> to vector<8x32xf32>
    %c0_2 = arith.constant 0 : index
    %c0_3 = arith.constant 0 : index
    %c0_4 = arith.constant 0 : index
    %2 = vector.load %arg3[%c0_2, %c0_3, %c0_4] : memref<1x8x32xf32, #tpu.memory_space<vmem>>, vector<1x8x32xf32>
    %3 = vector.shape_cast %2 : vector<1x8x32xf32> to vector<8x32xf32>
    %4 = arith.addf %1, %3 : vector<8x32xf32>
    %c0_5 = arith.constant 0 : index
    %c0_6 = arith.constant 0 : index
    %c0_7 = arith.constant 0 : index
    %5 = vector.load %arg2[%c0_5, %c0_6, %c0_7] : memref<1x8x32xf32, #tpu.memory_space<vmem>>, vector<1x8x32xf32>
    %6 = vector.shape_cast %5 : vector<1x8x32xf32> to vector<8x32xf32>
    %7 = vector.shape_cast %6 : vector<8x32xf32> to vector<1x8x32xf32>
    %8 = vector.shape_cast %7 : vector<1x8x32xf32> to vector<1x8x32xf32>
    %9 = vector.broadcast %8 : vector<1x8x32xf32> to vector<4x8x32xf32>
    %10 = vector.shape_cast %4 : vector<8x32xf32> to vector<1x8x32xf32>
    %11 = vector.shape_cast %10 : vector<1x8x32xf32> to vector<1x8x32xf32>
    %12 = vector.broadcast %11 : vector<1x8x32xf32> to vector<4x8x32xf32>
    %c0_8 = arith.constant 0 : index
    %c0_9 = arith.constant 0 : index
    %c0_10 = arith.constant 0 : index
    %c0_11 = arith.constant 0 : index
    %13 = vector.load %arg4[%c0_8, %c0_9, %c0_10, %c0_11] : memref<2x4x32x8xf32, #tpu.memory_space<vmem>>, vector<1x4x32x8xf32>
    %14 = vector.shape_cast %13 : vector<1x4x32x8xf32> to vector<4x32x8xf32>
    %c0_12 = arith.constant 0 : index
    %c0_13 = arith.constant 0 : index
    %c0_14 = arith.constant 0 : index
    %c0_15 = arith.constant 0 : index
    %15 = vector.load %arg5[%c0_12, %c0_13, %c0_14, %c0_15] : memref<2x4x1x8xf32, #tpu.memory_space<vmem>>, vector<1x4x1x8xf32>
    %16 = vector.shape_cast %15 : vector<1x4x1x8xf32> to vector<4x1x8xf32>
    %c0_16 = arith.constant 0 : index
    %c0_17 = arith.constant 0 : index
    %c0_18 = arith.constant 0 : index
    %c0_19 = arith.constant 0 : index
    %17 = vector.load %arg6[%c0_16, %c0_17, %c0_18, %c0_19] : memref<2x4x32x8xf32, #tpu.memory_space<vmem>>, vector<1x4x32x8xf32>
    %18 = vector.shape_cast %17 : vector<1x4x32x8xf32> to vector<4x32x8xf32>
    %c0_20 = arith.constant 0 : index
    %c0_21 = arith.constant 0 : index
    %c0_22 = arith.constant 0 : index
    %c0_23 = arith.constant 0 : index
    %19 = vector.load %arg7[%c0_20, %c0_21, %c0_22, %c0_23] : memref<2x4x1x8xf32, #tpu.memory_space<vmem>>, vector<1x4x1x8xf32>
    %20 = vector.shape_cast %19 : vector<1x4x1x8xf32> to vector<4x1x8xf32>
    %c0_24 = arith.constant 0 : index
    %c0_25 = arith.constant 0 : index
    %c0_26 = arith.constant 0 : index
    %c0_27 = arith.constant 0 : index
    %21 = vector.load %arg8[%c0_24, %c0_25, %c0_26, %c0_27] : memref<2x4x32x8xf32, #tpu.memory_space<vmem>>, vector<1x4x32x8xf32>
    %22 = vector.shape_cast %21 : vector<1x4x32x8xf32> to vector<4x32x8xf32>
    %c0_28 = arith.constant 0 : index
    %c0_29 = arith.constant 0 : index
    %c0_30 = arith.constant 0 : index
    %c0_31 = arith.constant 0 : index
    %23 = vector.load %arg9[%c0_28, %c0_29, %c0_30, %c0_31] : memref<2x4x1x8xf32, #tpu.memory_space<vmem>>, vector<1x4x1x8xf32>
    %24 = vector.shape_cast %23 : vector<1x4x1x8xf32> to vector<4x1x8xf32>
    %c0_32 = arith.constant 0 : index
    %c0_33 = arith.constant 0 : index
    %c0_34 = arith.constant 0 : index
    %c0_35 = arith.constant 0 : index
    %25 = vector.load %arg10[%c0_32, %c0_33, %c0_34, %c0_35] : memref<2x4x8x32xf32, #tpu.memory_space<vmem>>, vector<1x4x8x32xf32>
    %26 = vector.shape_cast %25 : vector<1x4x8x32xf32> to vector<4x8x32xf32>
    %c0_36 = arith.constant 0 : index
    %c0_37 = arith.constant 0 : index
    %c0_38 = arith.constant 0 : index
    %27 = vector.load %arg11[%c0_36, %c0_37, %c0_38] : memref<2x1x32xf32, #tpu.memory_space<vmem>>, vector<1x1x32xf32>
    %28 = vector.shape_cast %27 : vector<1x1x32xf32> to vector<1x32xf32>
    "tpu.trace_start"() <{level = 10 : i32, message = "hqd,hde->hqe"}> : () -> ()
    %cst = arith.constant dense<0.000000e+00> : vector<4x8x8xf32>
    %29 = tpu.matmul %12, %14, %cst {dimension_numbers = #tpu.dot_dimension_numbers<[2], [1], [1], [2], [0, 0, 0, 1, 1, 2], [0], [0]>} : vector<4x8x32xf32>, vector<4x32x8xf32>, vector<4x8x8xf32> -> vector<4x8x8xf32>
    "tpu.trace_stop"() : () -> ()
    %30 = vector.broadcast %16 : vector<4x1x8xf32> to vector<4x8x8xf32>
    %31 = arith.addf %29, %30 : vector<4x8x8xf32>
    "tpu.trace_start"() <{level = 10 : i32, message = "hkd,hde->hke"}> : () -> ()
    %cst_39 = arith.constant dense<0.000000e+00> : vector<4x8x8xf32>
    %32 = tpu.matmul %12, %18, %cst_39 {dimension_numbers = #tpu.dot_dimension_numbers<[2], [1], [1], [2], [0, 0, 0, 1, 1, 2], [0], [0]>} : vector<4x8x32xf32>, vector<4x32x8xf32>, vector<4x8x8xf32> -> vector<4x8x8xf32>
    "tpu.trace_stop"() : () -> ()
    %33 = vector.broadcast %20 : vector<4x1x8xf32> to vector<4x8x8xf32>
    %34 = arith.addf %32, %33 : vector<4x8x8xf32>
    "tpu.trace_start"() <{level = 10 : i32, message = "hkd,hdv->hkv"}> : () -> ()
    %cst_40 = arith.constant dense<0.000000e+00> : vector<4x8x8xf32>
    %35 = tpu.matmul %12, %22, %cst_40 {dimension_numbers = #tpu.dot_dimension_numbers<[2], [1], [1], [2], [0, 0, 0, 1, 1, 2], [0], [0]>} : vector<4x8x32xf32>, vector<4x32x8xf32>, vector<4x8x8xf32> -> vector<4x8x8xf32>
    "tpu.trace_stop"() : () -> ()
    %36 = vector.broadcast %24 : vector<4x1x8xf32> to vector<4x8x8xf32>
    %37 = arith.addf %35, %36 : vector<4x8x8xf32>
    "tpu.trace_start"() <{level = 10 : i32, message = "hqe,hke->hqk"}> : () -> ()
    %cst_41 = arith.constant dense<0.000000e+00> : vector<4x8x8xf32>
    %38 = tpu.matmul %31, %34, %cst_41 {dimension_numbers = #tpu.dot_dimension_numbers<[2], [2], [1], [1], [0, 0, 0, 1, 1, 1], [0], [0]>} : vector<4x8x8xf32>, vector<4x8x8xf32>, vector<4x8x8xf32> -> vector<4x8x8xf32>
    "tpu.trace_stop"() : () -> ()
    %cst_42 = arith.constant 0.353553385 : f32
    %39 = vector.broadcast %cst_42 : f32 to vector<4x8x8xf32>
    %40 = arith.mulf %38, %39 : vector<4x8x8xf32>
    %cst_43 = arith.constant dense<0xFF800000> : vector<4x8xf32>
    %41 = vector.multi_reduction <maximumf>, %40, %cst_43 [2] : vector<4x8x8xf32> to vector<4x8xf32>
    %42 = vector.shape_cast %41 : vector<4x8xf32> to vector<4x8x1xf32>
    %43 = vector.broadcast %42 : vector<4x8x1xf32> to vector<4x8x8xf32>
    %44 = arith.subf %40, %43 : vector<4x8x8xf32>
    %45 = math.exp %44 : vector<4x8x8xf32>
    %cst_44 = arith.constant dense<0.000000e+00> : vector<4x8xf32>
    %46 = vector.multi_reduction <add>, %45, %cst_44 [2] : vector<4x8x8xf32> to vector<4x8xf32>
    %47 = vector.shape_cast %46 : vector<4x8xf32> to vector<4x8x1xf32>
    %48 = tpu.reciprocal %47 {approx = true} : vector<4x8x1xf32> -> vector<4x8x1xf32>
    %49 = vector.broadcast %48 : vector<4x8x1xf32> to vector<4x8x8xf32>
    %50 = arith.mulf %45, %49 : vector<4x8x8xf32>
    "tpu.trace_start"() <{level = 10 : i32, message = "hqk,hkv->hqv"}> : () -> ()
    %cst_45 = arith.constant dense<0.000000e+00> : vector<4x8x8xf32>
    %51 = tpu.matmul %50, %37, %cst_45 {dimension_numbers = #tpu.dot_dimension_numbers<[2], [1], [1], [2], [0, 0, 0, 1, 1, 2], [0], [0]>} : vector<4x8x8xf32>, vector<4x8x8xf32>, vector<4x8x8xf32> -> vector<4x8x8xf32>
    "tpu.trace_stop"() : () -> ()
    "tpu.trace_start"() <{level = 10 : i32, message = "hqv,hvd->hqd"}> : () -> ()
    %cst_46 = arith.constant dense<0.000000e+00> : vector<4x8x32xf32>
    %52 = tpu.matmul %51, %26, %cst_46 {dimension_numbers = #tpu.dot_dimension_numbers<[2], [1], [1], [2], [0, 0, 0, 1, 1, 2], [0], [0]>} : vector<4x8x8xf32>, vector<4x8x32xf32>, vector<4x8x32xf32> -> vector<4x8x32xf32>
    "tpu.trace_stop"() : () -> ()
    %cst_47 = arith.constant dense<0.000000e+00> : vector<8x32xf32>
    %53 = vector.multi_reduction <add>, %52, %cst_47 [0] : vector<4x8x32xf32> to vector<8x32xf32>
    %54 = vector.broadcast %28 : vector<1x32xf32> to vector<8x32xf32>
    %55 = arith.addf %53, %54 : vector<8x32xf32>
    %56 = arith.addf %4, %55 : vector<8x32xf32>
    %cst_48 = arith.constant dense<0.000000e+00> : vector<8xf32>
    %57 = vector.multi_reduction <add>, %56, %cst_48 [1] : vector<8x32xf32> to vector<8xf32>
    %58 = vector.shape_cast %57 : vector<8xf32> to vector<8x1xf32>
    %cst_49 = arith.constant 3.200000e+01 : f32
    %59 = vector.broadcast %cst_49 : f32 to vector<8x1xf32>
    %60 = arith.divf %58, %59 : vector<8x1xf32>
    %61 = vector.broadcast %60 : vector<8x1xf32> to vector<8x32xf32>
    %62 = arith.subf %56, %61 : vector<8x32xf32>
    %63 = arith.mulf %62, %62 : vector<8x32xf32>
    %cst_50 = arith.constant dense<0.000000e+00> : vector<8xf32>
    %64 = vector.multi_reduction <add>, %63, %cst_50 [1] : vector<8x32xf32> to vector<8xf32>
    %65 = vector.shape_cast %64 : vector<8xf32> to vector<8x1xf32>
    %cst_51 = arith.constant 3.200000e+01 : f32
    %66 = vector.broadcast %cst_51 : f32 to vector<8x1xf32>
    %67 = arith.divf %65, %66 : vector<8x1xf32>
    %68 = vector.broadcast %60 : vector<8x1xf32> to vector<8x32xf32>
    %69 = arith.subf %56, %68 : vector<8x32xf32>
    %cst_52 = arith.constant 9.99999974E-6 : f32
    %70 = vector.broadcast %cst_52 : f32 to vector<8x1xf32>
    %71 = arith.addf %67, %70 : vector<8x1xf32>
    %72 = math.rsqrt %71 : vector<8x1xf32>
    %73 = vector.broadcast %72 : vector<8x1xf32> to vector<8x32xf32>
    %74 = arith.mulf %69, %73 : vector<8x32xf32>
    %75 = vector.shape_cast %74 : vector<8x32xf32> to vector<1x8x32xf32>
    %76 = vector.shape_cast %75 : vector<1x8x32xf32> to vector<1x8x32xf32>
    %77 = vector.broadcast %76 : vector<1x8x32xf32> to vector<4x8x32xf32>
    %c0_53 = arith.constant 0 : index
    %c0_54 = arith.constant 0 : index
    %c0_55 = arith.constant 0 : index
    %c0_56 = arith.constant 0 : index
    %78 = vector.load %arg12[%c0_53, %c0_54, %c0_55, %c0_56] : memref<2x4x32x8xf32, #tpu.memory_space<vmem>>, vector<1x4x32x8xf32>
    %79 = vector.shape_cast %78 : vector<1x4x32x8xf32> to vector<4x32x8xf32>
    %c0_57 = arith.constant 0 : index
    %c0_58 = arith.constant 0 : index
    %c0_59 = arith.constant 0 : index
    %c0_60 = arith.constant 0 : index
    %80 = vector.load %arg13[%c0_57, %c0_58, %c0_59, %c0_60] : memref<2x4x1x8xf32, #tpu.memory_space<vmem>>, vector<1x4x1x8xf32>
    %81 = vector.shape_cast %80 : vector<1x4x1x8xf32> to vector<4x1x8xf32>
    %c0_61 = arith.constant 0 : index
    %c0_62 = arith.constant 0 : index
    %c0_63 = arith.constant 0 : index
    %c0_64 = arith.constant 0 : index
    %82 = vector.load %arg14[%c0_61, %c0_62, %c0_63, %c0_64] : memref<2x4x32x8xf32, #tpu.memory_space<vmem>>, vector<1x4x32x8xf32>
    %83 = vector.shape_cast %82 : vector<1x4x32x8xf32> to vector<4x32x8xf32>
    %c0_65 = arith.constant 0 : index
    %c0_66 = arith.constant 0 : index
    %c0_67 = arith.constant 0 : index
    %c0_68 = arith.constant 0 : index
    %84 = vector.load %arg15[%c0_65, %c0_66, %c0_67, %c0_68] : memref<2x4x1x8xf32, #tpu.memory_space<vmem>>, vector<1x4x1x8xf32>
    %85 = vector.shape_cast %84 : vector<1x4x1x8xf32> to vector<4x1x8xf32>
    %c0_69 = arith.constant 0 : index
    %c0_70 = arith.constant 0 : index
    %c0_71 = arith.constant 0 : index
    %c0_72 = arith.constant 0 : index
    %86 = vector.load %arg16[%c0_69, %c0_70, %c0_71, %c0_72] : memref<2x4x32x8xf32, #tpu.memory_space<vmem>>, vector<1x4x32x8xf32>
    %87 = vector.shape_cast %86 : vector<1x4x32x8xf32> to vector<4x32x8xf32>
    %c0_73 = arith.constant 0 : index
    %c0_74 = arith.constant 0 : index
    %c0_75 = arith.constant 0 : index
    %c0_76 = arith.constant 0 : index
    %88 = vector.load %arg17[%c0_73, %c0_74, %c0_75, %c0_76] : memref<2x4x1x8xf32, #tpu.memory_space<vmem>>, vector<1x4x1x8xf32>
    %89 = vector.shape_cast %88 : vector<1x4x1x8xf32> to vector<4x1x8xf32>
    %c0_77 = arith.constant 0 : index
    %c0_78 = arith.constant 0 : index
    %c0_79 = arith.constant 0 : index
    %c0_80 = arith.constant 0 : index
    %90 = vector.load %arg18[%c0_77, %c0_78, %c0_79, %c0_80] : memref<2x4x8x32xf32, #tpu.memory_space<vmem>>, vector<1x4x8x32xf32>
    %91 = vector.shape_cast %90 : vector<1x4x8x32xf32> to vector<4x8x32xf32>
    %c0_81 = arith.constant 0 : index
    %c0_82 = arith.constant 0 : index
    %c0_83 = arith.constant 0 : index
    %92 = vector.load %arg19[%c0_81, %c0_82, %c0_83] : memref<2x1x32xf32, #tpu.memory_space<vmem>>, vector<1x1x32xf32>
    %93 = vector.shape_cast %92 : vector<1x1x32xf32> to vector<1x32xf32>
    "tpu.trace_start"() <{level = 10 : i32, message = "hqd,hde->hqe"}> : () -> ()
    %cst_84 = arith.constant dense<0.000000e+00> : vector<4x8x8xf32>
    %94 = tpu.matmul %77, %79, %cst_84 {dimension_numbers = #tpu.dot_dimension_numbers<[2], [1], [1], [2], [0, 0, 0, 1, 1, 2], [0], [0]>} : vector<4x8x32xf32>, vector<4x32x8xf32>, vector<4x8x8xf32> -> vector<4x8x8xf32>
    "tpu.trace_stop"() : () -> ()
    %95 = vector.broadcast %81 : vector<4x1x8xf32> to vector<4x8x8xf32>
    %96 = arith.addf %94, %95 : vector<4x8x8xf32>
    "tpu.trace_start"() <{level = 10 : i32, message = "hkd,hde->hke"}> : () -> ()
    %cst_85 = arith.constant dense<0.000000e+00> : vector<4x8x8xf32>
    %97 = tpu.matmul %9, %83, %cst_85 {dimension_numbers = #tpu.dot_dimension_numbers<[2], [1], [1], [2], [0, 0, 0, 1, 1, 2], [0], [0]>} : vector<4x8x32xf32>, vector<4x32x8xf32>, vector<4x8x8xf32> -> vector<4x8x8xf32>
    "tpu.trace_stop"() : () -> ()
    %98 = vector.broadcast %85 : vector<4x1x8xf32> to vector<4x8x8xf32>
    %99 = arith.addf %97, %98 : vector<4x8x8xf32>
    "tpu.trace_start"() <{level = 10 : i32, message = "hkd,hdv->hkv"}> : () -> ()
    %cst_86 = arith.constant dense<0.000000e+00> : vector<4x8x8xf32>
    %100 = tpu.matmul %9, %87, %cst_86 {dimension_numbers = #tpu.dot_dimension_numbers<[2], [1], [1], [2], [0, 0, 0, 1, 1, 2], [0], [0]>} : vector<4x8x32xf32>, vector<4x32x8xf32>, vector<4x8x8xf32> -> vector<4x8x8xf32>
    "tpu.trace_stop"() : () -> ()
    %101 = vector.broadcast %89 : vector<4x1x8xf32> to vector<4x8x8xf32>
    %102 = arith.addf %100, %101 : vector<4x8x8xf32>
    "tpu.trace_start"() <{level = 10 : i32, message = "hqe,hke->hqk"}> : () -> ()
    %cst_87 = arith.constant dense<0.000000e+00> : vector<4x8x8xf32>
    %103 = tpu.matmul %96, %99, %cst_87 {dimension_numbers = #tpu.dot_dimension_numbers<[2], [2], [1], [1], [0, 0, 0, 1, 1, 1], [0], [0]>} : vector<4x8x8xf32>, vector<4x8x8xf32>, vector<4x8x8xf32> -> vector<4x8x8xf32>
    "tpu.trace_stop"() : () -> ()
    %cst_88 = arith.constant 0.353553385 : f32
    %104 = vector.broadcast %cst_88 : f32 to vector<4x8x8xf32>
    %105 = arith.mulf %103, %104 : vector<4x8x8xf32>
    %cst_89 = arith.constant dense<0xFF800000> : vector<4x8xf32>
    %106 = vector.multi_reduction <maximumf>, %105, %cst_89 [2] : vector<4x8x8xf32> to vector<4x8xf32>
    %107 = vector.shape_cast %106 : vector<4x8xf32> to vector<4x8x1xf32>
    %108 = vector.broadcast %107 : vector<4x8x1xf32> to vector<4x8x8xf32>
    %109 = arith.subf %105, %108 : vector<4x8x8xf32>
    %110 = math.exp %109 : vector<4x8x8xf32>
    %cst_90 = arith.constant dense<0.000000e+00> : vector<4x8xf32>
    %111 = vector.multi_reduction <add>, %110, %cst_90 [2] : vector<4x8x8xf32> to vector<4x8xf32>
    %112 = vector.shape_cast %111 : vector<4x8xf32> to vector<4x8x1xf32>
    %113 = tpu.reciprocal %112 {approx = true} : vector<4x8x1xf32> -> vector<4x8x1xf32>
    %114 = vector.broadcast %113 : vector<4x8x1xf32> to vector<4x8x8xf32>
    %115 = arith.mulf %110, %114 : vector<4x8x8xf32>
    "tpu.trace_start"() <{level = 10 : i32, message = "hqk,hkv->hqv"}> : () -> ()
    %cst_91 = arith.constant dense<0.000000e+00> : vector<4x8x8xf32>
    %116 = tpu.matmul %115, %102, %cst_91 {dimension_numbers = #tpu.dot_dimension_numbers<[2], [1], [1], [2], [0, 0, 0, 1, 1, 2], [0], [0]>} : vector<4x8x8xf32>, vector<4x8x8xf32>, vector<4x8x8xf32> -> vector<4x8x8xf32>
    "tpu.trace_stop"() : () -> ()
    "tpu.trace_start"() <{level = 10 : i32, message = "hqv,hvd->hqd"}> : () -> ()
    %cst_92 = arith.constant dense<0.000000e+00> : vector<4x8x32xf32>
    %117 = tpu.matmul %116, %91, %cst_92 {dimension_numbers = #tpu.dot_dimension_numbers<[2], [1], [1], [2], [0, 0, 0, 1, 1, 2], [0], [0]>} : vector<4x8x8xf32>, vector<4x8x32xf32>, vector<4x8x32xf32> -> vector<4x8x32xf32>
    "tpu.trace_stop"() : () -> ()
    %cst_93 = arith.constant dense<0.000000e+00> : vector<8x32xf32>
    %118 = vector.multi_reduction <add>, %117, %cst_93 [0] : vector<4x8x32xf32> to vector<8x32xf32>
    %119 = vector.broadcast %93 : vector<1x32xf32> to vector<8x32xf32>
    %120 = arith.addf %118, %119 : vector<8x32xf32>
    %121 = arith.addf %74, %120 : vector<8x32xf32>
    %cst_94 = arith.constant dense<0.000000e+00> : vector<8xf32>
    %122 = vector.multi_reduction <add>, %121, %cst_94 [1] : vector<8x32xf32> to vector<8xf32>
    %123 = vector.shape_cast %122 : vector<8xf32> to vector<8x1xf32>
    %cst_95 = arith.constant 3.200000e+01 : f32
    %124 = vector.broadcast %cst_95 : f32 to vector<8x1xf32>
    %125 = arith.divf %123, %124 : vector<8x1xf32>
    %126 = vector.broadcast %125 : vector<8x1xf32> to vector<8x32xf32>
    %127 = arith.subf %121, %126 : vector<8x32xf32>
    %128 = arith.mulf %127, %127 : vector<8x32xf32>
    %cst_96 = arith.constant dense<0.000000e+00> : vector<8xf32>
    %129 = vector.multi_reduction <add>, %128, %cst_96 [1] : vector<8x32xf32> to vector<8xf32>
    %130 = vector.shape_cast %129 : vector<8xf32> to vector<8x1xf32>
    %cst_97 = arith.constant 3.200000e+01 : f32
    %131 = vector.broadcast %cst_97 : f32 to vector<8x1xf32>
    %132 = arith.divf %130, %131 : vector<8x1xf32>
    %133 = vector.broadcast %125 : vector<8x1xf32> to vector<8x32xf32>
    %134 = arith.subf %121, %133 : vector<8x32xf32>
    %cst_98 = arith.constant 9.99999974E-6 : f32
    %135 = vector.broadcast %cst_98 : f32 to vector<8x1xf32>
    %136 = arith.addf %132, %135 : vector<8x1xf32>
    %137 = math.rsqrt %136 : vector<8x1xf32>
    %138 = vector.broadcast %137 : vector<8x1xf32> to vector<8x32xf32>
    %139 = arith.mulf %134, %138 : vector<8x32xf32>
    %c0_99 = arith.constant 0 : index
    %c0_100 = arith.constant 0 : index
    %c0_101 = arith.constant 0 : index
    %140 = vector.load %arg20[%c0_99, %c0_100, %c0_101] : memref<2x32x64xf32, #tpu.memory_space<vmem>>, vector<1x32x64xf32>
    %141 = vector.shape_cast %140 : vector<1x32x64xf32> to vector<32x64xf32>
    "tpu.trace_start"() <{level = 10 : i32, message = "qd,df->qf"}> : () -> ()
    %cst_102 = arith.constant dense<0.000000e+00> : vector<8x64xf32>
    %142 = tpu.matmul %139, %141, %cst_102 {dimension_numbers = #tpu.dot_dimension_numbers<[1], [0], [0], [1], [0, 0, 1, 1], [], []>} : vector<8x32xf32>, vector<32x64xf32>, vector<8x64xf32> -> vector<8x64xf32>
    "tpu.trace_stop"() : () -> ()
    %c0_103 = arith.constant 0 : index
    %c0_104 = arith.constant 0 : index
    %c0_105 = arith.constant 0 : index
    %143 = vector.load %arg21[%c0_103, %c0_104, %c0_105] : memref<2x1x64xf32, #tpu.memory_space<vmem>>, vector<1x1x64xf32>
    %144 = vector.shape_cast %143 : vector<1x1x64xf32> to vector<1x64xf32>
    %145 = vector.broadcast %144 : vector<1x64xf32> to vector<8x64xf32>
    %146 = arith.addf %142, %145 : vector<8x64xf32>
    %cst_106 = arith.constant 0.000000e+00 : f32
    %147 = vector.broadcast %cst_106 : f32 to vector<8x64xf32>
    %148 = arith.maximumf %146, %147 : vector<8x64xf32>
    %c0_107 = arith.constant 0 : index
    %c0_108 = arith.constant 0 : index
    %c0_109 = arith.constant 0 : index
    %149 = vector.load %arg22[%c0_107, %c0_108, %c0_109] : memref<2x64x32xf32, #tpu.memory_space<vmem>>, vector<1x64x32xf32>
    %150 = vector.shape_cast %149 : vector<1x64x32xf32> to vector<64x32xf32>
    "tpu.trace_start"() <{level = 10 : i32, message = "qf,fd->qd"}> : () -> ()
    %cst_110 = arith.constant dense<0.000000e+00> : vector<8x32xf32>
    %151 = tpu.matmul %148, %150, %cst_110 {dimension_numbers = #tpu.dot_dimension_numbers<[1], [0], [0], [1], [0, 0, 1, 1], [], []>} : vector<8x64xf32>, vector<64x32xf32>, vector<8x32xf32> -> vector<8x32xf32>
    "tpu.trace_stop"() : () -> ()
    %c0_111 = arith.constant 0 : index
    %c0_112 = arith.constant 0 : index
    %c0_113 = arith.constant 0 : index
    %152 = vector.load %arg23[%c0_111, %c0_112, %c0_113] : memref<2x1x32xf32, #tpu.memory_space<vmem>>, vector<1x1x32xf32>
    %153 = vector.shape_cast %152 : vector<1x1x32xf32> to vector<1x32xf32>
    %154 = vector.broadcast %153 : vector<1x32xf32> to vector<8x32xf32>
    %155 = arith.addf %151, %154 : vector<8x32xf32>
    %156 = arith.addf %139, %155 : vector<8x32xf32>
    %cst_114 = arith.constant dense<0.000000e+00> : vector<8xf32>
    %157 = vector.multi_reduction <add>, %156, %cst_114 [1] : vector<8x32xf32> to vector<8xf32>
    %158 = vector.shape_cast %157 : vector<8xf32> to vector<8x1xf32>
    %cst_115 = arith.constant 3.200000e+01 : f32
    %159 = vector.broadcast %cst_115 : f32 to vector<8x1xf32>
    %160 = arith.divf %158, %159 : vector<8x1xf32>
    %161 = vector.broadcast %160 : vector<8x1xf32> to vector<8x32xf32>
    %162 = arith.subf %156, %161 : vector<8x32xf32>
    %163 = arith.mulf %162, %162 : vector<8x32xf32>
    %cst_116 = arith.constant dense<0.000000e+00> : vector<8xf32>
    %164 = vector.multi_reduction <add>, %163, %cst_116 [1] : vector<8x32xf32> to vector<8xf32>
    %165 = vector.shape_cast %164 : vector<8xf32> to vector<8x1xf32>
    %cst_117 = arith.constant 3.200000e+01 : f32
    %166 = vector.broadcast %cst_117 : f32 to vector<8x1xf32>
    %167 = arith.divf %165, %166 : vector<8x1xf32>
    %168 = vector.broadcast %160 : vector<8x1xf32> to vector<8x32xf32>
    %169 = arith.subf %156, %168 : vector<8x32xf32>
    %cst_118 = arith.constant 9.99999974E-6 : f32
    %170 = vector.broadcast %cst_118 : f32 to vector<8x1xf32>
    %171 = arith.addf %167, %170 : vector<8x1xf32>
    %172 = math.rsqrt %171 : vector<8x1xf32>
    %173 = vector.broadcast %172 : vector<8x1xf32> to vector<8x32xf32>
    %174 = arith.mulf %169, %173 : vector<8x32xf32>
    %175 = vector.shape_cast %174 : vector<8x32xf32> to vector<1x8x32xf32>
    %176 = vector.shape_cast %175 : vector<1x8x32xf32> to vector<1x8x32xf32>
    %177 = vector.broadcast %176 : vector<1x8x32xf32> to vector<4x8x32xf32>
    %c1 = arith.constant 1 : index
    %c0_119 = arith.constant 0 : index
    %c0_120 = arith.constant 0 : index
    %c0_121 = arith.constant 0 : index
    %178 = vector.load %arg4[%c1, %c0_119, %c0_120, %c0_121] : memref<2x4x32x8xf32, #tpu.memory_space<vmem>>, vector<1x4x32x8xf32>
    %179 = vector.shape_cast %178 : vector<1x4x32x8xf32> to vector<4x32x8xf32>
    %c1_122 = arith.constant 1 : index
    %c0_123 = arith.constant 0 : index
    %c0_124 = arith.constant 0 : index
    %c0_125 = arith.constant 0 : index
    %180 = vector.load %arg5[%c1_122, %c0_123, %c0_124, %c0_125] : memref<2x4x1x8xf32, #tpu.memory_space<vmem>>, vector<1x4x1x8xf32>
    %181 = vector.shape_cast %180 : vector<1x4x1x8xf32> to vector<4x1x8xf32>
    %c1_126 = arith.constant 1 : index
    %c0_127 = arith.constant 0 : index
    %c0_128 = arith.constant 0 : index
    %c0_129 = arith.constant 0 : index
    %182 = vector.load %arg6[%c1_126, %c0_127, %c0_128, %c0_129] : memref<2x4x32x8xf32, #tpu.memory_space<vmem>>, vector<1x4x32x8xf32>
    %183 = vector.shape_cast %182 : vector<1x4x32x8xf32> to vector<4x32x8xf32>
    %c1_130 = arith.constant 1 : index
    %c0_131 = arith.constant 0 : index
    %c0_132 = arith.constant 0 : index
    %c0_133 = arith.constant 0 : index
    %184 = vector.load %arg7[%c1_130, %c0_131, %c0_132, %c0_133] : memref<2x4x1x8xf32, #tpu.memory_space<vmem>>, vector<1x4x1x8xf32>
    %185 = vector.shape_cast %184 : vector<1x4x1x8xf32> to vector<4x1x8xf32>
    %c1_134 = arith.constant 1 : index
    %c0_135 = arith.constant 0 : index
    %c0_136 = arith.constant 0 : index
    %c0_137 = arith.constant 0 : index
    %186 = vector.load %arg8[%c1_134, %c0_135, %c0_136, %c0_137] : memref<2x4x32x8xf32, #tpu.memory_space<vmem>>, vector<1x4x32x8xf32>
    %187 = vector.shape_cast %186 : vector<1x4x32x8xf32> to vector<4x32x8xf32>
    %c1_138 = arith.constant 1 : index
    %c0_139 = arith.constant 0 : index
    %c0_140 = arith.constant 0 : index
    %c0_141 = arith.constant 0 : index
    %188 = vector.load %arg9[%c1_138, %c0_139, %c0_140, %c0_141] : memref<2x4x1x8xf32, #tpu.memory_space<vmem>>, vector<1x4x1x8xf32>
    %189 = vector.shape_cast %188 : vector<1x4x1x8xf32> to vector<4x1x8xf32>
    %c1_142 = arith.constant 1 : index
    %c0_143 = arith.constant 0 : index
    %c0_144 = arith.constant 0 : index
    %c0_145 = arith.constant 0 : index
    %190 = vector.load %arg10[%c1_142, %c0_143, %c0_144, %c0_145] : memref<2x4x8x32xf32, #tpu.memory_space<vmem>>, vector<1x4x8x32xf32>
    %191 = vector.shape_cast %190 : vector<1x4x8x32xf32> to vector<4x8x32xf32>
    %c1_146 = arith.constant 1 : index
    %c0_147 = arith.constant 0 : index
    %c0_148 = arith.constant 0 : index
    %192 = vector.load %arg11[%c1_146, %c0_147, %c0_148] : memref<2x1x32xf32, #tpu.memory_space<vmem>>, vector<1x1x32xf32>
    %193 = vector.shape_cast %192 : vector<1x1x32xf32> to vector<1x32xf32>
    "tpu.trace_start"() <{level = 10 : i32, message = "hqd,hde->hqe"}> : () -> ()
    %cst_149 = arith.constant dense<0.000000e+00> : vector<4x8x8xf32>
    %194 = tpu.matmul %177, %179, %cst_149 {dimension_numbers = #tpu.dot_dimension_numbers<[2], [1], [1], [2], [0, 0, 0, 1, 1, 2], [0], [0]>} : vector<4x8x32xf32>, vector<4x32x8xf32>, vector<4x8x8xf32> -> vector<4x8x8xf32>
    "tpu.trace_stop"() : () -> ()
    %195 = vector.broadcast %181 : vector<4x1x8xf32> to vector<4x8x8xf32>
    %196 = arith.addf %194, %195 : vector<4x8x8xf32>
    "tpu.trace_start"() <{level = 10 : i32, message = "hkd,hde->hke"}> : () -> ()
    %cst_150 = arith.constant dense<0.000000e+00> : vector<4x8x8xf32>
    %197 = tpu.matmul %177, %183, %cst_150 {dimension_numbers = #tpu.dot_dimension_numbers<[2], [1], [1], [2], [0, 0, 0, 1, 1, 2], [0], [0]>} : vector<4x8x32xf32>, vector<4x32x8xf32>, vector<4x8x8xf32> -> vector<4x8x8xf32>
    "tpu.trace_stop"() : () -> ()
    %198 = vector.broadcast %185 : vector<4x1x8xf32> to vector<4x8x8xf32>
    %199 = arith.addf %197, %198 : vector<4x8x8xf32>
    "tpu.trace_start"() <{level = 10 : i32, message = "hkd,hdv->hkv"}> : () -> ()
    %cst_151 = arith.constant dense<0.000000e+00> : vector<4x8x8xf32>
    %200 = tpu.matmul %177, %187, %cst_151 {dimension_numbers = #tpu.dot_dimension_numbers<[2], [1], [1], [2], [0, 0, 0, 1, 1, 2], [0], [0]>} : vector<4x8x32xf32>, vector<4x32x8xf32>, vector<4x8x8xf32> -> vector<4x8x8xf32>
    "tpu.trace_stop"() : () -> ()
    %201 = vector.broadcast %189 : vector<4x1x8xf32> to vector<4x8x8xf32>
    %202 = arith.addf %200, %201 : vector<4x8x8xf32>
    "tpu.trace_start"() <{level = 10 : i32, message = "hqe,hke->hqk"}> : () -> ()
    %cst_152 = arith.constant dense<0.000000e+00> : vector<4x8x8xf32>
    %203 = tpu.matmul %196, %199, %cst_152 {dimension_numbers = #tpu.dot_dimension_numbers<[2], [2], [1], [1], [0, 0, 0, 1, 1, 1], [0], [0]>} : vector<4x8x8xf32>, vector<4x8x8xf32>, vector<4x8x8xf32> -> vector<4x8x8xf32>
    "tpu.trace_stop"() : () -> ()
    %cst_153 = arith.constant 0.353553385 : f32
    %204 = vector.broadcast %cst_153 : f32 to vector<4x8x8xf32>
    %205 = arith.mulf %203, %204 : vector<4x8x8xf32>
    %cst_154 = arith.constant dense<0xFF800000> : vector<4x8xf32>
    %206 = vector.multi_reduction <maximumf>, %205, %cst_154 [2] : vector<4x8x8xf32> to vector<4x8xf32>
    %207 = vector.shape_cast %206 : vector<4x8xf32> to vector<4x8x1xf32>
    %208 = vector.broadcast %207 : vector<4x8x1xf32> to vector<4x8x8xf32>
    %209 = arith.subf %205, %208 : vector<4x8x8xf32>
    %210 = math.exp %209 : vector<4x8x8xf32>
    %cst_155 = arith.constant dense<0.000000e+00> : vector<4x8xf32>
    %211 = vector.multi_reduction <add>, %210, %cst_155 [2] : vector<4x8x8xf32> to vector<4x8xf32>
    %212 = vector.shape_cast %211 : vector<4x8xf32> to vector<4x8x1xf32>
    %213 = tpu.reciprocal %212 {approx = true} : vector<4x8x1xf32> -> vector<4x8x1xf32>
    %214 = vector.broadcast %213 : vector<4x8x1xf32> to vector<4x8x8xf32>
    %215 = arith.mulf %210, %214 : vector<4x8x8xf32>
    "tpu.trace_start"() <{level = 10 : i32, message = "hqk,hkv->hqv"}> : () -> ()
    %cst_156 = arith.constant dense<0.000000e+00> : vector<4x8x8xf32>
    %216 = tpu.matmul %215, %202, %cst_156 {dimension_numbers = #tpu.dot_dimension_numbers<[2], [1], [1], [2], [0, 0, 0, 1, 1, 2], [0], [0]>} : vector<4x8x8xf32>, vector<4x8x8xf32>, vector<4x8x8xf32> -> vector<4x8x8xf32>
    "tpu.trace_stop"() : () -> ()
    "tpu.trace_start"() <{level = 10 : i32, message = "hqv,hvd->hqd"}> : () -> ()
    %cst_157 = arith.constant dense<0.000000e+00> : vector<4x8x32xf32>
    %217 = tpu.matmul %216, %191, %cst_157 {dimension_numbers = #tpu.dot_dimension_numbers<[2], [1], [1], [2], [0, 0, 0, 1, 1, 2], [0], [0]>} : vector<4x8x8xf32>, vector<4x8x32xf32>, vector<4x8x32xf32> -> vector<4x8x32xf32>
    "tpu.trace_stop"() : () -> ()
    %cst_158 = arith.constant dense<0.000000e+00> : vector<8x32xf32>
    %218 = vector.multi_reduction <add>, %217, %cst_158 [0] : vector<4x8x32xf32> to vector<8x32xf32>
    %219 = vector.broadcast %193 : vector<1x32xf32> to vector<8x32xf32>
    %220 = arith.addf %218, %219 : vector<8x32xf32>
    %221 = arith.addf %174, %220 : vector<8x32xf32>
    %cst_159 = arith.constant dense<0.000000e+00> : vector<8xf32>
    %222 = vector.multi_reduction <add>, %221, %cst_159 [1] : vector<8x32xf32> to vector<8xf32>
    %223 = vector.shape_cast %222 : vector<8xf32> to vector<8x1xf32>
    %cst_160 = arith.constant 3.200000e+01 : f32
    %224 = vector.broadcast %cst_160 : f32 to vector<8x1xf32>
    %225 = arith.divf %223, %224 : vector<8x1xf32>
    %226 = vector.broadcast %225 : vector<8x1xf32> to vector<8x32xf32>
    %227 = arith.subf %221, %226 : vector<8x32xf32>
    %228 = arith.mulf %227, %227 : vector<8x32xf32>
    %cst_161 = arith.constant dense<0.000000e+00> : vector<8xf32>
    %229 = vector.multi_reduction <add>, %228, %cst_161 [1] : vector<8x32xf32> to vector<8xf32>
    %230 = vector.shape_cast %229 : vector<8xf32> to vector<8x1xf32>
    %cst_162 = arith.constant 3.200000e+01 : f32
    %231 = vector.broadcast %cst_162 : f32 to vector<8x1xf32>
    %232 = arith.divf %230, %231 : vector<8x1xf32>
    %233 = vector.broadcast %225 : vector<8x1xf32> to vector<8x32xf32>
    %234 = arith.subf %221, %233 : vector<8x32xf32>
    %cst_163 = arith.constant 9.99999974E-6 : f32
    %235 = vector.broadcast %cst_163 : f32 to vector<8x1xf32>
    %236 = arith.addf %232, %235 : vector<8x1xf32>
    %237 = math.rsqrt %236 : vector<8x1xf32>
    %238 = vector.broadcast %237 : vector<8x1xf32> to vector<8x32xf32>
    %239 = arith.mulf %234, %238 : vector<8x32xf32>
    %240 = vector.shape_cast %239 : vector<8x32xf32> to vector<1x8x32xf32>
    %241 = vector.shape_cast %240 : vector<1x8x32xf32> to vector<1x8x32xf32>
    %242 = vector.broadcast %241 : vector<1x8x32xf32> to vector<4x8x32xf32>
    %c1_164 = arith.constant 1 : index
    %c0_165 = arith.constant 0 : index
    %c0_166 = arith.constant 0 : index
    %c0_167 = arith.constant 0 : index
    %243 = vector.load %arg12[%c1_164, %c0_165, %c0_166, %c0_167] : memref<2x4x32x8xf32, #tpu.memory_space<vmem>>, vector<1x4x32x8xf32>
    %244 = vector.shape_cast %243 : vector<1x4x32x8xf32> to vector<4x32x8xf32>
    %c1_168 = arith.constant 1 : index
    %c0_169 = arith.constant 0 : index
    %c0_170 = arith.constant 0 : index
    %c0_171 = arith.constant 0 : index
    %245 = vector.load %arg13[%c1_168, %c0_169, %c0_170, %c0_171] : memref<2x4x1x8xf32, #tpu.memory_space<vmem>>, vector<1x4x1x8xf32>
    %246 = vector.shape_cast %245 : vector<1x4x1x8xf32> to vector<4x1x8xf32>
    %c1_172 = arith.constant 1 : index
    %c0_173 = arith.constant 0 : index
    %c0_174 = arith.constant 0 : index
    %c0_175 = arith.constant 0 : index
    %247 = vector.load %arg14[%c1_172, %c0_173, %c0_174, %c0_175] : memref<2x4x32x8xf32, #tpu.memory_space<vmem>>, vector<1x4x32x8xf32>
    %248 = vector.shape_cast %247 : vector<1x4x32x8xf32> to vector<4x32x8xf32>
    %c1_176 = arith.constant 1 : index
    %c0_177 = arith.constant 0 : index
    %c0_178 = arith.constant 0 : index
    %c0_179 = arith.constant 0 : index
    %249 = vector.load %arg15[%c1_176, %c0_177, %c0_178, %c0_179] : memref<2x4x1x8xf32, #tpu.memory_space<vmem>>, vector<1x4x1x8xf32>
    %250 = vector.shape_cast %249 : vector<1x4x1x8xf32> to vector<4x1x8xf32>
    %c1_180 = arith.constant 1 : index
    %c0_181 = arith.constant 0 : index
    %c0_182 = arith.constant 0 : index
    %c0_183 = arith.constant 0 : index
    %251 = vector.load %arg16[%c1_180, %c0_181, %c0_182, %c0_183] : memref<2x4x32x8xf32, #tpu.memory_space<vmem>>, vector<1x4x32x8xf32>
    %252 = vector.shape_cast %251 : vector<1x4x32x8xf32> to vector<4x32x8xf32>
    %c1_184 = arith.constant 1 : index
    %c0_185 = arith.constant 0 : index
    %c0_186 = arith.constant 0 : index
    %c0_187 = arith.constant 0 : index
    %253 = vector.load %arg17[%c1_184, %c0_185, %c0_186, %c0_187] : memref<2x4x1x8xf32, #tpu.memory_space<vmem>>, vector<1x4x1x8xf32>
    %254 = vector.shape_cast %253 : vector<1x4x1x8xf32> to vector<4x1x8xf32>
    %c1_188 = arith.constant 1 : index
    %c0_189 = arith.constant 0 : index
    %c0_190 = arith.constant 0 : index
    %c0_191 = arith.constant 0 : index
    %255 = vector.load %arg18[%c1_188, %c0_189, %c0_190, %c0_191] : memref<2x4x8x32xf32, #tpu.memory_space<vmem>>, vector<1x4x8x32xf32>
    %256 = vector.shape_cast %255 : vector<1x4x8x32xf32> to vector<4x8x32xf32>
    %c1_192 = arith.constant 1 : index
    %c0_193 = arith.constant 0 : index
    %c0_194 = arith.constant 0 : index
    %257 = vector.load %arg19[%c1_192, %c0_193, %c0_194] : memref<2x1x32xf32, #tpu.memory_space<vmem>>, vector<1x1x32xf32>
    %258 = vector.shape_cast %257 : vector<1x1x32xf32> to vector<1x32xf32>
    "tpu.trace_start"() <{level = 10 : i32, message = "hqd,hde->hqe"}> : () -> ()
    %cst_195 = arith.constant dense<0.000000e+00> : vector<4x8x8xf32>
    %259 = tpu.matmul %242, %244, %cst_195 {dimension_numbers = #tpu.dot_dimension_numbers<[2], [1], [1], [2], [0, 0, 0, 1, 1, 2], [0], [0]>} : vector<4x8x32xf32>, vector<4x32x8xf32>, vector<4x8x8xf32> -> vector<4x8x8xf32>
    "tpu.trace_stop"() : () -> ()
    %260 = vector.broadcast %246 : vector<4x1x8xf32> to vector<4x8x8xf32>
    %261 = arith.addf %259, %260 : vector<4x8x8xf32>
    "tpu.trace_start"() <{level = 10 : i32, message = "hkd,hde->hke"}> : () -> ()
    %cst_196 = arith.constant dense<0.000000e+00> : vector<4x8x8xf32>
    %262 = tpu.matmul %9, %248, %cst_196 {dimension_numbers = #tpu.dot_dimension_numbers<[2], [1], [1], [2], [0, 0, 0, 1, 1, 2], [0], [0]>} : vector<4x8x32xf32>, vector<4x32x8xf32>, vector<4x8x8xf32> -> vector<4x8x8xf32>
    "tpu.trace_stop"() : () -> ()
    %263 = vector.broadcast %250 : vector<4x1x8xf32> to vector<4x8x8xf32>
    %264 = arith.addf %262, %263 : vector<4x8x8xf32>
    "tpu.trace_start"() <{level = 10 : i32, message = "hkd,hdv->hkv"}> : () -> ()
    %cst_197 = arith.constant dense<0.000000e+00> : vector<4x8x8xf32>
    %265 = tpu.matmul %9, %252, %cst_197 {dimension_numbers = #tpu.dot_dimension_numbers<[2], [1], [1], [2], [0, 0, 0, 1, 1, 2], [0], [0]>} : vector<4x8x32xf32>, vector<4x32x8xf32>, vector<4x8x8xf32> -> vector<4x8x8xf32>
    "tpu.trace_stop"() : () -> ()
    %266 = vector.broadcast %254 : vector<4x1x8xf32> to vector<4x8x8xf32>
    %267 = arith.addf %265, %266 : vector<4x8x8xf32>
    "tpu.trace_start"() <{level = 10 : i32, message = "hqe,hke->hqk"}> : () -> ()
    %cst_198 = arith.constant dense<0.000000e+00> : vector<4x8x8xf32>
    %268 = tpu.matmul %261, %264, %cst_198 {dimension_numbers = #tpu.dot_dimension_numbers<[2], [2], [1], [1], [0, 0, 0, 1, 1, 1], [0], [0]>} : vector<4x8x8xf32>, vector<4x8x8xf32>, vector<4x8x8xf32> -> vector<4x8x8xf32>
    "tpu.trace_stop"() : () -> ()
    %cst_199 = arith.constant 0.353553385 : f32
    %269 = vector.broadcast %cst_199 : f32 to vector<4x8x8xf32>
    %270 = arith.mulf %268, %269 : vector<4x8x8xf32>
    %cst_200 = arith.constant dense<0xFF800000> : vector<4x8xf32>
    %271 = vector.multi_reduction <maximumf>, %270, %cst_200 [2] : vector<4x8x8xf32> to vector<4x8xf32>
    %272 = vector.shape_cast %271 : vector<4x8xf32> to vector<4x8x1xf32>
    %273 = vector.broadcast %272 : vector<4x8x1xf32> to vector<4x8x8xf32>
    %274 = arith.subf %270, %273 : vector<4x8x8xf32>
    %275 = math.exp %274 : vector<4x8x8xf32>
    %cst_201 = arith.constant dense<0.000000e+00> : vector<4x8xf32>
    %276 = vector.multi_reduction <add>, %275, %cst_201 [2] : vector<4x8x8xf32> to vector<4x8xf32>
    %277 = vector.shape_cast %276 : vector<4x8xf32> to vector<4x8x1xf32>
    %278 = tpu.reciprocal %277 {approx = true} : vector<4x8x1xf32> -> vector<4x8x1xf32>
    %279 = vector.broadcast %278 : vector<4x8x1xf32> to vector<4x8x8xf32>
    %280 = arith.mulf %275, %279 : vector<4x8x8xf32>
    "tpu.trace_start"() <{level = 10 : i32, message = "hqk,hkv->hqv"}> : () -> ()
    %cst_202 = arith.constant dense<0.000000e+00> : vector<4x8x8xf32>
    %281 = tpu.matmul %280, %267, %cst_202 {dimension_numbers = #tpu.dot_dimension_numbers<[2], [1], [1], [2], [0, 0, 0, 1, 1, 2], [0], [0]>} : vector<4x8x8xf32>, vector<4x8x8xf32>, vector<4x8x8xf32> -> vector<4x8x8xf32>
    "tpu.trace_stop"() : () -> ()
    "tpu.trace_start"() <{level = 10 : i32, message = "hqv,hvd->hqd"}> : () -> ()
    %cst_203 = arith.constant dense<0.000000e+00> : vector<4x8x32xf32>
    %282 = tpu.matmul %281, %256, %cst_203 {dimension_numbers = #tpu.dot_dimension_numbers<[2], [1], [1], [2], [0, 0, 0, 1, 1, 2], [0], [0]>} : vector<4x8x8xf32>, vector<4x8x32xf32>, vector<4x8x32xf32> -> vector<4x8x32xf32>
    "tpu.trace_stop"() : () -> ()
    %cst_204 = arith.constant dense<0.000000e+00> : vector<8x32xf32>
    %283 = vector.multi_reduction <add>, %282, %cst_204 [0] : vector<4x8x32xf32> to vector<8x32xf32>
    %284 = vector.broadcast %258 : vector<1x32xf32> to vector<8x32xf32>
    %285 = arith.addf %283, %284 : vector<8x32xf32>
    %286 = arith.addf %239, %285 : vector<8x32xf32>
    %cst_205 = arith.constant dense<0.000000e+00> : vector<8xf32>
    %287 = vector.multi_reduction <add>, %286, %cst_205 [1] : vector<8x32xf32> to vector<8xf32>
    %288 = vector.shape_cast %287 : vector<8xf32> to vector<8x1xf32>
    %cst_206 = arith.constant 3.200000e+01 : f32
    %289 = vector.broadcast %cst_206 : f32 to vector<8x1xf32>
    %290 = arith.divf %288, %289 : vector<8x1xf32>
    %291 = vector.broadcast %290 : vector<8x1xf32> to vector<8x32xf32>
    %292 = arith.subf %286, %291 : vector<8x32xf32>
    %293 = arith.mulf %292, %292 : vector<8x32xf32>
    %cst_207 = arith.constant dense<0.000000e+00> : vector<8xf32>
    %294 = vector.multi_reduction <add>, %293, %cst_207 [1] : vector<8x32xf32> to vector<8xf32>
    %295 = vector.shape_cast %294 : vector<8xf32> to vector<8x1xf32>
    %cst_208 = arith.constant 3.200000e+01 : f32
    %296 = vector.broadcast %cst_208 : f32 to vector<8x1xf32>
    %297 = arith.divf %295, %296 : vector<8x1xf32>
    %298 = vector.broadcast %290 : vector<8x1xf32> to vector<8x32xf32>
    %299 = arith.subf %286, %298 : vector<8x32xf32>
    %cst_209 = arith.constant 9.99999974E-6 : f32
    %300 = vector.broadcast %cst_209 : f32 to vector<8x1xf32>
    %301 = arith.addf %297, %300 : vector<8x1xf32>
    %302 = math.rsqrt %301 : vector<8x1xf32>
    %303 = vector.broadcast %302 : vector<8x1xf32> to vector<8x32xf32>
    %304 = arith.mulf %299, %303 : vector<8x32xf32>
    %c1_210 = arith.constant 1 : index
    %c0_211 = arith.constant 0 : index
    %c0_212 = arith.constant 0 : index
    %305 = vector.load %arg20[%c1_210, %c0_211, %c0_212] : memref<2x32x64xf32, #tpu.memory_space<vmem>>, vector<1x32x64xf32>
    %306 = vector.shape_cast %305 : vector<1x32x64xf32> to vector<32x64xf32>
    "tpu.trace_start"() <{level = 10 : i32, message = "qd,df->qf"}> : () -> ()
    %cst_213 = arith.constant dense<0.000000e+00> : vector<8x64xf32>
    %307 = tpu.matmul %304, %306, %cst_213 {dimension_numbers = #tpu.dot_dimension_numbers<[1], [0], [0], [1], [0, 0, 1, 1], [], []>} : vector<8x32xf32>, vector<32x64xf32>, vector<8x64xf32> -> vector<8x64xf32>
    "tpu.trace_stop"() : () -> ()
    %c1_214 = arith.constant 1 : index
    %c0_215 = arith.constant 0 : index
    %c0_216 = arith.constant 0 : index
    %308 = vector.load %arg21[%c1_214, %c0_215, %c0_216] : memref<2x1x64xf32, #tpu.memory_space<vmem>>, vector<1x1x64xf32>
    %309 = vector.shape_cast %308 : vector<1x1x64xf32> to vector<1x64xf32>
    %310 = vector.broadcast %309 : vector<1x64xf32> to vector<8x64xf32>
    %311 = arith.addf %307, %310 : vector<8x64xf32>
    %cst_217 = arith.constant 0.000000e+00 : f32
    %312 = vector.broadcast %cst_217 : f32 to vector<8x64xf32>
    %313 = arith.maximumf %311, %312 : vector<8x64xf32>
    %c1_218 = arith.constant 1 : index
    %c0_219 = arith.constant 0 : index
    %c0_220 = arith.constant 0 : index
    %314 = vector.load %arg22[%c1_218, %c0_219, %c0_220] : memref<2x64x32xf32, #tpu.memory_space<vmem>>, vector<1x64x32xf32>
    %315 = vector.shape_cast %314 : vector<1x64x32xf32> to vector<64x32xf32>
    "tpu.trace_start"() <{level = 10 : i32, message = "qf,fd->qd"}> : () -> ()
    %cst_221 = arith.constant dense<0.000000e+00> : vector<8x32xf32>
    %316 = tpu.matmul %313, %315, %cst_221 {dimension_numbers = #tpu.dot_dimension_numbers<[1], [0], [0], [1], [0, 0, 1, 1], [], []>} : vector<8x64xf32>, vector<64x32xf32>, vector<8x32xf32> -> vector<8x32xf32>
    "tpu.trace_stop"() : () -> ()
    %c1_222 = arith.constant 1 : index
    %c0_223 = arith.constant 0 : index
    %c0_224 = arith.constant 0 : index
    %317 = vector.load %arg23[%c1_222, %c0_223, %c0_224] : memref<2x1x32xf32, #tpu.memory_space<vmem>>, vector<1x1x32xf32>
    %318 = vector.shape_cast %317 : vector<1x1x32xf32> to vector<1x32xf32>
    %319 = vector.broadcast %318 : vector<1x32xf32> to vector<8x32xf32>
    %320 = arith.addf %316, %319 : vector<8x32xf32>
    %321 = arith.addf %304, %320 : vector<8x32xf32>
    %cst_225 = arith.constant dense<0.000000e+00> : vector<8xf32>
    %322 = vector.multi_reduction <add>, %321, %cst_225 [1] : vector<8x32xf32> to vector<8xf32>
    %323 = vector.shape_cast %322 : vector<8xf32> to vector<8x1xf32>
    %cst_226 = arith.constant 3.200000e+01 : f32
    %324 = vector.broadcast %cst_226 : f32 to vector<8x1xf32>
    %325 = arith.divf %323, %324 : vector<8x1xf32>
    %326 = vector.broadcast %325 : vector<8x1xf32> to vector<8x32xf32>
    %327 = arith.subf %321, %326 : vector<8x32xf32>
    %328 = arith.mulf %327, %327 : vector<8x32xf32>
    %cst_227 = arith.constant dense<0.000000e+00> : vector<8xf32>
    %329 = vector.multi_reduction <add>, %328, %cst_227 [1] : vector<8x32xf32> to vector<8xf32>
    %330 = vector.shape_cast %329 : vector<8xf32> to vector<8x1xf32>
    %cst_228 = arith.constant 3.200000e+01 : f32
    %331 = vector.broadcast %cst_228 : f32 to vector<8x1xf32>
    %332 = arith.divf %330, %331 : vector<8x1xf32>
    %333 = vector.broadcast %325 : vector<8x1xf32> to vector<8x32xf32>
    %334 = arith.subf %321, %333 : vector<8x32xf32>
    %cst_229 = arith.constant 9.99999974E-6 : f32
    %335 = vector.broadcast %cst_229 : f32 to vector<8x1xf32>
    %336 = arith.addf %332, %335 : vector<8x1xf32>
    %337 = math.rsqrt %336 : vector<8x1xf32>
    %338 = vector.broadcast %337 : vector<8x1xf32> to vector<8x32xf32>
    %339 = arith.mulf %334, %338 : vector<8x32xf32>
    %c0_230 = arith.constant 0 : index
    %c0_231 = arith.constant 0 : index
    %c0_232 = arith.constant 0 : index
    %340 = vector.load %arg24[%c0_230, %c0_231, %c0_232] : memref<1x8x32xf32, #tpu.memory_space<vmem>>, vector<1x8x32xf32>
    %341 = vector.shape_cast %340 : vector<1x8x32xf32> to vector<8x32xf32>
    %342 = vector.shape_cast %339 : vector<8x32xf32> to vector<1x8x32xf32>
    tpu.vector_store %arg24[%c0_230, %c0_231, %c0_232], %342 {strides = array<i32>} : memref<1x8x32xf32, #tpu.memory_space<vmem>>, vector<1x8x32xf32>,
    return
  }
  func.func @transform_0(%arg0: i32) -> (i32, i32, i32) {
    %c0_i32 = arith.constant 0 : i32
    %c0_i32_0 = arith.constant 0 : i32
    %c0_i32_1 = arith.constant 0 : i32
    return %arg0, %c0_i32, %c0_i32_0 : i32, i32, i32
  }
  func.func @transform_1(%arg0: i32) -> (i32, i32, i32) {
    %c0_i32 = arith.constant 0 : i32
    %c0_i32_0 = arith.constant 0 : i32
    %c0_i32_1 = arith.constant 0 : i32
    return %arg0, %c0_i32, %c0_i32_0 : i32, i32, i32
  }
  func.func @transform_2(%arg0: i32) -> (i32, i32, i32) {
    %c0_i32 = arith.constant 0 : i32
    %c0_i32_0 = arith.constant 0 : i32
    %c0_i32_1 = arith.constant 0 : i32
    %c0_i32_2 = arith.constant 0 : i32
    return %c0_i32, %c0_i32_0, %c0_i32_1 : i32, i32, i32
  }
  func.func @transform_3(%arg0: i32) -> (i32, i32, i32, i32) {
    %c0_i32 = arith.constant 0 : i32
    %c0_i32_0 = arith.constant 0 : i32
    %c0_i32_1 = arith.constant 0 : i32
    %c0_i32_2 = arith.constant 0 : i32
    %c0_i32_3 = arith.constant 0 : i32
    return %c0_i32, %c0_i32_0, %c0_i32_1, %c0_i32_2 : i32, i32, i32, i32
  }
  func.func @transform_4(%arg0: i32) -> (i32, i32, i32, i32) {
    %c0_i32 = arith.constant 0 : i32
    %c0_i32_0 = arith.constant 0 : i32
    %c0_i32_1 = arith.constant 0 : i32
    %c0_i32_2 = arith.constant 0 : i32
    %c0_i32_3 = arith.constant 0 : i32
    return %c0_i32, %c0_i32_0, %c0_i32_1, %c0_i32_2 : i32, i32, i32, i32
  }
  func.func @transform_5(%arg0: i32) -> (i32, i32, i32, i32) {
    %c0_i32 = arith.constant 0 : i32
    %c0_i32_0 = arith.constant 0 : i32
    %c0_i32_1 = arith.constant 0 : i32
    %c0_i32_2 = arith.constant 0 : i32
    %c0_i32_3 = arith.constant 0 : i32
    return %c0_i32, %c0_i32_0, %c0_i32_1, %c0_i32_2 : i32, i32, i32, i32
  }
  func.func @transform_6(%arg0: i32) -> (i32, i32, i32, i32) {
    %c0_i32 = arith.constant 0 : i32
    %c0_i32_0 = arith.constant 0 : i32
    %c0_i32_1 = arith.constant 0 : i32
    %c0_i32_2 = arith.constant 0 : i32
    %c0_i32_3 = arith.constant 0 : i32
    return %c0_i32, %c0_i32_0, %c0_i32_1, %c0_i32_2 : i32, i32, i32, i32
  }
  func.func @transform_7(%arg0: i32) -> (i32, i32, i32, i32) {
    %c0_i32 = arith.constant 0 : i32
    %c0_i32_0 = arith.constant 0 : i32
    %c0_i32_1 = arith.constant 0 : i32
    %c0_i32_2 = arith.constant 0 : i32
    %c0_i32_3 = arith.constant 0 : i32
    return %c0_i32, %c0_i32_0, %c0_i32_1, %c0_i32_2 : i32, i32, i32, i32
  }
  func.func @transform_8(%arg0: i32) -> (i32, i32, i32, i32) {
    %c0_i32 = arith.constant 0 : i32
    %c0_i32_0 = arith.constant 0 : i32
    %c0_i32_1 = arith.constant 0 : i32
    %c0_i32_2 = arith.constant 0 : i32
    %c0_i32_3 = arith.constant 0 : i32
    return %c0_i32, %c0_i32_0, %c0_i32_1, %c0_i32_2 : i32, i32, i32, i32
  }
  func.func @transform_9(%arg0: i32) -> (i32, i32, i32, i32) {
    %c0_i32 = arith.constant 0 : i32
    %c0_i32_0 = arith.constant 0 : i32
    %c0_i32_1 = arith.constant 0 : i32
    %c0_i32_2 = arith.constant 0 : i32
    %c0_i32_3 = arith.constant 0 : i32
    return %c0_i32, %c0_i32_0, %c0_i32_1, %c0_i32_2 : i32, i32, i32, i32
  }
  func.func @transform_10(%arg0: i32) -> (i32, i32, i32) {
    %c0_i32 = arith.constant 0 : i32
    %c0_i32_0 = arith.constant 0 : i32
    %c0_i32_1 = arith.constant 0 : i32
    %c0_i32_2 = arith.constant 0 : i32
    return %c0_i32, %c0_i32_0, %c0_i32_1 : i32, i32, i32
  }
  func.func @transform_11(%arg0: i32) -> (i32, i32, i32, i32) {
    %c0_i32 = arith.constant 0 : i32
    %c0_i32_0 = arith.constant 0 : i32
    %c0_i32_1 = arith.constant 0 : i32
    %c0_i32_2 = arith.constant 0 : i32
    %c0_i32_3 = arith.constant 0 : i32
    return %c0_i32, %c0_i32_0, %c0_i32_1, %c0_i32_2 : i32, i32, i32, i32
  }
  func.func @transform_12(%arg0: i32) -> (i32, i32, i32, i32) {
    %c0_i32 = arith.constant 0 : i32
    %c0_i32_0 = arith.constant 0 : i32
    %c0_i32_1 = arith.constant 0 : i32
    %c0_i32_2 = arith.constant 0 : i32
    %c0_i32_3 = arith.constant 0 : i32
    return %c0_i32, %c0_i32_0, %c0_i32_1, %c0_i32_2 : i32, i32, i32, i32
  }
  func.func @transform_13(%arg0: i32) -> (i32, i32, i32, i32) {
    %c0_i32 = arith.constant 0 : i32
    %c0_i32_0 = arith.constant 0 : i32
    %c0_i32_1 = arith.constant 0 : i32
    %c0_i32_2 = arith.constant 0 : i32
    %c0_i32_3 = arith.constant 0 : i32
    return %c0_i32, %c0_i32_0, %c0_i32_1, %c0_i32_2 : i32, i32, i32, i32
  }
  func.func @transform_14(%arg0: i32) -> (i32, i32, i32, i32) {
    %c0_i32 = arith.constant 0 : i32
    %c0_i32_0 = arith.constant 0 : i32
    %c0_i32_1 = arith.constant 0 : i32
    %c0_i32_2 = arith.constant 0 : i32
    %c0_i32_3 = arith.constant 0 : i32
    return %c0_i32, %c0_i32_0, %c0_i32_1, %c0_i32_2 : i32, i32, i32, i32
  }
  func.func @transform_15(%arg0: i32) -> (i32, i32, i32, i32) {
    %c0_i32 = arith.constant 0 : i32
    %c0_i32_0 = arith.constant 0 : i32
    %c0_i32_1 = arith.constant 0 : i32
    %c0_i32_2 = arith.constant 0 : i32
    %c0_i32_3 = arith.constant 0 : i32
    return %c0_i32, %c0_i32_0, %c0_i32_1, %c0_i32_2 : i32, i32, i32, i32
  }
  func.func @transform_16(%arg0: i32) -> (i32, i32, i32, i32) {
    %c0_i32 = arith.constant 0 : i32
    %c0_i32_0 = arith.constant 0 : i32
    %c0_i32_1 = arith.constant 0 : i32
    %c0_i32_2 = arith.constant 0 : i32
    %c0_i32_3 = arith.constant 0 : i32
    return %c0_i32, %c0_i32_0, %c0_i32_1, %c0_i32_2 : i32, i32, i32, i32
  }
  func.func @transform_17(%arg0: i32) -> (i32, i32, i32, i32) {
    %c0_i32 = arith.constant 0 : i32
    %c0_i32_0 = arith.constant 0 : i32
    %c0_i32_1 = arith.constant 0 : i32
    %c0_i32_2 = arith.constant 0 : i32
    %c0_i32_3 = arith.constant 0 : i32
    return %c0_i32, %c0_i32_0, %c0_i32_1, %c0_i32_2 : i32, i32, i32, i32
  }
  func.func @transform_18(%arg0: i32) -> (i32, i32, i32) {
    %c0_i32 = arith.constant 0 : i32
    %c0_i32_0 = arith.constant 0 : i32
    %c0_i32_1 = arith.constant 0 : i32
    %c0_i32_2 = arith.constant 0 : i32
    return %c0_i32, %c0_i32_0, %c0_i32_1 : i32, i32, i32
  }
  func.func @transform_19(%arg0: i32) -> (i32, i32, i32) {
    %c0_i32 = arith.constant 0 : i32
    %c0_i32_0 = arith.constant 0 : i32
    %c0_i32_1 = arith.constant 0 : i32
    %c0_i32_2 = arith.constant 0 : i32
    return %c0_i32, %c0_i32_0, %c0_i32_1 : i32, i32, i32
  }
  func.func @transform_20(%arg0: i32) -> (i32, i32, i32) {
    %c0_i32 = arith.constant 0 : i32
    %c0_i32_0 = arith.constant 0 : i32
    %c0_i32_1 = arith.constant 0 : i32
    %c0_i32_2 = arith.constant 0 : i32
    return %c0_i32, %c0_i32_0, %c0_i32_1 : i32, i32, i32
  }
  func.func @transform_21(%arg0: i32) -> (i32, i32, i32) {
    %c0_i32 = arith.constant 0 : i32
    %c0_i32_0 = arith.constant 0 : i32
    %c0_i32_1 = arith.constant 0 : i32
    %c0_i32_2 = arith.constant 0 : i32
    return %c0_i32, %c0_i32_0, %c0_i32_1 : i32, i32, i32
  }
  func.func @transform_22(%arg0: i32) -> (i32, i32, i32) {
    %c0_i32 = arith.constant 0 : i32
    %c0_i32_0 = arith.constant 0 : i32
    %c0_i32_1 = arith.constant 0 : i32
    %c0_i32_2 = arith.constant 0 : i32
    return %c0_i32, %c0_i32_0, %c0_i32_1 : i32, i32, i32
  }
  func.func @transform_23(%arg0: i32) -> (i32, i32, i32) {
    %c0_i32 = arith.constant 0 : i32
    %c0_i32_0 = arith.constant 0 : i32
    %c0_i32_1 = arith.constant 0 : i32
    return %arg0, %c0_i32, %c0_i32_0 : i32, i32, i32
  }
}

</mosaic_0001>

<llo_original>
// kernel: decoder_forward.1
$region0: #{decoder_forward.1}
  #allocation0 [shape = 'u32[]', space=smem, size = 0x4, offset = 0x4, fixed_abs, tag = 'smem constant byte address 0x4 - core index']
  #allocation1 [shape = 'u32[144,128]{1,0:T(1,128)}', space=vmem, size = 0x12000, scoped, tag = 'internal scratch']
  %s0 = inlined_call_operand.vmem [shape: f32[2,8,32], index: 0, kind: input, shape index: {}]
  %s1 = inlined_call_operand.vmem [shape: f32[2,8,32], index: 1, kind: input, shape index: {}]
  %s2 = inlined_call_operand.vmem [shape: f32[1,8,32], index: 2, kind: input, shape index: {}]
  %s3 = inlined_call_operand.vmem [shape: f32[2,4,32,8], index: 3, kind: input, shape index: {}]
  %s4 = inlined_call_operand.vmem [shape: f32[2,4,1,8], index: 4, kind: input, shape index: {}]
  %s5 = inlined_call_operand.vmem [shape: f32[2,4,32,8], index: 5, kind: input, shape index: {}]
  %s6 = inlined_call_operand.vmem [shape: f32[2,4,1,8], index: 6, kind: input, shape index: {}]
  %s7 = inlined_call_operand.vmem [shape: f32[2,4,32,8], index: 7, kind: input, shape index: {}]
  %s8 = inlined_call_operand.vmem [shape: f32[2,4,1,8], index: 8, kind: input, shape index: {}]
  %s9 = inlined_call_operand.vmem [shape: f32[2,4,8,32], index: 9, kind: input, shape index: {}]
  %s10 = inlined_call_operand.vmem [shape: f32[2,1,32], index: 10, kind: input, shape index: {}]
  %s11 = inlined_call_operand.vmem [shape: f32[2,4,32,8], index: 11, kind: input, shape index: {}]
  %s12 = inlined_call_operand.vmem [shape: f32[2,4,1,8], index: 12, kind: input, shape index: {}]
  %s13 = inlined_call_operand.vmem [shape: f32[2,4,32,8], index: 13, kind: input, shape index: {}]
  %s14 = inlined_call_operand.vmem [shape: f32[2,4,1,8], index: 14, kind: input, shape index: {}]
  %s15 = inlined_call_operand.vmem [shape: f32[2,4,32,8], index: 15, kind: input, shape index: {}]
  %s16 = inlined_call_operand.vmem [shape: f32[2,4,1,8], index: 16, kind: input, shape index: {}]
  %s17 = inlined_call_operand.vmem [shape: f32[2,4,8,32], index: 17, kind: input, shape index: {}]
  %s18 = inlined_call_operand.vmem [shape: f32[2,1,32], index: 18, kind: input, shape index: {}]
  %s19 = inlined_call_operand.vmem [shape: f32[2,32,64], index: 19, kind: input, shape index: {}]
  %s20 = inlined_call_operand.vmem [shape: f32[2,1,64], index: 20, kind: input, shape index: {}]
  %s21 = inlined_call_operand.vmem [shape: f32[2,64,32], index: 21, kind: input, shape index: {}]
  %s22 = inlined_call_operand.vmem [shape: f32[2,1,32], index: 22, kind: input, shape index: {}]
  %s23 = inlined_call_operand.hbm [shape: f32[2,8,32], index: 23, kind: output, shape index: {}]
  %s24 = sld [smem:[#allocation0]]
  $region125: #{decoder_forward.1} parent=0
    _
  %s26 = ssub.s32 1, %s24
  %s27 = scalar_select 0, %s26, %s24
  $region1: #{decoder_forward.1} parent=0
    #allocation2 [shape = 'u8[8192]{0}', space=vmem, size = 0x2000, scoped, tag = 'output window, operand 0']
    #allocation3 [shape = 's32[2]{0}', space=sflag, size = 0x8, scoped, tag = 'scoped memory for decoder_forward.1']
    %28 = vsyncpa [#allocation3], 0
    %s29 = scalar_lea.sflag [#allocation3], 1
    %30 = vsyncpa %s29, 0
    loop: start=0, step=1, limit=4
    $region2: #{decoder_forward.1} parent=1 // loop_pre_header
      _
    $region3: #{decoder_forward.1} parent=1 // loop_header
      %s32 = sphi 0, %s36
      %p33 = scmp.ge.s32.totalorder %s32, 4
      %s42 = sphi 0, %s44
      %s45 = sphi 0, %s42
      %s46 = sphi 0, %s45
      %s62 = sphi 0, %s46
      %s68 = sphi 0, %s70
      %s71 = sphi 0, %s68
      %s72 = sphi 0, %s71
      %s88 = sphi 0, %s72
      %s92 = sphi 0, %s92
      %s94 = sphi 0, %s92
      %s95 = sphi 0, %s94
      %s109 = sphi 0, %s95
      %s113 = sphi 0, %s113
      %s115 = sphi 0, %s113
      %s116 = sphi 0, %s115
      %s130 = sphi 0, %s116
      %s134 = sphi 0, %s134
      %s136 = sphi 0, %s134
      %s137 = sphi 0, %s136
      %s151 = sphi 0, %s137
      %s155 = sphi 0, %s155
      %s157 = sphi 0, %s155
      %s158 = sphi 0, %s157
      %s172 = sphi 0, %s158
      %s176 = sphi 0, %s176
      %s178 = sphi 0, %s176
      %s179 = sphi 0, %s178
      %s193 = sphi 0, %s179
      %s197 = sphi 0, %s197
      %s199 = sphi 0, %s197
      %s200 = sphi 0, %s199
      %s214 = sphi 0, %s200
      %s218 = sphi 0, %s218
      %s220 = sphi 0, %s218
      %s221 = sphi 0, %s220
      %s235 = sphi 0, %s221
      %s239 = sphi 0, %s239
      %s241 = sphi 0, %s239
      %s242 = sphi 0, %s241
      %s256 = sphi 0, %s242
      %s260 = sphi 0, %s260
      %s262 = sphi 0, %s260
      %s263 = sphi 0, %s262
      %s277 = sphi 0, %s263
      %s281 = sphi 0, %s281
      %s283 = sphi 0, %s281
      %s284 = sphi 0, %s283
      %s298 = sphi 0, %s284
      %s302 = sphi 0, %s302
      %s304 = sphi 0, %s302
      %s305 = sphi 0, %s304
      %s319 = sphi 0, %s305
      %s323 = sphi 0, %s323
      %s325 = sphi 0, %s323
      %s326 = sphi 0, %s325
      %s340 = sphi 0, %s326
      %s344 = sphi 0, %s344
      %s346 = sphi 0, %s344
      %s347 = sphi 0, %s346
      %s361 = sphi 0, %s347
      %s365 = sphi 0, %s365
      %s367 = sphi 0, %s365
      %s368 = sphi 0, %s367
      %s382 = sphi 0, %s368
      %s386 = sphi 0, %s386
      %s388 = sphi 0, %s386
      %s389 = sphi 0, %s388
      %s403 = sphi 0, %s389
      %s407 = sphi 0, %s407
      %s409 = sphi 0, %s407
      %s410 = sphi 0, %s409
      %s424 = sphi 0, %s410
      %s428 = sphi 0, %s428
      %s430 = sphi 0, %s428
      %s431 = sphi 0, %s430
      %s445 = sphi 0, %s431
      %s449 = sphi 0, %s449
      %s451 = sphi 0, %s449
      %s452 = sphi 0, %s451
      %s466 = sphi 0, %s452
      %s470 = sphi 0, %s470
      %s472 = sphi 0, %s470
      %s473 = sphi 0, %s472
      %s487 = sphi 0, %s473
      %s491 = sphi 0, %s491
      %s493 = sphi 0, %s491
      %s494 = sphi 0, %s493
      %s508 = sphi 0, %s494
      %s512 = sphi 0, %s512
      %s514 = sphi 0, %s512
      %s515 = sphi 0, %s514
      %s529 = sphi 0, %s515
      %s535 = sphi 0, %s537
      %s538 = sphi 0, %s535
      %s539 = sphi 0, %s538
      %s555 = sphi 0, %s539
    $region4: #{decoder_forward.1} parent=1 // loop_header_branch
      %35 = sbr.rel (%p33) target = $region8
    $region5: #{decoder_forward.1} parent=1 // loop_body
      %s37 = ssub.s32 %s32, 1
      %s38 = ssub.s32 %s32, 2
      %s39 = sadd.s32 %s32, 1
      %s40 = ssub.s32 %s32, %s39
      %p41 = scmp.eq.s32.totalorder %s40, 0
      %s43 = sadd.s32 %s42, 1
      %s44 = scalar_select %p41, %s42, %s43
      %p47 = pneg %p41
      %p48 = scmp.eq.s32.totalorder %s32, 1
      %p49 = por %p47, %p48
      %p50 = scmp.ne.s32.totalorder %s42, %s45
      %p51 = scmp.eq.s32.totalorder %s32, 0
      %p52 = por %p50, %p51
      %p53 = scmp.ne.s32.totalorder %s42, %s45
      %p54 = scmp.eq.s32.totalorder %s37, 1
      %p55 = por %p53, %p54
      %p56 = scmp.ne.s32.totalorder %s45, %s46
      %p57 = scmp.eq.s32.totalorder %s37, 0
      %p58 = por %p56, %p57
      %p59 = scmp.ne.s32.totalorder %s45, %s46
      %p60 = scmp.eq.s32.totalorder %s38, 1
      %p61 = por %p59, %p60
      %p63 = scmp.ne.s32.totalorder %s46, %s62
      %p64 = scmp.eq.s32.totalorder %s38, 0
      %p65 = por %p63, %p64
      %s66 = ssub.s32 %s32, %s39
      %p67 = scmp.eq.s32.totalorder %s66, 0
      %s69 = sadd.s32 %s68, 1
      %s70 = scalar_select %p67, %s68, %s69
      %p73 = pneg %p67
      %p74 = scmp.eq.s32.totalorder %s32, 1
      %p75 = por %p73, %p74
      %p76 = scmp.ne.s32.totalorder %s68, %s71
      %p77 = scmp.eq.s32.totalorder %s32, 0
      %p78 = por %p76, %p77
      %p79 = scmp.ne.s32.totalorder %s68, %s71
      %p80 = scmp.eq.s32.totalorder %s37, 1
      %p81 = por %p79, %p80
      %p82 = scmp.ne.s32.totalorder %s71, %s72
      %p83 = scmp.eq.s32.totalorder %s37, 0
      %p84 = por %p82, %p83
      %p85 = scmp.ne.s32.totalorder %s71, %s72
      %p86 = scmp.eq.s32.totalorder %s38, 1
      %p87 = por %p85, %p86
      %p89 = scmp.ne.s32.totalorder %s72, %s88
      %p90 = scmp.eq.s32.totalorder %s38, 0
      %p91 = por %p89, %p90
      %s93 = sadd.s32 %s92, 1
      %p96 = scmp.eq.s32.totalorder %s32, 1
      %p97 = scmp.ne.s32.totalorder %s92, %s94
      %p98 = scmp.eq.s32.totalorder %s32, 0
      %p99 = por %p97, %p98
      %p100 = scmp.ne.s32.totalorder %s92, %s94
      %p101 = scmp.eq.s32.totalorder %s37, 1
      %p102 = por %p100, %p101
      %p103 = scmp.ne.s32.totalorder %s94, %s95
      %p104 = scmp.eq.s32.totalorder %s37, 0
      %p105 = por %p103, %p104
      %p106 = scmp.ne.s32.totalorder %s94, %s95
      %p107 = scmp.eq.s32.totalorder %s38, 1
      %p108 = por %p106, %p107
      %p110 = scmp.ne.s32.totalorder %s95, %s109
      %p111 = scmp.eq.s32.totalorder %s38, 0
      %p112 = por %p110, %p111
      %s114 = sadd.s32 %s113, 1
      %p117 = scmp.eq.s32.totalorder %s32, 1
      %p118 = scmp.ne.s32.totalorder %s113, %s115
      %p119 = scmp.eq.s32.totalorder %s32, 0
      %p120 = por %p118, %p119
      %p121 = scmp.ne.s32.totalorder %s113, %s115
      %p122 = scmp.eq.s32.totalorder %s37, 1
      %p123 = por %p121, %p122
      %p124 = scmp.ne.s32.totalorder %s115, %s116
      %p125 = scmp.eq.s32.totalorder %s37, 0
      %p126 = por %p124, %p125
      %p127 = scmp.ne.s32.totalorder %s115, %s116
      %p128 = scmp.eq.s32.totalorder %s38, 1
      %p129 = por %p127, %p128
      %p131 = scmp.ne.s32.totalorder %s116, %s130
      %p132 = scmp.eq.s32.totalorder %s38, 0
      %p133 = por %p131, %p132
      %s135 = sadd.s32 %s134, 1
      %p138 = scmp.eq.s32.totalorder %s32, 1
      %p139 = scmp.ne.s32.totalorder %s134, %s136
      %p140 = scmp.eq.s32.totalorder %s32, 0
      %p141 = por %p139, %p140
      %p142 = scmp.ne.s32.totalorder %s134, %s136
      %p143 = scmp.eq.s32.totalorder %s37, 1
      %p144 = por %p142, %p143
      %p145 = scmp.ne.s32.totalorder %s136, %s137
      %p146 = scmp.eq.s32.totalorder %s37, 0
      %p147 = por %p145, %p146
      %p148 = scmp.ne.s32.totalorder %s136, %s137
      %p149 = scmp.eq.s32.totalorder %s38, 1
      %p150 = por %p148, %p149
      %p152 = scmp.ne.s32.totalorder %s137, %s151
      %p153 = scmp.eq.s32.totalorder %s38, 0
      %p154 = por %p152, %p153
      %s156 = sadd.s32 %s155, 1
      %p159 = scmp.eq.s32.totalorder %s32, 1
      %p160 = scmp.ne.s32.totalorder %s155, %s157
      %p161 = scmp.eq.s32.totalorder %s32, 0
      %p162 = por %p160, %p161
      %p163 = scmp.ne.s32.totalorder %s155, %s157
      %p164 = scmp.eq.s32.totalorder %s37, 1
      %p165 = por %p163, %p164
      %p166 = scmp.ne.s32.totalorder %s157, %s158
      %p167 = scmp.eq.s32.totalorder %s37, 0
      %p168 = por %p166, %p167
      %p169 = scmp.ne.s32.totalorder %s157, %s158
      %p170 = scmp.eq.s32.totalorder %s38, 1
      %p171 = por %p169, %p170
      %p173 = scmp.ne.s32.totalorder %s158, %s172
      %p174 = scmp.eq.s32.totalorder %s38, 0
      %p175 = por %p173, %p174
      %s177 = sadd.s32 %s176, 1
      %p180 = scmp.eq.s32.totalorder %s32, 1
      %p181 = scmp.ne.s32.totalorder %s176, %s178
      %p182 = scmp.eq.s32.totalorder %s32, 0
      %p183 = por %p181, %p182
      %p184 = scmp.ne.s32.totalorder %s176, %s178
      %p185 = scmp.eq.s32.totalorder %s37, 1
      %p186 = por %p184, %p185
      %p187 = scmp.ne.s32.totalorder %s178, %s179
      %p188 = scmp.eq.s32.totalorder %s37, 0
      %p189 = por %p187, %p188
      %p190 = scmp.ne.s32.totalorder %s178, %s179
      %p191 = scmp.eq.s32.totalorder %s38, 1
      %p192 = por %p190, %p191
      %p194 = scmp.ne.s32.totalorder %s179, %s193
      %p195 = scmp.eq.s32.totalorder %s38, 0
      %p196 = por %p194, %p195
      %s198 = sadd.s32 %s197, 1
      %p201 = scmp.eq.s32.totalorder %s32, 1
      %p202 = scmp.ne.s32.totalorder %s197, %s199
      %p203 = scmp.eq.s32.totalorder %s32, 0
      %p204 = por %p202, %p203
      %p205 = scmp.ne.s32.totalorder %s197, %s199
      %p206 = scmp.eq.s32.totalorder %s37, 1
      %p207 = por %p205, %p206
      %p208 = scmp.ne.s32.totalorder %s199, %s200
      %p209 = scmp.eq.s32.totalorder %s37, 0
      %p210 = por %p208, %p209
      %p211 = scmp.ne.s32.totalorder %s199, %s200
      %p212 = scmp.eq.s32.totalorder %s38, 1
      %p213 = por %p211, %p212
      %p215 = scmp.ne.s32.totalorder %s200, %s214
      %p216 = scmp.eq.s32.totalorder %s38, 0
      %p217 = por %p215, %p216
      %s219 = sadd.s32 %s218, 1
      %p222 = scmp.eq.s32.totalorder %s32, 1
      %p223 = scmp.ne.s32.totalorder %s218, %s220
      %p224 = scmp.eq.s32.totalorder %s32, 0
      %p225 = por %p223, %p224
      %p226 = scmp.ne.s32.totalorder %s218, %s220
      %p227 = scmp.eq.s32.totalorder %s37, 1
      %p228 = por %p226, %p227
      %p229 = scmp.ne.s32.totalorder %s220, %s221
      %p230 = scmp.eq.s32.totalorder %s37, 0
      %p231 = por %p229, %p230
      %p232 = scmp.ne.s32.totalorder %s220, %s221
      %p233 = scmp.eq.s32.totalorder %s38, 1
      %p234 = por %p232, %p233
      %p236 = scmp.ne.s32.totalorder %s221, %s235
      %p237 = scmp.eq.s32.totalorder %s38, 0
      %p238 = por %p236, %p237
      %s240 = sadd.s32 %s239, 1
      %p243 = scmp.eq.s32.totalorder %s32, 1
      %p244 = scmp.ne.s32.totalorder %s239, %s241
      %p245 = scmp.eq.s32.totalorder %s32, 0
      %p246 = por %p244, %p245
      %p247 = scmp.ne.s32.totalorder %s239, %s241
      %p248 = scmp.eq.s32.totalorder %s37, 1
      %p249 = por %p247, %p248
      %p250 = scmp.ne.s32.totalorder %s241, %s242
      %p251 = scmp.eq.s32.totalorder %s37, 0
      %p252 = por %p250, %p251
      %p253 = scmp.ne.s32.totalorder %s241, %s242
      %p254 = scmp.eq.s32.totalorder %s38, 1
      %p255 = por %p253, %p254
      %p257 = scmp.ne.s32.totalorder %s242, %s256
      %p258 = scmp.eq.s32.totalorder %s38, 0
      %p259 = por %p257, %p258
      %s261 = sadd.s32 %s260, 1
      %p264 = scmp.eq.s32.totalorder %s32, 1
      %p265 = scmp.ne.s32.totalorder %s260, %s262
      %p266 = scmp.eq.s32.totalorder %s32, 0
      %p267 = por %p265, %p266
      %p268 = scmp.ne.s32.totalorder %s260, %s262
      %p269 = scmp.eq.s32.totalorder %s37, 1
      %p270 = por %p268, %p269
      %p271 = scmp.ne.s32.totalorder %s262, %s263
      %p272 = scmp.eq.s32.totalorder %s37, 0
      %p273 = por %p271, %p272
      %p274 = scmp.ne.s32.totalorder %s262, %s263
      %p275 = scmp.eq.s32.totalorder %s38, 1
      %p276 = por %p274, %p275
      %p278 = scmp.ne.s32.totalorder %s263, %s277
      %p279 = scmp.eq.s32.totalorder %s38, 0
      %p280 = por %p278, %p279
      %s282 = sadd.s32 %s281, 1
      %p285 = scmp.eq.s32.totalorder %s32, 1
      %p286 = scmp.ne.s32.totalorder %s281, %s283
      %p287 = scmp.eq.s32.totalorder %s32, 0
      %p288 = por %p286, %p287
      %p289 = scmp.ne.s32.totalorder %s281, %s283
      %p290 = scmp.eq.s32.totalorder %s37, 1
      %p291 = por %p289, %p290
      %p292 = scmp.ne.s32.totalorder %s283, %s284
      %p293 = scmp.eq.s32.totalorder %s37, 0
      %p294 = por %p292, %p293
      %p295 = scmp.ne.s32.totalorder %s283, %s284
      %p296 = scmp.eq.s32.totalorder %s38, 1
      %p297 = por %p295, %p296
      %p299 = scmp.ne.s32.totalorder %s284, %s298
      %p300 = scmp.eq.s32.totalorder %s38, 0
      %p301 = por %p299, %p300
      %s303 = sadd.s32 %s302, 1
      %p306 = scmp.eq.s32.totalorder %s32, 1
      %p307 = scmp.ne.s32.totalorder %s302, %s304
      %p308 = scmp.eq.s32.totalorder %s32, 0
      %p309 = por %p307, %p308
      %p310 = scmp.ne.s32.totalorder %s302, %s304
      %p311 = scmp.eq.s32.totalorder %s37, 1
      %p312 = por %p310, %p311
      %p313 = scmp.ne.s32.totalorder %s304, %s305
      %p314 = scmp.eq.s32.totalorder %s37, 0
      %p315 = por %p313, %p314
      %p316 = scmp.ne.s32.totalorder %s304, %s305
      %p317 = scmp.eq.s32.totalorder %s38, 1
      %p318 = por %p316, %p317
      %p320 = scmp.ne.s32.totalorder %s305, %s319
      %p321 = scmp.eq.s32.totalorder %s38, 0
      %p322 = por %p320, %p321
      %s324 = sadd.s32 %s323, 1
      %p327 = scmp.eq.s32.totalorder %s32, 1
      %p328 = scmp.ne.s32.totalorder %s323, %s325
      %p329 = scmp.eq.s32.totalorder %s32, 0
      %p330 = por %p328, %p329
      %p331 = scmp.ne.s32.totalorder %s323, %s325
      %p332 = scmp.eq.s32.totalorder %s37, 1
      %p333 = por %p331, %p332
      %p334 = scmp.ne.s32.totalorder %s325, %s326
      %p335 = scmp.eq.s32.totalorder %s37, 0
      %p336 = por %p334, %p335
      %p337 = scmp.ne.s32.totalorder %s325, %s326
      %p338 = scmp.eq.s32.totalorder %s38, 1
      %p339 = por %p337, %p338
      %p341 = scmp.ne.s32.totalorder %s326, %s340
      %p342 = scmp.eq.s32.totalorder %s38, 0
      %p343 = por %p341, %p342
      %s345 = sadd.s32 %s344, 1
      %p348 = scmp.eq.s32.totalorder %s32, 1
      %p349 = scmp.ne.s32.totalorder %s344, %s346
      %p350 = scmp.eq.s32.totalorder %s32, 0
      %p351 = por %p349, %p350
      %p352 = scmp.ne.s32.totalorder %s344, %s346
      %p353 = scmp.eq.s32.totalorder %s37, 1
      %p354 = por %p352, %p353
      %p355 = scmp.ne.s32.totalorder %s346, %s347
      %p356 = scmp.eq.s32.totalorder %s37, 0
      %p357 = por %p355, %p356
      %p358 = scmp.ne.s32.totalorder %s346, %s347
      %p359 = scmp.eq.s32.totalorder %s38, 1
      %p360 = por %p358, %p359
      %p362 = scmp.ne.s32.totalorder %s347, %s361
      %p363 = scmp.eq.s32.totalorder %s38, 0
      %p364 = por %p362, %p363
      %s366 = sadd.s32 %s365, 1
      %p369 = scmp.eq.s32.totalorder %s32, 1
      %p370 = scmp.ne.s32.totalorder %s365, %s367
      %p371 = scmp.eq.s32.totalorder %s32, 0
      %p372 = por %p370, %p371
      %p373 = scmp.ne.s32.totalorder %s365, %s367
      %p374 = scmp.eq.s32.totalorder %s37, 1
      %p375 = por %p373, %p374
      %p376 = scmp.ne.s32.totalorder %s367, %s368
      %p377 = scmp.eq.s32.totalorder %s37, 0
      %p378 = por %p376, %p377
      %p379 = scmp.ne.s32.totalorder %s367, %s368
      %p380 = scmp.eq.s32.totalorder %s38, 1
      %p381 = por %p379, %p380
      %p383 = scmp.ne.s32.totalorder %s368, %s382
      %p384 = scmp.eq.s32.totalorder %s38, 0
      %p385 = por %p383, %p384
      %s387 = sadd.s32 %s386, 1
      %p390 = scmp.eq.s32.totalorder %s32, 1
      %p391 = scmp.ne.s32.totalorder %s386, %s388
      %p392 = scmp.eq.s32.totalorder %s32, 0
      %p393 = por %p391, %p392
      %p394 = scmp.ne.s32.totalorder %s386, %s388
      %p395 = scmp.eq.s32.totalorder %s37, 1
      %p396 = por %p394, %p395
      %p397 = scmp.ne.s32.totalorder %s388, %s389
      %p398 = scmp.eq.s32.totalorder %s37, 0
      %p399 = por %p397, %p398
      %p400 = scmp.ne.s32.totalorder %s388, %s389
      %p401 = scmp.eq.s32.totalorder %s38, 1
      %p402 = por %p400, %p401
      %p404 = scmp.ne.s32.totalorder %s389, %s403
      %p405 = scmp.eq.s32.totalorder %s38, 0
      %p406 = por %p404, %p405
      %s408 = sadd.s32 %s407, 1
      %p411 = scmp.eq.s32.totalorder %s32, 1
      %p412 = scmp.ne.s32.totalorder %s407, %s409
      %p413 = scmp.eq.s32.totalorder %s32, 0
      %p414 = por %p412, %p413
      %p415 = scmp.ne.s32.totalorder %s407, %s409
      %p416 = scmp.eq.s32.totalorder %s37, 1
      %p417 = por %p415, %p416
      %p418 = scmp.ne.s32.totalorder %s409, %s410
      %p419 = scmp.eq.s32.totalorder %s37, 0
      %p420 = por %p418, %p419
      %p421 = scmp.ne.s32.totalorder %s409, %s410
      %p422 = scmp.eq.s32.totalorder %s38, 1
      %p423 = por %p421, %p422
      %p425 = scmp.ne.s32.totalorder %s410, %s424
      %p426 = scmp.eq.s32.totalorder %s38, 0
      %p427 = por %p425, %p426
      %s429 = sadd.s32 %s428, 1
      %p432 = scmp.eq.s32.totalorder %s32, 1
      %p433 = scmp.ne.s32.totalorder %s428, %s430
      %p434 = scmp.eq.s32.totalorder %s32, 0
      %p435 = por %p433, %p434
      %p436 = scmp.ne.s32.totalorder %s428, %s430
      %p437 = scmp.eq.s32.totalorder %s37, 1
      %p438 = por %p436, %p437
      %p439 = scmp.ne.s32.totalorder %s430, %s431
      %p440 = scmp.eq.s32.totalorder %s37, 0
      %p441 = por %p439, %p440
      %p442 = scmp.ne.s32.totalorder %s430, %s431
      %p443 = scmp.eq.s32.totalorder %s38, 1
      %p444 = por %p442, %p443
      %p446 = scmp.ne.s32.totalorder %s431, %s445
      %p447 = scmp.eq.s32.totalorder %s38, 0
      %p448 = por %p446, %p447
      %s450 = sadd.s32 %s449, 1
      %p453 = scmp.eq.s32.totalorder %s32, 1
      %p454 = scmp.ne.s32.totalorder %s449, %s451
      %p455 = scmp.eq.s32.totalorder %s32, 0
      %p456 = por %p454, %p455
      %p457 = scmp.ne.s32.totalorder %s449, %s451
      %p458 = scmp.eq.s32.totalorder %s37, 1
      %p459 = por %p457, %p458
      %p460 = scmp.ne.s32.totalorder %s451, %s452
      %p461 = scmp.eq.s32.totalorder %s37, 0
      %p462 = por %p460, %p461
      %p463 = scmp.ne.s32.totalorder %s451, %s452
      %p464 = scmp.eq.s32.totalorder %s38, 1
      %p465 = por %p463, %p464
      %p467 = scmp.ne.s32.totalorder %s452, %s466
      %p468 = scmp.eq.s32.totalorder %s38, 0
      %p469 = por %p467, %p468
      %s471 = sadd.s32 %s470, 1
      %p474 = scmp.eq.s32.totalorder %s32, 1
      %p475 = scmp.ne.s32.totalorder %s470, %s472
      %p476 = scmp.eq.s32.totalorder %s32, 0
      %p477 = por %p475, %p476
      %p478 = scmp.ne.s32.totalorder %s470, %s472
      %p479 = scmp.eq.s32.totalorder %s37, 1
      %p480 = por %p478, %p479
      %p481 = scmp.ne.s32.totalorder %s472, %s473
      %p482 = scmp.eq.s32.totalorder %s37, 0
      %p483 = por %p481, %p482
      %p484 = scmp.ne.s32.totalorder %s472, %s473
      %p485 = scmp.eq.s32.totalorder %s38, 1
      %p486 = por %p484, %p485
      %p488 = scmp.ne.s32.totalorder %s473, %s487
      %p489 = scmp.eq.s32.totalorder %s38, 0
      %p490 = por %p488, %p489
      %s492 = sadd.s32 %s491, 1
      %p495 = scmp.eq.s32.totalorder %s32, 1
      %p496 = scmp.ne.s32.totalorder %s491, %s493
      %p497 = scmp.eq.s32.totalorder %s32, 0
      %p498 = por %p496, %p497
      %p499 = scmp.ne.s32.totalorder %s491, %s493
      %p500 = scmp.eq.s32.totalorder %s37, 1
      %p501 = por %p499, %p500
      %p502 = scmp.ne.s32.totalorder %s493, %s494
      %p503 = scmp.eq.s32.totalorder %s37, 0
      %p504 = por %p502, %p503
      %p505 = scmp.ne.s32.totalorder %s493, %s494
      %p506 = scmp.eq.s32.totalorder %s38, 1
      %p507 = por %p505, %p506
      %p509 = scmp.ne.s32.totalorder %s494, %s508
      %p510 = scmp.eq.s32.totalorder %s38, 0
      %p511 = por %p509, %p510
      %s513 = sadd.s32 %s512, 1
      %p516 = scmp.eq.s32.totalorder %s32, 1
      %p517 = scmp.ne.s32.totalorder %s512, %s514
      %p518 = scmp.eq.s32.totalorder %s32, 0
      %p519 = por %p517, %p518
      %p520 = scmp.ne.s32.totalorder %s512, %s514
      %p521 = scmp.eq.s32.totalorder %s37, 1
      %p522 = por %p520, %p521
      %p523 = scmp.ne.s32.totalorder %s514, %s515
      %p524 = scmp.eq.s32.totalorder %s37, 0
      %p525 = por %p523, %p524
      %p526 = scmp.ne.s32.totalorder %s514, %s515
      %p527 = scmp.eq.s32.totalorder %s38, 1
      %p528 = por %p526, %p527
      %p530 = scmp.ne.s32.totalorder %s515, %s529
      %p531 = scmp.eq.s32.totalorder %s38, 0
      %p532 = por %p530, %p531
      %s533 = ssub.s32 %s32, %s39
      %p534 = scmp.eq.s32.totalorder %s533, 0
      %s536 = sadd.s32 %s535, 1
      %s537 = scalar_select %p534, %s535, %s536
      %p540 = pneg %p534
      %p541 = scmp.eq.s32.totalorder %s32, 1
      %p542 = por %p540, %p541
      %p543 = scmp.ne.s32.totalorder %s535, %s538
      %p544 = scmp.eq.s32.totalorder %s32, 0
      %p545 = por %p543, %p544
      %p546 = scmp.ne.s32.totalorder %s535, %s538
      %p547 = scmp.eq.s32.totalorder %s37, 1
      %p548 = por %p546, %p547
      %p549 = scmp.ne.s32.totalorder %s538, %s539
      %p550 = scmp.eq.s32.totalorder %s37, 0
      %p551 = por %p549, %p550
      %p552 = scmp.ne.s32.totalorder %s538, %s539
      %p553 = scmp.eq.s32.totalorder %s38, 1
      %p554 = por %p552, %p553
      %p556 = scmp.ne.s32.totalorder %s539, %s555
      %p557 = scmp.eq.s32.totalorder %s38, 0
      %p558 = por %p556, %p557
      %p559 = scmp.le.s32.totalorder 1, %s32
      %p560 = scmp.lt.s32.totalorder %s32, 3
      %p561 = pnand %p559, %p560
      %p562 = pneg %p561
      // Predicated region
      $region9: #{decoder_forward.1} parent=5 // pred_check
        _
      $region10: #{decoder_forward.1} parent=5 // pred_check_branch
        %564 = sbr.rel (%p561) target = $region12
      $region11: #{decoder_forward.1} parent=5 // pred_region
        %s565 = ssub.s32 %s32, 1
        // Predicated region
        $region13: #{decoder_forward.1} parent=11 // pred_check
          %p566 = pneg %p105
        $region14: #{decoder_forward.1} parent=11 // pred_check_branch
          %568 = sbr.rel (%p566) target = $region16
        $region15: #{decoder_forward.1} parent=11 // pred_region
          _
        $region16: #{decoder_forward.1} parent=11 // pred_fallthru
          _
        // Predicated region
        $region17: #{decoder_forward.1} parent=11 // pred_check
          %p569 = pneg %p126
        $region18: #{decoder_forward.1} parent=11 // pred_check_branch
          %571 = sbr.rel (%p569) target = $region20
        $region19: #{decoder_forward.1} parent=11 // pred_region
          _
        $region20: #{decoder_forward.1} parent=11 // pred_fallthru
          _
        // Predicated region
        $region21: #{decoder_forward.1} parent=11 // pred_check
          %p572 = pneg %p147
        $region22: #{decoder_forward.1} parent=11 // pred_check_branch
          %574 = sbr.rel (%p572) target = $region24
        $region23: #{decoder_forward.1} parent=11 // pred_region
          _
        $region24: #{decoder_forward.1} parent=11 // pred_fallthru
          _
        // Predicated region
        $region25: #{decoder_forward.1} parent=11 // pred_check
          %p575 = pneg %p168
        $region26: #{decoder_forward.1} parent=11 // pred_check_branch
          %577 = sbr.rel (%p575) target = $region28
        $region27: #{decoder_forward.1} parent=11 // pred_region
          _
        $region28: #{decoder_forward.1} parent=11 // pred_fallthru
          _
        // Predicated region
        $region29: #{decoder_forward.1} parent=11 // pred_check
          %p578 = pneg %p189
        $region30: #{decoder_forward.1} parent=11 // pred_check_branch
          %580 = sbr.rel (%p578) target = $region32
        $region31: #{decoder_forward.1} parent=11 // pred_region
          _
        $region32: #{decoder_forward.1} parent=11 // pred_fallthru
          _
        // Predicated region
        $region33: #{decoder_forward.1} parent=11 // pred_check
          %p581 = pneg %p210
        $region34: #{decoder_forward.1} parent=11 // pred_check_branch
          %583 = sbr.rel (%p581) target = $region36
        $region35: #{decoder_forward.1} parent=11 // pred_region
          _
        $region36: #{decoder_forward.1} parent=11 // pred_fallthru
          _
        // Predicated region
        $region37: #{decoder_forward.1} parent=11 // pred_check
          %p584 = pneg %p231
        $region38: #{decoder_forward.1} parent=11 // pred_check_branch
          %586 = sbr.rel (%p584) target = $region40
        $region39: #{decoder_forward.1} parent=11 // pred_region
          _
        $region40: #{decoder_forward.1} parent=11 // pred_fallthru
          _
        // Predicated region
        $region41: #{decoder_forward.1} parent=11 // pred_check
          %p587 = pneg %p252
        $region42: #{decoder_forward.1} parent=11 // pred_check_branch
          %589 = sbr.rel (%p587) target = $region44
        $region43: #{decoder_forward.1} parent=11 // pred_region
          _
        $region44: #{decoder_forward.1} parent=11 // pred_fallthru
          _
        // Predicated region
        $region45: #{decoder_forward.1} parent=11 // pred_check
          %p590 = pneg %p273
        $region46: #{decoder_forward.1} parent=11 // pred_check_branch
          %592 = sbr.rel (%p590) target = $region48
        $region47: #{decoder_forward.1} parent=11 // pred_region
          _
        $region48: #{decoder_forward.1} parent=11 // pred_fallthru
          _
        // Predicated region
        $region49: #{decoder_forward.1} parent=11 // pred_check
          %p593 = pneg %p294
        $region50: #{decoder_forward.1} parent=11 // pred_check_branch
          %595 = sbr.rel (%p593) target = $region52
        $region51: #{decoder_forward.1} parent=11 // pred_region
          _
        $region52: #{decoder_forward.1} parent=11 // pred_fallthru
          _
        // Predicated region
        $region53: #{decoder_forward.1} parent=11 // pred_check
          %p596 = pneg %p315
        $region54: #{decoder_forward.1} parent=11 // pred_check_branch
          %598 = sbr.rel (%p596) target = $region56
        $region55: #{decoder_forward.1} parent=11 // pred_region
          _
        $region56: #{decoder_forward.1} parent=11 // pred_fallthru
          _
        // Predicated region
        $region57: #{decoder_forward.1} parent=11 // pred_check
          %p599 = pneg %p336
        $region58: #{decoder_forward.1} parent=11 // pred_check_branch
          %601 = sbr.rel (%p599) target = $region60
        $region59: #{decoder_forward.1} parent=11 // pred_region
          _
        $region60: #{decoder_forward.1} parent=11 // pred_fallthru
          _
        // Predicated region
        $region61: #{decoder_forward.1} parent=11 // pred_check
          %p602 = pneg %p357
        $region62: #{decoder_forward.1} parent=11 // pred_check_branch
          %604 = sbr.rel (%p602) target = $region64
        $region63: #{decoder_forward.1} parent=11 // pred_region
          _
        $region64: #{decoder_forward.1} parent=11 // pred_fallthru
          _
        // Predicated region
        $region65: #{decoder_forward.1} parent=11 // pred_check
          %p605 = pneg %p378
        $region66: #{decoder_forward.1} parent=11 // pred_check_branch
          %607 = sbr.rel (%p605) target = $region68
        $region67: #{decoder_forward.1} parent=11 // pred_region
          _
        $region68: #{decoder_forward.1} parent=11 // pred_fallthru
          _
        // Predicated region
        $region69: #{decoder_forward.1} parent=11 // pred_check
          %p608 = pneg %p399
        $region70: #{decoder_forward.1} parent=11 // pred_check_branch
          %610 = sbr.rel (%p608) target = $region72
        $region71: #{decoder_forward.1} parent=11 // pred_region
          _
        $region72: #{decoder_forward.1} parent=11 // pred_fallthru
          _
        // Predicated region
        $region73: #{decoder_forward.1} parent=11 // pred_check
          %p611 = pneg %p420
        $region74: #{decoder_forward.1} parent=11 // pred_check_branch
          %613 = sbr.rel (%p611) target = $region76
        $region75: #{decoder_forward.1} parent=11 // pred_region
          _
        $region76: #{decoder_forward.1} parent=11 // pred_fallthru
          _
        // Predicated region
        $region77: #{decoder_forward.1} parent=11 // pred_check
          %p614 = pneg %p441
        $region78: #{decoder_forward.1} parent=11 // pred_check_branch
          %616 = sbr.rel (%p614) target = $region80
        $region79: #{decoder_forward.1} parent=11 // pred_region
          _
        $region80: #{decoder_forward.1} parent=11 // pred_fallthru
          _
        // Predicated region
        $region81: #{decoder_forward.1} parent=11 // pred_check
          %p617 = pneg %p462
        $region82: #{decoder_forward.1} parent=11 // pred_check_branch
          %619 = sbr.rel (%p617) target = $region84
        $region83: #{decoder_forward.1} parent=11 // pred_region
          _
        $region84: #{decoder_forward.1} parent=11 // pred_fallthru
          _
        // Predicated region
        $region85: #{decoder_forward.1} parent=11 // pred_check
          %p620 = pneg %p483
        $region86: #{decoder_forward.1} parent=11 // pred_check_branch
          %622 = sbr.rel (%p620) target = $region88
        $region87: #{decoder_forward.1} parent=11 // pred_region
          _
        $region88: #{decoder_forward.1} parent=11 // pred_fallthru
          _
        // Predicated region
        $region89: #{decoder_forward.1} parent=11 // pred_check
          %p623 = pneg %p504
        $region90: #{decoder_forward.1} parent=11 // pred_check_branch
          %625 = sbr.rel (%p623) target = $region92
        $region91: #{decoder_forward.1} parent=11 // pred_region
          _
        $region92: #{decoder_forward.1} parent=11 // pred_fallthru
          _
        // Predicated region
        $region93: #{decoder_forward.1} parent=11 // pred_check
          %p626 = pneg %p525
        $region94: #{decoder_forward.1} parent=11 // pred_check_branch
          %628 = sbr.rel (%p626) target = $region96
        $region95: #{decoder_forward.1} parent=11 // pred_region
          _
        $region96: #{decoder_forward.1} parent=11 // pred_fallthru
          _
      $region12: #{decoder_forward.1} parent=5 // pred_fallthru
        _
      %p629 = scmp.lt.s32.totalorder %s32, 2
      // Predicated region
      $region97: #{decoder_forward.1} parent=5 // pred_check
        %p630 = pneg %p629
      $region98: #{decoder_forward.1} parent=5 // pred_check_branch
        %632 = sbr.rel (%p630) target = $region100
      $region99: #{decoder_forward.1} parent=5 // pred_region
        // Predicated region
        $region101: #{decoder_forward.1} parent=99 // pred_check
          %p633 = pneg %p52
        $region102: #{decoder_forward.1} parent=99 // pred_check_branch
          %635 = sbr.rel (%p633) target = $region104
        $region103: #{decoder_forward.1} parent=99 // pred_region
          %p636 = scmp.lt.s32.totalorder %s32, 1
          %s637 = scalar_select %p636, %s32, 1
          %s638 = smul.addr %s637, 8
          %s639 = scalar_lea.vmem %s0, %s638
        $region104: #{decoder_forward.1} parent=99 // pred_fallthru
          _
        // Predicated region
        $region105: #{decoder_forward.1} parent=99 // pred_check
          %p640 = pneg %p78
        $region106: #{decoder_forward.1} parent=99 // pred_check_branch
          %642 = sbr.rel (%p640) target = $region108
        $region107: #{decoder_forward.1} parent=99 // pred_region
          %p643 = scmp.lt.s32.totalorder %s32, 1
          %s644 = scalar_select %p643, %s32, 1
          %s645 = smul.addr %s644, 8
          %s646 = scalar_lea.vmem %s1, %s645
        $region108: #{decoder_forward.1} parent=99 // pred_fallthru
          _
      $region100: #{decoder_forward.1} parent=5 // pred_fallthru
        _
      %p647 = scmp.le.s32.totalorder 1, %s32
      %p648 = scmp.lt.s32.totalorder %s32, 3
      %p649 = pnand %p647, %p648
      %p650 = pneg %p649
      // Predicated region
      $region109: #{decoder_forward.1} parent=5 // pred_check
        _
      $region110: #{decoder_forward.1} parent=5 // pred_check_branch
        %652 = sbr.rel (%p649) target = $region112
      $region111: #{decoder_forward.1} parent=5 // pred_region
        %s653 = ssub.s32 %s32, 1
        %p654 = scmp.lt.s32.totalorder %s37, 1
        %s655 = scalar_select %p654, %s37, 1
        %s656 = smul.addr %s655, 8
        %s657 = scalar_lea.vmem %s0, %s656
        %p658 = pneg %p58
        %p659 = pneg %p55
        %p660 = scmp.lt.s32.totalorder %s37, 1
        %s661 = scalar_select %p660, %s37, 1
        %s662 = smul.addr %s661, 8
        %s663 = scalar_lea.vmem %s1, %s662
        %p664 = pneg %p84
        %p665 = pneg %p81
        %p666 = pneg %p105
        %p667 = pneg %p102
        %p668 = pneg %p126
        %p669 = pneg %p123
        %p670 = pneg %p147
        %p671 = pneg %p144
        %p672 = pneg %p168
        %p673 = pneg %p165
        %p674 = pneg %p189
        %p675 = pneg %p186
        %p676 = pneg %p210
        %p677 = pneg %p207
        %p678 = pneg %p231
        %p679 = pneg %p228
        %p680 = pneg %p252
        %p681 = pneg %p249
        %p682 = pneg %p273
        %p683 = pneg %p270
        %p684 = pneg %p294
        %p685 = pneg %p291
        %p686 = pneg %p315
        %p687 = pneg %p312
        %p688 = pneg %p336
        %p689 = pneg %p333
        %p690 = pneg %p357
        %p691 = pneg %p354
        %p692 = pneg %p378
        %p693 = pneg %p375
        %p694 = pneg %p399
        %p695 = pneg %p396
        %p696 = pneg %p420
        %p697 = pneg %p417
        %p698 = pneg %p441
        %p699 = pneg %p438
        %p700 = pneg %p462
        %p701 = pneg %p459
        %p702 = pneg %p483
        %p703 = pneg %p480
        %p704 = pneg %p504
        %p705 = pneg %p501
        %p706 = pneg %p525
        %p707 = pneg %p522
        %p708 = pneg %p551
        %p709 = pneg %p548
        %s710 = sand.u32 %s538, 1
        %s711 = scalar_lea.sflag [#allocation3], %s710
        %s712 = sand.u32 %s538, 1
        %s713 = smul.addr %s712, 8
        %s714 = scalar_lea.vmem [#allocation2], %s713
        %p715 = scmp.lt.s32.totalorder %s37, 1
        %s716 = scalar_select %p715, %s37, 1
        %s717 = smul.addr %s716, 8
        %s718 = scalar_lea.vmem %s0, %s717
        %p719 = scmp.lt.s32.totalorder %s37, 1
        %s720 = scalar_select %p719, %s37, 1
        %s721 = smul.addr %s720, 8
        %s722 = scalar_lea.vmem %s1, %s721
        %v723 = vld [vmem:[%s718] sm:$0xff]
        %v724 = vld [vmem:[%s2] sm:$0xff]
        %v725 = vadd.f32 %v723, %v724
        %v726 = vld [vmem:[%s722] sm:$0xff]
        %v727 = vld [vmem:[%s3] sm:$0xff]
        %v728 = vld [vmem:[%s3 + $0x8] sm:$0xff]
        %v729 = vld [vmem:[%s3 + $0x10] sm:$0xff]
        %v730 = vld [vmem:[%s3 + $0x18] sm:$0xff]
        %v731 = vld [vmem:[%s3 + $0x20] sm:$0xff]
        %v732 = vld [vmem:[%s3 + $0x28] sm:$0xff]
        %v733 = vld [vmem:[%s3 + $0x30] sm:$0xff]
        %v734 = vld [vmem:[%s3 + $0x38] sm:$0xff]
        %v735 = vld [vmem:[%s3 + $0x40] sm:$0xff]
        %v736 = vld [vmem:[%s3 + $0x48] sm:$0xff]
        %v737 = vld [vmem:[%s3 + $0x50] sm:$0xff]
        %v738 = vld [vmem:[%s3 + $0x58] sm:$0xff]
        %v739 = vld [vmem:[%s3 + $0x60] sm:$0xff]
        %v740 = vld [vmem:[%s3 + $0x68] sm:$0xff]
        %v741 = vld [vmem:[%s3 + $0x70] sm:$0xff]
        %v742 = vld [vmem:[%s3 + $0x78] sm:$0xff]
        %v743 = vld [vmem:[%s4] sm:$0x1]
        %v744 = vld [vmem:[%s4 + $0x1] sm:$0x1]
        %v745 = vld [vmem:[%s4 + $0x2] sm:$0x1]
        %v746 = vld [vmem:[%s4 + $0x3] sm:$0x1]
        %v747 = vld [vmem:[%s5] sm:$0xff]
        %v748 = vld [vmem:[%s5 + $0x8] sm:$0xff]
        %v749 = vld [vmem:[%s5 + $0x10] sm:$0xff]
        %v750 = vld [vmem:[%s5 + $0x18] sm:$0xff]
        %v751 = vld [vmem:[%s5 + $0x20] sm:$0xff]
        %v752 = vld [vmem:[%s5 + $0x28] sm:$0xff]
        %v753 = vld [vmem:[%s5 + $0x30] sm:$0xff]
        %v754 = vld [vmem:[%s5 + $0x38] sm:$0xff]
        %v755 = vld [vmem:[%s5 + $0x40] sm:$0xff]
        %v756 = vld [vmem:[%s5 + $0x48] sm:$0xff]
        %v757 = vld [vmem:[%s5 + $0x50] sm:$0xff]
        %v758 = vld [vmem:[%s5 + $0x58] sm:$0xff]
        %v759 = vld [vmem:[%s5 + $0x60] sm:$0xff]
        %v760 = vld [vmem:[%s5 + $0x68] sm:$0xff]
        %v761 = vld [vmem:[%s5 + $0x70] sm:$0xff]
        %v762 = vld [vmem:[%s5 + $0x78] sm:$0xff]
        %v763 = vld [vmem:[%s6] sm:$0x1]
        %v764 = vld [vmem:[%s6 + $0x1] sm:$0x1]
        %v765 = vld [vmem:[%s6 + $0x2] sm:$0x1]
        %v766 = vld [vmem:[%s6 + $0x3] sm:$0x1]
        %v767 = vld [vmem:[%s7] sm:$0xff]
        %v768 = vld [vmem:[%s7 + $0x8] sm:$0xff]
        %v769 = vld [vmem:[%s7 + $0x10] sm:$0xff]
        %v770 = vld [vmem:[%s7 + $0x18] sm:$0xff]
        %v771 = vld [vmem:[%s7 + $0x20] sm:$0xff]
        %v772 = vld [vmem:[%s7 + $0x28] sm:$0xff]
        %v773 = vld [vmem:[%s7 + $0x30] sm:$0xff]
        %v774 = vld [vmem:[%s7 + $0x38] sm:$0xff]
        %v775 = vld [vmem:[%s7 + $0x40] sm:$0xff]
        %v776 = vld [vmem:[%s7 + $0x48] sm:$0xff]
        %v777 = vld [vmem:[%s7 + $0x50] sm:$0xff]
        %v778 = vld [vmem:[%s7 + $0x58] sm:$0xff]
        %v779 = vld [vmem:[%s7 + $0x60] sm:$0xff]
        %v780 = vld [vmem:[%s7 + $0x68] sm:$0xff]
        %v781 = vld [vmem:[%s7 + $0x70] sm:$0xff]
        %v782 = vld [vmem:[%s7 + $0x78] sm:$0xff]
        %v783 = vld [vmem:[%s8] sm:$0x1]
        %v784 = vld [vmem:[%s8 + $0x1] sm:$0x1]
        %v785 = vld [vmem:[%s8 + $0x2] sm:$0x1]
        %v786 = vld [vmem:[%s8 + $0x3] sm:$0x1]
        %v787 = vld [vmem:[%s9] sm:$0xff]
        %v788 = vld [vmem:[%s9 + $0x8] sm:$0xff]
        %v789 = vld [vmem:[%s9 + $0x10] sm:$0xff]
        %v790 = vld [vmem:[%s9 + $0x18] sm:$0xff]
        %v791 = vld [vmem:[%s10] sm:$0x1]
        %v796 = vlaneseq
        %v797 = vshrl.u32 %v796, 7
        %v798 = vsub.s32 0, %v797
        %v799 = vrot.slane %v743, %v798
        %v800 = vlaneseq
        %v801 = vshrl.u32 %v800, 7
        %v802 = vsub.s32 0, %v801
        %v803 = vrot.slane %v744, %v802
        %v804 = vlaneseq
        %v805 = vshrl.u32 %v804, 7
        %v806 = vsub.s32 0, %v805
        %v807 = vrot.slane %v745, %v806
        %v808 = vlaneseq
        %v809 = vshrl.u32 %v808, 7
        %v810 = vsub.s32 0, %v809
        %v811 = vrot.slane %v746, %v810
        %vm816 = vcmask 261120
        %v818 = vsel %vm816, %v725, 0
        %820 = vmatprep.subr.mxu0 0.0
        %821 = vmatpush1.msra.mxu0 0.0
        %822 = vmatprep.subr.mxu0 0.0
        %823 = vmatpush1.msra.mxu0 0.0
        %824 = vmatprep.subr.mxu0 0.0
        %825 = vmatpush1.msra.mxu0 0.0
        %826 = vmatprep.subr.mxu0 0.0
        %827 = vmatpush1.msra.mxu0 0.0
        %828 = vmatprep.subr.mxu0 0.0
        %829 = vmatpush1.msra.mxu0 0.0
        %830 = vmatprep.subr.mxu0 0.0
        %831 = vmatpush1.msra.mxu0 0.0
        %832 = vmatprep.subr.mxu0 0.0
        %833 = vmatpush1.msra.mxu0 0.0
        %834 = vmatprep.subr.mxu0 0.0
        %835 = vmatpush1.msra.mxu0 0.0
        %836 = vmatprep.subr.mxu0 0.0
        %837 = vmatpush1.msra.mxu0 0.0
        %838 = vmatprep.subr.mxu0 0.0
        %839 = vmatpush1.msra.mxu0 0.0
        %840 = vmatprep.subr.mxu0 0.0
        %841 = vmatpush1.msra.mxu0 0.0
        %842 = vmatprep.subr.mxu0 0.0
        %843 = vmatpush1.msra.mxu0 0.0
        %844 = vmatprep.subr.mxu0 0.0
        %845 = vmatpush1.msra.mxu0 %v730
        %846 = vmatprep.subr.mxu0 0.0
        %847 = vmatpush1.msra.mxu0 %v729
        %848 = vmatprep.subr.mxu0 0.0
        %849 = vmatpush1.msra.mxu0 %v728
        %850 = vmatprep.subr.mxu0 0.0
        %851 = vmatpush1.msra.mxu0 %v727
        %852 = vmatprep.subr.mxu0 0.0
        %853 = vmatpush2.msra.mxu0 0.0
        %854 = vmatprep.subr.mxu0 0.0
        %855 = vmatpush2.msra.mxu0 0.0
        %856 = vmatprep.subr.mxu0 0.0
        %857 = vmatpush2.msra.mxu0 0.0
        %858 = vmatprep.subr.mxu0 0.0
        %859 = vmatpush2.msra.mxu0 0.0
        %860 = vmatprep.subr.mxu0 0.0
        %861 = vmatpush2.msra.mxu0 0.0
        %862 = vmatprep.subr.mxu0 0.0
        %863 = vmatpush2.msra.mxu0 0.0
        %864 = vmatprep.subr.mxu0 0.0
        %865 = vmatpush2.msra.mxu0 0.0
        %866 = vmatprep.subr.mxu0 0.0
        %867 = vmatpush2.msra.mxu0 0.0
        %868 = vmatprep.subr.mxu0 0.0
        %869 = vmatpush2.msra.mxu0 0.0
        %870 = vmatprep.subr.mxu0 0.0
        %871 = vmatpush2.msra.mxu0 0.0
        %872 = vmatprep.subr.mxu0 0.0
        %873 = vmatpush2.msra.mxu0 0.0
        %874 = vmatprep.subr.mxu0 0.0
        %875 = vmatpush2.msra.mxu0 0.0
        %876 = vmatprep.subr.mxu0 0.0
        %877 = vmatpush2.msra.mxu0 0.0
        %878 = vmatprep.subr.mxu0 0.0
        %879 = vmatpush2.msra.mxu0 0.0
        %880 = vmatprep.subr.mxu0 0.0
        %881 = vmatpush2.msra.mxu0 0.0
        %882 = vmatprep.subr.mxu0 0.0
        %883 = vmatpush2.msra.mxu0 0.0
        %884 = vmatprep.mubr.f32.mxu0 0.0
        %885 = vmatmul.mubr.f32.gmra.mxu0 %v818
        %v886 = vpop.f32.mrf.mxu0
        %v887 = vadd.f32 %v799, %v886
        %v888 = vpop.f32.mrf.mxu0
        %889 = vdwg.mxu0
        %890 = vmatprep.subr.mxu0 0.0
        %891 = vmatpush1.msra.mxu0 0.0
        %892 = vmatprep.subr.mxu0 0.0
        %893 = vmatpush1.msra.mxu0 0.0
        %894 = vmatprep.subr.mxu0 0.0
        %895 = vmatpush1.msra.mxu0 0.0
        %896 = vmatprep.subr.mxu0 0.0
        %897 = vmatpush1.msra.mxu0 0.0
        %898 = vmatprep.subr.mxu0 0.0
        %899 = vmatpush1.msra.mxu0 0.0
        %900 = vmatprep.subr.mxu0 0.0
        %901 = vmatpush1.msra.mxu0 0.0
        %902 = vmatprep.subr.mxu0 0.0
        %903 = vmatpush1.msra.mxu0 0.0
        %904 = vmatprep.subr.mxu0 0.0
        %905 = vmatpush1.msra.mxu0 0.0
        %906 = vmatprep.subr.mxu0 0.0
        %907 = vmatpush1.msra.mxu0 0.0
        %908 = vmatprep.subr.mxu0 0.0
        %909 = vmatpush1.msra.mxu0 0.0
        %910 = vmatprep.subr.mxu0 0.0
        %911 = vmatpush1.msra.mxu0 0.0
        %912 = vmatprep.subr.mxu0 0.0
        %913 = vmatpush1.msra.mxu0 0.0
        %914 = vmatprep.subr.mxu0 0.0
        %915 = vmatpush1.msra.mxu0 %v734
        %916 = vmatprep.subr.mxu0 0.0
        %917 = vmatpush1.msra.mxu0 %v733
        %918 = vmatprep.subr.mxu0 0.0
        %919 = vmatpush1.msra.mxu0 %v732
        %920 = vmatprep.subr.mxu0 0.0
        %921 = vmatpush1.msra.mxu0 %v731
        %922 = vmatprep.subr.mxu0 0.0
        %923 = vmatpush2.msra.mxu0 0.0
        %924 = vmatprep.subr.mxu0 0.0
        %925 = vmatpush2.msra.mxu0 0.0
        %926 = vmatprep.subr.mxu0 0.0
        %927 = vmatpush2.msra.mxu0 0.0
        %928 = vmatprep.subr.mxu0 0.0
        %929 = vmatpush2.msra.mxu0 0.0
        %930 = vmatprep.subr.mxu0 0.0
        %931 = vmatpush2.msra.mxu0 0.0
        %932 = vmatprep.subr.mxu0 0.0
        %933 = vmatpush2.msra.mxu0 0.0
        %934 = vmatprep.subr.mxu0 0.0
        %935 = vmatpush2.msra.mxu0 0.0
        %936 = vmatprep.subr.mxu0 0.0
        %937 = vmatpush2.msra.mxu0 0.0
        %938 = vmatprep.subr.mxu0 0.0
        %939 = vmatpush2.msra.mxu0 0.0
        %940 = vmatprep.subr.mxu0 0.0
        %941 = vmatpush2.msra.mxu0 0.0
        %942 = vmatprep.subr.mxu0 0.0
        %943 = vmatpush2.msra.mxu0 0.0
        %944 = vmatprep.subr.mxu0 0.0
        %945 = vmatpush2.msra.mxu0 0.0
        %946 = vmatprep.subr.mxu0 0.0
        %947 = vmatpush2.msra.mxu0 0.0
        %948 = vmatprep.subr.mxu0 0.0
        %949 = vmatpush2.msra.mxu0 0.0
        %950 = vmatprep.subr.mxu0 0.0
        %951 = vmatpush2.msra.mxu0 0.0
        %952 = vmatprep.subr.mxu0 0.0
        %953 = vmatpush2.msra.mxu0 0.0
        %954 = vmatprep.mubr.f32.mxu0 0.0
        %955 = vmatmul.mubr.f32.gmra.mxu0 %v818
        %v956 = vpop.f32.mrf.mxu0
        %v957 = vadd.f32 %v803, %v956
        %v958 = vpop.f32.mrf.mxu0
        %959 = vdwg.mxu0
        %960 = vmatprep.subr.mxu0 0.0
        %961 = vmatpush1.msra.mxu0 0.0
        %962 = vmatprep.subr.mxu0 0.0
        %963 = vmatpush1.msra.mxu0 0.0
        %964 = vmatprep.subr.mxu0 0.0
        %965 = vmatpush1.msra.mxu0 0.0
        %966 = vmatprep.subr.mxu0 0.0
        %967 = vmatpush1.msra.mxu0 0.0
        %968 = vmatprep.subr.mxu0 0.0
        %969 = vmatpush1.msra.mxu0 0.0
        %970 = vmatprep.subr.mxu0 0.0
        %971 = vmatpush1.msra.mxu0 0.0
        %972 = vmatprep.subr.mxu0 0.0
        %973 = vmatpush1.msra.mxu0 0.0
        %974 = vmatprep.subr.mxu0 0.0
        %975 = vmatpush1.msra.mxu0 0.0
        %976 = vmatprep.subr.mxu0 0.0
        %977 = vmatpush1.msra.mxu0 0.0
        %978 = vmatprep.subr.mxu0 0.0
        %979 = vmatpush1.msra.mxu0 0.0
        %980 = vmatprep.subr.mxu0 0.0
        %981 = vmatpush1.msra.mxu0 0.0
        %982 = vmatprep.subr.mxu0 0.0
        %983 = vmatpush1.msra.mxu0 0.0
        %984 = vmatprep.subr.mxu0 0.0
        %985 = vmatpush1.msra.mxu0 %v738
        %986 = vmatprep.subr.mxu0 0.0
        %987 = vmatpush1.msra.mxu0 %v737
        %988 = vmatprep.subr.mxu0 0.0
        %989 = vmatpush1.msra.mxu0 %v736
        %990 = vmatprep.subr.mxu0 0.0
        %991 = vmatpush1.msra.mxu0 %v735
        %992 = vmatprep.subr.mxu0 0.0
        %993 = vmatpush2.msra.mxu0 0.0
        %994 = vmatprep.subr.mxu0 0.0
        %995 = vmatpush2.msra.mxu0 0.0
        %996 = vmatprep.subr.mxu0 0.0
        %997 = vmatpush2.msra.mxu0 0.0
        %998 = vmatprep.subr.mxu0 0.0
        %999 = vmatpush2.msra.mxu0 0.0
        %1000 = vmatprep.subr.mxu0 0.0
        %1001 = vmatpush2.msra.mxu0 0.0
        %1002 = vmatprep.subr.mxu0 0.0
        %1003 = vmatpush2.msra.mxu0 0.0
        %1004 = vmatprep.subr.mxu0 0.0
        %1005 = vmatpush2.msra.mxu0 0.0
        %1006 = vmatprep.subr.mxu0 0.0
        %1007 = vmatpush2.msra.mxu0 0.0
        %1008 = vmatprep.subr.mxu0 0.0
        %1009 = vmatpush2.msra.mxu0 0.0
        %1010 = vmatprep.subr.mxu0 0.0
        %1011 = vmatpush2.msra.mxu0 0.0
        %1012 = vmatprep.subr.mxu0 0.0
        %1013 = vmatpush2.msra.mxu0 0.0
        %1014 = vmatprep.subr.mxu0 0.0
        %1015 = vmatpush2.msra.mxu0 0.0
        %1016 = vmatprep.subr.mxu0 0.0
        %1017 = vmatpush2.msra.mxu0 0.0
        %1018 = vmatprep.subr.mxu0 0.0
        %1019 = vmatpush2.msra.mxu0 0.0
        %1020 = vmatprep.subr.mxu0 0.0
        %1021 = vmatpush2.msra.mxu0 0.0
        %1022 = vmatprep.subr.mxu0 0.0
        %1023 = vmatpush2.msra.mxu0 0.0
        %1024 = vmatprep.mubr.f32.mxu0 0.0
        %1025 = vmatmul.mubr.f32.gmra.mxu0 %v818
        %v1026 = vpop.f32.mrf.mxu0
        %v1027 = vadd.f32 %v807, %v1026
        %v1028 = vpop.f32.mrf.mxu0
        %1029 = vdwg.mxu0
        %1030 = vmatprep.subr.mxu0 0.0
        %1031 = vmatpush1.msra.mxu0 0.0
        %1032 = vmatprep.subr.mxu0 0.0
        %1033 = vmatpush1.msra.mxu0 0.0
        %1034 = vmatprep.subr.mxu0 0.0
        %1035 = vmatpush1.msra.mxu0 0.0
        %1036 = vmatprep.subr.mxu0 0.0
        %1037 = vmatpush1.msra.mxu0 0.0
        %1038 = vmatprep.subr.mxu0 0.0
        %1039 = vmatpush1.msra.mxu0 0.0
        %1040 = vmatprep.subr.mxu0 0.0
        %1041 = vmatpush1.msra.mxu0 0.0
        %1042 = vmatprep.subr.mxu0 0.0
        %1043 = vmatpush1.msra.mxu0 0.0
        %1044 = vmatprep.subr.mxu0 0.0
        %1045 = vmatpush1.msra.mxu0 0.0
        %1046 = vmatprep.subr.mxu0 0.0
        %1047 = vmatpush1.msra.mxu0 0.0
        %1048 = vmatprep.subr.mxu0 0.0
        %1049 = vmatpush1.msra.mxu0 0.0
        %1050 = vmatprep.subr.mxu0 0.0
        %1051 = vmatpush1.msra.mxu0 0.0
        %1052 = vmatprep.subr.mxu0 0.0
        %1053 = vmatpush1.msra.mxu0 0.0
        %1054 = vmatprep.subr.mxu0 0.0
        %1055 = vmatpush1.msra.mxu0 %v742
        %1056 = vmatprep.subr.mxu0 0.0
        %1057 = vmatpush1.msra.mxu0 %v741
        %1058 = vmatprep.subr.mxu0 0.0
        %1059 = vmatpush1.msra.mxu0 %v740
        %1060 = vmatprep.subr.mxu0 0.0
        %1061 = vmatpush1.msra.mxu0 %v739
        %1062 = vmatprep.subr.mxu0 0.0
        %1063 = vmatpush2.msra.mxu0 0.0
        %1064 = vmatprep.subr.mxu0 0.0
        %1065 = vmatpush2.msra.mxu0 0.0
        %1066 = vmatprep.subr.mxu0 0.0
        %1067 = vmatpush2.msra.mxu0 0.0
        %1068 = vmatprep.subr.mxu0 0.0
        %1069 = vmatpush2.msra.mxu0 0.0
        %1070 = vmatprep.subr.mxu0 0.0
        %1071 = vmatpush2.msra.mxu0 0.0
        %1072 = vmatprep.subr.mxu0 0.0
        %1073 = vmatpush2.msra.mxu0 0.0
        %1074 = vmatprep.subr.mxu0 0.0
        %1075 = vmatpush2.msra.mxu0 0.0
        %1076 = vmatprep.subr.mxu0 0.0
        %1077 = vmatpush2.msra.mxu0 0.0
        %1078 = vmatprep.subr.mxu0 0.0
        %1079 = vmatpush2.msra.mxu0 0.0
        %1080 = vmatprep.subr.mxu0 0.0
        %1081 = vmatpush2.msra.mxu0 0.0
        %1082 = vmatprep.subr.mxu0 0.0
        %1083 = vmatpush2.msra.mxu0 0.0
        %1084 = vmatprep.subr.mxu0 0.0
        %1085 = vmatpush2.msra.mxu0 0.0
        %1086 = vmatprep.subr.mxu0 0.0
        %1087 = vmatpush2.msra.mxu0 0.0
        %1088 = vmatprep.subr.mxu0 0.0
        %1089 = vmatpush2.msra.mxu0 0.0
        %1090 = vmatprep.subr.mxu0 0.0
        %1091 = vmatpush2.msra.mxu0 0.0
        %1092 = vmatprep.subr.mxu0 0.0
        %1093 = vmatpush2.msra.mxu0 0.0
        %1094 = vmatprep.mubr.f32.mxu0 0.0
        %1095 = vmatmul.mubr.f32.gmra.mxu0 %v818
        %v1096 = vpop.f32.mrf.mxu0
        %v1097 = vadd.f32 %v811, %v1096
        %v1098 = vpop.f32.mrf.mxu0
        %1099 = vdwg.mxu0
        %v1104 = vlaneseq
        %v1105 = vshrl.u32 %v1104, 7
        %v1106 = vsub.s32 0, %v1105
        %v1107 = vrot.slane %v763, %v1106
        %v1108 = vlaneseq
        %v1109 = vshrl.u32 %v1108, 7
        %v1110 = vsub.s32 0, %v1109
        %v1111 = vrot.slane %v764, %v1110
        %v1112 = vlaneseq
        %v1113 = vshrl.u32 %v1112, 7
        %v1114 = vsub.s32 0, %v1113
        %v1115 = vrot.slane %v765, %v1114
        %v1116 = vlaneseq
        %v1117 = vshrl.u32 %v1116, 7
        %v1118 = vsub.s32 0, %v1117
        %v1119 = vrot.slane %v766, %v1118
        %1124 = vmatprep.subr.mxu0 0.0
        %1125 = vmatpush1.msra.mxu0 0.0
        %1126 = vmatprep.subr.mxu0 0.0
        %1127 = vmatpush1.msra.mxu0 0.0
        %1128 = vmatprep.subr.mxu0 0.0
        %1129 = vmatpush1.msra.mxu0 0.0
        %1130 = vmatprep.subr.mxu0 0.0
        %1131 = vmatpush1.msra.mxu0 0.0
        %1132 = vmatprep.subr.mxu0 0.0
        %1133 = vmatpush1.msra.mxu0 0.0
        %1134 = vmatprep.subr.mxu0 0.0
        %1135 = vmatpush1.msra.mxu0 0.0
        %1136 = vmatprep.subr.mxu0 0.0
        %1137 = vmatpush1.msra.mxu0 0.0
        %1138 = vmatprep.subr.mxu0 0.0
        %1139 = vmatpush1.msra.mxu0 0.0
        %1140 = vmatprep.subr.mxu0 0.0
        %1141 = vmatpush1.msra.mxu0 0.0
        %1142 = vmatprep.subr.mxu0 0.0
        %1143 = vmatpush1.msra.mxu0 0.0
        %1144 = vmatprep.subr.mxu0 0.0
        %1145 = vmatpush1.msra.mxu0 0.0
        %1146 = vmatprep.subr.mxu0 0.0
        %1147 = vmatpush1.msra.mxu0 0.0
        %1148 = vmatprep.subr.mxu0 0.0
        %1149 = vmatpush1.msra.mxu0 %v750
        %1150 = vmatprep.subr.mxu0 0.0
        %1151 = vmatpush1.msra.mxu0 %v749
        %1152 = vmatprep.subr.mxu0 0.0
        %1153 = vmatpush1.msra.mxu0 %v748
        %1154 = vmatprep.subr.mxu0 0.0
        %1155 = vmatpush1.msra.mxu0 %v747
        %1156 = vmatprep.subr.mxu0 0.0
        %1157 = vmatpush2.msra.mxu0 0.0
        %1158 = vmatprep.subr.mxu0 0.0
        %1159 = vmatpush2.msra.mxu0 0.0
        %1160 = vmatprep.subr.mxu0 0.0
        %1161 = vmatpush2.msra.mxu0 0.0
        %1162 = vmatprep.subr.mxu0 0.0
        %1163 = vmatpush2.msra.mxu0 0.0
        %1164 = vmatprep.subr.mxu0 0.0
        %1165 = vmatpush2.msra.mxu0 0.0
        %1166 = vmatprep.subr.mxu0 0.0
        %1167 = vmatpush2.msra.mxu0 0.0
        %1168 = vmatprep.subr.mxu0 0.0
        %1169 = vmatpush2.msra.mxu0 0.0
        %1170 = vmatprep.subr.mxu0 0.0
        %1171 = vmatpush2.msra.mxu0 0.0
        %1172 = vmatprep.subr.mxu0 0.0
        %1173 = vmatpush2.msra.mxu0 0.0
        %1174 = vmatprep.subr.mxu0 0.0
        %1175 = vmatpush2.msra.mxu0 0.0
        %1176 = vmatprep.subr.mxu0 0.0
        %1177 = vmatpush2.msra.mxu0 0.0
        %1178 = vmatprep.subr.mxu0 0.0
        %1179 = vmatpush2.msra.mxu0 0.0
        %1180 = vmatprep.subr.mxu0 0.0
        %1181 = vmatpush2.msra.mxu0 0.0
        %1182 = vmatprep.subr.mxu0 0.0
        %1183 = vmatpush2.msra.mxu0 0.0
        %1184 = vmatprep.subr.mxu0 0.0
        %1185 = vmatpush2.msra.mxu0 0.0
        %1186 = vmatprep.subr.mxu0 0.0
        %1187 = vmatpush2.msra.mxu0 0.0
        %1188 = vmatprep.mubr.f32.mxu0 0.0
        %1189 = vmatmul.mubr.f32.gmra.mxu0 %v818
        %v1190 = vpop.f32.mrf.mxu0
        %v1191 = vadd.f32 %v1107, %v1190
        %v1192 = vpop.f32.mrf.mxu0
        %1193 = vdwg.mxu0
        %1194 = vmatprep.subr.mxu0 0.0
        %1195 = vmatpush1.msra.mxu0 0.0
        %1196 = vmatprep.subr.mxu0 0.0
        %1197 = vmatpush1.msra.mxu0 0.0
        %1198 = vmatprep.subr.mxu0 0.0
        %1199 = vmatpush1.msra.mxu0 0.0
        %1200 = vmatprep.subr.mxu0 0.0
        %1201 = vmatpush1.msra.mxu0 0.0
        %1202 = vmatprep.subr.mxu0 0.0
        %1203 = vmatpush1.msra.mxu0 0.0
        %1204 = vmatprep.subr.mxu0 0.0
        %1205 = vmatpush1.msra.mxu0 0.0
        %1206 = vmatprep.subr.mxu0 0.0
        %1207 = vmatpush1.msra.mxu0 0.0
        %1208 = vmatprep.subr.mxu0 0.0
        %1209 = vmatpush1.msra.mxu0 0.0
        %1210 = vmatprep.subr.mxu0 0.0
        %1211 = vmatpush1.msra.mxu0 0.0
        %1212 = vmatprep.subr.mxu0 0.0
        %1213 = vmatpush1.msra.mxu0 0.0
        %1214 = vmatprep.subr.mxu0 0.0
        %1215 = vmatpush1.msra.mxu0 0.0
        %1216 = vmatprep.subr.mxu0 0.0
        %1217 = vmatpush1.msra.mxu0 0.0
        %1218 = vmatprep.subr.mxu0 0.0
        %1219 = vmatpush1.msra.mxu0 %v754
        %1220 = vmatprep.subr.mxu0 0.0
        %1221 = vmatpush1.msra.mxu0 %v753
        %1222 = vmatprep.subr.mxu0 0.0
        %1223 = vmatpush1.msra.mxu0 %v752
        %1224 = vmatprep.subr.mxu0 0.0
        %1225 = vmatpush1.msra.mxu0 %v751
        %1226 = vmatprep.subr.mxu0 0.0
        %1227 = vmatpush2.msra.mxu0 0.0
        %1228 = vmatprep.subr.mxu0 0.0
        %1229 = vmatpush2.msra.mxu0 0.0
        %1230 = vmatprep.subr.mxu0 0.0
        %1231 = vmatpush2.msra.mxu0 0.0
        %1232 = vmatprep.subr.mxu0 0.0
        %1233 = vmatpush2.msra.mxu0 0.0
        %1234 = vmatprep.subr.mxu0 0.0
        %1235 = vmatpush2.msra.mxu0 0.0
        %1236 = vmatprep.subr.mxu0 0.0
        %1237 = vmatpush2.msra.mxu0 0.0
        %1238 = vmatprep.subr.mxu0 0.0
        %1239 = vmatpush2.msra.mxu0 0.0
        %1240 = vmatprep.subr.mxu0 0.0
        %1241 = vmatpush2.msra.mxu0 0.0
        %1242 = vmatprep.subr.mxu0 0.0
        %1243 = vmatpush2.msra.mxu0 0.0
        %1244 = vmatprep.subr.mxu0 0.0
        %1245 = vmatpush2.msra.mxu0 0.0
        %1246 = vmatprep.subr.mxu0 0.0
        %1247 = vmatpush2.msra.mxu0 0.0
        %1248 = vmatprep.subr.mxu0 0.0
        %1249 = vmatpush2.msra.mxu0 0.0
        %1250 = vmatprep.subr.mxu0 0.0
        %1251 = vmatpush2.msra.mxu0 0.0
        %1252 = vmatprep.subr.mxu0 0.0
        %1253 = vmatpush2.msra.mxu0 0.0
        %1254 = vmatprep.subr.mxu0 0.0
        %1255 = vmatpush2.msra.mxu0 0.0
        %1256 = vmatprep.subr.mxu0 0.0
        %1257 = vmatpush2.msra.mxu0 0.0
        %1258 = vmatprep.mubr.f32.mxu0 0.0
        %1259 = vmatmul.mubr.f32.gmra.mxu0 %v818
        %v1260 = vpop.f32.mrf.mxu0
        %v1261 = vadd.f32 %v1111, %v1260
        %v1262 = vpop.f32.mrf.mxu0
        %1263 = vdwg.mxu0
        %1264 = vmatprep.subr.mxu0 0.0
        %1265 = vmatpush1.msra.mxu0 0.0
        %1266 = vmatprep.subr.mxu0 0.0
        %1267 = vmatpush1.msra.mxu0 0.0
        %1268 = vmatprep.subr.mxu0 0.0
        %1269 = vmatpush1.msra.mxu0 0.0
        %1270 = vmatprep.subr.mxu0 0.0
        %1271 = vmatpush1.msra.mxu0 0.0
        %1272 = vmatprep.subr.mxu0 0.0
        %1273 = vmatpush1.msra.mxu0 0.0
        %1274 = vmatprep.subr.mxu0 0.0
        %1275 = vmatpush1.msra.mxu0 0.0
        %1276 = vmatprep.subr.mxu0 0.0
        %1277 = vmatpush1.msra.mxu0 0.0
        %1278 = vmatprep.subr.mxu0 0.0
        %1279 = vmatpush1.msra.mxu0 0.0
        %1280 = vmatprep.subr.mxu0 0.0
        %1281 = vmatpush1.msra.mxu0 0.0
        %1282 = vmatprep.subr.mxu0 0.0
        %1283 = vmatpush1.msra.mxu0 0.0
        %1284 = vmatprep.subr.mxu0 0.0
        %1285 = vmatpush1.msra.mxu0 0.0
        %1286 = vmatprep.subr.mxu0 0.0
        %1287 = vmatpush1.msra.mxu0 0.0
        %1288 = vmatprep.subr.mxu0 0.0
        %1289 = vmatpush1.msra.mxu0 %v758
        %1290 = vmatprep.subr.mxu0 0.0
        %1291 = vmatpush1.msra.mxu0 %v757
        %1292 = vmatprep.subr.mxu0 0.0
        %1293 = vmatpush1.msra.mxu0 %v756
        %1294 = vmatprep.subr.mxu0 0.0
        %1295 = vmatpush1.msra.mxu0 %v755
        %1296 = vmatprep.subr.mxu0 0.0
        %1297 = vmatpush2.msra.mxu0 0.0
        %1298 = vmatprep.subr.mxu0 0.0
        %1299 = vmatpush2.msra.mxu0 0.0
        %1300 = vmatprep.subr.mxu0 0.0
        %1301 = vmatpush2.msra.mxu0 0.0
        %1302 = vmatprep.subr.mxu0 0.0
        %1303 = vmatpush2.msra.mxu0 0.0
        %1304 = vmatprep.subr.mxu0 0.0
        %1305 = vmatpush2.msra.mxu0 0.0
        %1306 = vmatprep.subr.mxu0 0.0
        %1307 = vmatpush2.msra.mxu0 0.0
        %1308 = vmatprep.subr.mxu0 0.0
        %1309 = vmatpush2.msra.mxu0 0.0
        %1310 = vmatprep.subr.mxu0 0.0
        %1311 = vmatpush2.msra.mxu0 0.0
        %1312 = vmatprep.subr.mxu0 0.0
        %1313 = vmatpush2.msra.mxu0 0.0
        %1314 = vmatprep.subr.mxu0 0.0
        %1315 = vmatpush2.msra.mxu0 0.0
        %1316 = vmatprep.subr.mxu0 0.0
        %1317 = vmatpush2.msra.mxu0 0.0
        %1318 = vmatprep.subr.mxu0 0.0
        %1319 = vmatpush2.msra.mxu0 0.0
        %1320 = vmatprep.subr.mxu0 0.0
        %1321 = vmatpush2.msra.mxu0 0.0
        %1322 = vmatprep.subr.mxu0 0.0
        %1323 = vmatpush2.msra.mxu0 0.0
        %1324 = vmatprep.subr.mxu0 0.0
        %1325 = vmatpush2.msra.mxu0 0.0
        %1326 = vmatprep.subr.mxu0 0.0
        %1327 = vmatpush2.msra.mxu0 0.0
        %1328 = vmatprep.mubr.f32.mxu0 0.0
        %1329 = vmatmul.mubr.f32.gmra.mxu0 %v818
        %v1330 = vpop.f32.mrf.mxu0
        %v1331 = vadd.f32 %v1115, %v1330
        %v1332 = vpop.f32.mrf.mxu0
        %1333 = vdwg.mxu0
        %1334 = vmatprep.subr.mxu0 0.0
        %1335 = vmatpush1.msra.mxu0 0.0
        %1336 = vmatprep.subr.mxu0 0.0
        %1337 = vmatpush1.msra.mxu0 0.0
        %1338 = vmatprep.subr.mxu0 0.0
        %1339 = vmatpush1.msra.mxu0 0.0
        %1340 = vmatprep.subr.mxu0 0.0
        %1341 = vmatpush1.msra.mxu0 0.0
        %1342 = vmatprep.subr.mxu0 0.0
        %1343 = vmatpush1.msra.mxu0 0.0
        %1344 = vmatprep.subr.mxu0 0.0
        %1345 = vmatpush1.msra.mxu0 0.0
        %1346 = vmatprep.subr.mxu0 0.0
        %1347 = vmatpush1.msra.mxu0 0.0
        %1348 = vmatprep.subr.mxu0 0.0
        %1349 = vmatpush1.msra.mxu0 0.0
        %1350 = vmatprep.subr.mxu0 0.0
        %1351 = vmatpush1.msra.mxu0 0.0
        %1352 = vmatprep.subr.mxu0 0.0
        %1353 = vmatpush1.msra.mxu0 0.0
        %1354 = vmatprep.subr.mxu0 0.0
        %1355 = vmatpush1.msra.mxu0 0.0
        %1356 = vmatprep.subr.mxu0 0.0
        %1357 = vmatpush1.msra.mxu0 0.0
        %1358 = vmatprep.subr.mxu0 0.0
        %1359 = vmatpush1.msra.mxu0 %v762
        %1360 = vmatprep.subr.mxu0 0.0
        %1361 = vmatpush1.msra.mxu0 %v761
        %1362 = vmatprep.subr.mxu0 0.0
        %1363 = vmatpush1.msra.mxu0 %v760
        %1364 = vmatprep.subr.mxu0 0.0
        %1365 = vmatpush1.msra.mxu0 %v759
        %1366 = vmatprep.subr.mxu0 0.0
        %1367 = vmatpush2.msra.mxu0 0.0
        %1368 = vmatprep.subr.mxu0 0.0
        %1369 = vmatpush2.msra.mxu0 0.0
        %1370 = vmatprep.subr.mxu0 0.0
        %1371 = vmatpush2.msra.mxu0 0.0
        %1372 = vmatprep.subr.mxu0 0.0
        %1373 = vmatpush2.msra.mxu0 0.0
        %1374 = vmatprep.subr.mxu0 0.0
        %1375 = vmatpush2.msra.mxu0 0.0
        %1376 = vmatprep.subr.mxu0 0.0
        %1377 = vmatpush2.msra.mxu0 0.0
        %1378 = vmatprep.subr.mxu0 0.0
        %1379 = vmatpush2.msra.mxu0 0.0
        %1380 = vmatprep.subr.mxu0 0.0
        %1381 = vmatpush2.msra.mxu0 0.0
        %1382 = vmatprep.subr.mxu0 0.0
        %1383 = vmatpush2.msra.mxu0 0.0
        %1384 = vmatprep.subr.mxu0 0.0
        %1385 = vmatpush2.msra.mxu0 0.0
        %1386 = vmatprep.subr.mxu0 0.0
        %1387 = vmatpush2.msra.mxu0 0.0
        %1388 = vmatprep.subr.mxu0 0.0
        %1389 = vmatpush2.msra.mxu0 0.0
        %1390 = vmatprep.subr.mxu0 0.0
        %1391 = vmatpush2.msra.mxu0 0.0
        %1392 = vmatprep.subr.mxu0 0.0
        %1393 = vmatpush2.msra.mxu0 0.0
        %1394 = vmatprep.subr.mxu0 0.0
        %1395 = vmatpush2.msra.mxu0 0.0
        %1396 = vmatprep.subr.mxu0 0.0
        %1397 = vmatpush2.msra.mxu0 0.0
        %1398 = vmatprep.mubr.f32.mxu0 0.0
        %1399 = vmatmul.mubr.f32.gmra.mxu0 %v818
        %v1400 = vpop.f32.mrf.mxu0
        %v1401 = vadd.f32 %v1119, %v1400
        %v1402 = vpop.f32.mrf.mxu0
        %1403 = vdwg.mxu0
        %v1408 = vlaneseq
        %v1409 = vshrl.u32 %v1408, 7
        %v1410 = vsub.s32 0, %v1409
        %v1411 = vrot.slane %v783, %v1410
        %v1412 = vlaneseq
        %v1413 = vshrl.u32 %v1412, 7
        %v1414 = vsub.s32 0, %v1413
        %v1415 = vrot.slane %v784, %v1414
        %v1416 = vlaneseq
        %v1417 = vshrl.u32 %v1416, 7
        %v1418 = vsub.s32 0, %v1417
        %v1419 = vrot.slane %v785, %v1418
        %v1420 = vlaneseq
        %v1421 = vshrl.u32 %v1420, 7
        %v1422 = vsub.s32 0, %v1421
        %v1423 = vrot.slane %v786, %v1422
        %1428 = vmatprep.subr.mxu0 0.0
        %1429 = vmatpush1.msra.mxu0 0.0
        %1430 = vmatprep.subr.mxu0 0.0
        %1431 = vmatpush1.msra.mxu0 0.0
        %1432 = vmatprep.subr.mxu0 0.0
        %1433 = vmatpush1.msra.mxu0 0.0
        %1434 = vmatprep.subr.mxu0 0.0
        %1435 = vmatpush1.msra.mxu0 0.0
        %1436 = vmatprep.subr.mxu0 0.0
        %1437 = vmatpush1.msra.mxu0 0.0
        %1438 = vmatprep.subr.mxu0 0.0
        %1439 = vmatpush1.msra.mxu0 0.0
        %1440 = vmatprep.subr.mxu0 0.0
        %1441 = vmatpush1.msra.mxu0 0.0
        %1442 = vmatprep.subr.mxu0 0.0
        %1443 = vmatpush1.msra.mxu0 0.0
        %1444 = vmatprep.subr.mxu0 0.0
        %1445 = vmatpush1.msra.mxu0 0.0
        %1446 = vmatprep.subr.mxu0 0.0
        %1447 = vmatpush1.msra.mxu0 0.0
        %1448 = vmatprep.subr.mxu0 0.0
        %1449 = vmatpush1.msra.mxu0 0.0
        %1450 = vmatprep.subr.mxu0 0.0
        %1451 = vmatpush1.msra.mxu0 0.0
        %1452 = vmatprep.subr.mxu0 0.0
        %1453 = vmatpush1.msra.mxu0 %v770
        %1454 = vmatprep.subr.mxu0 0.0
        %1455 = vmatpush1.msra.mxu0 %v769
        %1456 = vmatprep.subr.mxu0 0.0
        %1457 = vmatpush1.msra.mxu0 %v768
        %1458 = vmatprep.subr.mxu0 0.0
        %1459 = vmatpush1.msra.mxu0 %v767
        %1460 = vmatprep.subr.mxu0 0.0
        %1461 = vmatpush2.msra.mxu0 0.0
        %1462 = vmatprep.subr.mxu0 0.0
        %1463 = vmatpush2.msra.mxu0 0.0
        %1464 = vmatprep.subr.mxu0 0.0
        %1465 = vmatpush2.msra.mxu0 0.0
        %1466 = vmatprep.subr.mxu0 0.0
        %1467 = vmatpush2.msra.mxu0 0.0
        %1468 = vmatprep.subr.mxu0 0.0
        %1469 = vmatpush2.msra.mxu0 0.0
        %1470 = vmatprep.subr.mxu0 0.0
        %1471 = vmatpush2.msra.mxu0 0.0
        %1472 = vmatprep.subr.mxu0 0.0
        %1473 = vmatpush2.msra.mxu0 0.0
        %1474 = vmatprep.subr.mxu0 0.0
        %1475 = vmatpush2.msra.mxu0 0.0
        %1476 = vmatprep.subr.mxu0 0.0
        %1477 = vmatpush2.msra.mxu0 0.0
        %1478 = vmatprep.subr.mxu0 0.0
        %1479 = vmatpush2.msra.mxu0 0.0
        %1480 = vmatprep.subr.mxu0 0.0
        %1481 = vmatpush2.msra.mxu0 0.0
        %1482 = vmatprep.subr.mxu0 0.0
        %1483 = vmatpush2.msra.mxu0 0.0
        %1484 = vmatprep.subr.mxu0 0.0
        %1485 = vmatpush2.msra.mxu0 0.0
        %1486 = vmatprep.subr.mxu0 0.0
        %1487 = vmatpush2.msra.mxu0 0.0
        %1488 = vmatprep.subr.mxu0 0.0
        %1489 = vmatpush2.msra.mxu0 0.0
        %1490 = vmatprep.subr.mxu0 0.0
        %1491 = vmatpush2.msra.mxu0 0.0
        %1492 = vmatprep.mubr.f32.mxu0 0.0
        %1493 = vmatmul.mubr.f32.gmra.mxu0 %v818
        %v1494 = vpop.f32.mrf.mxu0
        %v1495 = vadd.f32 %v1411, %v1494
        %v1496 = vpop.f32.mrf.mxu0
        %1497 = vdwg.mxu0
        %1498 = vmatprep.subr.mxu0 0.0
        %1499 = vmatpush1.msra.mxu0 0.0
        %1500 = vmatprep.subr.mxu0 0.0
        %1501 = vmatpush1.msra.mxu0 0.0
        %1502 = vmatprep.subr.mxu0 0.0
        %1503 = vmatpush1.msra.mxu0 0.0
        %1504 = vmatprep.subr.mxu0 0.0
        %1505 = vmatpush1.msra.mxu0 0.0
        %1506 = vmatprep.subr.mxu0 0.0
        %1507 = vmatpush1.msra.mxu0 0.0
        %1508 = vmatprep.subr.mxu0 0.0
        %1509 = vmatpush1.msra.mxu0 0.0
        %1510 = vmatprep.subr.mxu0 0.0
        %1511 = vmatpush1.msra.mxu0 0.0
        %1512 = vmatprep.subr.mxu0 0.0
        %1513 = vmatpush1.msra.mxu0 0.0
        %1514 = vmatprep.subr.mxu0 0.0
        %1515 = vmatpush1.msra.mxu0 0.0
        %1516 = vmatprep.subr.mxu0 0.0
        %1517 = vmatpush1.msra.mxu0 0.0
        %1518 = vmatprep.subr.mxu0 0.0
        %1519 = vmatpush1.msra.mxu0 0.0
        %1520 = vmatprep.subr.mxu0 0.0
        %1521 = vmatpush1.msra.mxu0 0.0
        %1522 = vmatprep.subr.mxu0 0.0
        %1523 = vmatpush1.msra.mxu0 %v774
        %1524 = vmatprep.subr.mxu0 0.0
        %1525 = vmatpush1.msra.mxu0 %v773
        %1526 = vmatprep.subr.mxu0 0.0
        %1527 = vmatpush1.msra.mxu0 %v772
        %1528 = vmatprep.subr.mxu0 0.0
        %1529 = vmatpush1.msra.mxu0 %v771
        %1530 = vmatprep.subr.mxu0 0.0
        %1531 = vmatpush2.msra.mxu0 0.0
        %1532 = vmatprep.subr.mxu0 0.0
        %1533 = vmatpush2.msra.mxu0 0.0
        %1534 = vmatprep.subr.mxu0 0.0
        %1535 = vmatpush2.msra.mxu0 0.0
        %1536 = vmatprep.subr.mxu0 0.0
        %1537 = vmatpush2.msra.mxu0 0.0
        %1538 = vmatprep.subr.mxu0 0.0
        %1539 = vmatpush2.msra.mxu0 0.0
        %1540 = vmatprep.subr.mxu0 0.0
        %1541 = vmatpush2.msra.mxu0 0.0
        %1542 = vmatprep.subr.mxu0 0.0
        %1543 = vmatpush2.msra.mxu0 0.0
        %1544 = vmatprep.subr.mxu0 0.0
        %1545 = vmatpush2.msra.mxu0 0.0
        %1546 = vmatprep.subr.mxu0 0.0
        %1547 = vmatpush2.msra.mxu0 0.0
        %1548 = vmatprep.subr.mxu0 0.0
        %1549 = vmatpush2.msra.mxu0 0.0
        %1550 = vmatprep.subr.mxu0 0.0
        %1551 = vmatpush2.msra.mxu0 0.0
        %1552 = vmatprep.subr.mxu0 0.0
        %1553 = vmatpush2.msra.mxu0 0.0
        %1554 = vmatprep.subr.mxu0 0.0
        %1555 = vmatpush2.msra.mxu0 0.0
        %1556 = vmatprep.subr.mxu0 0.0
        %1557 = vmatpush2.msra.mxu0 0.0
        %1558 = vmatprep.subr.mxu0 0.0
        %1559 = vmatpush2.msra.mxu0 0.0
        %1560 = vmatprep.subr.mxu0 0.0
        %1561 = vmatpush2.msra.mxu0 0.0
        %1562 = vmatprep.mubr.f32.mxu0 0.0
        %1563 = vmatmul.mubr.f32.gmra.mxu0 %v818
        %v1564 = vpop.f32.mrf.mxu0
        %v1565 = vadd.f32 %v1415, %v1564
        %v1566 = vpop.f32.mrf.mxu0
        %1567 = vdwg.mxu0
        %1568 = vmatprep.subr.mxu0 0.0
        %1569 = vmatpush1.msra.mxu0 0.0
        %1570 = vmatprep.subr.mxu0 0.0
        %1571 = vmatpush1.msra.mxu0 0.0
        %1572 = vmatprep.subr.mxu0 0.0
        %1573 = vmatpush1.msra.mxu0 0.0
        %1574 = vmatprep.subr.mxu0 0.0
        %1575 = vmatpush1.msra.mxu0 0.0
        %1576 = vmatprep.subr.mxu0 0.0
        %1577 = vmatpush1.msra.mxu0 0.0
        %1578 = vmatprep.subr.mxu0 0.0
        %1579 = vmatpush1.msra.mxu0 0.0
        %1580 = vmatprep.subr.mxu0 0.0
        %1581 = vmatpush1.msra.mxu0 0.0
        %1582 = vmatprep.subr.mxu0 0.0
        %1583 = vmatpush1.msra.mxu0 0.0
        %1584 = vmatprep.subr.mxu0 0.0
        %1585 = vmatpush1.msra.mxu0 0.0
        %1586 = vmatprep.subr.mxu0 0.0
        %1587 = vmatpush1.msra.mxu0 0.0
        %1588 = vmatprep.subr.mxu0 0.0
        %1589 = vmatpush1.msra.mxu0 0.0
        %1590 = vmatprep.subr.mxu0 0.0
        %1591 = vmatpush1.msra.mxu0 0.0
        %1592 = vmatprep.subr.mxu0 0.0
        %1593 = vmatpush1.msra.mxu0 %v778
        %1594 = vmatprep.subr.mxu0 0.0
        %1595 = vmatpush1.msra.mxu0 %v777
        %1596 = vmatprep.subr.mxu0 0.0
        %1597 = vmatpush1.msra.mxu0 %v776
        %1598 = vmatprep.subr.mxu0 0.0
        %1599 = vmatpush1.msra.mxu0 %v775
        %1600 = vmatprep.subr.mxu0 0.0
        %1601 = vmatpush2.msra.mxu0 0.0
        %1602 = vmatprep.subr.mxu0 0.0
        %1603 = vmatpush2.msra.mxu0 0.0
        %1604 = vmatprep.subr.mxu0 0.0
        %1605 = vmatpush2.msra.mxu0 0.0
        %1606 = vmatprep.subr.mxu0 0.0
        %1607 = vmatpush2.msra.mxu0 0.0
        %1608 = vmatprep.subr.mxu0 0.0
        %1609 = vmatpush2.msra.mxu0 0.0
        %1610 = vmatprep.subr.mxu0 0.0
        %1611 = vmatpush2.msra.mxu0 0.0
        %1612 = vmatprep.subr.mxu0 0.0
        %1613 = vmatpush2.msra.mxu0 0.0
        %1614 = vmatprep.subr.mxu0 0.0
        %1615 = vmatpush2.msra.mxu0 0.0
        %1616 = vmatprep.subr.mxu0 0.0
        %1617 = vmatpush2.msra.mxu0 0.0
        %1618 = vmatprep.subr.mxu0 0.0
        %1619 = vmatpush2.msra.mxu0 0.0
        %1620 = vmatprep.subr.mxu0 0.0
        %1621 = vmatpush2.msra.mxu0 0.0
        %1622 = vmatprep.subr.mxu0 0.0
        %1623 = vmatpush2.msra.mxu0 0.0
        %1624 = vmatprep.subr.mxu0 0.0
        %1625 = vmatpush2.msra.mxu0 0.0
        %1626 = vmatprep.subr.mxu0 0.0
        %1627 = vmatpush2.msra.mxu0 0.0
        %1628 = vmatprep.subr.mxu0 0.0
        %1629 = vmatpush2.msra.mxu0 0.0
        %1630 = vmatprep.subr.mxu0 0.0
        %1631 = vmatpush2.msra.mxu0 0.0
        %1632 = vmatprep.mubr.f32.mxu0 0.0
        %1633 = vmatmul.mubr.f32.gmra.mxu0 %v818
        %v1634 = vpop.f32.mrf.mxu0
        %v1635 = vadd.f32 %v1419, %v1634
        %v1636 = vpop.f32.mrf.mxu0
        %1637 = vdwg.mxu0
        %1638 = vmatprep.subr.mxu0 0.0
        %1639 = vmatpush1.msra.mxu0 0.0
        %1640 = vmatprep.subr.mxu0 0.0
        %1641 = vmatpush1.msra.mxu0 0.0
        %1642 = vmatprep.subr.mxu0 0.0
        %1643 = vmatpush1.msra.mxu0 0.0
        %1644 = vmatprep.subr.mxu0 0.0
        %1645 = vmatpush1.msra.mxu0 0.0
        %1646 = vmatprep.subr.mxu0 0.0
        %1647 = vmatpush1.msra.mxu0 0.0
        %1648 = vmatprep.subr.mxu0 0.0
        %1649 = vmatpush1.msra.mxu0 0.0
        %1650 = vmatprep.subr.mxu0 0.0
        %1651 = vmatpush1.msra.mxu0 0.0
        %1652 = vmatprep.subr.mxu0 0.0
        %1653 = vmatpush1.msra.mxu0 0.0
        %1654 = vmatprep.subr.mxu0 0.0
        %1655 = vmatpush1.msra.mxu0 0.0
        %1656 = vmatprep.subr.mxu0 0.0
        %1657 = vmatpush1.msra.mxu0 0.0
        %1658 = vmatprep.subr.mxu0 0.0
        %1659 = vmatpush1.msra.mxu0 0.0
        %1660 = vmatprep.subr.mxu0 0.0
        %1661 = vmatpush1.msra.mxu0 0.0
        %1662 = vmatprep.subr.mxu0 0.0
        %1663 = vmatpush1.msra.mxu0 %v782
        %1664 = vmatprep.subr.mxu0 0.0
        %1665 = vmatpush1.msra.mxu0 %v781
        %1666 = vmatprep.subr.mxu0 0.0
        %1667 = vmatpush1.msra.mxu0 %v780
        %1668 = vmatprep.subr.mxu0 0.0
        %1669 = vmatpush1.msra.mxu0 %v779
        %1670 = vmatprep.subr.mxu0 0.0
        %1671 = vmatpush2.msra.mxu0 0.0
        %1672 = vmatprep.subr.mxu0 0.0
        %1673 = vmatpush2.msra.mxu0 0.0
        %1674 = vmatprep.subr.mxu0 0.0
        %1675 = vmatpush2.msra.mxu0 0.0
        %1676 = vmatprep.subr.mxu0 0.0
        %1677 = vmatpush2.msra.mxu0 0.0
        %1678 = vmatprep.subr.mxu0 0.0
        %1679 = vmatpush2.msra.mxu0 0.0
        %1680 = vmatprep.subr.mxu0 0.0
        %1681 = vmatpush2.msra.mxu0 0.0
        %1682 = vmatprep.subr.mxu0 0.0
        %1683 = vmatpush2.msra.mxu0 0.0
        %1684 = vmatprep.subr.mxu0 0.0
        %1685 = vmatpush2.msra.mxu0 0.0
        %1686 = vmatprep.subr.mxu0 0.0
        %1687 = vmatpush2.msra.mxu0 0.0
        %1688 = vmatprep.subr.mxu0 0.0
        %1689 = vmatpush2.msra.mxu0 0.0
        %1690 = vmatprep.subr.mxu0 0.0
        %1691 = vmatpush2.msra.mxu0 0.0
        %1692 = vmatprep.subr.mxu0 0.0
        %1693 = vmatpush2.msra.mxu0 0.0
        %1694 = vmatprep.subr.mxu0 0.0
        %1695 = vmatpush2.msra.mxu0 0.0
        %1696 = vmatprep.subr.mxu0 0.0
        %1697 = vmatpush2.msra.mxu0 0.0
        %1698 = vmatprep.subr.mxu0 0.0
        %1699 = vmatpush2.msra.mxu0 0.0
        %1700 = vmatprep.subr.mxu0 0.0
        %1701 = vmatpush2.msra.mxu0 0.0
        %1702 = vmatprep.mubr.f32.mxu0 0.0
        %1703 = vmatmul.mubr.f32.gmra.mxu0 %v818
        %v1704 = vpop.f32.mrf.mxu0
        %v1705 = vadd.f32 %v1423, %v1704
        %v1706 = vpop.f32.mrf.mxu0
        %1707 = vdwg.mxu0
        %vm1708 = vcmask 64512
        %v1710 = vsel %vm1708, %v887, 0
        %v1713 = vsel %vm1708, %v1191, 0
        %1715 = vmatprep.subr.mxu0 0.0
        %1716 = vmatpush1.xpose.msra.mxu0 0.0
        %1717 = vmatprep.subr.mxu0 0.0
        %1718 = vmatpush1.xpose.msra.mxu0 0.0
        %1719 = vmatprep.subr.mxu0 0.0
        %1720 = vmatpush1.xpose.msra.mxu0 0.0
        %1721 = vmatprep.subr.mxu0 0.0
        %1722 = vmatpush1.xpose.msra.mxu0 0.0
        %1723 = vmatprep.subr.mxu0 0.0
        %1724 = vmatpush1.xpose.msra.mxu0 0.0
        %1725 = vmatprep.subr.mxu0 0.0
        %1726 = vmatpush1.xpose.msra.mxu0 0.0
        %1727 = vmatprep.subr.mxu0 0.0
        %1728 = vmatpush1.xpose.msra.mxu0 0.0
        %1729 = vmatprep.subr.mxu0 0.0
        %1730 = vmatpush1.xpose.msra.mxu0 0.0
        %1731 = vmatprep.subr.mxu0 0.0
        %1732 = vmatpush1.xpose.msra.mxu0 0.0
        %1733 = vmatprep.subr.mxu0 0.0
        %1734 = vmatpush1.xpose.msra.mxu0 0.0
        %1735 = vmatprep.subr.mxu0 0.0
        %1736 = vmatpush1.xpose.msra.mxu0 0.0
        %1737 = vmatprep.subr.mxu0 0.0
        %1738 = vmatpush1.xpose.msra.mxu0 0.0
        %1739 = vmatprep.subr.mxu0 0.0
        %1740 = vmatpush1.xpose.msra.mxu0 0.0
        %1741 = vmatprep.subr.mxu0 0.0
        %1742 = vmatpush1.xpose.msra.mxu0 0.0
        %1743 = vmatprep.subr.mxu0 0.0
        %1744 = vmatpush1.xpose.msra.mxu0 0.0
        %1745 = vmatprep.subr.mxu0 0.0
        %1746 = vmatpush1.xpose.msra.mxu0 %v1713
        %1747 = vmatprep.subr.mxu0 0.0
        %1748 = vmatpush2.xpose.msra.mxu0 0.0
        %1749 = vmatprep.subr.mxu0 0.0
        %1750 = vmatpush2.xpose.msra.mxu0 0.0
        %1751 = vmatprep.subr.mxu0 0.0
        %1752 = vmatpush2.xpose.msra.mxu0 0.0
        %1753 = vmatprep.subr.mxu0 0.0
        %1754 = vmatpush2.xpose.msra.mxu0 0.0
        %1755 = vmatprep.subr.mxu0 0.0
        %1756 = vmatpush2.xpose.msra.mxu0 0.0
        %1757 = vmatprep.subr.mxu0 0.0
        %1758 = vmatpush2.xpose.msra.mxu0 0.0
        %1759 = vmatprep.subr.mxu0 0.0
        %1760 = vmatpush2.xpose.msra.mxu0 0.0
        %1761 = vmatprep.subr.mxu0 0.0
        %1762 = vmatpush2.xpose.msra.mxu0 0.0
        %1763 = vmatprep.subr.mxu0 0.0
        %1764 = vmatpush2.xpose.msra.mxu0 0.0
        %1765 = vmatprep.subr.mxu0 0.0
        %1766 = vmatpush2.xpose.msra.mxu0 0.0
        %1767 = vmatprep.subr.mxu0 0.0
        %1768 = vmatpush2.xpose.msra.mxu0 0.0
        %1769 = vmatprep.subr.mxu0 0.0
        %1770 = vmatpush2.xpose.msra.mxu0 0.0
        %1771 = vmatprep.subr.mxu0 0.0
        %1772 = vmatpush2.xpose.msra.mxu0 0.0
        %1773 = vmatprep.subr.mxu0 0.0
        %1774 = vmatpush2.xpose.msra.mxu0 0.0
        %1775 = vmatprep.subr.mxu0 0.0
        %1776 = vmatpush2.xpose.msra.mxu0 0.0
        %1777 = vmatprep.subr.mxu0 0.0
        %1778 = vmatpush2.xpose.msra.mxu0 0.0
        %1779 = vmatprep.mubr.f32.mxu0 0.0
        %1780 = vmatmul.mubr.f32.gmra.mxu0 %v1710
        %v1781 = vpop.f32.mrf.mxu0
        %v1782 = vadd.f32 0.0, %v1781
        %v1783 = vpop.f32.mrf.mxu0
        %1784 = vdwg.mxu0
        %v1786 = vsel %vm1708, %v957, 0
        %v1789 = vsel %vm1708, %v1261, 0
        %1791 = vmatprep.subr.mxu0 0.0
        %1792 = vmatpush1.xpose.msra.mxu0 0.0
        %1793 = vmatprep.subr.mxu0 0.0
        %1794 = vmatpush1.xpose.msra.mxu0 0.0
        %1795 = vmatprep.subr.mxu0 0.0
        %1796 = vmatpush1.xpose.msra.mxu0 0.0
        %1797 = vmatprep.subr.mxu0 0.0
        %1798 = vmatpush1.xpose.msra.mxu0 0.0
        %1799 = vmatprep.subr.mxu0 0.0
        %1800 = vmatpush1.xpose.msra.mxu0 0.0
        %1801 = vmatprep.subr.mxu0 0.0
        %1802 = vmatpush1.xpose.msra.mxu0 0.0
        %1803 = vmatprep.subr.mxu0 0.0
        %1804 = vmatpush1.xpose.msra.mxu0 0.0
        %1805 = vmatprep.subr.mxu0 0.0
        %1806 = vmatpush1.xpose.msra.mxu0 0.0
        %1807 = vmatprep.subr.mxu0 0.0
        %1808 = vmatpush1.xpose.msra.mxu0 0.0
        %1809 = vmatprep.subr.mxu0 0.0
        %1810 = vmatpush1.xpose.msra.mxu0 0.0
        %1811 = vmatprep.subr.mxu0 0.0
        %1812 = vmatpush1.xpose.msra.mxu0 0.0
        %1813 = vmatprep.subr.mxu0 0.0
        %1814 = vmatpush1.xpose.msra.mxu0 0.0
        %1815 = vmatprep.subr.mxu0 0.0
        %1816 = vmatpush1.xpose.msra.mxu0 0.0
        %1817 = vmatprep.subr.mxu0 0.0
        %1818 = vmatpush1.xpose.msra.mxu0 0.0
        %1819 = vmatprep.subr.mxu0 0.0
        %1820 = vmatpush1.xpose.msra.mxu0 0.0
        %1821 = vmatprep.subr.mxu0 0.0
        %1822 = vmatpush1.xpose.msra.mxu0 %v1789
        %1823 = vmatprep.subr.mxu0 0.0
        %1824 = vmatpush2.xpose.msra.mxu0 0.0
        %1825 = vmatprep.subr.mxu0 0.0
        %1826 = vmatpush2.xpose.msra.mxu0 0.0
        %1827 = vmatprep.subr.mxu0 0.0
        %1828 = vmatpush2.xpose.msra.mxu0 0.0
        %1829 = vmatprep.subr.mxu0 0.0
        %1830 = vmatpush2.xpose.msra.mxu0 0.0
        %1831 = vmatprep.subr.mxu0 0.0
        %1832 = vmatpush2.xpose.msra.mxu0 0.0
        %1833 = vmatprep.subr.mxu0 0.0
        %1834 = vmatpush2.xpose.msra.mxu0 0.0
        %1835 = vmatprep.subr.mxu0 0.0
        %1836 = vmatpush2.xpose.msra.mxu0 0.0
        %1837 = vmatprep.subr.mxu0 0.0
        %1838 = vmatpush2.xpose.msra.mxu0 0.0
        %1839 = vmatprep.subr.mxu0 0.0
        %1840 = vmatpush2.xpose.msra.mxu0 0.0
        %1841 = vmatprep.subr.mxu0 0.0
        %1842 = vmatpush2.xpose.msra.mxu0 0.0
        %1843 = vmatprep.subr.mxu0 0.0
        %1844 = vmatpush2.xpose.msra.mxu0 0.0
        %1845 = vmatprep.subr.mxu0 0.0
        %1846 = vmatpush2.xpose.msra.mxu0 0.0
        %1847 = vmatprep.subr.mxu0 0.0
        %1848 = vmatpush2.xpose.msra.mxu0 0.0
        %1849 = vmatprep.subr.mxu0 0.0
        %1850 = vmatpush2.xpose.msra.mxu0 0.0
        %1851 = vmatprep.subr.mxu0 0.0
        %1852 = vmatpush2.xpose.msra.mxu0 0.0
        %1853 = vmatprep.subr.mxu0 0.0
        %1854 = vmatpush2.xpose.msra.mxu0 0.0
        %1855 = vmatprep.mubr.f32.mxu0 0.0
        %1856 = vmatmul.mubr.f32.gmra.mxu0 %v1786
        %v1857 = vpop.f32.mrf.mxu0
        %v1858 = vadd.f32 0.0, %v1857
        %v1859 = vpop.f32.mrf.mxu0
        %1860 = vdwg.mxu0
        %v1862 = vsel %vm1708, %v1027, 0
        %v1865 = vsel %vm1708, %v1331, 0
        %1867 = vmatprep.subr.mxu0 0.0
        %1868 = vmatpush1.xpose.msra.mxu0 0.0
        %1869 = vmatprep.subr.mxu0 0.0
        %1870 = vmatpush1.xpose.msra.mxu0 0.0
        %1871 = vmatprep.subr.mxu0 0.0
        %1872 = vmatpush1.xpose.msra.mxu0 0.0
        %1873 = vmatprep.subr.mxu0 0.0
        %1874 = vmatpush1.xpose.msra.mxu0 0.0
        %1875 = vmatprep.subr.mxu0 0.0
        %1876 = vmatpush1.xpose.msra.mxu0 0.0
        %1877 = vmatprep.subr.mxu0 0.0
        %1878 = vmatpush1.xpose.msra.mxu0 0.0
        %1879 = vmatprep.subr.mxu0 0.0
        %1880 = vmatpush1.xpose.msra.mxu0 0.0
        %1881 = vmatprep.subr.mxu0 0.0
        %1882 = vmatpush1.xpose.msra.mxu0 0.0
        %1883 = vmatprep.subr.mxu0 0.0
        %1884 = vmatpush1.xpose.msra.mxu0 0.0
        %1885 = vmatprep.subr.mxu0 0.0
        %1886 = vmatpush1.xpose.msra.mxu0 0.0
        %1887 = vmatprep.subr.mxu0 0.0
        %1888 = vmatpush1.xpose.msra.mxu0 0.0
        %1889 = vmatprep.subr.mxu0 0.0
        %1890 = vmatpush1.xpose.msra.mxu0 0.0
        %1891 = vmatprep.subr.mxu0 0.0
        %1892 = vmatpush1.xpose.msra.mxu0 0.0
        %1893 = vmatprep.subr.mxu0 0.0
        %1894 = vmatpush1.xpose.msra.mxu0 0.0
        %1895 = vmatprep.subr.mxu0 0.0
        %1896 = vmatpush1.xpose.msra.mxu0 0.0
        %1897 = vmatprep.subr.mxu0 0.0
        %1898 = vmatpush1.xpose.msra.mxu0 %v1865
        %1899 = vmatprep.subr.mxu0 0.0
        %1900 = vmatpush2.xpose.msra.mxu0 0.0
        %1901 = vmatprep.subr.mxu0 0.0
        %1902 = vmatpush2.xpose.msra.mxu0 0.0
        %1903 = vmatprep.subr.mxu0 0.0
        %1904 = vmatpush2.xpose.msra.mxu0 0.0
        %1905 = vmatprep.subr.mxu0 0.0
        %1906 = vmatpush2.xpose.msra.mxu0 0.0
        %1907 = vmatprep.subr.mxu0 0.0
        %1908 = vmatpush2.xpose.msra.mxu0 0.0
        %1909 = vmatprep.subr.mxu0 0.0
        %1910 = vmatpush2.xpose.msra.mxu0 0.0
        %1911 = vmatprep.subr.mxu0 0.0
        %1912 = vmatpush2.xpose.msra.mxu0 0.0
        %1913 = vmatprep.subr.mxu0 0.0
        %1914 = vmatpush2.xpose.msra.mxu0 0.0
        %1915 = vmatprep.subr.mxu0 0.0
        %1916 = vmatpush2.xpose.msra.mxu0 0.0
        %1917 = vmatprep.subr.mxu0 0.0
        %1918 = vmatpush2.xpose.msra.mxu0 0.0
        %1919 = vmatprep.subr.mxu0 0.0
        %1920 = vmatpush2.xpose.msra.mxu0 0.0
        %1921 = vmatprep.subr.mxu0 0.0
        %1922 = vmatpush2.xpose.msra.mxu0 0.0
        %1923 = vmatprep.subr.mxu0 0.0
        %1924 = vmatpush2.xpose.msra.mxu0 0.0
        %1925 = vmatprep.subr.mxu0 0.0
        %1926 = vmatpush2.xpose.msra.mxu0 0.0
        %1927 = vmatprep.subr.mxu0 0.0
        %1928 = vmatpush2.xpose.msra.mxu0 0.0
        %1929 = vmatprep.subr.mxu0 0.0
        %1930 = vmatpush2.xpose.msra.mxu0 0.0
        %1931 = vmatprep.mubr.f32.mxu0 0.0
        %1932 = vmatmul.mubr.f32.gmra.mxu0 %v1862
        %v1933 = vpop.f32.mrf.mxu0
        %v1934 = vadd.f32 0.0, %v1933
        %v1935 = vpop.f32.mrf.mxu0
        %1936 = vdwg.mxu0
        %v1938 = vsel %vm1708, %v1097, 0
        %v1941 = vsel %vm1708, %v1401, 0
        %1943 = vmatprep.subr.mxu0 0.0
        %1944 = vmatpush1.xpose.msra.mxu0 0.0
        %1945 = vmatprep.subr.mxu0 0.0
        %1946 = vmatpush1.xpose.msra.mxu0 0.0
        %1947 = vmatprep.subr.mxu0 0.0
        %1948 = vmatpush1.xpose.msra.mxu0 0.0
        %1949 = vmatprep.subr.mxu0 0.0
        %1950 = vmatpush1.xpose.msra.mxu0 0.0
        %1951 = vmatprep.subr.mxu0 0.0
        %1952 = vmatpush1.xpose.msra.mxu0 0.0
        %1953 = vmatprep.subr.mxu0 0.0
        %1954 = vmatpush1.xpose.msra.mxu0 0.0
        %1955 = vmatprep.subr.mxu0 0.0
        %1956 = vmatpush1.xpose.msra.mxu0 0.0
        %1957 = vmatprep.subr.mxu0 0.0
        %1958 = vmatpush1.xpose.msra.mxu0 0.0
        %1959 = vmatprep.subr.mxu0 0.0
        %1960 = vmatpush1.xpose.msra.mxu0 0.0
        %1961 = vmatprep.subr.mxu0 0.0
        %1962 = vmatpush1.xpose.msra.mxu0 0.0
        %1963 = vmatprep.subr.mxu0 0.0
        %1964 = vmatpush1.xpose.msra.mxu0 0.0
        %1965 = vmatprep.subr.mxu0 0.0
        %1966 = vmatpush1.xpose.msra.mxu0 0.0
        %1967 = vmatprep.subr.mxu0 0.0
        %1968 = vmatpush1.xpose.msra.mxu0 0.0
        %1969 = vmatprep.subr.mxu0 0.0
        %1970 = vmatpush1.xpose.msra.mxu0 0.0
        %1971 = vmatprep.subr.mxu0 0.0
        %1972 = vmatpush1.xpose.msra.mxu0 0.0
        %1973 = vmatprep.subr.mxu0 0.0
        %1974 = vmatpush1.xpose.msra.mxu0 %v1941
        %1975 = vmatprep.subr.mxu0 0.0
        %1976 = vmatpush2.xpose.msra.mxu0 0.0
        %1977 = vmatprep.subr.mxu0 0.0
        %1978 = vmatpush2.xpose.msra.mxu0 0.0
        %1979 = vmatprep.subr.mxu0 0.0
        %1980 = vmatpush2.xpose.msra.mxu0 0.0
        %1981 = vmatprep.subr.mxu0 0.0
        %1982 = vmatpush2.xpose.msra.mxu0 0.0
        %1983 = vmatprep.subr.mxu0 0.0
        %1984 = vmatpush2.xpose.msra.mxu0 0.0
        %1985 = vmatprep.subr.mxu0 0.0
        %1986 = vmatpush2.xpose.msra.mxu0 0.0
        %1987 = vmatprep.subr.mxu0 0.0
        %1988 = vmatpush2.xpose.msra.mxu0 0.0
        %1989 = vmatprep.subr.mxu0 0.0
        %1990 = vmatpush2.xpose.msra.mxu0 0.0
        %1991 = vmatprep.subr.mxu0 0.0
        %1992 = vmatpush2.xpose.msra.mxu0 0.0
        %1993 = vmatprep.subr.mxu0 0.0
        %1994 = vmatpush2.xpose.msra.mxu0 0.0
        %1995 = vmatprep.subr.mxu0 0.0
        %1996 = vmatpush2.xpose.msra.mxu0 0.0
        %1997 = vmatprep.subr.mxu0 0.0
        %1998 = vmatpush2.xpose.msra.mxu0 0.0
        %1999 = vmatprep.subr.mxu0 0.0
        %2000 = vmatpush2.xpose.msra.mxu0 0.0
        %2001 = vmatprep.subr.mxu0 0.0
        %2002 = vmatpush2.xpose.msra.mxu0 0.0
        %2003 = vmatprep.subr.mxu0 0.0
        %2004 = vmatpush2.xpose.msra.mxu0 0.0
        %2005 = vmatprep.subr.mxu0 0.0
        %2006 = vmatpush2.xpose.msra.mxu0 0.0
        %2007 = vmatprep.mubr.f32.mxu0 0.0
        %2008 = vmatmul.mubr.f32.gmra.mxu0 %v1938
        %v2009 = vpop.f32.mrf.mxu0
        %v2010 = vadd.f32 0.0, %v2009
        %v2011 = vpop.f32.mrf.mxu0
        %2012 = vdwg.mxu0
        %v2013 = vmul.f32 %v1782, 0.35355338
        %v2014 = vmul.f32 %v1858, 0.35355338
        %v2015 = vmul.f32 %v1934, 0.35355338
        %v2016 = vmul.f32 %v2010, 0.35355338
        %v2017 = vsel %vm1708, %v2013, -inf
        %2018 = vmax.xlane.f32.xlu0 %v2017
        %v2019 = vpop.xlane.xlu0 %2018
        %v2020 = vsel %vm1708, %v2014, -inf
        %2021 = vmax.xlane.f32.xlu0 %v2020
        %v2022 = vpop.xlane.xlu0 %2021
        %v2023 = vsel %vm1708, %v2015, -inf
        %2024 = vmax.xlane.f32.xlu0 %v2023
        %v2025 = vpop.xlane.xlu0 %2024
        %v2026 = vsel %vm1708, %v2016, -inf
        %2027 = vmax.xlane.f32.xlu0 %v2026
        %v2028 = vpop.xlane.xlu0 %2027
        %v2029 = vsub.f32 %v2013, %v2019
        %v2030 = vsub.f32 %v2014, %v2022
        %v2031 = vsub.f32 %v2015, %v2025
        %v2032 = vsub.f32 %v2016, %v2028
        %v2033 = vmul.f32 %v2029, 1.442695
        %v2034 = vpow.pop %v2033
        %v2035 = vmul.f32 %v2030, 1.442695
        %v2036 = vpow.pop %v2035
        %v2037 = vmul.f32 %v2031, 1.442695
        %v2038 = vpow.pop %v2037
        %v2039 = vmul.f32 %v2032, 1.442695
        %v2040 = vpow.pop %v2039
        %v2041 = vsel %vm1708, %v2034, 0.0
        %2042 = vadd.xlane.f32.xlu0 %v2041
        %v2043 = vpop.xlane.xlu0 %2042
        %v2044 = vsel %vm1708, %v2036, 0.0
        %2045 = vadd.xlane.f32.xlu0 %v2044
        %v2046 = vpop.xlane.xlu0 %2045
        %v2047 = vsel %vm1708, %v2038, 0.0
        %2048 = vadd.xlane.f32.xlu0 %v2047
        %v2049 = vpop.xlane.xlu0 %2048
        %v2050 = vsel %vm1708, %v2040, 0.0
        %2051 = vadd.xlane.f32.xlu0 %v2050
        %v2052 = vpop.xlane.xlu0 %2051
        %v2053 = vrcp.pop %v2043
        %v2054 = vrcp.pop %v2046
        %v2055 = vrcp.pop %v2049
        %v2056 = vrcp.pop %v2052
        %v2057 = vmul.f32 %v2034, %v2053
        %v2058 = vmul.f32 %v2036, %v2054
        %v2059 = vmul.f32 %v2038, %v2055
        %v2060 = vmul.f32 %v2040, %v2056
        %v2062 = vsel %vm1708, %v2057, 0
        %2064 = vmatprep.subr.mxu0 0.0
        %2065 = vmatpush1.msra.mxu0 0.0
        %2066 = vmatprep.subr.mxu0 0.0
        %2067 = vmatpush1.msra.mxu0 0.0
        %2068 = vmatprep.subr.mxu0 0.0
        %2069 = vmatpush1.msra.mxu0 0.0
        %2070 = vmatprep.subr.mxu0 0.0
        %2071 = vmatpush1.msra.mxu0 0.0
        %2072 = vmatprep.subr.mxu0 0.0
        %2073 = vmatpush1.msra.mxu0 0.0
        %2074 = vmatprep.subr.mxu0 0.0
        %2075 = vmatpush1.msra.mxu0 0.0
        %2076 = vmatprep.subr.mxu0 0.0
        %2077 = vmatpush1.msra.mxu0 0.0
        %2078 = vmatprep.subr.mxu0 0.0
        %2079 = vmatpush1.msra.mxu0 0.0
        %2080 = vmatprep.subr.mxu0 0.0
        %2081 = vmatpush1.msra.mxu0 0.0
        %2082 = vmatprep.subr.mxu0 0.0
        %2083 = vmatpush1.msra.mxu0 0.0
        %2084 = vmatprep.subr.mxu0 0.0
        %2085 = vmatpush1.msra.mxu0 0.0
        %2086 = vmatprep.subr.mxu0 0.0
        %2087 = vmatpush1.msra.mxu0 0.0
        %2088 = vmatprep.subr.mxu0 0.0
        %2089 = vmatpush1.msra.mxu0 0.0
        %2090 = vmatprep.subr.mxu0 0.0
        %2091 = vmatpush1.msra.mxu0 0.0
        %2092 = vmatprep.subr.mxu0 0.0
        %2093 = vmatpush1.msra.mxu0 0.0
        %2094 = vmatprep.subr.mxu0 0.0
        %2095 = vmatpush1.msra.mxu0 %v1495
        %2096 = vmatprep.subr.mxu0 0.0
        %2097 = vmatpush2.msra.mxu0 0.0
        %2098 = vmatprep.subr.mxu0 0.0
        %2099 = vmatpush2.msra.mxu0 0.0
        %2100 = vmatprep.subr.mxu0 0.0
        %2101 = vmatpush2.msra.mxu0 0.0
        %2102 = vmatprep.subr.mxu0 0.0
        %2103 = vmatpush2.msra.mxu0 0.0
        %2104 = vmatprep.subr.mxu0 0.0
        %2105 = vmatpush2.msra.mxu0 0.0
        %2106 = vmatprep.subr.mxu0 0.0
        %2107 = vmatpush2.msra.mxu0 0.0
        %2108 = vmatprep.subr.mxu0 0.0
        %2109 = vmatpush2.msra.mxu0 0.0
        %2110 = vmatprep.subr.mxu0 0.0
        %2111 = vmatpush2.msra.mxu0 0.0
        %2112 = vmatprep.subr.mxu0 0.0
        %2113 = vmatpush2.msra.mxu0 0.0
        %2114 = vmatprep.subr.mxu0 0.0
        %2115 = vmatpush2.msra.mxu0 0.0
        %2116 = vmatprep.subr.mxu0 0.0
        %2117 = vmatpush2.msra.mxu0 0.0
        %2118 = vmatprep.subr.mxu0 0.0
        %2119 = vmatpush2.msra.mxu0 0.0
        %2120 = vmatprep.subr.mxu0 0.0
        %2121 = vmatpush2.msra.mxu0 0.0
        %2122 = vmatprep.subr.mxu0 0.0
        %2123 = vmatpush2.msra.mxu0 0.0
        %2124 = vmatprep.subr.mxu0 0.0
        %2125 = vmatpush2.msra.mxu0 0.0
        %2126 = vmatprep.subr.mxu0 0.0
        %2127 = vmatpush2.msra.mxu0 0.0
        %2128 = vmatprep.mubr.f32.mxu0 0.0
        %2129 = vmatmul.mubr.f32.gmra.mxu0 %v2062
        %v2130 = vpop.f32.mrf.mxu0
        %v2131 = vadd.f32 0.0, %v2130
        %v2132 = vpop.f32.mrf.mxu0
        %2133 = vdwg.mxu0
        %v2135 = vsel %vm1708, %v2058, 0
        %2137 = vmatprep.subr.mxu0 0.0
        %2138 = vmatpush1.msra.mxu0 0.0
        %2139 = vmatprep.subr.mxu0 0.0
        %2140 = vmatpush1.msra.mxu0 0.0
        %2141 = vmatprep.subr.mxu0 0.0
        %2142 = vmatpush1.msra.mxu0 0.0
        %2143 = vmatprep.subr.mxu0 0.0
        %2144 = vmatpush1.msra.mxu0 0.0
        %2145 = vmatprep.subr.mxu0 0.0
        %2146 = vmatpush1.msra.mxu0 0.0
        %2147 = vmatprep.subr.mxu0 0.0
        %2148 = vmatpush1.msra.mxu0 0.0
        %2149 = vmatprep.subr.mxu0 0.0
        %2150 = vmatpush1.msra.mxu0 0.0
        %2151 = vmatprep.subr.mxu0 0.0
        %2152 = vmatpush1.msra.mxu0 0.0
        %2153 = vmatprep.subr.mxu0 0.0
        %2154 = vmatpush1.msra.mxu0 0.0
        %2155 = vmatprep.subr.mxu0 0.0
        %2156 = vmatpush1.msra.mxu0 0.0
        %2157 = vmatprep.subr.mxu0 0.0
        %2158 = vmatpush1.msra.mxu0 0.0
        %2159 = vmatprep.subr.mxu0 0.0
        %2160 = vmatpush1.msra.mxu0 0.0
        %2161 = vmatprep.subr.mxu0 0.0
        %2162 = vmatpush1.msra.mxu0 0.0
        %2163 = vmatprep.subr.mxu0 0.0
        %2164 = vmatpush1.msra.mxu0 0.0
        %2165 = vmatprep.subr.mxu0 0.0
        %2166 = vmatpush1.msra.mxu0 0.0
        %2167 = vmatprep.subr.mxu0 0.0
        %2168 = vmatpush1.msra.mxu0 %v1565
        %2169 = vmatprep.subr.mxu0 0.0
        %2170 = vmatpush2.msra.mxu0 0.0
        %2171 = vmatprep.subr.mxu0 0.0
        %2172 = vmatpush2.msra.mxu0 0.0
        %2173 = vmatprep.subr.mxu0 0.0
        %2174 = vmatpush2.msra.mxu0 0.0
        %2175 = vmatprep.subr.mxu0 0.0
        %2176 = vmatpush2.msra.mxu0 0.0
        %2177 = vmatprep.subr.mxu0 0.0
        %2178 = vmatpush2.msra.mxu0 0.0
        %2179 = vmatprep.subr.mxu0 0.0
        %2180 = vmatpush2.msra.mxu0 0.0
        %2181 = vmatprep.subr.mxu0 0.0
        %2182 = vmatpush2.msra.mxu0 0.0
        %2183 = vmatprep.subr.mxu0 0.0
        %2184 = vmatpush2.msra.mxu0 0.0
        %2185 = vmatprep.subr.mxu0 0.0
        %2186 = vmatpush2.msra.mxu0 0.0
        %2187 = vmatprep.subr.mxu0 0.0
        %2188 = vmatpush2.msra.mxu0 0.0
        %2189 = vmatprep.subr.mxu0 0.0
        %2190 = vmatpush2.msra.mxu0 0.0
        %2191 = vmatprep.subr.mxu0 0.0
        %2192 = vmatpush2.msra.mxu0 0.0
        %2193 = vmatprep.subr.mxu0 0.0
        %2194 = vmatpush2.msra.mxu0 0.0
        %2195 = vmatprep.subr.mxu0 0.0
        %2196 = vmatpush2.msra.mxu0 0.0
        %2197 = vmatprep.subr.mxu0 0.0
        %2198 = vmatpush2.msra.mxu0 0.0
        %2199 = vmatprep.subr.mxu0 0.0
        %2200 = vmatpush2.msra.mxu0 0.0
        %2201 = vmatprep.mubr.f32.mxu0 0.0
        %2202 = vmatmul.mubr.f32.gmra.mxu0 %v2135
        %v2203 = vpop.f32.mrf.mxu0
        %v2204 = vadd.f32 0.0, %v2203
        %v2205 = vpop.f32.mrf.mxu0
        %2206 = vdwg.mxu0
        %v2208 = vsel %vm1708, %v2059, 0
        %2210 = vmatprep.subr.mxu0 0.0
        %2211 = vmatpush1.msra.mxu0 0.0
        %2212 = vmatprep.subr.mxu0 0.0
        %2213 = vmatpush1.msra.mxu0 0.0
        %2214 = vmatprep.subr.mxu0 0.0
        %2215 = vmatpush1.msra.mxu0 0.0
        %2216 = vmatprep.subr.mxu0 0.0
        %2217 = vmatpush1.msra.mxu0 0.0
        %2218 = vmatprep.subr.mxu0 0.0
        %2219 = vmatpush1.msra.mxu0 0.0
        %2220 = vmatprep.subr.mxu0 0.0
        %2221 = vmatpush1.msra.mxu0 0.0
        %2222 = vmatprep.subr.mxu0 0.0
        %2223 = vmatpush1.msra.mxu0 0.0
        %2224 = vmatprep.subr.mxu0 0.0
        %2225 = vmatpush1.msra.mxu0 0.0
        %2226 = vmatprep.subr.mxu0 0.0
        %2227 = vmatpush1.msra.mxu0 0.0
        %2228 = vmatprep.subr.mxu0 0.0
        %2229 = vmatpush1.msra.mxu0 0.0
        %2230 = vmatprep.subr.mxu0 0.0
        %2231 = vmatpush1.msra.mxu0 0.0
        %2232 = vmatprep.subr.mxu0 0.0
        %2233 = vmatpush1.msra.mxu0 0.0
        %2234 = vmatprep.subr.mxu0 0.0
        %2235 = vmatpush1.msra.mxu0 0.0
        %2236 = vmatprep.subr.mxu0 0.0
        %2237 = vmatpush1.msra.mxu0 0.0
        %2238 = vmatprep.subr.mxu0 0.0
        %2239 = vmatpush1.msra.mxu0 0.0
        %2240 = vmatprep.subr.mxu0 0.0
        %2241 = vmatpush1.msra.mxu0 %v1635
        %2242 = vmatprep.subr.mxu0 0.0
        %2243 = vmatpush2.msra.mxu0 0.0
        %2244 = vmatprep.subr.mxu0 0.0
        %2245 = vmatpush2.msra.mxu0 0.0
        %2246 = vmatprep.subr.mxu0 0.0
        %2247 = vmatpush2.msra.mxu0 0.0
        %2248 = vmatprep.subr.mxu0 0.0
        %2249 = vmatpush2.msra.mxu0 0.0
        %2250 = vmatprep.subr.mxu0 0.0
        %2251 = vmatpush2.msra.mxu0 0.0
        %2252 = vmatprep.subr.mxu0 0.0
        %2253 = vmatpush2.msra.mxu0 0.0
        %2254 = vmatprep.subr.mxu0 0.0
        %2255 = vmatpush2.msra.mxu0 0.0
        %2256 = vmatprep.subr.mxu0 0.0
        %2257 = vmatpush2.msra.mxu0 0.0
        %2258 = vmatprep.subr.mxu0 0.0
        %2259 = vmatpush2.msra.mxu0 0.0
        %2260 = vmatprep.subr.mxu0 0.0
        %2261 = vmatpush2.msra.mxu0 0.0
        %2262 = vmatprep.subr.mxu0 0.0
        %2263 = vmatpush2.msra.mxu0 0.0
        %2264 = vmatprep.subr.mxu0 0.0
        %2265 = vmatpush2.msra.mxu0 0.0
        %2266 = vmatprep.subr.mxu0 0.0
        %2267 = vmatpush2.msra.mxu0 0.0
        %2268 = vmatprep.subr.mxu0 0.0
        %2269 = vmatpush2.msra.mxu0 0.0
        %2270 = vmatprep.subr.mxu0 0.0
        %2271 = vmatpush2.msra.mxu0 0.0
        %2272 = vmatprep.subr.mxu0 0.0
        %2273 = vmatpush2.msra.mxu0 0.0
        %2274 = vmatprep.mubr.f32.mxu0 0.0
        %2275 = vmatmul.mubr.f32.gmra.mxu0 %v2208
        %v2276 = vpop.f32.mrf.mxu0
        %v2277 = vadd.f32 0.0, %v2276
        %v2278 = vpop.f32.mrf.mxu0
        %2279 = vdwg.mxu0
        %v2281 = vsel %vm1708, %v2060, 0
        %2283 = vmatprep.subr.mxu0 0.0
        %2284 = vmatpush1.msra.mxu0 0.0
        %2285 = vmatprep.subr.mxu0 0.0
        %2286 = vmatpush1.msra.mxu0 0.0
        %2287 = vmatprep.subr.mxu0 0.0
        %2288 = vmatpush1.msra.mxu0 0.0
        %2289 = vmatprep.subr.mxu0 0.0
        %2290 = vmatpush1.msra.mxu0 0.0
        %2291 = vmatprep.subr.mxu0 0.0
        %2292 = vmatpush1.msra.mxu0 0.0
        %2293 = vmatprep.subr.mxu0 0.0
        %2294 = vmatpush1.msra.mxu0 0.0
        %2295 = vmatprep.subr.mxu0 0.0
        %2296 = vmatpush1.msra.mxu0 0.0
        %2297 = vmatprep.subr.mxu0 0.0
        %2298 = vmatpush1.msra.mxu0 0.0
        %2299 = vmatprep.subr.mxu0 0.0
        %2300 = vmatpush1.msra.mxu0 0.0
        %2301 = vmatprep.subr.mxu0 0.0
        %2302 = vmatpush1.msra.mxu0 0.0
        %2303 = vmatprep.subr.mxu0 0.0
        %2304 = vmatpush1.msra.mxu0 0.0
        %2305 = vmatprep.subr.mxu0 0.0
        %2306 = vmatpush1.msra.mxu0 0.0
        %2307 = vmatprep.subr.mxu0 0.0
        %2308 = vmatpush1.msra.mxu0 0.0
        %2309 = vmatprep.subr.mxu0 0.0
        %2310 = vmatpush1.msra.mxu0 0.0
        %2311 = vmatprep.subr.mxu0 0.0
        %2312 = vmatpush1.msra.mxu0 0.0
        %2313 = vmatprep.subr.mxu0 0.0
        %2314 = vmatpush1.msra.mxu0 %v1705
        %2315 = vmatprep.subr.mxu0 0.0
        %2316 = vmatpush2.msra.mxu0 0.0
        %2317 = vmatprep.subr.mxu0 0.0
        %2318 = vmatpush2.msra.mxu0 0.0
        %2319 = vmatprep.subr.mxu0 0.0
        %2320 = vmatpush2.msra.mxu0 0.0
        %2321 = vmatprep.subr.mxu0 0.0
        %2322 = vmatpush2.msra.mxu0 0.0
        %2323 = vmatprep.subr.mxu0 0.0
        %2324 = vmatpush2.msra.mxu0 0.0
        %2325 = vmatprep.subr.mxu0 0.0
        %2326 = vmatpush2.msra.mxu0 0.0
        %2327 = vmatprep.subr.mxu0 0.0
        %2328 = vmatpush2.msra.mxu0 0.0
        %2329 = vmatprep.subr.mxu0 0.0
        %2330 = vmatpush2.msra.mxu0 0.0
        %2331 = vmatprep.subr.mxu0 0.0
        %2332 = vmatpush2.msra.mxu0 0.0
        %2333 = vmatprep.subr.mxu0 0.0
        %2334 = vmatpush2.msra.mxu0 0.0
        %2335 = vmatprep.subr.mxu0 0.0
        %2336 = vmatpush2.msra.mxu0 0.0
        %2337 = vmatprep.subr.mxu0 0.0
        %2338 = vmatpush2.msra.mxu0 0.0
        %2339 = vmatprep.subr.mxu0 0.0
        %2340 = vmatpush2.msra.mxu0 0.0
        %2341 = vmatprep.subr.mxu0 0.0
        %2342 = vmatpush2.msra.mxu0 0.0
        %2343 = vmatprep.subr.mxu0 0.0
        %2344 = vmatpush2.msra.mxu0 0.0
        %2345 = vmatprep.subr.mxu0 0.0
        %2346 = vmatpush2.msra.mxu0 0.0
        %2347 = vmatprep.mubr.f32.mxu0 0.0
        %2348 = vmatmul.mubr.f32.gmra.mxu0 %v2281
        %v2349 = vpop.f32.mrf.mxu0
        %v2350 = vadd.f32 0.0, %v2349
        %v2351 = vpop.f32.mrf.mxu0
        %2352 = vdwg.mxu0
        %v2354 = vsel %vm1708, %v2131, 0
        %2356 = vmatprep.subr.mxu0 0.0
        %2357 = vmatpush1.msra.mxu0 0.0
        %2358 = vmatprep.subr.mxu0 0.0
        %2359 = vmatpush1.msra.mxu0 0.0
        %2360 = vmatprep.subr.mxu0 0.0
        %2361 = vmatpush1.msra.mxu0 0.0
        %2362 = vmatprep.subr.mxu0 0.0
        %2363 = vmatpush1.msra.mxu0 0.0
        %2364 = vmatprep.subr.mxu0 0.0
        %2365 = vmatpush1.msra.mxu0 0.0
        %2366 = vmatprep.subr.mxu0 0.0
        %2367 = vmatpush1.msra.mxu0 0.0
        %2368 = vmatprep.subr.mxu0 0.0
        %2369 = vmatpush1.msra.mxu0 0.0
        %2370 = vmatprep.subr.mxu0 0.0
        %2371 = vmatpush1.msra.mxu0 0.0
        %2372 = vmatprep.subr.mxu0 0.0
        %2373 = vmatpush1.msra.mxu0 0.0
        %2374 = vmatprep.subr.mxu0 0.0
        %2375 = vmatpush1.msra.mxu0 0.0
        %2376 = vmatprep.subr.mxu0 0.0
        %2377 = vmatpush1.msra.mxu0 0.0
        %2378 = vmatprep.subr.mxu0 0.0
        %2379 = vmatpush1.msra.mxu0 0.0
        %2380 = vmatprep.subr.mxu0 0.0
        %2381 = vmatpush1.msra.mxu0 0.0
        %2382 = vmatprep.subr.mxu0 0.0
        %2383 = vmatpush1.msra.mxu0 0.0
        %2384 = vmatprep.subr.mxu0 0.0
        %2385 = vmatpush1.msra.mxu0 0.0
        %2386 = vmatprep.subr.mxu0 0.0
        %2387 = vmatpush1.msra.mxu0 %v787
        %2388 = vmatprep.subr.mxu0 0.0
        %2389 = vmatpush2.msra.mxu0 0.0
        %2390 = vmatprep.subr.mxu0 0.0
        %2391 = vmatpush2.msra.mxu0 0.0
        %2392 = vmatprep.subr.mxu0 0.0
        %2393 = vmatpush2.msra.mxu0 0.0
        %2394 = vmatprep.subr.mxu0 0.0
        %2395 = vmatpush2.msra.mxu0 0.0
        %2396 = vmatprep.subr.mxu0 0.0
        %2397 = vmatpush2.msra.mxu0 0.0
        %2398 = vmatprep.subr.mxu0 0.0
        %2399 = vmatpush2.msra.mxu0 0.0
        %2400 = vmatprep.subr.mxu0 0.0
        %2401 = vmatpush2.msra.mxu0 0.0
        %2402 = vmatprep.subr.mxu0 0.0
        %2403 = vmatpush2.msra.mxu0 0.0
        %2404 = vmatprep.subr.mxu0 0.0
        %2405 = vmatpush2.msra.mxu0 0.0
        %2406 = vmatprep.subr.mxu0 0.0
        %2407 = vmatpush2.msra.mxu0 0.0
        %2408 = vmatprep.subr.mxu0 0.0
        %2409 = vmatpush2.msra.mxu0 0.0
        %2410 = vmatprep.subr.mxu0 0.0
        %2411 = vmatpush2.msra.mxu0 0.0
        %2412 = vmatprep.subr.mxu0 0.0
        %2413 = vmatpush2.msra.mxu0 0.0
        %2414 = vmatprep.subr.mxu0 0.0
        %2415 = vmatpush2.msra.mxu0 0.0
        %2416 = vmatprep.subr.mxu0 0.0
        %2417 = vmatpush2.msra.mxu0 0.0
        %2418 = vmatprep.subr.mxu0 0.0
        %2419 = vmatpush2.msra.mxu0 0.0
        %2420 = vmatprep.mubr.f32.mxu0 0.0
        %2421 = vmatmul.mubr.f32.gmra.mxu0 %v2354
        %v2422 = vpop.f32.mrf.mxu0
        %v2423 = vadd.f32 0.0, %v2422
        %v2424 = vpop.f32.mrf.mxu0
        %2425 = vdwg.mxu0
        %v2427 = vsel %vm1708, %v2204, 0
        %2429 = vmatprep.subr.mxu0 0.0
        %2430 = vmatpush1.msra.mxu0 0.0
        %2431 = vmatprep.subr.mxu0 0.0
        %2432 = vmatpush1.msra.mxu0 0.0
        %2433 = vmatprep.subr.mxu0 0.0
        %2434 = vmatpush1.msra.mxu0 0.0
        %2435 = vmatprep.subr.mxu0 0.0
        %2436 = vmatpush1.msra.mxu0 0.0
        %2437 = vmatprep.subr.mxu0 0.0
        %2438 = vmatpush1.msra.mxu0 0.0
        %2439 = vmatprep.subr.mxu0 0.0
        %2440 = vmatpush1.msra.mxu0 0.0
        %2441 = vmatprep.subr.mxu0 0.0
        %2442 = vmatpush1.msra.mxu0 0.0
        %2443 = vmatprep.subr.mxu0 0.0
        %2444 = vmatpush1.msra.mxu0 0.0
        %2445 = vmatprep.subr.mxu0 0.0
        %2446 = vmatpush1.msra.mxu0 0.0
        %2447 = vmatprep.subr.mxu0 0.0
        %2448 = vmatpush1.msra.mxu0 0.0
        %2449 = vmatprep.subr.mxu0 0.0
        %2450 = vmatpush1.msra.mxu0 0.0
        %2451 = vmatprep.subr.mxu0 0.0
        %2452 = vmatpush1.msra.mxu0 0.0
        %2453 = vmatprep.subr.mxu0 0.0
        %2454 = vmatpush1.msra.mxu0 0.0
        %2455 = vmatprep.subr.mxu0 0.0
        %2456 = vmatpush1.msra.mxu0 0.0
        %2457 = vmatprep.subr.mxu0 0.0
        %2458 = vmatpush1.msra.mxu0 0.0
        %2459 = vmatprep.subr.mxu0 0.0
        %2460 = vmatpush1.msra.mxu0 %v788
        %2461 = vmatprep.subr.mxu0 0.0
        %2462 = vmatpush2.msra.mxu0 0.0
        %2463 = vmatprep.subr.mxu0 0.0
        %2464 = vmatpush2.msra.mxu0 0.0
        %2465 = vmatprep.subr.mxu0 0.0
        %2466 = vmatpush2.msra.mxu0 0.0
        %2467 = vmatprep.subr.mxu0 0.0
        %2468 = vmatpush2.msra.mxu0 0.0
        %2469 = vmatprep.subr.mxu0 0.0
        %2470 = vmatpush2.msra.mxu0 0.0
        %2471 = vmatprep.subr.mxu0 0.0
        %2472 = vmatpush2.msra.mxu0 0.0
        %2473 = vmatprep.subr.mxu0 0.0
        %2474 = vmatpush2.msra.mxu0 0.0
        %2475 = vmatprep.subr.mxu0 0.0
        %2476 = vmatpush2.msra.mxu0 0.0
        %2477 = vmatprep.subr.mxu0 0.0
        %2478 = vmatpush2.msra.mxu0 0.0
        %2479 = vmatprep.subr.mxu0 0.0
        %2480 = vmatpush2.msra.mxu0 0.0
        %2481 = vmatprep.subr.mxu0 0.0
        %2482 = vmatpush2.msra.mxu0 0.0
        %2483 = vmatprep.subr.mxu0 0.0
        %2484 = vmatpush2.msra.mxu0 0.0
        %2485 = vmatprep.subr.mxu0 0.0
        %2486 = vmatpush2.msra.mxu0 0.0
        %2487 = vmatprep.subr.mxu0 0.0
        %2488 = vmatpush2.msra.mxu0 0.0
        %2489 = vmatprep.subr.mxu0 0.0
        %2490 = vmatpush2.msra.mxu0 0.0
        %2491 = vmatprep.subr.mxu0 0.0
        %2492 = vmatpush2.msra.mxu0 0.0
        %2493 = vmatprep.mubr.f32.mxu0 0.0
        %2494 = vmatmul.mubr.f32.gmra.mxu0 %v2427
        %v2495 = vpop.f32.mrf.mxu0
        %v2496 = vadd.f32 0.0, %v2495
        %v2497 = vpop.f32.mrf.mxu0
        %2498 = vdwg.mxu0
        %v2500 = vsel %vm1708, %v2277, 0
        %2502 = vmatprep.subr.mxu0 0.0
        %2503 = vmatpush1.msra.mxu0 0.0
        %2504 = vmatprep.subr.mxu0 0.0
        %2505 = vmatpush1.msra.mxu0 0.0
        %2506 = vmatprep.subr.mxu0 0.0
        %2507 = vmatpush1.msra.mxu0 0.0
        %2508 = vmatprep.subr.mxu0 0.0
        %2509 = vmatpush1.msra.mxu0 0.0
        %2510 = vmatprep.subr.mxu0 0.0
        %2511 = vmatpush1.msra.mxu0 0.0
        %2512 = vmatprep.subr.mxu0 0.0
        %2513 = vmatpush1.msra.mxu0 0.0
        %2514 = vmatprep.subr.mxu0 0.0
        %2515 = vmatpush1.msra.mxu0 0.0
        %2516 = vmatprep.subr.mxu0 0.0
        %2517 = vmatpush1.msra.mxu0 0.0
        %2518 = vmatprep.subr.mxu0 0.0
        %2519 = vmatpush1.msra.mxu0 0.0
        %2520 = vmatprep.subr.mxu0 0.0
        %2521 = vmatpush1.msra.mxu0 0.0
        %2522 = vmatprep.subr.mxu0 0.0
        %2523 = vmatpush1.msra.mxu0 0.0
        %2524 = vmatprep.subr.mxu0 0.0
        %2525 = vmatpush1.msra.mxu0 0.0
        %2526 = vmatprep.subr.mxu0 0.0
        %2527 = vmatpush1.msra.mxu0 0.0
        %2528 = vmatprep.subr.mxu0 0.0
        %2529 = vmatpush1.msra.mxu0 0.0
        %2530 = vmatprep.subr.mxu0 0.0
        %2531 = vmatpush1.msra.mxu0 0.0
        %2532 = vmatprep.subr.mxu0 0.0
        %2533 = vmatpush1.msra.mxu0 %v789
        %2534 = vmatprep.subr.mxu0 0.0
        %2535 = vmatpush2.msra.mxu0 0.0
        %2536 = vmatprep.subr.mxu0 0.0
        %2537 = vmatpush2.msra.mxu0 0.0
        %2538 = vmatprep.subr.mxu0 0.0
        %2539 = vmatpush2.msra.mxu0 0.0
        %2540 = vmatprep.subr.mxu0 0.0
        %2541 = vmatpush2.msra.mxu0 0.0
        %2542 = vmatprep.subr.mxu0 0.0
        %2543 = vmatpush2.msra.mxu0 0.0
        %2544 = vmatprep.subr.mxu0 0.0
        %2545 = vmatpush2.msra.mxu0 0.0
        %2546 = vmatprep.subr.mxu0 0.0
        %2547 = vmatpush2.msra.mxu0 0.0
        %2548 = vmatprep.subr.mxu0 0.0
        %2549 = vmatpush2.msra.mxu0 0.0
        %2550 = vmatprep.subr.mxu0 0.0
        %2551 = vmatpush2.msra.mxu0 0.0
        %2552 = vmatprep.subr.mxu0 0.0
        %2553 = vmatpush2.msra.mxu0 0.0
        %2554 = vmatprep.subr.mxu0 0.0
        %2555 = vmatpush2.msra.mxu0 0.0
        %2556 = vmatprep.subr.mxu0 0.0
        %2557 = vmatpush2.msra.mxu0 0.0
        %2558 = vmatprep.subr.mxu0 0.0
        %2559 = vmatpush2.msra.mxu0 0.0
        %2560 = vmatprep.subr.mxu0 0.0
        %2561 = vmatpush2.msra.mxu0 0.0
        %2562 = vmatprep.subr.mxu0 0.0
        %2563 = vmatpush2.msra.mxu0 0.0
        %2564 = vmatprep.subr.mxu0 0.0
        %2565 = vmatpush2.msra.mxu0 0.0
        %2566 = vmatprep.mubr.f32.mxu0 0.0
        %2567 = vmatmul.mubr.f32.gmra.mxu0 %v2500
        %v2568 = vpop.f32.mrf.mxu0
        %v2569 = vadd.f32 0.0, %v2568
        %v2570 = vpop.f32.mrf.mxu0
        %2571 = vdwg.mxu0
        %v2573 = vsel %vm1708, %v2350, 0
        %2575 = vmatprep.subr.mxu0 0.0
        %2576 = vmatpush1.msra.mxu0 0.0
        %2577 = vmatprep.subr.mxu0 0.0
        %2578 = vmatpush1.msra.mxu0 0.0
        %2579 = vmatprep.subr.mxu0 0.0
        %2580 = vmatpush1.msra.mxu0 0.0
        %2581 = vmatprep.subr.mxu0 0.0
        %2582 = vmatpush1.msra.mxu0 0.0
        %2583 = vmatprep.subr.mxu0 0.0
        %2584 = vmatpush1.msra.mxu0 0.0
        %2585 = vmatprep.subr.mxu0 0.0
        %2586 = vmatpush1.msra.mxu0 0.0
        %2587 = vmatprep.subr.mxu0 0.0
        %2588 = vmatpush1.msra.mxu0 0.0
        %2589 = vmatprep.subr.mxu0 0.0
        %2590 = vmatpush1.msra.mxu0 0.0
        %2591 = vmatprep.subr.mxu0 0.0
        %2592 = vmatpush1.msra.mxu0 0.0
        %2593 = vmatprep.subr.mxu0 0.0
        %2594 = vmatpush1.msra.mxu0 0.0
        %2595 = vmatprep.subr.mxu0 0.0
        %2596 = vmatpush1.msra.mxu0 0.0
        %2597 = vmatprep.subr.mxu0 0.0
        %2598 = vmatpush1.msra.mxu0 0.0
        %2599 = vmatprep.subr.mxu0 0.0
        %2600 = vmatpush1.msra.mxu0 0.0
        %2601 = vmatprep.subr.mxu0 0.0
        %2602 = vmatpush1.msra.mxu0 0.0
        %2603 = vmatprep.subr.mxu0 0.0
        %2604 = vmatpush1.msra.mxu0 0.0
        %2605 = vmatprep.subr.mxu0 0.0
        %2606 = vmatpush1.msra.mxu0 %v790
        %2607 = vmatprep.subr.mxu0 0.0
        %2608 = vmatpush2.msra.mxu0 0.0
        %2609 = vmatprep.subr.mxu0 0.0
        %2610 = vmatpush2.msra.mxu0 0.0
        %2611 = vmatprep.subr.mxu0 0.0
        %2612 = vmatpush2.msra.mxu0 0.0
        %2613 = vmatprep.subr.mxu0 0.0
        %2614 = vmatpush2.msra.mxu0 0.0
        %2615 = vmatprep.subr.mxu0 0.0
        %2616 = vmatpush2.msra.mxu0 0.0
        %2617 = vmatprep.subr.mxu0 0.0
        %2618 = vmatpush2.msra.mxu0 0.0
        %2619 = vmatprep.subr.mxu0 0.0
        %2620 = vmatpush2.msra.mxu0 0.0
        %2621 = vmatprep.subr.mxu0 0.0
        %2622 = vmatpush2.msra.mxu0 0.0
        %2623 = vmatprep.subr.mxu0 0.0
        %2624 = vmatpush2.msra.mxu0 0.0
        %2625 = vmatprep.subr.mxu0 0.0
        %2626 = vmatpush2.msra.mxu0 0.0
        %2627 = vmatprep.subr.mxu0 0.0
        %2628 = vmatpush2.msra.mxu0 0.0
        %2629 = vmatprep.subr.mxu0 0.0
        %2630 = vmatpush2.msra.mxu0 0.0
        %2631 = vmatprep.subr.mxu0 0.0
        %2632 = vmatpush2.msra.mxu0 0.0
        %2633 = vmatprep.subr.mxu0 0.0
        %2634 = vmatpush2.msra.mxu0 0.0
        %2635 = vmatprep.subr.mxu0 0.0
        %2636 = vmatpush2.msra.mxu0 0.0
        %2637 = vmatprep.subr.mxu0 0.0
        %2638 = vmatpush2.msra.mxu0 0.0
        %2639 = vmatprep.mubr.f32.mxu0 0.0
        %2640 = vmatmul.mubr.f32.gmra.mxu0 %v2573
        %v2641 = vpop.f32.mrf.mxu0
        %v2642 = vadd.f32 0.0, %v2641
        %v2643 = vpop.f32.mrf.mxu0
        %2644 = vdwg.mxu0
        %v2645 = vsel %vm816, %v2423, 0.0
        %v2646 = vsel %vm816, %v2496, 0.0
        %v2647 = vadd.f32 %v2645, %v2646
        %v2648 = vsel %vm816, %v2569, 0.0
        %v2649 = vadd.f32 %v2647, %v2648
        %v2650 = vsel %vm816, %v2642, 0.0
        %v2651 = vadd.f32 %v2649, %v2650
        %v2653 = vlaneseq
        %v2654 = vshrl.u32 %v2653, 7
        %v2655 = vsub.s32 0, %v2654
        %v2656 = vrot.slane %v791, %v2655
        %v2658 = vadd.f32 %v2651, %v2656
        %v2659 = vadd.f32 %v725, %v2658
        %v2660 = vsel %vm816, %v2659, 0.0
        %2661 = vadd.xlane.f32.xlu0 %v2660
        %v2662 = vpop.xlane.xlu0 %2661
        %v2663 = vrcp.pop 32.0
        %v2664 = vmul.f32 %v2662, %v2663
        %v2665 = vsub.f32 %v2659, %v2664
        %v2666 = vmul.f32 %v2665, %v2665
        %v2667 = vsel %vm816, %v2666, 0.0
        %2668 = vadd.xlane.f32.xlu0 %v2667
        %v2669 = vpop.xlane.xlu0 %2668
        %v2670 = vmul.f32 %v2669, %v2663
        %v2671 = vadd.f32 %v2670, 1e-05
        %v2672 = vrsqrt.pop %v2671
        %v2673 = vmul.f32 %v2665, %v2672
        %v2674 = vld [vmem:[%s11] sm:$0xff]
        %v2675 = vld [vmem:[%s11 + $0x8] sm:$0xff]
        %v2676 = vld [vmem:[%s11 + $0x10] sm:$0xff]
        %v2677 = vld [vmem:[%s11 + $0x18] sm:$0xff]
        %v2678 = vld [vmem:[%s11 + $0x20] sm:$0xff]
        %v2679 = vld [vmem:[%s11 + $0x28] sm:$0xff]
        %v2680 = vld [vmem:[%s11 + $0x30] sm:$0xff]
        %v2681 = vld [vmem:[%s11 + $0x38] sm:$0xff]
        %v2682 = vld [vmem:[%s11 + $0x40] sm:$0xff]
        %v2683 = vld [vmem:[%s11 + $0x48] sm:$0xff]
        %v2684 = vld [vmem:[%s11 + $0x50] sm:$0xff]
        %v2685 = vld [vmem:[%s11 + $0x58] sm:$0xff]
        %v2686 = vld [vmem:[%s11 + $0x60] sm:$0xff]
        %v2687 = vld [vmem:[%s11 + $0x68] sm:$0xff]
        %v2688 = vld [vmem:[%s11 + $0x70] sm:$0xff]
        %v2689 = vld [vmem:[%s11 + $0x78] sm:$0xff]
        %v2690 = vld [vmem:[%s12] sm:$0x1]
        %v2691 = vld [vmem:[%s12 + $0x1] sm:$0x1]
        %v2692 = vld [vmem:[%s12 + $0x2] sm:$0x1]
        %v2693 = vld [vmem:[%s12 + $0x3] sm:$0x1]
        %v2694 = vld [vmem:[%s13] sm:$0xff]
        %v2695 = vld [vmem:[%s13 + $0x8] sm:$0xff]
        %v2696 = vld [vmem:[%s13 + $0x10] sm:$0xff]
        %v2697 = vld [vmem:[%s13 + $0x18] sm:$0xff]
        %v2698 = vld [vmem:[%s13 + $0x20] sm:$0xff]
        %v2699 = vld [vmem:[%s13 + $0x28] sm:$0xff]
        %v2700 = vld [vmem:[%s13 + $0x30] sm:$0xff]
        %v2701 = vld [vmem:[%s13 + $0x38] sm:$0xff]
        %v2702 = vld [vmem:[%s13 + $0x40] sm:$0xff]
        %v2703 = vld [vmem:[%s13 + $0x48] sm:$0xff]
        %v2704 = vld [vmem:[%s13 + $0x50] sm:$0xff]
        %v2705 = vld [vmem:[%s13 + $0x58] sm:$0xff]
        %v2706 = vld [vmem:[%s13 + $0x60] sm:$0xff]
        %v2707 = vld [vmem:[%s13 + $0x68] sm:$0xff]
        %v2708 = vld [vmem:[%s13 + $0x70] sm:$0xff]
        %v2709 = vld [vmem:[%s13 + $0x78] sm:$0xff]
        %v2710 = vld [vmem:[%s14] sm:$0x1]
        %v2711 = vld [vmem:[%s14 + $0x1] sm:$0x1]
        %v2712 = vld [vmem:[%s14 + $0x2] sm:$0x1]
        %v2713 = vld [vmem:[%s14 + $0x3] sm:$0x1]
        %v2714 = vld [vmem:[%s15] sm:$0xff]
        %v2715 = vld [vmem:[%s15 + $0x8] sm:$0xff]
        %v2716 = vld [vmem:[%s15 + $0x10] sm:$0xff]
        %v2717 = vld [vmem:[%s15 + $0x18] sm:$0xff]
        %v2718 = vld [vmem:[%s15 + $0x20] sm:$0xff]
        %v2719 = vld [vmem:[%s15 + $0x28] sm:$0xff]
        %v2720 = vld [vmem:[%s15 + $0x30] sm:$0xff]
        %v2721 = vld [vmem:[%s15 + $0x38] sm:$0xff]
        %v2722 = vld [vmem:[%s15 + $0x40] sm:$0xff]
        %v2723 = vld [vmem:[%s15 + $0x48] sm:$0xff]
        %v2724 = vld [vmem:[%s15 + $0x50] sm:$0xff]
        %v2725 = vld [vmem:[%s15 + $0x58] sm:$0xff]
        %v2726 = vld [vmem:[%s15 + $0x60] sm:$0xff]
        %v2727 = vld [vmem:[%s15 + $0x68] sm:$0xff]
        %v2728 = vld [vmem:[%s15 + $0x70] sm:$0xff]
        %v2729 = vld [vmem:[%s15 + $0x78] sm:$0xff]
        %v2730 = vld [vmem:[%s16] sm:$0x1]
        %v2731 = vld [vmem:[%s16 + $0x1] sm:$0x1]
        %v2732 = vld [vmem:[%s16 + $0x2] sm:$0x1]
        %v2733 = vld [vmem:[%s16 + $0x3] sm:$0x1]
        %v2734 = vld [vmem:[%s17] sm:$0xff]
        %v2735 = vld [vmem:[%s17 + $0x8] sm:$0xff]
        %v2736 = vld [vmem:[%s17 + $0x10] sm:$0xff]
        %v2737 = vld [vmem:[%s17 + $0x18] sm:$0xff]
        %v2738 = vld [vmem:[%s18] sm:$0x1]
        %v2743 = vlaneseq
        %v2744 = vshrl.u32 %v2743, 7
        %v2745 = vsub.s32 0, %v2744
        %v2746 = vrot.slane %v2690, %v2745
        %v2747 = vlaneseq
        %v2748 = vshrl.u32 %v2747, 7
        %v2749 = vsub.s32 0, %v2748
        %v2750 = vrot.slane %v2691, %v2749
        %v2751 = vlaneseq
        %v2752 = vshrl.u32 %v2751, 7
        %v2753 = vsub.s32 0, %v2752
        %v2754 = vrot.slane %v2692, %v2753
        %v2755 = vlaneseq
        %v2756 = vshrl.u32 %v2755, 7
        %v2757 = vsub.s32 0, %v2756
        %v2758 = vrot.slane %v2693, %v2757
        %v2764 = vsel %vm816, %v2673, 0
        %2766 = vmatprep.subr.mxu0 0.0
        %2767 = vmatpush1.msra.mxu0 0.0
        %2768 = vmatprep.subr.mxu0 0.0
        %2769 = vmatpush1.msra.mxu0 0.0
        %2770 = vmatprep.subr.mxu0 0.0
        %2771 = vmatpush1.msra.mxu0 0.0
        %2772 = vmatprep.subr.mxu0 0.0
        %2773 = vmatpush1.msra.mxu0 0.0
        %2774 = vmatprep.subr.mxu0 0.0
        %2775 = vmatpush1.msra.mxu0 0.0
        %2776 = vmatprep.subr.mxu0 0.0
        %2777 = vmatpush1.msra.mxu0 0.0
        %2778 = vmatprep.subr.mxu0 0.0
        %2779 = vmatpush1.msra.mxu0 0.0
        %2780 = vmatprep.subr.mxu0 0.0
        %2781 = vmatpush1.msra.mxu0 0.0
        %2782 = vmatprep.subr.mxu0 0.0
        %2783 = vmatpush1.msra.mxu0 0.0
        %2784 = vmatprep.subr.mxu0 0.0
        %2785 = vmatpush1.msra.mxu0 0.0
        %2786 = vmatprep.subr.mxu0 0.0
        %2787 = vmatpush1.msra.mxu0 0.0
        %2788 = vmatprep.subr.mxu0 0.0
        %2789 = vmatpush1.msra.mxu0 0.0
        %2790 = vmatprep.subr.mxu0 0.0
        %2791 = vmatpush1.msra.mxu0 %v2677
        %2792 = vmatprep.subr.mxu0 0.0
        %2793 = vmatpush1.msra.mxu0 %v2676
        %2794 = vmatprep.subr.mxu0 0.0
        %2795 = vmatpush1.msra.mxu0 %v2675
        %2796 = vmatprep.subr.mxu0 0.0
        %2797 = vmatpush1.msra.mxu0 %v2674
        %2798 = vmatprep.subr.mxu0 0.0
        %2799 = vmatpush2.msra.mxu0 0.0
        %2800 = vmatprep.subr.mxu0 0.0
        %2801 = vmatpush2.msra.mxu0 0.0
        %2802 = vmatprep.subr.mxu0 0.0
        %2803 = vmatpush2.msra.mxu0 0.0
        %2804 = vmatprep.subr.mxu0 0.0
        %2805 = vmatpush2.msra.mxu0 0.0
        %2806 = vmatprep.subr.mxu0 0.0
        %2807 = vmatpush2.msra.mxu0 0.0
        %2808 = vmatprep.subr.mxu0 0.0
        %2809 = vmatpush2.msra.mxu0 0.0
        %2810 = vmatprep.subr.mxu0 0.0
        %2811 = vmatpush2.msra.mxu0 0.0
        %2812 = vmatprep.subr.mxu0 0.0
        %2813 = vmatpush2.msra.mxu0 0.0
        %2814 = vmatprep.subr.mxu0 0.0
        %2815 = vmatpush2.msra.mxu0 0.0
        %2816 = vmatprep.subr.mxu0 0.0
        %2817 = vmatpush2.msra.mxu0 0.0
        %2818 = vmatprep.subr.mxu0 0.0
        %2819 = vmatpush2.msra.mxu0 0.0
        %2820 = vmatprep.subr.mxu0 0.0
        %2821 = vmatpush2.msra.mxu0 0.0
        %2822 = vmatprep.subr.mxu0 0.0
        %2823 = vmatpush2.msra.mxu0 0.0
        %2824 = vmatprep.subr.mxu0 0.0
        %2825 = vmatpush2.msra.mxu0 0.0
        %2826 = vmatprep.subr.mxu0 0.0
        %2827 = vmatpush2.msra.mxu0 0.0
        %2828 = vmatprep.subr.mxu0 0.0
        %2829 = vmatpush2.msra.mxu0 0.0
        %2830 = vmatprep.mubr.f32.mxu0 0.0
        %2831 = vmatmul.mubr.f32.gmra.mxu0 %v2764
        %v2832 = vpop.f32.mrf.mxu0
        %v2833 = vadd.f32 %v2746, %v2832
        %v2834 = vpop.f32.mrf.mxu0
        %2835 = vdwg.mxu0
        %2836 = vmatprep.subr.mxu0 0.0
        %2837 = vmatpush1.msra.mxu0 0.0
        %2838 = vmatprep.subr.mxu0 0.0
        %2839 = vmatpush1.msra.mxu0 0.0
        %2840 = vmatprep.subr.mxu0 0.0
        %2841 = vmatpush1.msra.mxu0 0.0
        %2842 = vmatprep.subr.mxu0 0.0
        %2843 = vmatpush1.msra.mxu0 0.0
        %2844 = vmatprep.subr.mxu0 0.0
        %2845 = vmatpush1.msra.mxu0 0.0
        %2846 = vmatprep.subr.mxu0 0.0
        %2847 = vmatpush1.msra.mxu0 0.0
        %2848 = vmatprep.subr.mxu0 0.0
        %2849 = vmatpush1.msra.mxu0 0.0
        %2850 = vmatprep.subr.mxu0 0.0
        %2851 = vmatpush1.msra.mxu0 0.0
        %2852 = vmatprep.subr.mxu0 0.0
        %2853 = vmatpush1.msra.mxu0 0.0
        %2854 = vmatprep.subr.mxu0 0.0
        %2855 = vmatpush1.msra.mxu0 0.0
        %2856 = vmatprep.subr.mxu0 0.0
        %2857 = vmatpush1.msra.mxu0 0.0
        %2858 = vmatprep.subr.mxu0 0.0
        %2859 = vmatpush1.msra.mxu0 0.0
        %2860 = vmatprep.subr.mxu0 0.0
        %2861 = vmatpush1.msra.mxu0 %v2681
        %2862 = vmatprep.subr.mxu0 0.0
        %2863 = vmatpush1.msra.mxu0 %v2680
        %2864 = vmatprep.subr.mxu0 0.0
        %2865 = vmatpush1.msra.mxu0 %v2679
        %2866 = vmatprep.subr.mxu0 0.0
        %2867 = vmatpush1.msra.mxu0 %v2678
        %2868 = vmatprep.subr.mxu0 0.0
        %2869 = vmatpush2.msra.mxu0 0.0
        %2870 = vmatprep.subr.mxu0 0.0
        %2871 = vmatpush2.msra.mxu0 0.0
        %2872 = vmatprep.subr.mxu0 0.0
        %2873 = vmatpush2.msra.mxu0 0.0
        %2874 = vmatprep.subr.mxu0 0.0
        %2875 = vmatpush2.msra.mxu0 0.0
        %2876 = vmatprep.subr.mxu0 0.0
        %2877 = vmatpush2.msra.mxu0 0.0
        %2878 = vmatprep.subr.mxu0 0.0
        %2879 = vmatpush2.msra.mxu0 0.0
        %2880 = vmatprep.subr.mxu0 0.0
        %2881 = vmatpush2.msra.mxu0 0.0
        %2882 = vmatprep.subr.mxu0 0.0
        %2883 = vmatpush2.msra.mxu0 0.0
        %2884 = vmatprep.subr.mxu0 0.0
        %2885 = vmatpush2.msra.mxu0 0.0
        %2886 = vmatprep.subr.mxu0 0.0
        %2887 = vmatpush2.msra.mxu0 0.0
        %2888 = vmatprep.subr.mxu0 0.0
        %2889 = vmatpush2.msra.mxu0 0.0
        %2890 = vmatprep.subr.mxu0 0.0
        %2891 = vmatpush2.msra.mxu0 0.0
        %2892 = vmatprep.subr.mxu0 0.0
        %2893 = vmatpush2.msra.mxu0 0.0
        %2894 = vmatprep.subr.mxu0 0.0
        %2895 = vmatpush2.msra.mxu0 0.0
        %2896 = vmatprep.subr.mxu0 0.0
        %2897 = vmatpush2.msra.mxu0 0.0
        %2898 = vmatprep.subr.mxu0 0.0
        %2899 = vmatpush2.msra.mxu0 0.0
        %2900 = vmatprep.mubr.f32.mxu0 0.0
        %2901 = vmatmul.mubr.f32.gmra.mxu0 %v2764
        %v2902 = vpop.f32.mrf.mxu0
        %v2903 = vadd.f32 %v2750, %v2902
        %v2904 = vpop.f32.mrf.mxu0
        %2905 = vdwg.mxu0
        %2906 = vmatprep.subr.mxu0 0.0
        %2907 = vmatpush1.msra.mxu0 0.0
        %2908 = vmatprep.subr.mxu0 0.0
        %2909 = vmatpush1.msra.mxu0 0.0
        %2910 = vmatprep.subr.mxu0 0.0
        %2911 = vmatpush1.msra.mxu0 0.0
        %2912 = vmatprep.subr.mxu0 0.0
        %2913 = vmatpush1.msra.mxu0 0.0
        %2914 = vmatprep.subr.mxu0 0.0
        %2915 = vmatpush1.msra.mxu0 0.0
        %2916 = vmatprep.subr.mxu0 0.0
        %2917 = vmatpush1.msra.mxu0 0.0
        %2918 = vmatprep.subr.mxu0 0.0
        %2919 = vmatpush1.msra.mxu0 0.0
        %2920 = vmatprep.subr.mxu0 0.0
        %2921 = vmatpush1.msra.mxu0 0.0
        %2922 = vmatprep.subr.mxu0 0.0
        %2923 = vmatpush1.msra.mxu0 0.0
        %2924 = vmatprep.subr.mxu0 0.0
        %2925 = vmatpush1.msra.mxu0 0.0
        %2926 = vmatprep.subr.mxu0 0.0
        %2927 = vmatpush1.msra.mxu0 0.0
        %2928 = vmatprep.subr.mxu0 0.0
        %2929 = vmatpush1.msra.mxu0 0.0
        %2930 = vmatprep.subr.mxu0 0.0
        %2931 = vmatpush1.msra.mxu0 %v2685
        %2932 = vmatprep.subr.mxu0 0.0
        %2933 = vmatpush1.msra.mxu0 %v2684
        %2934 = vmatprep.subr.mxu0 0.0
        %2935 = vmatpush1.msra.mxu0 %v2683
        %2936 = vmatprep.subr.mxu0 0.0
        %2937 = vmatpush1.msra.mxu0 %v2682
        %2938 = vmatprep.subr.mxu0 0.0
        %2939 = vmatpush2.msra.mxu0 0.0
        %2940 = vmatprep.subr.mxu0 0.0
        %2941 = vmatpush2.msra.mxu0 0.0
        %2942 = vmatprep.subr.mxu0 0.0
        %2943 = vmatpush2.msra.mxu0 0.0
        %2944 = vmatprep.subr.mxu0 0.0
        %2945 = vmatpush2.msra.mxu0 0.0
        %2946 = vmatprep.subr.mxu0 0.0
        %2947 = vmatpush2.msra.mxu0 0.0
        %2948 = vmatprep.subr.mxu0 0.0
        %2949 = vmatpush2.msra.mxu0 0.0
        %2950 = vmatprep.subr.mxu0 0.0
        %2951 = vmatpush2.msra.mxu0 0.0
        %2952 = vmatprep.subr.mxu0 0.0
        %2953 = vmatpush2.msra.mxu0 0.0
        %2954 = vmatprep.subr.mxu0 0.0
        %2955 = vmatpush2.msra.mxu0 0.0
        %2956 = vmatprep.subr.mxu0 0.0
        %2957 = vmatpush2.msra.mxu0 0.0
        %2958 = vmatprep.subr.mxu0 0.0
        %2959 = vmatpush2.msra.mxu0 0.0
        %2960 = vmatprep.subr.mxu0 0.0
        %2961 = vmatpush2.msra.mxu0 0.0
        %2962 = vmatprep.subr.mxu0 0.0
        %2963 = vmatpush2.msra.mxu0 0.0
        %2964 = vmatprep.subr.mxu0 0.0
        %2965 = vmatpush2.msra.mxu0 0.0
        %2966 = vmatprep.subr.mxu0 0.0
        %2967 = vmatpush2.msra.mxu0 0.0
        %2968 = vmatprep.subr.mxu0 0.0
        %2969 = vmatpush2.msra.mxu0 0.0
        %2970 = vmatprep.mubr.f32.mxu0 0.0
        %2971 = vmatmul.mubr.f32.gmra.mxu0 %v2764
        %v2972 = vpop.f32.mrf.mxu0
        %v2973 = vadd.f32 %v2754, %v2972
        %v2974 = vpop.f32.mrf.mxu0
        %2975 = vdwg.mxu0
        %2976 = vmatprep.subr.mxu0 0.0
        %2977 = vmatpush1.msra.mxu0 0.0
        %2978 = vmatprep.subr.mxu0 0.0
        %2979 = vmatpush1.msra.mxu0 0.0
        %2980 = vmatprep.subr.mxu0 0.0
        %2981 = vmatpush1.msra.mxu0 0.0
        %2982 = vmatprep.subr.mxu0 0.0
        %2983 = vmatpush1.msra.mxu0 0.0
        %2984 = vmatprep.subr.mxu0 0.0
        %2985 = vmatpush1.msra.mxu0 0.0
        %2986 = vmatprep.subr.mxu0 0.0
        %2987 = vmatpush1.msra.mxu0 0.0
        %2988 = vmatprep.subr.mxu0 0.0
        %2989 = vmatpush1.msra.mxu0 0.0
        %2990 = vmatprep.subr.mxu0 0.0
        %2991 = vmatpush1.msra.mxu0 0.0
        %2992 = vmatprep.subr.mxu0 0.0
        %2993 = vmatpush1.msra.mxu0 0.0
        %2994 = vmatprep.subr.mxu0 0.0
        %2995 = vmatpush1.msra.mxu0 0.0
        %2996 = vmatprep.subr.mxu0 0.0
        %2997 = vmatpush1.msra.mxu0 0.0
        %2998 = vmatprep.subr.mxu0 0.0
        %2999 = vmatpush1.msra.mxu0 0.0
        %3000 = vmatprep.subr.mxu0 0.0
        %3001 = vmatpush1.msra.mxu0 %v2689
        %3002 = vmatprep.subr.mxu0 0.0
        %3003 = vmatpush1.msra.mxu0 %v2688
        %3004 = vmatprep.subr.mxu0 0.0
        %3005 = vmatpush1.msra.mxu0 %v2687
        %3006 = vmatprep.subr.mxu0 0.0
        %3007 = vmatpush1.msra.mxu0 %v2686
        %3008 = vmatprep.subr.mxu0 0.0
        %3009 = vmatpush2.msra.mxu0 0.0
        %3010 = vmatprep.subr.mxu0 0.0
        %3011 = vmatpush2.msra.mxu0 0.0
        %3012 = vmatprep.subr.mxu0 0.0
        %3013 = vmatpush2.msra.mxu0 0.0
        %3014 = vmatprep.subr.mxu0 0.0
        %3015 = vmatpush2.msra.mxu0 0.0
        %3016 = vmatprep.subr.mxu0 0.0
        %3017 = vmatpush2.msra.mxu0 0.0
        %3018 = vmatprep.subr.mxu0 0.0
        %3019 = vmatpush2.msra.mxu0 0.0
        %3020 = vmatprep.subr.mxu0 0.0
        %3021 = vmatpush2.msra.mxu0 0.0
        %3022 = vmatprep.subr.mxu0 0.0
        %3023 = vmatpush2.msra.mxu0 0.0
        %3024 = vmatprep.subr.mxu0 0.0
        %3025 = vmatpush2.msra.mxu0 0.0
        %3026 = vmatprep.subr.mxu0 0.0
        %3027 = vmatpush2.msra.mxu0 0.0
        %3028 = vmatprep.subr.mxu0 0.0
        %3029 = vmatpush2.msra.mxu0 0.0
        %3030 = vmatprep.subr.mxu0 0.0
        %3031 = vmatpush2.msra.mxu0 0.0
        %3032 = vmatprep.subr.mxu0 0.0
        %3033 = vmatpush2.msra.mxu0 0.0
        %3034 = vmatprep.subr.mxu0 0.0
        %3035 = vmatpush2.msra.mxu0 0.0
        %3036 = vmatprep.subr.mxu0 0.0
        %3037 = vmatpush2.msra.mxu0 0.0
        %3038 = vmatprep.subr.mxu0 0.0
        %3039 = vmatpush2.msra.mxu0 0.0
        %3040 = vmatprep.mubr.f32.mxu0 0.0
        %3041 = vmatmul.mubr.f32.gmra.mxu0 %v2764
        %v3042 = vpop.f32.mrf.mxu0
        %v3043 = vadd.f32 %v2758, %v3042
        %v3044 = vpop.f32.mrf.mxu0
        %3045 = vdwg.mxu0
        %v3050 = vlaneseq
        %v3051 = vshrl.u32 %v3050, 7
        %v3052 = vsub.s32 0, %v3051
        %v3053 = vrot.slane %v2710, %v3052
        %v3054 = vlaneseq
        %v3055 = vshrl.u32 %v3054, 7
        %v3056 = vsub.s32 0, %v3055
        %v3057 = vrot.slane %v2711, %v3056
        %v3058 = vlaneseq
        %v3059 = vshrl.u32 %v3058, 7
        %v3060 = vsub.s32 0, %v3059
        %v3061 = vrot.slane %v2712, %v3060
        %v3062 = vlaneseq
        %v3063 = vshrl.u32 %v3062, 7
        %v3064 = vsub.s32 0, %v3063
        %v3065 = vrot.slane %v2713, %v3064
        %v3071 = vsel %vm816, %v726, 0
        %3073 = vmatprep.subr.mxu0 0.0
        %3074 = vmatpush1.msra.mxu0 0.0
        %3075 = vmatprep.subr.mxu0 0.0
        %3076 = vmatpush1.msra.mxu0 0.0
        %3077 = vmatprep.subr.mxu0 0.0
        %3078 = vmatpush1.msra.mxu0 0.0
        %3079 = vmatprep.subr.mxu0 0.0
        %3080 = vmatpush1.msra.mxu0 0.0
        %3081 = vmatprep.subr.mxu0 0.0
        %3082 = vmatpush1.msra.mxu0 0.0
        %3083 = vmatprep.subr.mxu0 0.0
        %3084 = vmatpush1.msra.mxu0 0.0
        %3085 = vmatprep.subr.mxu0 0.0
        %3086 = vmatpush1.msra.mxu0 0.0
        %3087 = vmatprep.subr.mxu0 0.0
        %3088 = vmatpush1.msra.mxu0 0.0
        %3089 = vmatprep.subr.mxu0 0.0
        %3090 = vmatpush1.msra.mxu0 0.0
        %3091 = vmatprep.subr.mxu0 0.0
        %3092 = vmatpush1.msra.mxu0 0.0
        %3093 = vmatprep.subr.mxu0 0.0
        %3094 = vmatpush1.msra.mxu0 0.0
        %3095 = vmatprep.subr.mxu0 0.0
        %3096 = vmatpush1.msra.mxu0 0.0
        %3097 = vmatprep.subr.mxu0 0.0
        %3098 = vmatpush1.msra.mxu0 %v2697
        %3099 = vmatprep.subr.mxu0 0.0
        %3100 = vmatpush1.msra.mxu0 %v2696
        %3101 = vmatprep.subr.mxu0 0.0
        %3102 = vmatpush1.msra.mxu0 %v2695
        %3103 = vmatprep.subr.mxu0 0.0
        %3104 = vmatpush1.msra.mxu0 %v2694
        %3105 = vmatprep.subr.mxu0 0.0
        %3106 = vmatpush2.msra.mxu0 0.0
        %3107 = vmatprep.subr.mxu0 0.0
        %3108 = vmatpush2.msra.mxu0 0.0
        %3109 = vmatprep.subr.mxu0 0.0
        %3110 = vmatpush2.msra.mxu0 0.0
        %3111 = vmatprep.subr.mxu0 0.0
        %3112 = vmatpush2.msra.mxu0 0.0
        %3113 = vmatprep.subr.mxu0 0.0
        %3114 = vmatpush2.msra.mxu0 0.0
        %3115 = vmatprep.subr.mxu0 0.0
        %3116 = vmatpush2.msra.mxu0 0.0
        %3117 = vmatprep.subr.mxu0 0.0
        %3118 = vmatpush2.msra.mxu0 0.0
        %3119 = vmatprep.subr.mxu0 0.0
        %3120 = vmatpush2.msra.mxu0 0.0
        %3121 = vmatprep.subr.mxu0 0.0
        %3122 = vmatpush2.msra.mxu0 0.0
        %3123 = vmatprep.subr.mxu0 0.0
        %3124 = vmatpush2.msra.mxu0 0.0
        %3125 = vmatprep.subr.mxu0 0.0
        %3126 = vmatpush2.msra.mxu0 0.0
        %3127 = vmatprep.subr.mxu0 0.0
        %3128 = vmatpush2.msra.mxu0 0.0
        %3129 = vmatprep.subr.mxu0 0.0
        %3130 = vmatpush2.msra.mxu0 0.0
        %3131 = vmatprep.subr.mxu0 0.0
        %3132 = vmatpush2.msra.mxu0 0.0
        %3133 = vmatprep.subr.mxu0 0.0
        %3134 = vmatpush2.msra.mxu0 0.0
        %3135 = vmatprep.subr.mxu0 0.0
        %3136 = vmatpush2.msra.mxu0 0.0
        %3137 = vmatprep.mubr.f32.mxu0 0.0
        %3138 = vmatmul.mubr.f32.gmra.mxu0 %v3071
        %v3139 = vpop.f32.mrf.mxu0
        %v3140 = vadd.f32 %v3053, %v3139
        %v3141 = vpop.f32.mrf.mxu0
        %3142 = vdwg.mxu0
        %3143 = vmatprep.subr.mxu0 0.0
        %3144 = vmatpush1.msra.mxu0 0.0
        %3145 = vmatprep.subr.mxu0 0.0
        %3146 = vmatpush1.msra.mxu0 0.0
        %3147 = vmatprep.subr.mxu0 0.0
        %3148 = vmatpush1.msra.mxu0 0.0
        %3149 = vmatprep.subr.mxu0 0.0
        %3150 = vmatpush1.msra.mxu0 0.0
        %3151 = vmatprep.subr.mxu0 0.0
        %3152 = vmatpush1.msra.mxu0 0.0
        %3153 = vmatprep.subr.mxu0 0.0
        %3154 = vmatpush1.msra.mxu0 0.0
        %3155 = vmatprep.subr.mxu0 0.0
        %3156 = vmatpush1.msra.mxu0 0.0
        %3157 = vmatprep.subr.mxu0 0.0
        %3158 = vmatpush1.msra.mxu0 0.0
        %3159 = vmatprep.subr.mxu0 0.0
        %3160 = vmatpush1.msra.mxu0 0.0
        %3161 = vmatprep.subr.mxu0 0.0
        %3162 = vmatpush1.msra.mxu0 0.0
        %3163 = vmatprep.subr.mxu0 0.0
        %3164 = vmatpush1.msra.mxu0 0.0
        %3165 = vmatprep.subr.mxu0 0.0
        %3166 = vmatpush1.msra.mxu0 0.0
        %3167 = vmatprep.subr.mxu0 0.0
        %3168 = vmatpush1.msra.mxu0 %v2701
        %3169 = vmatprep.subr.mxu0 0.0
        %3170 = vmatpush1.msra.mxu0 %v2700
        %3171 = vmatprep.subr.mxu0 0.0
        %3172 = vmatpush1.msra.mxu0 %v2699
        %3173 = vmatprep.subr.mxu0 0.0
        %3174 = vmatpush1.msra.mxu0 %v2698
        %3175 = vmatprep.subr.mxu0 0.0
        %3176 = vmatpush2.msra.mxu0 0.0
        %3177 = vmatprep.subr.mxu0 0.0
        %3178 = vmatpush2.msra.mxu0 0.0
        %3179 = vmatprep.subr.mxu0 0.0
        %3180 = vmatpush2.msra.mxu0 0.0
        %3181 = vmatprep.subr.mxu0 0.0
        %3182 = vmatpush2.msra.mxu0 0.0
        %3183 = vmatprep.subr.mxu0 0.0
        %3184 = vmatpush2.msra.mxu0 0.0
        %3185 = vmatprep.subr.mxu0 0.0
        %3186 = vmatpush2.msra.mxu0 0.0
        %3187 = vmatprep.subr.mxu0 0.0
        %3188 = vmatpush2.msra.mxu0 0.0
        %3189 = vmatprep.subr.mxu0 0.0
        %3190 = vmatpush2.msra.mxu0 0.0
        %3191 = vmatprep.subr.mxu0 0.0
        %3192 = vmatpush2.msra.mxu0 0.0
        %3193 = vmatprep.subr.mxu0 0.0
        %3194 = vmatpush2.msra.mxu0 0.0
        %3195 = vmatprep.subr.mxu0 0.0
        %3196 = vmatpush2.msra.mxu0 0.0
        %3197 = vmatprep.subr.mxu0 0.0
        %3198 = vmatpush2.msra.mxu0 0.0
        %3199 = vmatprep.subr.mxu0 0.0
        %3200 = vmatpush2.msra.mxu0 0.0
        %3201 = vmatprep.subr.mxu0 0.0
        %3202 = vmatpush2.msra.mxu0 0.0
        %3203 = vmatprep.subr.mxu0 0.0
        %3204 = vmatpush2.msra.mxu0 0.0
        %3205 = vmatprep.subr.mxu0 0.0
        %3206 = vmatpush2.msra.mxu0 0.0
        %3207 = vmatprep.mubr.f32.mxu0 0.0
        %3208 = vmatmul.mubr.f32.gmra.mxu0 %v3071
        %v3209 = vpop.f32.mrf.mxu0
        %v3210 = vadd.f32 %v3057, %v3209
        %v3211 = vpop.f32.mrf.mxu0
        %3212 = vdwg.mxu0
        %3213 = vmatprep.subr.mxu0 0.0
        %3214 = vmatpush1.msra.mxu0 0.0
        %3215 = vmatprep.subr.mxu0 0.0
        %3216 = vmatpush1.msra.mxu0 0.0
        %3217 = vmatprep.subr.mxu0 0.0
        %3218 = vmatpush1.msra.mxu0 0.0
        %3219 = vmatprep.subr.mxu0 0.0
        %3220 = vmatpush1.msra.mxu0 0.0
        %3221 = vmatprep.subr.mxu0 0.0
        %3222 = vmatpush1.msra.mxu0 0.0
        %3223 = vmatprep.subr.mxu0 0.0
        %3224 = vmatpush1.msra.mxu0 0.0
        %3225 = vmatprep.subr.mxu0 0.0
        %3226 = vmatpush1.msra.mxu0 0.0
        %3227 = vmatprep.subr.mxu0 0.0
        %3228 = vmatpush1.msra.mxu0 0.0
        %3229 = vmatprep.subr.mxu0 0.0
        %3230 = vmatpush1.msra.mxu0 0.0
        %3231 = vmatprep.subr.mxu0 0.0
        %3232 = vmatpush1.msra.mxu0 0.0
        %3233 = vmatprep.subr.mxu0 0.0
        %3234 = vmatpush1.msra.mxu0 0.0
        %3235 = vmatprep.subr.mxu0 0.0
        %3236 = vmatpush1.msra.mxu0 0.0
        %3237 = vmatprep.subr.mxu0 0.0
        %3238 = vmatpush1.msra.mxu0 %v2705
        %3239 = vmatprep.subr.mxu0 0.0
        %3240 = vmatpush1.msra.mxu0 %v2704
        %3241 = vmatprep.subr.mxu0 0.0
        %3242 = vmatpush1.msra.mxu0 %v2703
        %3243 = vmatprep.subr.mxu0 0.0
        %3244 = vmatpush1.msra.mxu0 %v2702
        %3245 = vmatprep.subr.mxu0 0.0
        %3246 = vmatpush2.msra.mxu0 0.0
        %3247 = vmatprep.subr.mxu0 0.0
        %3248 = vmatpush2.msra.mxu0 0.0
        %3249 = vmatprep.subr.mxu0 0.0
        %3250 = vmatpush2.msra.mxu0 0.0
        %3251 = vmatprep.subr.mxu0 0.0
        %3252 = vmatpush2.msra.mxu0 0.0
        %3253 = vmatprep.subr.mxu0 0.0
        %3254 = vmatpush2.msra.mxu0 0.0
        %3255 = vmatprep.subr.mxu0 0.0
        %3256 = vmatpush2.msra.mxu0 0.0
        %3257 = vmatprep.subr.mxu0 0.0
        %3258 = vmatpush2.msra.mxu0 0.0
        %3259 = vmatprep.subr.mxu0 0.0
        %3260 = vmatpush2.msra.mxu0 0.0
        %3261 = vmatprep.subr.mxu0 0.0
        %3262 = vmatpush2.msra.mxu0 0.0
        %3263 = vmatprep.subr.mxu0 0.0
        %3264 = vmatpush2.msra.mxu0 0.0
        %3265 = vmatprep.subr.mxu0 0.0
        %3266 = vmatpush2.msra.mxu0 0.0
        %3267 = vmatprep.subr.mxu0 0.0
        %3268 = vmatpush2.msra.mxu0 0.0
        %3269 = vmatprep.subr.mxu0 0.0
        %3270 = vmatpush2.msra.mxu0 0.0
        %3271 = vmatprep.subr.mxu0 0.0
        %3272 = vmatpush2.msra.mxu0 0.0
        %3273 = vmatprep.subr.mxu0 0.0
        %3274 = vmatpush2.msra.mxu0 0.0
        %3275 = vmatprep.subr.mxu0 0.0
        %3276 = vmatpush2.msra.mxu0 0.0
        %3277 = vmatprep.mubr.f32.mxu0 0.0
        %3278 = vmatmul.mubr.f32.gmra.mxu0 %v3071
        %v3279 = vpop.f32.mrf.mxu0
        %v3280 = vadd.f32 %v3061, %v3279
        %v3281 = vpop.f32.mrf.mxu0
        %3282 = vdwg.mxu0
        %3283 = vmatprep.subr.mxu0 0.0
        %3284 = vmatpush1.msra.mxu0 0.0
        %3285 = vmatprep.subr.mxu0 0.0
        %3286 = vmatpush1.msra.mxu0 0.0
        %3287 = vmatprep.subr.mxu0 0.0
        %3288 = vmatpush1.msra.mxu0 0.0
        %3289 = vmatprep.subr.mxu0 0.0
        %3290 = vmatpush1.msra.mxu0 0.0
        %3291 = vmatprep.subr.mxu0 0.0
        %3292 = vmatpush1.msra.mxu0 0.0
        %3293 = vmatprep.subr.mxu0 0.0
        %3294 = vmatpush1.msra.mxu0 0.0
        %3295 = vmatprep.subr.mxu0 0.0
        %3296 = vmatpush1.msra.mxu0 0.0
        %3297 = vmatprep.subr.mxu0 0.0
        %3298 = vmatpush1.msra.mxu0 0.0
        %3299 = vmatprep.subr.mxu0 0.0
        %3300 = vmatpush1.msra.mxu0 0.0
        %3301 = vmatprep.subr.mxu0 0.0
        %3302 = vmatpush1.msra.mxu0 0.0
        %3303 = vmatprep.subr.mxu0 0.0
        %3304 = vmatpush1.msra.mxu0 0.0
        %3305 = vmatprep.subr.mxu0 0.0
        %3306 = vmatpush1.msra.mxu0 0.0
        %3307 = vmatprep.subr.mxu0 0.0
        %3308 = vmatpush1.msra.mxu0 %v2709
        %3309 = vmatprep.subr.mxu0 0.0
        %3310 = vmatpush1.msra.mxu0 %v2708
        %3311 = vmatprep.subr.mxu0 0.0
        %3312 = vmatpush1.msra.mxu0 %v2707
        %3313 = vmatprep.subr.mxu0 0.0
        %3314 = vmatpush1.msra.mxu0 %v2706
        %3315 = vmatprep.subr.mxu0 0.0
        %3316 = vmatpush2.msra.mxu0 0.0
        %3317 = vmatprep.subr.mxu0 0.0
        %3318 = vmatpush2.msra.mxu0 0.0
        %3319 = vmatprep.subr.mxu0 0.0
        %3320 = vmatpush2.msra.mxu0 0.0
        %3321 = vmatprep.subr.mxu0 0.0
        %3322 = vmatpush2.msra.mxu0 0.0
        %3323 = vmatprep.subr.mxu0 0.0
        %3324 = vmatpush2.msra.mxu0 0.0
        %3325 = vmatprep.subr.mxu0 0.0
        %3326 = vmatpush2.msra.mxu0 0.0
        %3327 = vmatprep.subr.mxu0 0.0
        %3328 = vmatpush2.msra.mxu0 0.0
        %3329 = vmatprep.subr.mxu0 0.0
        %3330 = vmatpush2.msra.mxu0 0.0
        %3331 = vmatprep.subr.mxu0 0.0
        %3332 = vmatpush2.msra.mxu0 0.0
        %3333 = vmatprep.subr.mxu0 0.0
        %3334 = vmatpush2.msra.mxu0 0.0
        %3335 = vmatprep.subr.mxu0 0.0
        %3336 = vmatpush2.msra.mxu0 0.0
        %3337 = vmatprep.subr.mxu0 0.0
        %3338 = vmatpush2.msra.mxu0 0.0
        %3339 = vmatprep.subr.mxu0 0.0
        %3340 = vmatpush2.msra.mxu0 0.0
        %3341 = vmatprep.subr.mxu0 0.0
        %3342 = vmatpush2.msra.mxu0 0.0
        %3343 = vmatprep.subr.mxu0 0.0
        %3344 = vmatpush2.msra.mxu0 0.0
        %3345 = vmatprep.subr.mxu0 0.0
        %3346 = vmatpush2.msra.mxu0 0.0
        %3347 = vmatprep.mubr.f32.mxu0 0.0
        %3348 = vmatmul.mubr.f32.gmra.mxu0 %v3071
        %v3349 = vpop.f32.mrf.mxu0
        %v3350 = vadd.f32 %v3065, %v3349
        %v3351 = vpop.f32.mrf.mxu0
        %3352 = vdwg.mxu0
        %v3357 = vlaneseq
        %v3358 = vshrl.u32 %v3357, 7
        %v3359 = vsub.s32 0, %v3358
        %v3360 = vrot.slane %v2730, %v3359
        %v3361 = vlaneseq
        %v3362 = vshrl.u32 %v3361, 7
        %v3363 = vsub.s32 0, %v3362
        %v3364 = vrot.slane %v2731, %v3363
        %v3365 = vlaneseq
        %v3366 = vshrl.u32 %v3365, 7
        %v3367 = vsub.s32 0, %v3366
        %v3368 = vrot.slane %v2732, %v3367
        %v3369 = vlaneseq
        %v3370 = vshrl.u32 %v3369, 7
        %v3371 = vsub.s32 0, %v3370
        %v3372 = vrot.slane %v2733, %v3371
        %3377 = vmatprep.subr.mxu0 0.0
        %3378 = vmatpush1.msra.mxu0 0.0
        %3379 = vmatprep.subr.mxu0 0.0
        %3380 = vmatpush1.msra.mxu0 0.0
        %3381 = vmatprep.subr.mxu0 0.0
        %3382 = vmatpush1.msra.mxu0 0.0
        %3383 = vmatprep.subr.mxu0 0.0
        %3384 = vmatpush1.msra.mxu0 0.0
        %3385 = vmatprep.subr.mxu0 0.0
        %3386 = vmatpush1.msra.mxu0 0.0
        %3387 = vmatprep.subr.mxu0 0.0
        %3388 = vmatpush1.msra.mxu0 0.0
        %3389 = vmatprep.subr.mxu0 0.0
        %3390 = vmatpush1.msra.mxu0 0.0
        %3391 = vmatprep.subr.mxu0 0.0
        %3392 = vmatpush1.msra.mxu0 0.0
        %3393 = vmatprep.subr.mxu0 0.0
        %3394 = vmatpush1.msra.mxu0 0.0
        %3395 = vmatprep.subr.mxu0 0.0
        %3396 = vmatpush1.msra.mxu0 0.0
        %3397 = vmatprep.subr.mxu0 0.0
        %3398 = vmatpush1.msra.mxu0 0.0
        %3399 = vmatprep.subr.mxu0 0.0
        %3400 = vmatpush1.msra.mxu0 0.0
        %3401 = vmatprep.subr.mxu0 0.0
        %3402 = vmatpush1.msra.mxu0 %v2717
        %3403 = vmatprep.subr.mxu0 0.0
        %3404 = vmatpush1.msra.mxu0 %v2716
        %3405 = vmatprep.subr.mxu0 0.0
        %3406 = vmatpush1.msra.mxu0 %v2715
        %3407 = vmatprep.subr.mxu0 0.0
        %3408 = vmatpush1.msra.mxu0 %v2714
        %3409 = vmatprep.subr.mxu0 0.0
        %3410 = vmatpush2.msra.mxu0 0.0
        %3411 = vmatprep.subr.mxu0 0.0
        %3412 = vmatpush2.msra.mxu0 0.0
        %3413 = vmatprep.subr.mxu0 0.0
        %3414 = vmatpush2.msra.mxu0 0.0
        %3415 = vmatprep.subr.mxu0 0.0
        %3416 = vmatpush2.msra.mxu0 0.0
        %3417 = vmatprep.subr.mxu0 0.0
        %3418 = vmatpush2.msra.mxu0 0.0
        %3419 = vmatprep.subr.mxu0 0.0
        %3420 = vmatpush2.msra.mxu0 0.0
        %3421 = vmatprep.subr.mxu0 0.0
        %3422 = vmatpush2.msra.mxu0 0.0
        %3423 = vmatprep.subr.mxu0 0.0
        %3424 = vmatpush2.msra.mxu0 0.0
        %3425 = vmatprep.subr.mxu0 0.0
        %3426 = vmatpush2.msra.mxu0 0.0
        %3427 = vmatprep.subr.mxu0 0.0
        %3428 = vmatpush2.msra.mxu0 0.0
        %3429 = vmatprep.subr.mxu0 0.0
        %3430 = vmatpush2.msra.mxu0 0.0
        %3431 = vmatprep.subr.mxu0 0.0
        %3432 = vmatpush2.msra.mxu0 0.0
        %3433 = vmatprep.subr.mxu0 0.0
        %3434 = vmatpush2.msra.mxu0 0.0
        %3435 = vmatprep.subr.mxu0 0.0
        %3436 = vmatpush2.msra.mxu0 0.0
        %3437 = vmatprep.subr.mxu0 0.0
        %3438 = vmatpush2.msra.mxu0 0.0
        %3439 = vmatprep.subr.mxu0 0.0
        %3440 = vmatpush2.msra.mxu0 0.0
        %3441 = vmatprep.mubr.f32.mxu0 0.0
        %3442 = vmatmul.mubr.f32.gmra.mxu0 %v3071
        %v3443 = vpop.f32.mrf.mxu0
        %v3444 = vadd.f32 %v3360, %v3443
        %v3445 = vpop.f32.mrf.mxu0
        %3446 = vdwg.mxu0
        %3447 = vmatprep.subr.mxu0 0.0
        %3448 = vmatpush1.msra.mxu0 0.0
        %3449 = vmatprep.subr.mxu0 0.0
        %3450 = vmatpush1.msra.mxu0 0.0
        %3451 = vmatprep.subr.mxu0 0.0
        %3452 = vmatpush1.msra.mxu0 0.0
        %3453 = vmatprep.subr.mxu0 0.0
        %3454 = vmatpush1.msra.mxu0 0.0
        %3455 = vmatprep.subr.mxu0 0.0
        %3456 = vmatpush1.msra.mxu0 0.0
        %3457 = vmatprep.subr.mxu0 0.0
        %3458 = vmatpush1.msra.mxu0 0.0
        %3459 = vmatprep.subr.mxu0 0.0
        %3460 = vmatpush1.msra.mxu0 0.0
        %3461 = vmatprep.subr.mxu0 0.0
        %3462 = vmatpush1.msra.mxu0 0.0
        %3463 = vmatprep.subr.mxu0 0.0
        %3464 = vmatpush1.msra.mxu0 0.0
        %3465 = vmatprep.subr.mxu0 0.0
        %3466 = vmatpush1.msra.mxu0 0.0
        %3467 = vmatprep.subr.mxu0 0.0
        %3468 = vmatpush1.msra.mxu0 0.0
        %3469 = vmatprep.subr.mxu0 0.0
        %3470 = vmatpush1.msra.mxu0 0.0
        %3471 = vmatprep.subr.mxu0 0.0
        %3472 = vmatpush1.msra.mxu0 %v2721
        %3473 = vmatprep.subr.mxu0 0.0
        %3474 = vmatpush1.msra.mxu0 %v2720
        %3475 = vmatprep.subr.mxu0 0.0
        %3476 = vmatpush1.msra.mxu0 %v2719
        %3477 = vmatprep.subr.mxu0 0.0
        %3478 = vmatpush1.msra.mxu0 %v2718
        %3479 = vmatprep.subr.mxu0 0.0
        %3480 = vmatpush2.msra.mxu0 0.0
        %3481 = vmatprep.subr.mxu0 0.0
        %3482 = vmatpush2.msra.mxu0 0.0
        %3483 = vmatprep.subr.mxu0 0.0
        %3484 = vmatpush2.msra.mxu0 0.0
        %3485 = vmatprep.subr.mxu0 0.0
        %3486 = vmatpush2.msra.mxu0 0.0
        %3487 = vmatprep.subr.mxu0 0.0
        %3488 = vmatpush2.msra.mxu0 0.0
        %3489 = vmatprep.subr.mxu0 0.0
        %3490 = vmatpush2.msra.mxu0 0.0
        %3491 = vmatprep.subr.mxu0 0.0
        %3492 = vmatpush2.msra.mxu0 0.0
        %3493 = vmatprep.subr.mxu0 0.0
        %3494 = vmatpush2.msra.mxu0 0.0
        %3495 = vmatprep.subr.mxu0 0.0
        %3496 = vmatpush2.msra.mxu0 0.0
        %3497 = vmatprep.subr.mxu0 0.0
        %3498 = vmatpush2.msra.mxu0 0.0
        %3499 = vmatprep.subr.mxu0 0.0
        %3500 = vmatpush2.msra.mxu0 0.0
        %3501 = vmatprep.subr.mxu0 0.0
        %3502 = vmatpush2.msra.mxu0 0.0
        %3503 = vmatprep.subr.mxu0 0.0
        %3504 = vmatpush2.msra.mxu0 0.0
        %3505 = vmatprep.subr.mxu0 0.0
        %3506 = vmatpush2.msra.mxu0 0.0
        %3507 = vmatprep.subr.mxu0 0.0
        %3508 = vmatpush2.msra.mxu0 0.0
        %3509 = vmatprep.subr.mxu0 0.0
        %3510 = vmatpush2.msra.mxu0 0.0
        %3511 = vmatprep.mubr.f32.mxu0 0.0
        %3512 = vmatmul.mubr.f32.gmra.mxu0 %v3071
        %v3513 = vpop.f32.mrf.mxu0
        %v3514 = vadd.f32 %v3364, %v3513
        %v3515 = vpop.f32.mrf.mxu0
        %3516 = vdwg.mxu0
        %3517 = vmatprep.subr.mxu0 0.0
        %3518 = vmatpush1.msra.mxu0 0.0
        %3519 = vmatprep.subr.mxu0 0.0
        %3520 = vmatpush1.msra.mxu0 0.0
        %3521 = vmatprep.subr.mxu0 0.0
        %3522 = vmatpush1.msra.mxu0 0.0
        %3523 = vmatprep.subr.mxu0 0.0
        %3524 = vmatpush1.msra.mxu0 0.0
        %3525 = vmatprep.subr.mxu0 0.0
        %3526 = vmatpush1.msra.mxu0 0.0
        %3527 = vmatprep.subr.mxu0 0.0
        %3528 = vmatpush1.msra.mxu0 0.0
        %3529 = vmatprep.subr.mxu0 0.0
        %3530 = vmatpush1.msra.mxu0 0.0
        %3531 = vmatprep.subr.mxu0 0.0
        %3532 = vmatpush1.msra.mxu0 0.0
        %3533 = vmatprep.subr.mxu0 0.0
        %3534 = vmatpush1.msra.mxu0 0.0
        %3535 = vmatprep.subr.mxu0 0.0
        %3536 = vmatpush1.msra.mxu0 0.0
        %3537 = vmatprep.subr.mxu0 0.0
        %3538 = vmatpush1.msra.mxu0 0.0
        %3539 = vmatprep.subr.mxu0 0.0
        %3540 = vmatpush1.msra.mxu0 0.0
        %3541 = vmatprep.subr.mxu0 0.0
        %3542 = vmatpush1.msra.mxu0 %v2725
        %3543 = vmatprep.subr.mxu0 0.0
        %3544 = vmatpush1.msra.mxu0 %v2724
        %3545 = vmatprep.subr.mxu0 0.0
        %3546 = vmatpush1.msra.mxu0 %v2723
        %3547 = vmatprep.subr.mxu0 0.0
        %3548 = vmatpush1.msra.mxu0 %v2722
        %3549 = vmatprep.subr.mxu0 0.0
        %3550 = vmatpush2.msra.mxu0 0.0
        %3551 = vmatprep.subr.mxu0 0.0
        %3552 = vmatpush2.msra.mxu0 0.0
        %3553 = vmatprep.subr.mxu0 0.0
        %3554 = vmatpush2.msra.mxu0 0.0
        %3555 = vmatprep.subr.mxu0 0.0
        %3556 = vmatpush2.msra.mxu0 0.0
        %3557 = vmatprep.subr.mxu0 0.0
        %3558 = vmatpush2.msra.mxu0 0.0
        %3559 = vmatprep.subr.mxu0 0.0
        %3560 = vmatpush2.msra.mxu0 0.0
        %3561 = vmatprep.subr.mxu0 0.0
        %3562 = vmatpush2.msra.mxu0 0.0
        %3563 = vmatprep.subr.mxu0 0.0
        %3564 = vmatpush2.msra.mxu0 0.0
        %3565 = vmatprep.subr.mxu0 0.0
        %3566 = vmatpush2.msra.mxu0 0.0
        %3567 = vmatprep.subr.mxu0 0.0
        %3568 = vmatpush2.msra.mxu0 0.0
        %3569 = vmatprep.subr.mxu0 0.0
        %3570 = vmatpush2.msra.mxu0 0.0
        %3571 = vmatprep.subr.mxu0 0.0
        %3572 = vmatpush2.msra.mxu0 0.0
        %3573 = vmatprep.subr.mxu0 0.0
        %3574 = vmatpush2.msra.mxu0 0.0
        %3575 = vmatprep.subr.mxu0 0.0
        %3576 = vmatpush2.msra.mxu0 0.0
        %3577 = vmatprep.subr.mxu0 0.0
        %3578 = vmatpush2.msra.mxu0 0.0
        %3579 = vmatprep.subr.mxu0 0.0
        %3580 = vmatpush2.msra.mxu0 0.0
        %3581 = vmatprep.mubr.f32.mxu0 0.0
        %3582 = vmatmul.mubr.f32.gmra.mxu0 %v3071
        %v3583 = vpop.f32.mrf.mxu0
        %v3584 = vadd.f32 %v3368, %v3583
        %v3585 = vpop.f32.mrf.mxu0
        %3586 = vdwg.mxu0
        %3587 = vmatprep.subr.mxu0 0.0
        %3588 = vmatpush1.msra.mxu0 0.0
        %3589 = vmatprep.subr.mxu0 0.0
        %3590 = vmatpush1.msra.mxu0 0.0
        %3591 = vmatprep.subr.mxu0 0.0
        %3592 = vmatpush1.msra.mxu0 0.0
        %3593 = vmatprep.subr.mxu0 0.0
        %3594 = vmatpush1.msra.mxu0 0.0
        %3595 = vmatprep.subr.mxu0 0.0
        %3596 = vmatpush1.msra.mxu0 0.0
        %3597 = vmatprep.subr.mxu0 0.0
        %3598 = vmatpush1.msra.mxu0 0.0
        %3599 = vmatprep.subr.mxu0 0.0
        %3600 = vmatpush1.msra.mxu0 0.0
        %3601 = vmatprep.subr.mxu0 0.0
        %3602 = vmatpush1.msra.mxu0 0.0
        %3603 = vmatprep.subr.mxu0 0.0
        %3604 = vmatpush1.msra.mxu0 0.0
        %3605 = vmatprep.subr.mxu0 0.0
        %3606 = vmatpush1.msra.mxu0 0.0
        %3607 = vmatprep.subr.mxu0 0.0
        %3608 = vmatpush1.msra.mxu0 0.0
        %3609 = vmatprep.subr.mxu0 0.0
        %3610 = vmatpush1.msra.mxu0 0.0
        %3611 = vmatprep.subr.mxu0 0.0
        %3612 = vmatpush1.msra.mxu0 %v2729
        %3613 = vmatprep.subr.mxu0 0.0
        %3614 = vmatpush1.msra.mxu0 %v2728
        %3615 = vmatprep.subr.mxu0 0.0
        %3616 = vmatpush1.msra.mxu0 %v2727
        %3617 = vmatprep.subr.mxu0 0.0
        %3618 = vmatpush1.msra.mxu0 %v2726
        %3619 = vmatprep.subr.mxu0 0.0
        %3620 = vmatpush2.msra.mxu0 0.0
        %3621 = vmatprep.subr.mxu0 0.0
        %3622 = vmatpush2.msra.mxu0 0.0
        %3623 = vmatprep.subr.mxu0 0.0
        %3624 = vmatpush2.msra.mxu0 0.0
        %3625 = vmatprep.subr.mxu0 0.0
        %3626 = vmatpush2.msra.mxu0 0.0
        %3627 = vmatprep.subr.mxu0 0.0
        %3628 = vmatpush2.msra.mxu0 0.0
        %3629 = vmatprep.subr.mxu0 0.0
        %3630 = vmatpush2.msra.mxu0 0.0
        %3631 = vmatprep.subr.mxu0 0.0
        %3632 = vmatpush2.msra.mxu0 0.0
        %3633 = vmatprep.subr.mxu0 0.0
        %3634 = vmatpush2.msra.mxu0 0.0
        %3635 = vmatprep.subr.mxu0 0.0
        %3636 = vmatpush2.msra.mxu0 0.0
        %3637 = vmatprep.subr.mxu0 0.0
        %3638 = vmatpush2.msra.mxu0 0.0
        %3639 = vmatprep.subr.mxu0 0.0
        %3640 = vmatpush2.msra.mxu0 0.0
        %3641 = vmatprep.subr.mxu0 0.0
        %3642 = vmatpush2.msra.mxu0 0.0
        %3643 = vmatprep.subr.mxu0 0.0
        %3644 = vmatpush2.msra.mxu0 0.0
        %3645 = vmatprep.subr.mxu0 0.0
        %3646 = vmatpush2.msra.mxu0 0.0
        %3647 = vmatprep.subr.mxu0 0.0
        %3648 = vmatpush2.msra.mxu0 0.0
        %3649 = vmatprep.subr.mxu0 0.0
        %3650 = vmatpush2.msra.mxu0 0.0
        %3651 = vmatprep.mubr.f32.mxu0 0.0
        %3652 = vmatmul.mubr.f32.gmra.mxu0 %v3071
        %v3653 = vpop.f32.mrf.mxu0
        %v3654 = vadd.f32 %v3372, %v3653
        %v3655 = vpop.f32.mrf.mxu0
        %3656 = vdwg.mxu0
        %v3658 = vsel %vm1708, %v2833, 0
        %v3661 = vsel %vm1708, %v3140, 0
        %3663 = vmatprep.subr.mxu0 0.0
        %3664 = vmatpush1.xpose.msra.mxu0 0.0
        %3665 = vmatprep.subr.mxu0 0.0
        %3666 = vmatpush1.xpose.msra.mxu0 0.0
        %3667 = vmatprep.subr.mxu0 0.0
        %3668 = vmatpush1.xpose.msra.mxu0 0.0
        %3669 = vmatprep.subr.mxu0 0.0
        %3670 = vmatpush1.xpose.msra.mxu0 0.0
        %3671 = vmatprep.subr.mxu0 0.0
        %3672 = vmatpush1.xpose.msra.mxu0 0.0
        %3673 = vmatprep.subr.mxu0 0.0
        %3674 = vmatpush1.xpose.msra.mxu0 0.0
        %3675 = vmatprep.subr.mxu0 0.0
        %3676 = vmatpush1.xpose.msra.mxu0 0.0
        %3677 = vmatprep.subr.mxu0 0.0
        %3678 = vmatpush1.xpose.msra.mxu0 0.0
        %3679 = vmatprep.subr.mxu0 0.0
        %3680 = vmatpush1.xpose.msra.mxu0 0.0
        %3681 = vmatprep.subr.mxu0 0.0
        %3682 = vmatpush1.xpose.msra.mxu0 0.0
        %3683 = vmatprep.subr.mxu0 0.0
        %3684 = vmatpush1.xpose.msra.mxu0 0.0
        %3685 = vmatprep.subr.mxu0 0.0
        %3686 = vmatpush1.xpose.msra.mxu0 0.0
        %3687 = vmatprep.subr.mxu0 0.0
        %3688 = vmatpush1.xpose.msra.mxu0 0.0
        %3689 = vmatprep.subr.mxu0 0.0
        %3690 = vmatpush1.xpose.msra.mxu0 0.0
        %3691 = vmatprep.subr.mxu0 0.0
        %3692 = vmatpush1.xpose.msra.mxu0 0.0
        %3693 = vmatprep.subr.mxu0 0.0
        %3694 = vmatpush1.xpose.msra.mxu0 %v3661
        %3695 = vmatprep.subr.mxu0 0.0
        %3696 = vmatpush2.xpose.msra.mxu0 0.0
        %3697 = vmatprep.subr.mxu0 0.0
        %3698 = vmatpush2.xpose.msra.mxu0 0.0
        %3699 = vmatprep.subr.mxu0 0.0
        %3700 = vmatpush2.xpose.msra.mxu0 0.0
        %3701 = vmatprep.subr.mxu0 0.0
        %3702 = vmatpush2.xpose.msra.mxu0 0.0
        %3703 = vmatprep.subr.mxu0 0.0
        %3704 = vmatpush2.xpose.msra.mxu0 0.0
        %3705 = vmatprep.subr.mxu0 0.0
        %3706 = vmatpush2.xpose.msra.mxu0 0.0
        %3707 = vmatprep.subr.mxu0 0.0
        %3708 = vmatpush2.xpose.msra.mxu0 0.0
        %3709 = vmatprep.subr.mxu0 0.0
        %3710 = vmatpush2.xpose.msra.mxu0 0.0
        %3711 = vmatprep.subr.mxu0 0.0
        %3712 = vmatpush2.xpose.msra.mxu0 0.0
        %3713 = vmatprep.subr.mxu0 0.0
        %3714 = vmatpush2.xpose.msra.mxu0 0.0
        %3715 = vmatprep.subr.mxu0 0.0
        %3716 = vmatpush2.xpose.msra.mxu0 0.0
        %3717 = vmatprep.subr.mxu0 0.0
        %3718 = vmatpush2.xpose.msra.mxu0 0.0
        %3719 = vmatprep.subr.mxu0 0.0
        %3720 = vmatpush2.xpose.msra.mxu0 0.0
        %3721 = vmatprep.subr.mxu0 0.0
        %3722 = vmatpush2.xpose.msra.mxu0 0.0
        %3723 = vmatprep.subr.mxu0 0.0
        %3724 = vmatpush2.xpose.msra.mxu0 0.0
        %3725 = vmatprep.subr.mxu0 0.0
        %3726 = vmatpush2.xpose.msra.mxu0 0.0
        %3727 = vmatprep.mubr.f32.mxu0 0.0
        %3728 = vmatmul.mubr.f32.gmra.mxu0 %v3658
        %v3729 = vpop.f32.mrf.mxu0
        %v3730 = vadd.f32 0.0, %v3729
        %v3731 = vpop.f32.mrf.mxu0
        %3732 = vdwg.mxu0
        %v3734 = vsel %vm1708, %v2903, 0
        %v3737 = vsel %vm1708, %v3210, 0
        %3739 = vmatprep.subr.mxu0 0.0
        %3740 = vmatpush1.xpose.msra.mxu0 0.0
        %3741 = vmatprep.subr.mxu0 0.0
        %3742 = vmatpush1.xpose.msra.mxu0 0.0
        %3743 = vmatprep.subr.mxu0 0.0
        %3744 = vmatpush1.xpose.msra.mxu0 0.0
        %3745 = vmatprep.subr.mxu0 0.0
        %3746 = vmatpush1.xpose.msra.mxu0 0.0
        %3747 = vmatprep.subr.mxu0 0.0
        %3748 = vmatpush1.xpose.msra.mxu0 0.0
        %3749 = vmatprep.subr.mxu0 0.0
        %3750 = vmatpush1.xpose.msra.mxu0 0.0
        %3751 = vmatprep.subr.mxu0 0.0
        %3752 = vmatpush1.xpose.msra.mxu0 0.0
        %3753 = vmatprep.subr.mxu0 0.0
        %3754 = vmatpush1.xpose.msra.mxu0 0.0
        %3755 = vmatprep.subr.mxu0 0.0
        %3756 = vmatpush1.xpose.msra.mxu0 0.0
        %3757 = vmatprep.subr.mxu0 0.0
        %3758 = vmatpush1.xpose.msra.mxu0 0.0
        %3759 = vmatprep.subr.mxu0 0.0
        %3760 = vmatpush1.xpose.msra.mxu0 0.0
        %3761 = vmatprep.subr.mxu0 0.0
        %3762 = vmatpush1.xpose.msra.mxu0 0.0
        %3763 = vmatprep.subr.mxu0 0.0
        %3764 = vmatpush1.xpose.msra.mxu0 0.0
        %3765 = vmatprep.subr.mxu0 0.0
        %3766 = vmatpush1.xpose.msra.mxu0 0.0
        %3767 = vmatprep.subr.mxu0 0.0
        %3768 = vmatpush1.xpose.msra.mxu0 0.0
        %3769 = vmatprep.subr.mxu0 0.0
        %3770 = vmatpush1.xpose.msra.mxu0 %v3737
        %3771 = vmatprep.subr.mxu0 0.0
        %3772 = vmatpush2.xpose.msra.mxu0 0.0
        %3773 = vmatprep.subr.mxu0 0.0
        %3774 = vmatpush2.xpose.msra.mxu0 0.0
        %3775 = vmatprep.subr.mxu0 0.0
        %3776 = vmatpush2.xpose.msra.mxu0 0.0
        %3777 = vmatprep.subr.mxu0 0.0
        %3778 = vmatpush2.xpose.msra.mxu0 0.0
        %3779 = vmatprep.subr.mxu0 0.0
        %3780 = vmatpush2.xpose.msra.mxu0 0.0
        %3781 = vmatprep.subr.mxu0 0.0
        %3782 = vmatpush2.xpose.msra.mxu0 0.0
        %3783 = vmatprep.subr.mxu0 0.0
        %3784 = vmatpush2.xpose.msra.mxu0 0.0
        %3785 = vmatprep.subr.mxu0 0.0
        %3786 = vmatpush2.xpose.msra.mxu0 0.0
        %3787 = vmatprep.subr.mxu0 0.0
        %3788 = vmatpush2.xpose.msra.mxu0 0.0
        %3789 = vmatprep.subr.mxu0 0.0
        %3790 = vmatpush2.xpose.msra.mxu0 0.0
        %3791 = vmatprep.subr.mxu0 0.0
        %3792 = vmatpush2.xpose.msra.mxu0 0.0
        %3793 = vmatprep.subr.mxu0 0.0
        %3794 = vmatpush2.xpose.msra.mxu0 0.0
        %3795 = vmatprep.subr.mxu0 0.0
        %3796 = vmatpush2.xpose.msra.mxu0 0.0
        %3797 = vmatprep.subr.mxu0 0.0
        %3798 = vmatpush2.xpose.msra.mxu0 0.0
        %3799 = vmatprep.subr.mxu0 0.0
        %3800 = vmatpush2.xpose.msra.mxu0 0.0
        %3801 = vmatprep.subr.mxu0 0.0
        %3802 = vmatpush2.xpose.msra.mxu0 0.0
        %3803 = vmatprep.mubr.f32.mxu0 0.0
        %3804 = vmatmul.mubr.f32.gmra.mxu0 %v3734
        %v3805 = vpop.f32.mrf.mxu0
        %v3806 = vadd.f32 0.0, %v3805
        %v3807 = vpop.f32.mrf.mxu0
        %3808 = vdwg.mxu0
        %v3810 = vsel %vm1708, %v2973, 0
        %v3813 = vsel %vm1708, %v3280, 0
        %3815 = vmatprep.subr.mxu0 0.0
        %3816 = vmatpush1.xpose.msra.mxu0 0.0
        %3817 = vmatprep.subr.mxu0 0.0
        %3818 = vmatpush1.xpose.msra.mxu0 0.0
        %3819 = vmatprep.subr.mxu0 0.0
        %3820 = vmatpush1.xpose.msra.mxu0 0.0
        %3821 = vmatprep.subr.mxu0 0.0
        %3822 = vmatpush1.xpose.msra.mxu0 0.0
        %3823 = vmatprep.subr.mxu0 0.0
        %3824 = vmatpush1.xpose.msra.mxu0 0.0
        %3825 = vmatprep.subr.mxu0 0.0
        %3826 = vmatpush1.xpose.msra.mxu0 0.0
        %3827 = vmatprep.subr.mxu0 0.0
        %3828 = vmatpush1.xpose.msra.mxu0 0.0
        %3829 = vmatprep.subr.mxu0 0.0
        %3830 = vmatpush1.xpose.msra.mxu0 0.0
        %3831 = vmatprep.subr.mxu0 0.0
        %3832 = vmatpush1.xpose.msra.mxu0 0.0
        %3833 = vmatprep.subr.mxu0 0.0
        %3834 = vmatpush1.xpose.msra.mxu0 0.0
        %3835 = vmatprep.subr.mxu0 0.0
        %3836 = vmatpush1.xpose.msra.mxu0 0.0
        %3837 = vmatprep.subr.mxu0 0.0
        %3838 = vmatpush1.xpose.msra.mxu0 0.0
        %3839 = vmatprep.subr.mxu0 0.0
        %3840 = vmatpush1.xpose.msra.mxu0 0.0
        %3841 = vmatprep.subr.mxu0 0.0
        %3842 = vmatpush1.xpose.msra.mxu0 0.0
        %3843 = vmatprep.subr.mxu0 0.0
        %3844 = vmatpush1.xpose.msra.mxu0 0.0
        %3845 = vmatprep.subr.mxu0 0.0
        %3846 = vmatpush1.xpose.msra.mxu0 %v3813
        %3847 = vmatprep.subr.mxu0 0.0
        %3848 = vmatpush2.xpose.msra.mxu0 0.0
        %3849 = vmatprep.subr.mxu0 0.0
        %3850 = vmatpush2.xpose.msra.mxu0 0.0
        %3851 = vmatprep.subr.mxu0 0.0
        %3852 = vmatpush2.xpose.msra.mxu0 0.0
        %3853 = vmatprep.subr.mxu0 0.0
        %3854 = vmatpush2.xpose.msra.mxu0 0.0
        %3855 = vmatprep.subr.mxu0 0.0
        %3856 = vmatpush2.xpose.msra.mxu0 0.0
        %3857 = vmatprep.subr.mxu0 0.0
        %3858 = vmatpush2.xpose.msra.mxu0 0.0
        %3859 = vmatprep.subr.mxu0 0.0
        %3860 = vmatpush2.xpose.msra.mxu0 0.0
        %3861 = vmatprep.subr.mxu0 0.0
        %3862 = vmatpush2.xpose.msra.mxu0 0.0
        %3863 = vmatprep.subr.mxu0 0.0
        %3864 = vmatpush2.xpose.msra.mxu0 0.0
        %3865 = vmatprep.subr.mxu0 0.0
        %3866 = vmatpush2.xpose.msra.mxu0 0.0
        %3867 = vmatprep.subr.mxu0 0.0
        %3868 = vmatpush2.xpose.msra.mxu0 0.0
        %3869 = vmatprep.subr.mxu0 0.0
        %3870 = vmatpush2.xpose.msra.mxu0 0.0
        %3871 = vmatprep.subr.mxu0 0.0
        %3872 = vmatpush2.xpose.msra.mxu0 0.0
        %3873 = vmatprep.subr.mxu0 0.0
        %3874 = vmatpush2.xpose.msra.mxu0 0.0
        %3875 = vmatprep.subr.mxu0 0.0
        %3876 = vmatpush2.xpose.msra.mxu0 0.0
        %3877 = vmatprep.subr.mxu0 0.0
        %3878 = vmatpush2.xpose.msra.mxu0 0.0
        %3879 = vmatprep.mubr.f32.mxu0 0.0
        %3880 = vmatmul.mubr.f32.gmra.mxu0 %v3810
        %v3881 = vpop.f32.mrf.mxu0
        %v3882 = vadd.f32 0.0, %v3881
        %v3883 = vpop.f32.mrf.mxu0
        %3884 = vdwg.mxu0
        %v3886 = vsel %vm1708, %v3043, 0
        %v3889 = vsel %vm1708, %v3350, 0
        %3891 = vmatprep.subr.mxu0 0.0
        %3892 = vmatpush1.xpose.msra.mxu0 0.0
        %3893 = vmatprep.subr.mxu0 0.0
        %3894 = vmatpush1.xpose.msra.mxu0 0.0
        %3895 = vmatprep.subr.mxu0 0.0
        %3896 = vmatpush1.xpose.msra.mxu0 0.0
        %3897 = vmatprep.subr.mxu0 0.0
        %3898 = vmatpush1.xpose.msra.mxu0 0.0
        %3899 = vmatprep.subr.mxu0 0.0
        %3900 = vmatpush1.xpose.msra.mxu0 0.0
        %3901 = vmatprep.subr.mxu0 0.0
        %3902 = vmatpush1.xpose.msra.mxu0 0.0
        %3903 = vmatprep.subr.mxu0 0.0
        %3904 = vmatpush1.xpose.msra.mxu0 0.0
        %3905 = vmatprep.subr.mxu0 0.0
        %3906 = vmatpush1.xpose.msra.mxu0 0.0
        %3907 = vmatprep.subr.mxu0 0.0
        %3908 = vmatpush1.xpose.msra.mxu0 0.0
        %3909 = vmatprep.subr.mxu0 0.0
        %3910 = vmatpush1.xpose.msra.mxu0 0.0
        %3911 = vmatprep.subr.mxu0 0.0
        %3912 = vmatpush1.xpose.msra.mxu0 0.0
        %3913 = vmatprep.subr.mxu0 0.0
        %3914 = vmatpush1.xpose.msra.mxu0 0.0
        %3915 = vmatprep.subr.mxu0 0.0
        %3916 = vmatpush1.xpose.msra.mxu0 0.0
        %3917 = vmatprep.subr.mxu0 0.0
        %3918 = vmatpush1.xpose.msra.mxu0 0.0
        %3919 = vmatprep.subr.mxu0 0.0
        %3920 = vmatpush1.xpose.msra.mxu0 0.0
        %3921 = vmatprep.subr.mxu0 0.0
        %3922 = vmatpush1.xpose.msra.mxu0 %v3889
        %3923 = vmatprep.subr.mxu0 0.0
        %3924 = vmatpush2.xpose.msra.mxu0 0.0
        %3925 = vmatprep.subr.mxu0 0.0
        %3926 = vmatpush2.xpose.msra.mxu0 0.0
        %3927 = vmatprep.subr.mxu0 0.0
        %3928 = vmatpush2.xpose.msra.mxu0 0.0
        %3929 = vmatprep.subr.mxu0 0.0
        %3930 = vmatpush2.xpose.msra.mxu0 0.0
        %3931 = vmatprep.subr.mxu0 0.0
        %3932 = vmatpush2.xpose.msra.mxu0 0.0
        %3933 = vmatprep.subr.mxu0 0.0
        %3934 = vmatpush2.xpose.msra.mxu0 0.0
        %3935 = vmatprep.subr.mxu0 0.0
        %3936 = vmatpush2.xpose.msra.mxu0 0.0
        %3937 = vmatprep.subr.mxu0 0.0
        %3938 = vmatpush2.xpose.msra.mxu0 0.0
        %3939 = vmatprep.subr.mxu0 0.0
        %3940 = vmatpush2.xpose.msra.mxu0 0.0
        %3941 = vmatprep.subr.mxu0 0.0
        %3942 = vmatpush2.xpose.msra.mxu0 0.0
        %3943 = vmatprep.subr.mxu0 0.0
        %3944 = vmatpush2.xpose.msra.mxu0 0.0
        %3945 = vmatprep.subr.mxu0 0.0
        %3946 = vmatpush2.xpose.msra.mxu0 0.0
        %3947 = vmatprep.subr.mxu0 0.0
        %3948 = vmatpush2.xpose.msra.mxu0 0.0
        %3949 = vmatprep.subr.mxu0 0.0
        %3950 = vmatpush2.xpose.msra.mxu0 0.0
        %3951 = vmatprep.subr.mxu0 0.0
        %3952 = vmatpush2.xpose.msra.mxu0 0.0
        %3953 = vmatprep.subr.mxu0 0.0
        %3954 = vmatpush2.xpose.msra.mxu0 0.0
        %3955 = vmatprep.mubr.f32.mxu0 0.0
        %3956 = vmatmul.mubr.f32.gmra.mxu0 %v3886
        %v3957 = vpop.f32.mrf.mxu0
        %v3958 = vadd.f32 0.0, %v3957
        %v3959 = vpop.f32.mrf.mxu0
        %3960 = vdwg.mxu0
        %v3961 = vmul.f32 %v3730, 0.35355338
        %v3962 = vmul.f32 %v3806, 0.35355338
        %v3963 = vmul.f32 %v3882, 0.35355338
        %v3964 = vmul.f32 %v3958, 0.35355338
        %v3965 = vsel %vm1708, %v3961, -inf
        %3966 = vmax.xlane.f32.xlu0 %v3965
        %v3967 = vpop.xlane.xlu0 %3966
        %v3968 = vsel %vm1708, %v3962, -inf
        %3969 = vmax.xlane.f32.xlu0 %v3968
        %v3970 = vpop.xlane.xlu0 %3969
        %v3971 = vsel %vm1708, %v3963, -inf
        %3972 = vmax.xlane.f32.xlu0 %v3971
        %v3973 = vpop.xlane.xlu0 %3972
        %v3974 = vsel %vm1708, %v3964, -inf
        %3975 = vmax.xlane.f32.xlu0 %v3974
        %v3976 = vpop.xlane.xlu0 %3975
        %v3977 = vsub.f32 %v3961, %v3967
        %v3978 = vsub.f32 %v3962, %v3970
        %v3979 = vsub.f32 %v3963, %v3973
        %v3980 = vsub.f32 %v3964, %v3976
        %v3981 = vmul.f32 %v3977, 1.442695
        %v3982 = vpow.pop %v3981
        %v3983 = vmul.f32 %v3978, 1.442695
        %v3984 = vpow.pop %v3983
        %v3985 = vmul.f32 %v3979, 1.442695
        %v3986 = vpow.pop %v3985
        %v3987 = vmul.f32 %v3980, 1.442695
        %v3988 = vpow.pop %v3987
        %v3989 = vsel %vm1708, %v3982, 0.0
        %3990 = vadd.xlane.f32.xlu0 %v3989
        %v3991 = vpop.xlane.xlu0 %3990
        %v3992 = vsel %vm1708, %v3984, 0.0
        %3993 = vadd.xlane.f32.xlu0 %v3992
        %v3994 = vpop.xlane.xlu0 %3993
        %v3995 = vsel %vm1708, %v3986, 0.0
        %3996 = vadd.xlane.f32.xlu0 %v3995
        %v3997 = vpop.xlane.xlu0 %3996
        %v3998 = vsel %vm1708, %v3988, 0.0
        %3999 = vadd.xlane.f32.xlu0 %v3998
        %v4000 = vpop.xlane.xlu0 %3999
        %v4001 = vrcp.pop %v3991
        %v4002 = vrcp.pop %v3994
        %v4003 = vrcp.pop %v3997
        %v4004 = vrcp.pop %v4000
        %v4005 = vmul.f32 %v3982, %v4001
        %v4006 = vmul.f32 %v3984, %v4002
        %v4007 = vmul.f32 %v3986, %v4003
        %v4008 = vmul.f32 %v3988, %v4004
        %v4010 = vsel %vm1708, %v4005, 0
        %4012 = vmatprep.subr.mxu0 0.0
        %4013 = vmatpush1.msra.mxu0 0.0
        %4014 = vmatprep.subr.mxu0 0.0
        %4015 = vmatpush1.msra.mxu0 0.0
        %4016 = vmatprep.subr.mxu0 0.0
        %4017 = vmatpush1.msra.mxu0 0.0
        %4018 = vmatprep.subr.mxu0 0.0
        %4019 = vmatpush1.msra.mxu0 0.0
        %4020 = vmatprep.subr.mxu0 0.0
        %4021 = vmatpush1.msra.mxu0 0.0
        %4022 = vmatprep.subr.mxu0 0.0
        %4023 = vmatpush1.msra.mxu0 0.0
        %4024 = vmatprep.subr.mxu0 0.0
        %4025 = vmatpush1.msra.mxu0 0.0
        %4026 = vmatprep.subr.mxu0 0.0
        %4027 = vmatpush1.msra.mxu0 0.0
        %4028 = vmatprep.subr.mxu0 0.0
        %4029 = vmatpush1.msra.mxu0 0.0
        %4030 = vmatprep.subr.mxu0 0.0
        %4031 = vmatpush1.msra.mxu0 0.0
        %4032 = vmatprep.subr.mxu0 0.0
        %4033 = vmatpush1.msra.mxu0 0.0
        %4034 = vmatprep.subr.mxu0 0.0
        %4035 = vmatpush1.msra.mxu0 0.0
        %4036 = vmatprep.subr.mxu0 0.0
        %4037 = vmatpush1.msra.mxu0 0.0
        %4038 = vmatprep.subr.mxu0 0.0
        %4039 = vmatpush1.msra.mxu0 0.0
        %4040 = vmatprep.subr.mxu0 0.0
        %4041 = vmatpush1.msra.mxu0 0.0
        %4042 = vmatprep.subr.mxu0 0.0
        %4043 = vmatpush1.msra.mxu0 %v3444
        %4044 = vmatprep.subr.mxu0 0.0
        %4045 = vmatpush2.msra.mxu0 0.0
        %4046 = vmatprep.subr.mxu0 0.0
        %4047 = vmatpush2.msra.mxu0 0.0
        %4048 = vmatprep.subr.mxu0 0.0
        %4049 = vmatpush2.msra.mxu0 0.0
        %4050 = vmatprep.subr.mxu0 0.0
        %4051 = vmatpush2.msra.mxu0 0.0
        %4052 = vmatprep.subr.mxu0 0.0
        %4053 = vmatpush2.msra.mxu0 0.0
        %4054 = vmatprep.subr.mxu0 0.0
        %4055 = vmatpush2.msra.mxu0 0.0
        %4056 = vmatprep.subr.mxu0 0.0
        %4057 = vmatpush2.msra.mxu0 0.0
        %4058 = vmatprep.subr.mxu0 0.0
        %4059 = vmatpush2.msra.mxu0 0.0
        %4060 = vmatprep.subr.mxu0 0.0
        %4061 = vmatpush2.msra.mxu0 0.0
        %4062 = vmatprep.subr.mxu0 0.0
        %4063 = vmatpush2.msra.mxu0 0.0
        %4064 = vmatprep.subr.mxu0 0.0
        %4065 = vmatpush2.msra.mxu0 0.0
        %4066 = vmatprep.subr.mxu0 0.0
        %4067 = vmatpush2.msra.mxu0 0.0
        %4068 = vmatprep.subr.mxu0 0.0
        %4069 = vmatpush2.msra.mxu0 0.0
        %4070 = vmatprep.subr.mxu0 0.0
        %4071 = vmatpush2.msra.mxu0 0.0
        %4072 = vmatprep.subr.mxu0 0.0
        %4073 = vmatpush2.msra.mxu0 0.0
        %4074 = vmatprep.subr.mxu0 0.0
        %4075 = vmatpush2.msra.mxu0 0.0
        %4076 = vmatprep.mubr.f32.mxu0 0.0
        %4077 = vmatmul.mubr.f32.gmra.mxu0 %v4010
        %v4078 = vpop.f32.mrf.mxu0
        %v4079 = vadd.f32 0.0, %v4078
        %v4080 = vpop.f32.mrf.mxu0
        %4081 = vdwg.mxu0
        %v4083 = vsel %vm1708, %v4006, 0
        %4085 = vmatprep.subr.mxu0 0.0
        %4086 = vmatpush1.msra.mxu0 0.0
        %4087 = vmatprep.subr.mxu0 0.0
        %4088 = vmatpush1.msra.mxu0 0.0
        %4089 = vmatprep.subr.mxu0 0.0
        %4090 = vmatpush1.msra.mxu0 0.0
        %4091 = vmatprep.subr.mxu0 0.0
        %4092 = vmatpush1.msra.mxu0 0.0
        %4093 = vmatprep.subr.mxu0 0.0
        %4094 = vmatpush1.msra.mxu0 0.0
        %4095 = vmatprep.subr.mxu0 0.0
        %4096 = vmatpush1.msra.mxu0 0.0
        %4097 = vmatprep.subr.mxu0 0.0
        %4098 = vmatpush1.msra.mxu0 0.0
        %4099 = vmatprep.subr.mxu0 0.0
        %4100 = vmatpush1.msra.mxu0 0.0
        %4101 = vmatprep.subr.mxu0 0.0
        %4102 = vmatpush1.msra.mxu0 0.0
        %4103 = vmatprep.subr.mxu0 0.0
        %4104 = vmatpush1.msra.mxu0 0.0
        %4105 = vmatprep.subr.mxu0 0.0
        %4106 = vmatpush1.msra.mxu0 0.0
        %4107 = vmatprep.subr.mxu0 0.0
        %4108 = vmatpush1.msra.mxu0 0.0
        %4109 = vmatprep.subr.mxu0 0.0
        %4110 = vmatpush1.msra.mxu0 0.0
        %4111 = vmatprep.subr.mxu0 0.0
        %4112 = vmatpush1.msra.mxu0 0.0
        %4113 = vmatprep.subr.mxu0 0.0
        %4114 = vmatpush1.msra.mxu0 0.0
        %4115 = vmatprep.subr.mxu0 0.0
        %4116 = vmatpush1.msra.mxu0 %v3514
        %4117 = vmatprep.subr.mxu0 0.0
        %4118 = vmatpush2.msra.mxu0 0.0
        %4119 = vmatprep.subr.mxu0 0.0
        %4120 = vmatpush2.msra.mxu0 0.0
        %4121 = vmatprep.subr.mxu0 0.0
        %4122 = vmatpush2.msra.mxu0 0.0
        %4123 = vmatprep.subr.mxu0 0.0
        %4124 = vmatpush2.msra.mxu0 0.0
        %4125 = vmatprep.subr.mxu0 0.0
        %4126 = vmatpush2.msra.mxu0 0.0
        %4127 = vmatprep.subr.mxu0 0.0
        %4128 = vmatpush2.msra.mxu0 0.0
        %4129 = vmatprep.subr.mxu0 0.0
        %4130 = vmatpush2.msra.mxu0 0.0
        %4131 = vmatprep.subr.mxu0 0.0
        %4132 = vmatpush2.msra.mxu0 0.0
        %4133 = vmatprep.subr.mxu0 0.0
        %4134 = vmatpush2.msra.mxu0 0.0
        %4135 = vmatprep.subr.mxu0 0.0
        %4136 = vmatpush2.msra.mxu0 0.0
        %4137 = vmatprep.subr.mxu0 0.0
        %4138 = vmatpush2.msra.mxu0 0.0
        %4139 = vmatprep.subr.mxu0 0.0
        %4140 = vmatpush2.msra.mxu0 0.0
        %4141 = vmatprep.subr.mxu0 0.0
        %4142 = vmatpush2.msra.mxu0 0.0
        %4143 = vmatprep.subr.mxu0 0.0
        %4144 = vmatpush2.msra.mxu0 0.0
        %4145 = vmatprep.subr.mxu0 0.0
        %4146 = vmatpush2.msra.mxu0 0.0
        %4147 = vmatprep.subr.mxu0 0.0
        %4148 = vmatpush2.msra.mxu0 0.0
        %4149 = vmatprep.mubr.f32.mxu0 0.0
        %4150 = vmatmul.mubr.f32.gmra.mxu0 %v4083
        %v4151 = vpop.f32.mrf.mxu0
        %v4152 = vadd.f32 0.0, %v4151
        %v4153 = vpop.f32.mrf.mxu0
        %4154 = vdwg.mxu0
        %v4156 = vsel %vm1708, %v4007, 0
        %4158 = vmatprep.subr.mxu0 0.0
        %4159 = vmatpush1.msra.mxu0 0.0
        %4160 = vmatprep.subr.mxu0 0.0
        %4161 = vmatpush1.msra.mxu0 0.0
        %4162 = vmatprep.subr.mxu0 0.0
        %4163 = vmatpush1.msra.mxu0 0.0
        %4164 = vmatprep.subr.mxu0 0.0
        %4165 = vmatpush1.msra.mxu0 0.0
        %4166 = vmatprep.subr.mxu0 0.0
        %4167 = vmatpush1.msra.mxu0 0.0
        %4168 = vmatprep.subr.mxu0 0.0
        %4169 = vmatpush1.msra.mxu0 0.0
        %4170 = vmatprep.subr.mxu0 0.0
        %4171 = vmatpush1.msra.mxu0 0.0
        %4172 = vmatprep.subr.mxu0 0.0
        %4173 = vmatpush1.msra.mxu0 0.0
        %4174 = vmatprep.subr.mxu0 0.0
        %4175 = vmatpush1.msra.mxu0 0.0
        %4176 = vmatprep.subr.mxu0 0.0
        %4177 = vmatpush1.msra.mxu0 0.0
        %4178 = vmatprep.subr.mxu0 0.0
        %4179 = vmatpush1.msra.mxu0 0.0
        %4180 = vmatprep.subr.mxu0 0.0
        %4181 = vmatpush1.msra.mxu0 0.0
        %4182 = vmatprep.subr.mxu0 0.0
        %4183 = vmatpush1.msra.mxu0 0.0
        %4184 = vmatprep.subr.mxu0 0.0
        %4185 = vmatpush1.msra.mxu0 0.0
        %4186 = vmatprep.subr.mxu0 0.0
        %4187 = vmatpush1.msra.mxu0 0.0
        %4188 = vmatprep.subr.mxu0 0.0
        %4189 = vmatpush1.msra.mxu0 %v3584
        %4190 = vmatprep.subr.mxu0 0.0
        %4191 = vmatpush2.msra.mxu0 0.0
        %4192 = vmatprep.subr.mxu0 0.0
        %4193 = vmatpush2.msra.mxu0 0.0
        %4194 = vmatprep.subr.mxu0 0.0
        %4195 = vmatpush2.msra.mxu0 0.0
        %4196 = vmatprep.subr.mxu0 0.0
        %4197 = vmatpush2.msra.mxu0 0.0
        %4198 = vmatprep.subr.mxu0 0.0
        %4199 = vmatpush2.msra.mxu0 0.0
        %4200 = vmatprep.subr.mxu0 0.0
        %4201 = vmatpush2.msra.mxu0 0.0
        %4202 = vmatprep.subr.mxu0 0.0
        %4203 = vmatpush2.msra.mxu0 0.0
        %4204 = vmatprep.subr.mxu0 0.0
        %4205 = vmatpush2.msra.mxu0 0.0
        %4206 = vmatprep.subr.mxu0 0.0
        %4207 = vmatpush2.msra.mxu0 0.0
        %4208 = vmatprep.subr.mxu0 0.0
        %4209 = vmatpush2.msra.mxu0 0.0
        %4210 = vmatprep.subr.mxu0 0.0
        %4211 = vmatpush2.msra.mxu0 0.0
        %4212 = vmatprep.subr.mxu0 0.0
        %4213 = vmatpush2.msra.mxu0 0.0
        %4214 = vmatprep.subr.mxu0 0.0
        %4215 = vmatpush2.msra.mxu0 0.0
        %4216 = vmatprep.subr.mxu0 0.0
        %4217 = vmatpush2.msra.mxu0 0.0
        %4218 = vmatprep.subr.mxu0 0.0
        %4219 = vmatpush2.msra.mxu0 0.0
        %4220 = vmatprep.subr.mxu0 0.0
        %4221 = vmatpush2.msra.mxu0 0.0
        %4222 = vmatprep.mubr.f32.mxu0 0.0
        %4223 = vmatmul.mubr.f32.gmra.mxu0 %v4156
        %v4224 = vpop.f32.mrf.mxu0
        %v4225 = vadd.f32 0.0, %v4224
        %v4226 = vpop.f32.mrf.mxu0
        %4227 = vdwg.mxu0
        %v4229 = vsel %vm1708, %v4008, 0
        %4231 = vmatprep.subr.mxu0 0.0
        %4232 = vmatpush1.msra.mxu0 0.0
        %4233 = vmatprep.subr.mxu0 0.0
        %4234 = vmatpush1.msra.mxu0 0.0
        %4235 = vmatprep.subr.mxu0 0.0
        %4236 = vmatpush1.msra.mxu0 0.0
        %4237 = vmatprep.subr.mxu0 0.0
        %4238 = vmatpush1.msra.mxu0 0.0
        %4239 = vmatprep.subr.mxu0 0.0
        %4240 = vmatpush1.msra.mxu0 0.0
        %4241 = vmatprep.subr.mxu0 0.0
        %4242 = vmatpush1.msra.mxu0 0.0
        %4243 = vmatprep.subr.mxu0 0.0
        %4244 = vmatpush1.msra.mxu0 0.0
        %4245 = vmatprep.subr.mxu0 0.0
        %4246 = vmatpush1.msra.mxu0 0.0
        %4247 = vmatprep.subr.mxu0 0.0
        %4248 = vmatpush1.msra.mxu0 0.0
        %4249 = vmatprep.subr.mxu0 0.0
        %4250 = vmatpush1.msra.mxu0 0.0
        %4251 = vmatprep.subr.mxu0 0.0
        %4252 = vmatpush1.msra.mxu0 0.0
        %4253 = vmatprep.subr.mxu0 0.0
        %4254 = vmatpush1.msra.mxu0 0.0
        %4255 = vmatprep.subr.mxu0 0.0
        %4256 = vmatpush1.msra.mxu0 0.0
        %4257 = vmatprep.subr.mxu0 0.0
        %4258 = vmatpush1.msra.mxu0 0.0
        %4259 = vmatprep.subr.mxu0 0.0
        %4260 = vmatpush1.msra.mxu0 0.0
        %4261 = vmatprep.subr.mxu0 0.0
        %4262 = vmatpush1.msra.mxu0 %v3654
        %4263 = vmatprep.subr.mxu0 0.0
        %4264 = vmatpush2.msra.mxu0 0.0
        %4265 = vmatprep.subr.mxu0 0.0
        %4266 = vmatpush2.msra.mxu0 0.0
        %4267 = vmatprep.subr.mxu0 0.0
        %4268 = vmatpush2.msra.mxu0 0.0
        %4269 = vmatprep.subr.mxu0 0.0
        %4270 = vmatpush2.msra.mxu0 0.0
        %4271 = vmatprep.subr.mxu0 0.0
        %4272 = vmatpush2.msra.mxu0 0.0
        %4273 = vmatprep.subr.mxu0 0.0
        %4274 = vmatpush2.msra.mxu0 0.0
        %4275 = vmatprep.subr.mxu0 0.0
        %4276 = vmatpush2.msra.mxu0 0.0
        %4277 = vmatprep.subr.mxu0 0.0
        %4278 = vmatpush2.msra.mxu0 0.0
        %4279 = vmatprep.subr.mxu0 0.0
        %4280 = vmatpush2.msra.mxu0 0.0
        %4281 = vmatprep.subr.mxu0 0.0
        %4282 = vmatpush2.msra.mxu0 0.0
        %4283 = vmatprep.subr.mxu0 0.0
        %4284 = vmatpush2.msra.mxu0 0.0
        %4285 = vmatprep.subr.mxu0 0.0
        %4286 = vmatpush2.msra.mxu0 0.0
        %4287 = vmatprep.subr.mxu0 0.0
        %4288 = vmatpush2.msra.mxu0 0.0
        %4289 = vmatprep.subr.mxu0 0.0
        %4290 = vmatpush2.msra.mxu0 0.0
        %4291 = vmatprep.subr.mxu0 0.0
        %4292 = vmatpush2.msra.mxu0 0.0
        %4293 = vmatprep.subr.mxu0 0.0
        %4294 = vmatpush2.msra.mxu0 0.0
        %4295 = vmatprep.mubr.f32.mxu0 0.0
        %4296 = vmatmul.mubr.f32.gmra.mxu0 %v4229
        %v4297 = vpop.f32.mrf.mxu0
        %v4298 = vadd.f32 0.0, %v4297
        %v4299 = vpop.f32.mrf.mxu0
        %4300 = vdwg.mxu0
        %v4302 = vsel %vm1708, %v4079, 0
        %4304 = vmatprep.subr.mxu0 0.0
        %4305 = vmatpush1.msra.mxu0 0.0
        %4306 = vmatprep.subr.mxu0 0.0
        %4307 = vmatpush1.msra.mxu0 0.0
        %4308 = vmatprep.subr.mxu0 0.0
        %4309 = vmatpush1.msra.mxu0 0.0
        %4310 = vmatprep.subr.mxu0 0.0
        %4311 = vmatpush1.msra.mxu0 0.0
        %4312 = vmatprep.subr.mxu0 0.0
        %4313 = vmatpush1.msra.mxu0 0.0
        %4314 = vmatprep.subr.mxu0 0.0
        %4315 = vmatpush1.msra.mxu0 0.0
        %4316 = vmatprep.subr.mxu0 0.0
        %4317 = vmatpush1.msra.mxu0 0.0
        %4318 = vmatprep.subr.mxu0 0.0
        %4319 = vmatpush1.msra.mxu0 0.0
        %4320 = vmatprep.subr.mxu0 0.0
        %4321 = vmatpush1.msra.mxu0 0.0
        %4322 = vmatprep.subr.mxu0 0.0
        %4323 = vmatpush1.msra.mxu0 0.0
        %4324 = vmatprep.subr.mxu0 0.0
        %4325 = vmatpush1.msra.mxu0 0.0
        %4326 = vmatprep.subr.mxu0 0.0
        %4327 = vmatpush1.msra.mxu0 0.0
        %4328 = vmatprep.subr.mxu0 0.0
        %4329 = vmatpush1.msra.mxu0 0.0
        %4330 = vmatprep.subr.mxu0 0.0
        %4331 = vmatpush1.msra.mxu0 0.0
        %4332 = vmatprep.subr.mxu0 0.0
        %4333 = vmatpush1.msra.mxu0 0.0
        %4334 = vmatprep.subr.mxu0 0.0
        %4335 = vmatpush1.msra.mxu0 %v2734
        %4336 = vmatprep.subr.mxu0 0.0
        %4337 = vmatpush2.msra.mxu0 0.0
        %4338 = vmatprep.subr.mxu0 0.0
        %4339 = vmatpush2.msra.mxu0 0.0
        %4340 = vmatprep.subr.mxu0 0.0
        %4341 = vmatpush2.msra.mxu0 0.0
        %4342 = vmatprep.subr.mxu0 0.0
        %4343 = vmatpush2.msra.mxu0 0.0
        %4344 = vmatprep.subr.mxu0 0.0
        %4345 = vmatpush2.msra.mxu0 0.0
        %4346 = vmatprep.subr.mxu0 0.0
        %4347 = vmatpush2.msra.mxu0 0.0
        %4348 = vmatprep.subr.mxu0 0.0
        %4349 = vmatpush2.msra.mxu0 0.0
        %4350 = vmatprep.subr.mxu0 0.0
        %4351 = vmatpush2.msra.mxu0 0.0
        %4352 = vmatprep.subr.mxu0 0.0
        %4353 = vmatpush2.msra.mxu0 0.0
        %4354 = vmatprep.subr.mxu0 0.0
        %4355 = vmatpush2.msra.mxu0 0.0
        %4356 = vmatprep.subr.mxu0 0.0
        %4357 = vmatpush2.msra.mxu0 0.0
        %4358 = vmatprep.subr.mxu0 0.0
        %4359 = vmatpush2.msra.mxu0 0.0
        %4360 = vmatprep.subr.mxu0 0.0
        %4361 = vmatpush2.msra.mxu0 0.0
        %4362 = vmatprep.subr.mxu0 0.0
        %4363 = vmatpush2.msra.mxu0 0.0
        %4364 = vmatprep.subr.mxu0 0.0
        %4365 = vmatpush2.msra.mxu0 0.0
        %4366 = vmatprep.subr.mxu0 0.0
        %4367 = vmatpush2.msra.mxu0 0.0
        %4368 = vmatprep.mubr.f32.mxu0 0.0
        %4369 = vmatmul.mubr.f32.gmra.mxu0 %v4302
        %v4370 = vpop.f32.mrf.mxu0
        %v4371 = vadd.f32 0.0, %v4370
        %v4372 = vpop.f32.mrf.mxu0
        %4373 = vdwg.mxu0
        %v4375 = vsel %vm1708, %v4152, 0
        %4377 = vmatprep.subr.mxu0 0.0
        %4378 = vmatpush1.msra.mxu0 0.0
        %4379 = vmatprep.subr.mxu0 0.0
        %4380 = vmatpush1.msra.mxu0 0.0
        %4381 = vmatprep.subr.mxu0 0.0
        %4382 = vmatpush1.msra.mxu0 0.0
        %4383 = vmatprep.subr.mxu0 0.0
        %4384 = vmatpush1.msra.mxu0 0.0
        %4385 = vmatprep.subr.mxu0 0.0
        %4386 = vmatpush1.msra.mxu0 0.0
        %4387 = vmatprep.subr.mxu0 0.0
        %4388 = vmatpush1.msra.mxu0 0.0
        %4389 = vmatprep.subr.mxu0 0.0
        %4390 = vmatpush1.msra.mxu0 0.0
        %4391 = vmatprep.subr.mxu0 0.0
        %4392 = vmatpush1.msra.mxu0 0.0
        %4393 = vmatprep.subr.mxu0 0.0
        %4394 = vmatpush1.msra.mxu0 0.0
        %4395 = vmatprep.subr.mxu0 0.0
        %4396 = vmatpush1.msra.mxu0 0.0
        %4397 = vmatprep.subr.mxu0 0.0
        %4398 = vmatpush1.msra.mxu0 0.0
        %4399 = vmatprep.subr.mxu0 0.0
        %4400 = vmatpush1.msra.mxu0 0.0
        %4401 = vmatprep.subr.mxu0 0.0
        %4402 = vmatpush1.msra.mxu0 0.0
        %4403 = vmatprep.subr.mxu0 0.0
        %4404 = vmatpush1.msra.mxu0 0.0
        %4405 = vmatprep.subr.mxu0 0.0
        %4406 = vmatpush1.msra.mxu0 0.0
        %4407 = vmatprep.subr.mxu0 0.0
        %4408 = vmatpush1.msra.mxu0 %v2735
        %4409 = vmatprep.subr.mxu0 0.0
        %4410 = vmatpush2.msra.mxu0 0.0
        %4411 = vmatprep.subr.mxu0 0.0
        %4412 = vmatpush2.msra.mxu0 0.0
        %4413 = vmatprep.subr.mxu0 0.0
        %4414 = vmatpush2.msra.mxu0 0.0
        %4415 = vmatprep.subr.mxu0 0.0
        %4416 = vmatpush2.msra.mxu0 0.0
        %4417 = vmatprep.subr.mxu0 0.0
        %4418 = vmatpush2.msra.mxu0 0.0
        %4419 = vmatprep.subr.mxu0 0.0
        %4420 = vmatpush2.msra.mxu0 0.0
        %4421 = vmatprep.subr.mxu0 0.0
        %4422 = vmatpush2.msra.mxu0 0.0
        %4423 = vmatprep.subr.mxu0 0.0
        %4424 = vmatpush2.msra.mxu0 0.0
        %4425 = vmatprep.subr.mxu0 0.0
        %4426 = vmatpush2.msra.mxu0 0.0
        %4427 = vmatprep.subr.mxu0 0.0
        %4428 = vmatpush2.msra.mxu0 0.0
        %4429 = vmatprep.subr.mxu0 0.0
        %4430 = vmatpush2.msra.mxu0 0.0
        %4431 = vmatprep.subr.mxu0 0.0
        %4432 = vmatpush2.msra.mxu0 0.0
        %4433 = vmatprep.subr.mxu0 0.0
        %4434 = vmatpush2.msra.mxu0 0.0
        %4435 = vmatprep.subr.mxu0 0.0
        %4436 = vmatpush2.msra.mxu0 0.0
        %4437 = vmatprep.subr.mxu0 0.0
        %4438 = vmatpush2.msra.mxu0 0.0
        %4439 = vmatprep.subr.mxu0 0.0
        %4440 = vmatpush2.msra.mxu0 0.0
        %4441 = vmatprep.mubr.f32.mxu0 0.0
        %4442 = vmatmul.mubr.f32.gmra.mxu0 %v4375
        %v4443 = vpop.f32.mrf.mxu0
        %v4444 = vadd.f32 0.0, %v4443
        %v4445 = vpop.f32.mrf.mxu0
        %4446 = vdwg.mxu0
        %v4448 = vsel %vm1708, %v4225, 0
        %4450 = vmatprep.subr.mxu0 0.0
        %4451 = vmatpush1.msra.mxu0 0.0
        %4452 = vmatprep.subr.mxu0 0.0
        %4453 = vmatpush1.msra.mxu0 0.0
        %4454 = vmatprep.subr.mxu0 0.0
        %4455 = vmatpush1.msra.mxu0 0.0
        %4456 = vmatprep.subr.mxu0 0.0
        %4457 = vmatpush1.msra.mxu0 0.0
        %4458 = vmatprep.subr.mxu0 0.0
        %4459 = vmatpush1.msra.mxu0 0.0
        %4460 = vmatprep.subr.mxu0 0.0
        %4461 = vmatpush1.msra.mxu0 0.0
        %4462 = vmatprep.subr.mxu0 0.0
        %4463 = vmatpush1.msra.mxu0 0.0
        %4464 = vmatprep.subr.mxu0 0.0
        %4465 = vmatpush1.msra.mxu0 0.0
        %4466 = vmatprep.subr.mxu0 0.0
        %4467 = vmatpush1.msra.mxu0 0.0
        %4468 = vmatprep.subr.mxu0 0.0
        %4469 = vmatpush1.msra.mxu0 0.0
        %4470 = vmatprep.subr.mxu0 0.0
        %4471 = vmatpush1.msra.mxu0 0.0
        %4472 = vmatprep.subr.mxu0 0.0
        %4473 = vmatpush1.msra.mxu0 0.0
        %4474 = vmatprep.subr.mxu0 0.0
        %4475 = vmatpush1.msra.mxu0 0.0
        %4476 = vmatprep.subr.mxu0 0.0
        %4477 = vmatpush1.msra.mxu0 0.0
        %4478 = vmatprep.subr.mxu0 0.0
        %4479 = vmatpush1.msra.mxu0 0.0
        %4480 = vmatprep.subr.mxu0 0.0
        %4481 = vmatpush1.msra.mxu0 %v2736
        %4482 = vmatprep.subr.mxu0 0.0
        %4483 = vmatpush2.msra.mxu0 0.0
        %4484 = vmatprep.subr.mxu0 0.0
        %4485 = vmatpush2.msra.mxu0 0.0
        %4486 = vmatprep.subr.mxu0 0.0
        %4487 = vmatpush2.msra.mxu0 0.0
        %4488 = vmatprep.subr.mxu0 0.0
        %4489 = vmatpush2.msra.mxu0 0.0
        %4490 = vmatprep.subr.mxu0 0.0
        %4491 = vmatpush2.msra.mxu0 0.0
        %4492 = vmatprep.subr.mxu0 0.0
        %4493 = vmatpush2.msra.mxu0 0.0
        %4494 = vmatprep.subr.mxu0 0.0
        %4495 = vmatpush2.msra.mxu0 0.0
        %4496 = vmatprep.subr.mxu0 0.0
        %4497 = vmatpush2.msra.mxu0 0.0
        %4498 = vmatprep.subr.mxu0 0.0
        %4499 = vmatpush2.msra.mxu0 0.0
        %4500 = vmatprep.subr.mxu0 0.0
        %4501 = vmatpush2.msra.mxu0 0.0
        %4502 = vmatprep.subr.mxu0 0.0
        %4503 = vmatpush2.msra.mxu0 0.0
        %4504 = vmatprep.subr.mxu0 0.0
        %4505 = vmatpush2.msra.mxu0 0.0
        %4506 = vmatprep.subr.mxu0 0.0
        %4507 = vmatpush2.msra.mxu0 0.0
        %4508 = vmatprep.subr.mxu0 0.0
        %4509 = vmatpush2.msra.mxu0 0.0
        %4510 = vmatprep.subr.mxu0 0.0
        %4511 = vmatpush2.msra.mxu0 0.0
        %4512 = vmatprep.subr.mxu0 0.0
        %4513 = vmatpush2.msra.mxu0 0.0
        %4514 = vmatprep.mubr.f32.mxu0 0.0
        %4515 = vmatmul.mubr.f32.gmra.mxu0 %v4448
        %v4516 = vpop.f32.mrf.mxu0
        %v4517 = vadd.f32 0.0, %v4516
        %v4518 = vpop.f32.mrf.mxu0
        %4519 = vdwg.mxu0
        %v4521 = vsel %vm1708, %v4298, 0
        %4523 = vmatprep.subr.mxu0 0.0
        %4524 = vmatpush1.msra.mxu0 0.0
        %4525 = vmatprep.subr.mxu0 0.0
        %4526 = vmatpush1.msra.mxu0 0.0
        %4527 = vmatprep.subr.mxu0 0.0
        %4528 = vmatpush1.msra.mxu0 0.0
        %4529 = vmatprep.subr.mxu0 0.0
        %4530 = vmatpush1.msra.mxu0 0.0
        %4531 = vmatprep.subr.mxu0 0.0
        %4532 = vmatpush1.msra.mxu0 0.0
        %4533 = vmatprep.subr.mxu0 0.0
        %4534 = vmatpush1.msra.mxu0 0.0
        %4535 = vmatprep.subr.mxu0 0.0
        %4536 = vmatpush1.msra.mxu0 0.0
        %4537 = vmatprep.subr.mxu0 0.0
        %4538 = vmatpush1.msra.mxu0 0.0
        %4539 = vmatprep.subr.mxu0 0.0
        %4540 = vmatpush1.msra.mxu0 0.0
        %4541 = vmatprep.subr.mxu0 0.0
        %4542 = vmatpush1.msra.mxu0 0.0
        %4543 = vmatprep.subr.mxu0 0.0
        %4544 = vmatpush1.msra.mxu0 0.0
        %4545 = vmatprep.subr.mxu0 0.0
        %4546 = vmatpush1.msra.mxu0 0.0
        %4547 = vmatprep.subr.mxu0 0.0
        %4548 = vmatpush1.msra.mxu0 0.0
        %4549 = vmatprep.subr.mxu0 0.0
        %4550 = vmatpush1.msra.mxu0 0.0
        %4551 = vmatprep.subr.mxu0 0.0
        %4552 = vmatpush1.msra.mxu0 0.0
        %4553 = vmatprep.subr.mxu0 0.0
        %4554 = vmatpush1.msra.mxu0 %v2737
        %4555 = vmatprep.subr.mxu0 0.0
        %4556 = vmatpush2.msra.mxu0 0.0
        %4557 = vmatprep.subr.mxu0 0.0
        %4558 = vmatpush2.msra.mxu0 0.0
        %4559 = vmatprep.subr.mxu0 0.0
        %4560 = vmatpush2.msra.mxu0 0.0
        %4561 = vmatprep.subr.mxu0 0.0
        %4562 = vmatpush2.msra.mxu0 0.0
        %4563 = vmatprep.subr.mxu0 0.0
        %4564 = vmatpush2.msra.mxu0 0.0
        %4565 = vmatprep.subr.mxu0 0.0
        %4566 = vmatpush2.msra.mxu0 0.0
        %4567 = vmatprep.subr.mxu0 0.0
        %4568 = vmatpush2.msra.mxu0 0.0
        %4569 = vmatprep.subr.mxu0 0.0
        %4570 = vmatpush2.msra.mxu0 0.0
        %4571 = vmatprep.subr.mxu0 0.0
        %4572 = vmatpush2.msra.mxu0 0.0
        %4573 = vmatprep.subr.mxu0 0.0
        %4574 = vmatpush2.msra.mxu0 0.0
        %4575 = vmatprep.subr.mxu0 0.0
        %4576 = vmatpush2.msra.mxu0 0.0
        %4577 = vmatprep.subr.mxu0 0.0
        %4578 = vmatpush2.msra.mxu0 0.0
        %4579 = vmatprep.subr.mxu0 0.0
        %4580 = vmatpush2.msra.mxu0 0.0
        %4581 = vmatprep.subr.mxu0 0.0
        %4582 = vmatpush2.msra.mxu0 0.0
        %4583 = vmatprep.subr.mxu0 0.0
        %4584 = vmatpush2.msra.mxu0 0.0
        %4585 = vmatprep.subr.mxu0 0.0
        %4586 = vmatpush2.msra.mxu0 0.0
        %4587 = vmatprep.mubr.f32.mxu0 0.0
        %4588 = vmatmul.mubr.f32.gmra.mxu0 %v4521
        %v4589 = vpop.f32.mrf.mxu0
        %v4590 = vadd.f32 0.0, %v4589
        %v4591 = vpop.f32.mrf.mxu0
        %4592 = vdwg.mxu0
        %v4593 = vsel %vm816, %v4371, 0.0
        %v4594 = vsel %vm816, %v4444, 0.0
        %v4595 = vadd.f32 %v4593, %v4594
        %v4596 = vsel %vm816, %v4517, 0.0
        %v4597 = vadd.f32 %v4595, %v4596
        %v4598 = vsel %vm816, %v4590, 0.0
        %v4599 = vadd.f32 %v4597, %v4598
        %v4601 = vlaneseq
        %v4602 = vshrl.u32 %v4601, 7
        %v4603 = vsub.s32 0, %v4602
        %v4604 = vrot.slane %v2738, %v4603
        %v4606 = vadd.f32 %v4599, %v4604
        %v4607 = vadd.f32 %v2673, %v4606
        %v4608 = vsel %vm816, %v4607, 0.0
        %4609 = vadd.xlane.f32.xlu0 %v4608
        %v4610 = vpop.xlane.xlu0 %4609
        %v4611 = vmul.f32 %v4610, %v2663
        %v4612 = vsub.f32 %v4607, %v4611
        %v4613 = vmul.f32 %v4612, %v4612
        %v4614 = vsel %vm816, %v4613, 0.0
        %4615 = vadd.xlane.f32.xlu0 %v4614
        %v4616 = vpop.xlane.xlu0 %4615
        %v4617 = vmul.f32 %v4616, %v2663
        %v4618 = vadd.f32 %v4617, 1e-05
        %v4619 = vrsqrt.pop %v4618
        %v4620 = vmul.f32 %v4612, %v4619
        %v4621 = vld [vmem:[%s19] sm:$0xff]
        %v4622 = vld [vmem:[%s19 + $0x8] sm:$0xff]
        %v4623 = vld [vmem:[%s19 + $0x10] sm:$0xff]
        %v4624 = vld [vmem:[%s19 + $0x18] sm:$0xff]
        %v4625 = vld [vmem:[%s20] sm:$0x1]
        %v4627 = vlaneseq
        %v4628 = vshrl.u32 %v4627, 7
        %v4629 = vsub.s32 0, %v4628
        %v4630 = vrot.slane %v4625, %v4629
        %v4633 = vsel %vm816, %v4620, 0
        %4635 = vmatprep.subr.mxu0 0.0
        %4636 = vmatpush1.msra.mxu0 0.0
        %4637 = vmatprep.subr.mxu0 0.0
        %4638 = vmatpush1.msra.mxu0 0.0
        %4639 = vmatprep.subr.mxu0 0.0
        %4640 = vmatpush1.msra.mxu0 0.0
        %4641 = vmatprep.subr.mxu0 0.0
        %4642 = vmatpush1.msra.mxu0 0.0
        %4643 = vmatprep.subr.mxu0 0.0
        %4644 = vmatpush1.msra.mxu0 0.0
        %4645 = vmatprep.subr.mxu0 0.0
        %4646 = vmatpush1.msra.mxu0 0.0
        %4647 = vmatprep.subr.mxu0 0.0
        %4648 = vmatpush1.msra.mxu0 0.0
        %4649 = vmatprep.subr.mxu0 0.0
        %4650 = vmatpush1.msra.mxu0 0.0
        %4651 = vmatprep.subr.mxu0 0.0
        %4652 = vmatpush1.msra.mxu0 0.0
        %4653 = vmatprep.subr.mxu0 0.0
        %4654 = vmatpush1.msra.mxu0 0.0
        %4655 = vmatprep.subr.mxu0 0.0
        %4656 = vmatpush1.msra.mxu0 0.0
        %4657 = vmatprep.subr.mxu0 0.0
        %4658 = vmatpush1.msra.mxu0 0.0
        %4659 = vmatprep.subr.mxu0 0.0
        %4660 = vmatpush1.msra.mxu0 %v4624
        %4661 = vmatprep.subr.mxu0 0.0
        %4662 = vmatpush1.msra.mxu0 %v4623
        %4663 = vmatprep.subr.mxu0 0.0
        %4664 = vmatpush1.msra.mxu0 %v4622
        %4665 = vmatprep.subr.mxu0 0.0
        %4666 = vmatpush1.msra.mxu0 %v4621
        %4667 = vmatprep.subr.mxu0 0.0
        %4668 = vmatpush2.msra.mxu0 0.0
        %4669 = vmatprep.subr.mxu0 0.0
        %4670 = vmatpush2.msra.mxu0 0.0
        %4671 = vmatprep.subr.mxu0 0.0
        %4672 = vmatpush2.msra.mxu0 0.0
        %4673 = vmatprep.subr.mxu0 0.0
        %4674 = vmatpush2.msra.mxu0 0.0
        %4675 = vmatprep.subr.mxu0 0.0
        %4676 = vmatpush2.msra.mxu0 0.0
        %4677 = vmatprep.subr.mxu0 0.0
        %4678 = vmatpush2.msra.mxu0 0.0
        %4679 = vmatprep.subr.mxu0 0.0
        %4680 = vmatpush2.msra.mxu0 0.0
        %4681 = vmatprep.subr.mxu0 0.0
        %4682 = vmatpush2.msra.mxu0 0.0
        %4683 = vmatprep.subr.mxu0 0.0
        %4684 = vmatpush2.msra.mxu0 0.0
        %4685 = vmatprep.subr.mxu0 0.0
        %4686 = vmatpush2.msra.mxu0 0.0
        %4687 = vmatprep.subr.mxu0 0.0
        %4688 = vmatpush2.msra.mxu0 0.0
        %4689 = vmatprep.subr.mxu0 0.0
        %4690 = vmatpush2.msra.mxu0 0.0
        %4691 = vmatprep.subr.mxu0 0.0
        %4692 = vmatpush2.msra.mxu0 0.0
        %4693 = vmatprep.subr.mxu0 0.0
        %4694 = vmatpush2.msra.mxu0 0.0
        %4695 = vmatprep.subr.mxu0 0.0
        %4696 = vmatpush2.msra.mxu0 0.0
        %4697 = vmatprep.subr.mxu0 0.0
        %4698 = vmatpush2.msra.mxu0 0.0
        %4699 = vmatprep.mubr.f32.mxu0 0.0
        %4700 = vmatmul.mubr.f32.gmra.mxu0 %v4633
        %v4701 = vpop.f32.mrf.mxu0
        %v4702 = vadd.f32 %v4630, %v4701
        %v4703 = vpop.f32.mrf.mxu0
        %4704 = vdwg.mxu0
        %v4705 = vmax.f32 %v4702, 0.0
        %v4706 = vld [vmem:[%s21] sm:$0xff]
        %v4707 = vld [vmem:[%s21 + $0x8] sm:$0xff]
        %v4708 = vld [vmem:[%s21 + $0x10] sm:$0xff]
        %v4709 = vld [vmem:[%s21 + $0x18] sm:$0xff]
        %v4710 = vld [vmem:[%s21 + $0x20] sm:$0xff]
        %v4711 = vld [vmem:[%s21 + $0x28] sm:$0xff]
        %v4712 = vld [vmem:[%s21 + $0x30] sm:$0xff]
        %v4713 = vld [vmem:[%s21 + $0x38] sm:$0xff]
        %v4714 = vld [vmem:[%s22] sm:$0x1]
        %v4716 = vlaneseq
        %v4717 = vshrl.u32 %v4716, 7
        %v4718 = vsub.s32 0, %v4717
        %v4719 = vrot.slane %v4714, %v4718
        %vm4721 = vcmask 523264
        %v4723 = vsel %vm4721, %v4705, 0
        %4725 = vmatprep.subr.mxu0 0.0
        %4726 = vmatpush1.msra.mxu0 0.0
        %4727 = vmatprep.subr.mxu0 0.0
        %4728 = vmatpush1.msra.mxu0 0.0
        %4729 = vmatprep.subr.mxu0 0.0
        %4730 = vmatpush1.msra.mxu0 0.0
        %4731 = vmatprep.subr.mxu0 0.0
        %4732 = vmatpush1.msra.mxu0 0.0
        %4733 = vmatprep.subr.mxu0 0.0
        %4734 = vmatpush1.msra.mxu0 0.0
        %4735 = vmatprep.subr.mxu0 0.0
        %4736 = vmatpush1.msra.mxu0 0.0
        %4737 = vmatprep.subr.mxu0 0.0
        %4738 = vmatpush1.msra.mxu0 0.0
        %4739 = vmatprep.subr.mxu0 0.0
        %4740 = vmatpush1.msra.mxu0 0.0
        %4741 = vmatprep.subr.mxu0 0.0
        %4742 = vmatpush1.msra.mxu0 %v4713
        %4743 = vmatprep.subr.mxu0 0.0
        %4744 = vmatpush1.msra.mxu0 %v4712
        %4745 = vmatprep.subr.mxu0 0.0
        %4746 = vmatpush1.msra.mxu0 %v4711
        %4747 = vmatprep.subr.mxu0 0.0
        %4748 = vmatpush1.msra.mxu0 %v4710
        %4749 = vmatprep.subr.mxu0 0.0
        %4750 = vmatpush1.msra.mxu0 %v4709
        %4751 = vmatprep.subr.mxu0 0.0
        %4752 = vmatpush1.msra.mxu0 %v4708
        %4753 = vmatprep.subr.mxu0 0.0
        %4754 = vmatpush1.msra.mxu0 %v4707
        %4755 = vmatprep.subr.mxu0 0.0
        %4756 = vmatpush1.msra.mxu0 %v4706
        %4757 = vmatprep.subr.mxu0 0.0
        %4758 = vmatpush2.msra.mxu0 0.0
        %4759 = vmatprep.subr.mxu0 0.0
        %4760 = vmatpush2.msra.mxu0 0.0
        %4761 = vmatprep.subr.mxu0 0.0
        %4762 = vmatpush2.msra.mxu0 0.0
        %4763 = vmatprep.subr.mxu0 0.0
        %4764 = vmatpush2.msra.mxu0 0.0
        %4765 = vmatprep.subr.mxu0 0.0
        %4766 = vmatpush2.msra.mxu0 0.0
        %4767 = vmatprep.subr.mxu0 0.0
        %4768 = vmatpush2.msra.mxu0 0.0
        %4769 = vmatprep.subr.mxu0 0.0
        %4770 = vmatpush2.msra.mxu0 0.0
        %4771 = vmatprep.subr.mxu0 0.0
        %4772 = vmatpush2.msra.mxu0 0.0
        %4773 = vmatprep.subr.mxu0 0.0
        %4774 = vmatpush2.msra.mxu0 0.0
        %4775 = vmatprep.subr.mxu0 0.0
        %4776 = vmatpush2.msra.mxu0 0.0
        %4777 = vmatprep.subr.mxu0 0.0
        %4778 = vmatpush2.msra.mxu0 0.0
        %4779 = vmatprep.subr.mxu0 0.0
        %4780 = vmatpush2.msra.mxu0 0.0
        %4781 = vmatprep.subr.mxu0 0.0
        %4782 = vmatpush2.msra.mxu0 0.0
        %4783 = vmatprep.subr.mxu0 0.0
        %4784 = vmatpush2.msra.mxu0 0.0
        %4785 = vmatprep.subr.mxu0 0.0
        %4786 = vmatpush2.msra.mxu0 0.0
        %4787 = vmatprep.subr.mxu0 0.0
        %4788 = vmatpush2.msra.mxu0 0.0
        %4789 = vmatprep.mubr.f32.mxu0 0.0
        %4790 = vmatmul.mubr.f32.gmra.mxu0 %v4723
        %v4791 = vpop.f32.mrf.mxu0
        %v4792 = vadd.f32 %v4719, %v4791
        %v4793 = vpop.f32.mrf.mxu0
        %4794 = vdwg.mxu0
        %v4795 = vadd.f32 %v4620, %v4792
        %v4796 = vsel %vm816, %v4795, 0.0
        %4797 = vadd.xlane.f32.xlu0 %v4796
        %v4798 = vpop.xlane.xlu0 %4797
        %v4799 = vmul.f32 %v4798, %v2663
        %v4800 = vsub.f32 %v4795, %v4799
        %v4801 = vmul.f32 %v4800, %v4800
        %v4802 = vsel %vm816, %v4801, 0.0
        %4803 = vadd.xlane.f32.xlu0 %v4802
        %v4804 = vpop.xlane.xlu0 %4803
        %v4805 = vmul.f32 %v4804, %v2663
        %v4806 = vadd.f32 %v4805, 1e-05
        %v4807 = vrsqrt.pop %v4806
        %v4808 = vmul.f32 %v4800, %v4807
        %s4809 = scalar_lea.vmem %s3, 128
        %v4810 = vld [vmem:[%s4809] sm:$0xff]
        %v4811 = vld [vmem:[%s4809 + $0x8] sm:$0xff]
        %v4812 = vld [vmem:[%s4809 + $0x10] sm:$0xff]
        %v4813 = vld [vmem:[%s4809 + $0x18] sm:$0xff]
        %v4814 = vld [vmem:[%s4809 + $0x20] sm:$0xff]
        %v4815 = vld [vmem:[%s4809 + $0x28] sm:$0xff]
        %v4816 = vld [vmem:[%s4809 + $0x30] sm:$0xff]
        %v4817 = vld [vmem:[%s4809 + $0x38] sm:$0xff]
        %v4818 = vld [vmem:[%s4809 + $0x40] sm:$0xff]
        %v4819 = vld [vmem:[%s4809 + $0x48] sm:$0xff]
        %v4820 = vld [vmem:[%s4809 + $0x50] sm:$0xff]
        %v4821 = vld [vmem:[%s4809 + $0x58] sm:$0xff]
        %v4822 = vld [vmem:[%s4809 + $0x60] sm:$0xff]
        %v4823 = vld [vmem:[%s4809 + $0x68] sm:$0xff]
        %v4824 = vld [vmem:[%s4809 + $0x70] sm:$0xff]
        %v4825 = vld [vmem:[%s4809 + $0x78] sm:$0xff]
        %s4826 = scalar_lea.vmem %s4, 4
        %v4827 = vld [vmem:[%s4826] sm:$0x1]
        %v4828 = vld [vmem:[%s4826 + $0x1] sm:$0x1]
        %v4829 = vld [vmem:[%s4826 + $0x2] sm:$0x1]
        %v4830 = vld [vmem:[%s4826 + $0x3] sm:$0x1]
        %s4831 = scalar_lea.vmem %s5, 128
        %v4832 = vld [vmem:[%s4831] sm:$0xff]
        %v4833 = vld [vmem:[%s4831 + $0x8] sm:$0xff]
        %v4834 = vld [vmem:[%s4831 + $0x10] sm:$0xff]
        %v4835 = vld [vmem:[%s4831 + $0x18] sm:$0xff]
        %v4836 = vld [vmem:[%s4831 + $0x20] sm:$0xff]
        %v4837 = vld [vmem:[%s4831 + $0x28] sm:$0xff]
        %v4838 = vld [vmem:[%s4831 + $0x30] sm:$0xff]
        %v4839 = vld [vmem:[%s4831 + $0x38] sm:$0xff]
        %v4840 = vld [vmem:[%s4831 + $0x40] sm:$0xff]
        %v4841 = vld [vmem:[%s4831 + $0x48] sm:$0xff]
        %v4842 = vld [vmem:[%s4831 + $0x50] sm:$0xff]
        %v4843 = vld [vmem:[%s4831 + $0x58] sm:$0xff]
        %v4844 = vld [vmem:[%s4831 + $0x60] sm:$0xff]
        %v4845 = vld [vmem:[%s4831 + $0x68] sm:$0xff]
        %v4846 = vld [vmem:[%s4831 + $0x70] sm:$0xff]
        %v4847 = vld [vmem:[%s4831 + $0x78] sm:$0xff]
        %s4848 = scalar_lea.vmem %s6, 4
        %v4849 = vld [vmem:[%s4848] sm:$0x1]
        %v4850 = vld [vmem:[%s4848 + $0x1] sm:$0x1]
        %v4851 = vld [vmem:[%s4848 + $0x2] sm:$0x1]
        %v4852 = vld [vmem:[%s4848 + $0x3] sm:$0x1]
        %s4853 = scalar_lea.vmem %s7, 128
        %v4854 = vld [vmem:[%s4853] sm:$0xff]
        %v4855 = vld [vmem:[%s4853 + $0x8] sm:$0xff]
        %v4856 = vld [vmem:[%s4853 + $0x10] sm:$0xff]
        %v4857 = vld [vmem:[%s4853 + $0x18] sm:$0xff]
        %v4858 = vld [vmem:[%s4853 + $0x20] sm:$0xff]
        %v4859 = vld [vmem:[%s4853 + $0x28] sm:$0xff]
        %v4860 = vld [vmem:[%s4853 + $0x30] sm:$0xff]
        %v4861 = vld [vmem:[%s4853 + $0x38] sm:$0xff]
        %v4862 = vld [vmem:[%s4853 + $0x40] sm:$0xff]
        %v4863 = vld [vmem:[%s4853 + $0x48] sm:$0xff]
        %v4864 = vld [vmem:[%s4853 + $0x50] sm:$0xff]
        %v4865 = vld [vmem:[%s4853 + $0x58] sm:$0xff]
        %v4866 = vld [vmem:[%s4853 + $0x60] sm:$0xff]
        %v4867 = vld [vmem:[%s4853 + $0x68] sm:$0xff]
        %v4868 = vld [vmem:[%s4853 + $0x70] sm:$0xff]
        %v4869 = vld [vmem:[%s4853 + $0x78] sm:$0xff]
        %s4870 = scalar_lea.vmem %s8, 4
        %v4871 = vld [vmem:[%s4870] sm:$0x1]
        %v4872 = vld [vmem:[%s4870 + $0x1] sm:$0x1]
        %v4873 = vld [vmem:[%s4870 + $0x2] sm:$0x1]
        %v4874 = vld [vmem:[%s4870 + $0x3] sm:$0x1]
        %s4875 = scalar_lea.vmem %s9, 32
        %v4876 = vld [vmem:[%s4875] sm:$0xff]
        %v4877 = vld [vmem:[%s4875 + $0x8] sm:$0xff]
        %v4878 = vld [vmem:[%s4875 + $0x10] sm:$0xff]
        %v4879 = vld [vmem:[%s4875 + $0x18] sm:$0xff]
        %s4880 = scalar_lea.vmem %s10, 1
        %v4881 = vld [vmem:[%s4880] sm:$0x1]
        %v4886 = vlaneseq
        %v4887 = vshrl.u32 %v4886, 7
        %v4888 = vsub.s32 0, %v4887
        %v4889 = vrot.slane %v4827, %v4888
        %v4890 = vlaneseq
        %v4891 = vshrl.u32 %v4890, 7
        %v4892 = vsub.s32 0, %v4891
        %v4893 = vrot.slane %v4828, %v4892
        %v4894 = vlaneseq
        %v4895 = vshrl.u32 %v4894, 7
        %v4896 = vsub.s32 0, %v4895
        %v4897 = vrot.slane %v4829, %v4896
        %v4898 = vlaneseq
        %v4899 = vshrl.u32 %v4898, 7
        %v4900 = vsub.s32 0, %v4899
        %v4901 = vrot.slane %v4830, %v4900
        %v4907 = vsel %vm816, %v4808, 0
        %4909 = vmatprep.subr.mxu0 0.0
        %4910 = vmatpush1.msra.mxu0 0.0
        %4911 = vmatprep.subr.mxu0 0.0
        %4912 = vmatpush1.msra.mxu0 0.0
        %4913 = vmatprep.subr.mxu0 0.0
        %4914 = vmatpush1.msra.mxu0 0.0
        %4915 = vmatprep.subr.mxu0 0.0
        %4916 = vmatpush1.msra.mxu0 0.0
        %4917 = vmatprep.subr.mxu0 0.0
        %4918 = vmatpush1.msra.mxu0 0.0
        %4919 = vmatprep.subr.mxu0 0.0
        %4920 = vmatpush1.msra.mxu0 0.0
        %4921 = vmatprep.subr.mxu0 0.0
        %4922 = vmatpush1.msra.mxu0 0.0
        %4923 = vmatprep.subr.mxu0 0.0
        %4924 = vmatpush1.msra.mxu0 0.0
        %4925 = vmatprep.subr.mxu0 0.0
        %4926 = vmatpush1.msra.mxu0 0.0
        %4927 = vmatprep.subr.mxu0 0.0
        %4928 = vmatpush1.msra.mxu0 0.0
        %4929 = vmatprep.subr.mxu0 0.0
        %4930 = vmatpush1.msra.mxu0 0.0
        %4931 = vmatprep.subr.mxu0 0.0
        %4932 = vmatpush1.msra.mxu0 0.0
        %4933 = vmatprep.subr.mxu0 0.0
        %4934 = vmatpush1.msra.mxu0 %v4813
        %4935 = vmatprep.subr.mxu0 0.0
        %4936 = vmatpush1.msra.mxu0 %v4812
        %4937 = vmatprep.subr.mxu0 0.0
        %4938 = vmatpush1.msra.mxu0 %v4811
        %4939 = vmatprep.subr.mxu0 0.0
        %4940 = vmatpush1.msra.mxu0 %v4810
        %4941 = vmatprep.subr.mxu0 0.0
        %4942 = vmatpush2.msra.mxu0 0.0
        %4943 = vmatprep.subr.mxu0 0.0
        %4944 = vmatpush2.msra.mxu0 0.0
        %4945 = vmatprep.subr.mxu0 0.0
        %4946 = vmatpush2.msra.mxu0 0.0
        %4947 = vmatprep.subr.mxu0 0.0
        %4948 = vmatpush2.msra.mxu0 0.0
        %4949 = vmatprep.subr.mxu0 0.0
        %4950 = vmatpush2.msra.mxu0 0.0
        %4951 = vmatprep.subr.mxu0 0.0
        %4952 = vmatpush2.msra.mxu0 0.0
        %4953 = vmatprep.subr.mxu0 0.0
        %4954 = vmatpush2.msra.mxu0 0.0
        %4955 = vmatprep.subr.mxu0 0.0
        %4956 = vmatpush2.msra.mxu0 0.0
        %4957 = vmatprep.subr.mxu0 0.0
        %4958 = vmatpush2.msra.mxu0 0.0
        %4959 = vmatprep.subr.mxu0 0.0
        %4960 = vmatpush2.msra.mxu0 0.0
        %4961 = vmatprep.subr.mxu0 0.0
        %4962 = vmatpush2.msra.mxu0 0.0
        %4963 = vmatprep.subr.mxu0 0.0
        %4964 = vmatpush2.msra.mxu0 0.0
        %4965 = vmatprep.subr.mxu0 0.0
        %4966 = vmatpush2.msra.mxu0 0.0
        %4967 = vmatprep.subr.mxu0 0.0
        %4968 = vmatpush2.msra.mxu0 0.0
        %4969 = vmatprep.subr.mxu0 0.0
        %4970 = vmatpush2.msra.mxu0 0.0
        %4971 = vmatprep.subr.mxu0 0.0
        %4972 = vmatpush2.msra.mxu0 0.0
        %4973 = vmatprep.mubr.f32.mxu0 0.0
        %4974 = vmatmul.mubr.f32.gmra.mxu0 %v4907
        %v4975 = vpop.f32.mrf.mxu0
        %v4976 = vadd.f32 %v4889, %v4975
        %v4977 = vpop.f32.mrf.mxu0
        %4978 = vdwg.mxu0
        %4979 = vmatprep.subr.mxu0 0.0
        %4980 = vmatpush1.msra.mxu0 0.0
        %4981 = vmatprep.subr.mxu0 0.0
        %4982 = vmatpush1.msra.mxu0 0.0
        %4983 = vmatprep.subr.mxu0 0.0
        %4984 = vmatpush1.msra.mxu0 0.0
        %4985 = vmatprep.subr.mxu0 0.0
        %4986 = vmatpush1.msra.mxu0 0.0
        %4987 = vmatprep.subr.mxu0 0.0
        %4988 = vmatpush1.msra.mxu0 0.0
        %4989 = vmatprep.subr.mxu0 0.0
        %4990 = vmatpush1.msra.mxu0 0.0
        %4991 = vmatprep.subr.mxu0 0.0
        %4992 = vmatpush1.msra.mxu0 0.0
        %4993 = vmatprep.subr.mxu0 0.0
        %4994 = vmatpush1.msra.mxu0 0.0
        %4995 = vmatprep.subr.mxu0 0.0
        %4996 = vmatpush1.msra.mxu0 0.0
        %4997 = vmatprep.subr.mxu0 0.0
        %4998 = vmatpush1.msra.mxu0 0.0
        %4999 = vmatprep.subr.mxu0 0.0
        %5000 = vmatpush1.msra.mxu0 0.0
        %5001 = vmatprep.subr.mxu0 0.0
        %5002 = vmatpush1.msra.mxu0 0.0
        %5003 = vmatprep.subr.mxu0 0.0
        %5004 = vmatpush1.msra.mxu0 %v4817
        %5005 = vmatprep.subr.mxu0 0.0
        %5006 = vmatpush1.msra.mxu0 %v4816
        %5007 = vmatprep.subr.mxu0 0.0
        %5008 = vmatpush1.msra.mxu0 %v4815
        %5009 = vmatprep.subr.mxu0 0.0
        %5010 = vmatpush1.msra.mxu0 %v4814
        %5011 = vmatprep.subr.mxu0 0.0
        %5012 = vmatpush2.msra.mxu0 0.0
        %5013 = vmatprep.subr.mxu0 0.0
        %5014 = vmatpush2.msra.mxu0 0.0
        %5015 = vmatprep.subr.mxu0 0.0
        %5016 = vmatpush2.msra.mxu0 0.0
        %5017 = vmatprep.subr.mxu0 0.0
        %5018 = vmatpush2.msra.mxu0 0.0
        %5019 = vmatprep.subr.mxu0 0.0
        %5020 = vmatpush2.msra.mxu0 0.0
        %5021 = vmatprep.subr.mxu0 0.0
        %5022 = vmatpush2.msra.mxu0 0.0
        %5023 = vmatprep.subr.mxu0 0.0
        %5024 = vmatpush2.msra.mxu0 0.0
        %5025 = vmatprep.subr.mxu0 0.0
        %5026 = vmatpush2.msra.mxu0 0.0
        %5027 = vmatprep.subr.mxu0 0.0
        %5028 = vmatpush2.msra.mxu0 0.0
        %5029 = vmatprep.subr.mxu0 0.0
        %5030 = vmatpush2.msra.mxu0 0.0
        %5031 = vmatprep.subr.mxu0 0.0
        %5032 = vmatpush2.msra.mxu0 0.0
        %5033 = vmatprep.subr.mxu0 0.0
        %5034 = vmatpush2.msra.mxu0 0.0
        %5035 = vmatprep.subr.mxu0 0.0
        %5036 = vmatpush2.msra.mxu0 0.0
        %5037 = vmatprep.subr.mxu0 0.0
        %5038 = vmatpush2.msra.mxu0 0.0
        %5039 = vmatprep.subr.mxu0 0.0
        %5040 = vmatpush2.msra.mxu0 0.0
        %5041 = vmatprep.subr.mxu0 0.0
        %5042 = vmatpush2.msra.mxu0 0.0
        %5043 = vmatprep.mubr.f32.mxu0 0.0
        %5044 = vmatmul.mubr.f32.gmra.mxu0 %v4907
        %v5045 = vpop.f32.mrf.mxu0
        %v5046 = vadd.f32 %v4893, %v5045
        %v5047 = vpop.f32.mrf.mxu0
        %5048 = vdwg.mxu0
        %5049 = vmatprep.subr.mxu0 0.0
        %5050 = vmatpush1.msra.mxu0 0.0
        %5051 = vmatprep.subr.mxu0 0.0
        %5052 = vmatpush1.msra.mxu0 0.0
        %5053 = vmatprep.subr.mxu0 0.0
        %5054 = vmatpush1.msra.mxu0 0.0
        %5055 = vmatprep.subr.mxu0 0.0
        %5056 = vmatpush1.msra.mxu0 0.0
        %5057 = vmatprep.subr.mxu0 0.0
        %5058 = vmatpush1.msra.mxu0 0.0
        %5059 = vmatprep.subr.mxu0 0.0
        %5060 = vmatpush1.msra.mxu0 0.0
        %5061 = vmatprep.subr.mxu0 0.0
        %5062 = vmatpush1.msra.mxu0 0.0
        %5063 = vmatprep.subr.mxu0 0.0
        %5064 = vmatpush1.msra.mxu0 0.0
        %5065 = vmatprep.subr.mxu0 0.0
        %5066 = vmatpush1.msra.mxu0 0.0
        %5067 = vmatprep.subr.mxu0 0.0
        %5068 = vmatpush1.msra.mxu0 0.0
        %5069 = vmatprep.subr.mxu0 0.0
        %5070 = vmatpush1.msra.mxu0 0.0
        %5071 = vmatprep.subr.mxu0 0.0
        %5072 = vmatpush1.msra.mxu0 0.0
        %5073 = vmatprep.subr.mxu0 0.0
        %5074 = vmatpush1.msra.mxu0 %v4821
        %5075 = vmatprep.subr.mxu0 0.0
        %5076 = vmatpush1.msra.mxu0 %v4820
        %5077 = vmatprep.subr.mxu0 0.0
        %5078 = vmatpush1.msra.mxu0 %v4819
        %5079 = vmatprep.subr.mxu0 0.0
        %5080 = vmatpush1.msra.mxu0 %v4818
        %5081 = vmatprep.subr.mxu0 0.0
        %5082 = vmatpush2.msra.mxu0 0.0
        %5083 = vmatprep.subr.mxu0 0.0
        %5084 = vmatpush2.msra.mxu0 0.0
        %5085 = vmatprep.subr.mxu0 0.0
        %5086 = vmatpush2.msra.mxu0 0.0
        %5087 = vmatprep.subr.mxu0 0.0
        %5088 = vmatpush2.msra.mxu0 0.0
        %5089 = vmatprep.subr.mxu0 0.0
        %5090 = vmatpush2.msra.mxu0 0.0
        %5091 = vmatprep.subr.mxu0 0.0
        %5092 = vmatpush2.msra.mxu0 0.0
        %5093 = vmatprep.subr.mxu0 0.0
        %5094 = vmatpush2.msra.mxu0 0.0
        %5095 = vmatprep.subr.mxu0 0.0
        %5096 = vmatpush2.msra.mxu0 0.0
        %5097 = vmatprep.subr.mxu0 0.0
        %5098 = vmatpush2.msra.mxu0 0.0
        %5099 = vmatprep.subr.mxu0 0.0
        %5100 = vmatpush2.msra.mxu0 0.0
        %5101 = vmatprep.subr.mxu0 0.0
        %5102 = vmatpush2.msra.mxu0 0.0
        %5103 = vmatprep.subr.mxu0 0.0
        %5104 = vmatpush2.msra.mxu0 0.0
        %5105 = vmatprep.subr.mxu0 0.0
        %5106 = vmatpush2.msra.mxu0 0.0
        %5107 = vmatprep.subr.mxu0 0.0
        %5108 = vmatpush2.msra.mxu0 0.0
        %5109 = vmatprep.subr.mxu0 0.0
        %5110 = vmatpush2.msra.mxu0 0.0
        %5111 = vmatprep.subr.mxu0 0.0
        %5112 = vmatpush2.msra.mxu0 0.0
        %5113 = vmatprep.mubr.f32.mxu0 0.0
        %5114 = vmatmul.mubr.f32.gmra.mxu0 %v4907
        %v5115 = vpop.f32.mrf.mxu0
        %v5116 = vadd.f32 %v4897, %v5115
        %v5117 = vpop.f32.mrf.mxu0
        %5118 = vdwg.mxu0
        %5119 = vmatprep.subr.mxu0 0.0
        %5120 = vmatpush1.msra.mxu0 0.0
        %5121 = vmatprep.subr.mxu0 0.0
        %5122 = vmatpush1.msra.mxu0 0.0
        %5123 = vmatprep.subr.mxu0 0.0
        %5124 = vmatpush1.msra.mxu0 0.0
        %5125 = vmatprep.subr.mxu0 0.0
        %5126 = vmatpush1.msra.mxu0 0.0
        %5127 = vmatprep.subr.mxu0 0.0
        %5128 = vmatpush1.msra.mxu0 0.0
        %5129 = vmatprep.subr.mxu0 0.0
        %5130 = vmatpush1.msra.mxu0 0.0
        %5131 = vmatprep.subr.mxu0 0.0
        %5132 = vmatpush1.msra.mxu0 0.0
        %5133 = vmatprep.subr.mxu0 0.0
        %5134 = vmatpush1.msra.mxu0 0.0
        %5135 = vmatprep.subr.mxu0 0.0
        %5136 = vmatpush1.msra.mxu0 0.0
        %5137 = vmatprep.subr.mxu0 0.0
        %5138 = vmatpush1.msra.mxu0 0.0
        %5139 = vmatprep.subr.mxu0 0.0
        %5140 = vmatpush1.msra.mxu0 0.0
        %5141 = vmatprep.subr.mxu0 0.0
        %5142 = vmatpush1.msra.mxu0 0.0
        %5143 = vmatprep.subr.mxu0 0.0
        %5144 = vmatpush1.msra.mxu0 %v4825
        %5145 = vmatprep.subr.mxu0 0.0
        %5146 = vmatpush1.msra.mxu0 %v4824
        %5147 = vmatprep.subr.mxu0 0.0
        %5148 = vmatpush1.msra.mxu0 %v4823
        %5149 = vmatprep.subr.mxu0 0.0
        %5150 = vmatpush1.msra.mxu0 %v4822
        %5151 = vmatprep.subr.mxu0 0.0
        %5152 = vmatpush2.msra.mxu0 0.0
        %5153 = vmatprep.subr.mxu0 0.0
        %5154 = vmatpush2.msra.mxu0 0.0
        %5155 = vmatprep.subr.mxu0 0.0
        %5156 = vmatpush2.msra.mxu0 0.0
        %5157 = vmatprep.subr.mxu0 0.0
        %5158 = vmatpush2.msra.mxu0 0.0
        %5159 = vmatprep.subr.mxu0 0.0
        %5160 = vmatpush2.msra.mxu0 0.0
        %5161 = vmatprep.subr.mxu0 0.0
        %5162 = vmatpush2.msra.mxu0 0.0
        %5163 = vmatprep.subr.mxu0 0.0
        %5164 = vmatpush2.msra.mxu0 0.0
        %5165 = vmatprep.subr.mxu0 0.0
        %5166 = vmatpush2.msra.mxu0 0.0
        %5167 = vmatprep.subr.mxu0 0.0
        %5168 = vmatpush2.msra.mxu0 0.0
        %5169 = vmatprep.subr.mxu0 0.0
        %5170 = vmatpush2.msra.mxu0 0.0
        %5171 = vmatprep.subr.mxu0 0.0
        %5172 = vmatpush2.msra.mxu0 0.0
        %5173 = vmatprep.subr.mxu0 0.0
        %5174 = vmatpush2.msra.mxu0 0.0
        %5175 = vmatprep.subr.mxu0 0.0
        %5176 = vmatpush2.msra.mxu0 0.0
        %5177 = vmatprep.subr.mxu0 0.0
        %5178 = vmatpush2.msra.mxu0 0.0
        %5179 = vmatprep.subr.mxu0 0.0
        %5180 = vmatpush2.msra.mxu0 0.0
        %5181 = vmatprep.subr.mxu0 0.0
        %5182 = vmatpush2.msra.mxu0 0.0
        %5183 = vmatprep.mubr.f32.mxu0 0.0
        %5184 = vmatmul.mubr.f32.gmra.mxu0 %v4907
        %v5185 = vpop.f32.mrf.mxu0
        %v5186 = vadd.f32 %v4901, %v5185
        %v5187 = vpop.f32.mrf.mxu0
        %5188 = vdwg.mxu0
        %v5193 = vlaneseq
        %v5194 = vshrl.u32 %v5193, 7
        %v5195 = vsub.s32 0, %v5194
        %v5196 = vrot.slane %v4849, %v5195
        %v5197 = vlaneseq
        %v5198 = vshrl.u32 %v5197, 7
        %v5199 = vsub.s32 0, %v5198
        %v5200 = vrot.slane %v4850, %v5199
        %v5201 = vlaneseq
        %v5202 = vshrl.u32 %v5201, 7
        %v5203 = vsub.s32 0, %v5202
        %v5204 = vrot.slane %v4851, %v5203
        %v5205 = vlaneseq
        %v5206 = vshrl.u32 %v5205, 7
        %v5207 = vsub.s32 0, %v5206
        %v5208 = vrot.slane %v4852, %v5207
        %5213 = vmatprep.subr.mxu0 0.0
        %5214 = vmatpush1.msra.mxu0 0.0
        %5215 = vmatprep.subr.mxu0 0.0
        %5216 = vmatpush1.msra.mxu0 0.0
        %5217 = vmatprep.subr.mxu0 0.0
        %5218 = vmatpush1.msra.mxu0 0.0
        %5219 = vmatprep.subr.mxu0 0.0
        %5220 = vmatpush1.msra.mxu0 0.0
        %5221 = vmatprep.subr.mxu0 0.0
        %5222 = vmatpush1.msra.mxu0 0.0
        %5223 = vmatprep.subr.mxu0 0.0
        %5224 = vmatpush1.msra.mxu0 0.0
        %5225 = vmatprep.subr.mxu0 0.0
        %5226 = vmatpush1.msra.mxu0 0.0
        %5227 = vmatprep.subr.mxu0 0.0
        %5228 = vmatpush1.msra.mxu0 0.0
        %5229 = vmatprep.subr.mxu0 0.0
        %5230 = vmatpush1.msra.mxu0 0.0
        %5231 = vmatprep.subr.mxu0 0.0
        %5232 = vmatpush1.msra.mxu0 0.0
        %5233 = vmatprep.subr.mxu0 0.0
        %5234 = vmatpush1.msra.mxu0 0.0
        %5235 = vmatprep.subr.mxu0 0.0
        %5236 = vmatpush1.msra.mxu0 0.0
        %5237 = vmatprep.subr.mxu0 0.0
        %5238 = vmatpush1.msra.mxu0 %v4835
        %5239 = vmatprep.subr.mxu0 0.0
        %5240 = vmatpush1.msra.mxu0 %v4834
        %5241 = vmatprep.subr.mxu0 0.0
        %5242 = vmatpush1.msra.mxu0 %v4833
        %5243 = vmatprep.subr.mxu0 0.0
        %5244 = vmatpush1.msra.mxu0 %v4832
        %5245 = vmatprep.subr.mxu0 0.0
        %5246 = vmatpush2.msra.mxu0 0.0
        %5247 = vmatprep.subr.mxu0 0.0
        %5248 = vmatpush2.msra.mxu0 0.0
        %5249 = vmatprep.subr.mxu0 0.0
        %5250 = vmatpush2.msra.mxu0 0.0
        %5251 = vmatprep.subr.mxu0 0.0
        %5252 = vmatpush2.msra.mxu0 0.0
        %5253 = vmatprep.subr.mxu0 0.0
        %5254 = vmatpush2.msra.mxu0 0.0
        %5255 = vmatprep.subr.mxu0 0.0
        %5256 = vmatpush2.msra.mxu0 0.0
        %5257 = vmatprep.subr.mxu0 0.0
        %5258 = vmatpush2.msra.mxu0 0.0
        %5259 = vmatprep.subr.mxu0 0.0
        %5260 = vmatpush2.msra.mxu0 0.0
        %5261 = vmatprep.subr.mxu0 0.0
        %5262 = vmatpush2.msra.mxu0 0.0
        %5263 = vmatprep.subr.mxu0 0.0
        %5264 = vmatpush2.msra.mxu0 0.0
        %5265 = vmatprep.subr.mxu0 0.0
        %5266 = vmatpush2.msra.mxu0 0.0
        %5267 = vmatprep.subr.mxu0 0.0
        %5268 = vmatpush2.msra.mxu0 0.0
        %5269 = vmatprep.subr.mxu0 0.0
        %5270 = vmatpush2.msra.mxu0 0.0
        %5271 = vmatprep.subr.mxu0 0.0
        %5272 = vmatpush2.msra.mxu0 0.0
        %5273 = vmatprep.subr.mxu0 0.0
        %5274 = vmatpush2.msra.mxu0 0.0
        %5275 = vmatprep.subr.mxu0 0.0
        %5276 = vmatpush2.msra.mxu0 0.0
        %5277 = vmatprep.mubr.f32.mxu0 0.0
        %5278 = vmatmul.mubr.f32.gmra.mxu0 %v4907
        %v5279 = vpop.f32.mrf.mxu0
        %v5280 = vadd.f32 %v5196, %v5279
        %v5281 = vpop.f32.mrf.mxu0
        %5282 = vdwg.mxu0
        %5283 = vmatprep.subr.mxu0 0.0
        %5284 = vmatpush1.msra.mxu0 0.0
        %5285 = vmatprep.subr.mxu0 0.0
        %5286 = vmatpush1.msra.mxu0 0.0
        %5287 = vmatprep.subr.mxu0 0.0
        %5288 = vmatpush1.msra.mxu0 0.0
        %5289 = vmatprep.subr.mxu0 0.0
        %5290 = vmatpush1.msra.mxu0 0.0
        %5291 = vmatprep.subr.mxu0 0.0
        %5292 = vmatpush1.msra.mxu0 0.0
        %5293 = vmatprep.subr.mxu0 0.0
        %5294 = vmatpush1.msra.mxu0 0.0
        %5295 = vmatprep.subr.mxu0 0.0
        %5296 = vmatpush1.msra.mxu0 0.0
        %5297 = vmatprep.subr.mxu0 0.0
        %5298 = vmatpush1.msra.mxu0 0.0
        %5299 = vmatprep.subr.mxu0 0.0
        %5300 = vmatpush1.msra.mxu0 0.0
        %5301 = vmatprep.subr.mxu0 0.0
        %5302 = vmatpush1.msra.mxu0 0.0
        %5303 = vmatprep.subr.mxu0 0.0
        %5304 = vmatpush1.msra.mxu0 0.0
        %5305 = vmatprep.subr.mxu0 0.0
        %5306 = vmatpush1.msra.mxu0 0.0
        %5307 = vmatprep.subr.mxu0 0.0
        %5308 = vmatpush1.msra.mxu0 %v4839
        %5309 = vmatprep.subr.mxu0 0.0
        %5310 = vmatpush1.msra.mxu0 %v4838
        %5311 = vmatprep.subr.mxu0 0.0
        %5312 = vmatpush1.msra.mxu0 %v4837
        %5313 = vmatprep.subr.mxu0 0.0
        %5314 = vmatpush1.msra.mxu0 %v4836
        %5315 = vmatprep.subr.mxu0 0.0
        %5316 = vmatpush2.msra.mxu0 0.0
        %5317 = vmatprep.subr.mxu0 0.0
        %5318 = vmatpush2.msra.mxu0 0.0
        %5319 = vmatprep.subr.mxu0 0.0
        %5320 = vmatpush2.msra.mxu0 0.0
        %5321 = vmatprep.subr.mxu0 0.0
        %5322 = vmatpush2.msra.mxu0 0.0
        %5323 = vmatprep.subr.mxu0 0.0
        %5324 = vmatpush2.msra.mxu0 0.0
        %5325 = vmatprep.subr.mxu0 0.0
        %5326 = vmatpush2.msra.mxu0 0.0
        %5327 = vmatprep.subr.mxu0 0.0
        %5328 = vmatpush2.msra.mxu0 0.0
        %5329 = vmatprep.subr.mxu0 0.0
        %5330 = vmatpush2.msra.mxu0 0.0
        %5331 = vmatprep.subr.mxu0 0.0
        %5332 = vmatpush2.msra.mxu0 0.0
        %5333 = vmatprep.subr.mxu0 0.0
        %5334 = vmatpush2.msra.mxu0 0.0
        %5335 = vmatprep.subr.mxu0 0.0
        %5336 = vmatpush2.msra.mxu0 0.0
        %5337 = vmatprep.subr.mxu0 0.0
        %5338 = vmatpush2.msra.mxu0 0.0
        %5339 = vmatprep.subr.mxu0 0.0
        %5340 = vmatpush2.msra.mxu0 0.0
        %5341 = vmatprep.subr.mxu0 0.0
        %5342 = vmatpush2.msra.mxu0 0.0
        %5343 = vmatprep.subr.mxu0 0.0
        %5344 = vmatpush2.msra.mxu0 0.0
        %5345 = vmatprep.subr.mxu0 0.0
        %5346 = vmatpush2.msra.mxu0 0.0
        %5347 = vmatprep.mubr.f32.mxu0 0.0
        %5348 = vmatmul.mubr.f32.gmra.mxu0 %v4907
        %v5349 = vpop.f32.mrf.mxu0
        %v5350 = vadd.f32 %v5200, %v5349
        %v5351 = vpop.f32.mrf.mxu0
        %5352 = vdwg.mxu0
        %5353 = vmatprep.subr.mxu0 0.0
        %5354 = vmatpush1.msra.mxu0 0.0
        %5355 = vmatprep.subr.mxu0 0.0
        %5356 = vmatpush1.msra.mxu0 0.0
        %5357 = vmatprep.subr.mxu0 0.0
        %5358 = vmatpush1.msra.mxu0 0.0
        %5359 = vmatprep.subr.mxu0 0.0
        %5360 = vmatpush1.msra.mxu0 0.0
        %5361 = vmatprep.subr.mxu0 0.0
        %5362 = vmatpush1.msra.mxu0 0.0
        %5363 = vmatprep.subr.mxu0 0.0
        %5364 = vmatpush1.msra.mxu0 0.0
        %5365 = vmatprep.subr.mxu0 0.0
        %5366 = vmatpush1.msra.mxu0 0.0
        %5367 = vmatprep.subr.mxu0 0.0
        %5368 = vmatpush1.msra.mxu0 0.0
        %5369 = vmatprep.subr.mxu0 0.0
        %5370 = vmatpush1.msra.mxu0 0.0
        %5371 = vmatprep.subr.mxu0 0.0
        %5372 = vmatpush1.msra.mxu0 0.0
        %5373 = vmatprep.subr.mxu0 0.0
        %5374 = vmatpush1.msra.mxu0 0.0
        %5375 = vmatprep.subr.mxu0 0.0
        %5376 = vmatpush1.msra.mxu0 0.0
        %5377 = vmatprep.subr.mxu0 0.0
        %5378 = vmatpush1.msra.mxu0 %v4843
        %5379 = vmatprep.subr.mxu0 0.0
        %5380 = vmatpush1.msra.mxu0 %v4842
        %5381 = vmatprep.subr.mxu0 0.0
        %5382 = vmatpush1.msra.mxu0 %v4841
        %5383 = vmatprep.subr.mxu0 0.0
        %5384 = vmatpush1.msra.mxu0 %v4840
        %5385 = vmatprep.subr.mxu0 0.0
        %5386 = vmatpush2.msra.mxu0 0.0
        %5387 = vmatprep.subr.mxu0 0.0
        %5388 = vmatpush2.msra.mxu0 0.0
        %5389 = vmatprep.subr.mxu0 0.0
        %5390 = vmatpush2.msra.mxu0 0.0
        %5391 = vmatprep.subr.mxu0 0.0
        %5392 = vmatpush2.msra.mxu0 0.0
        %5393 = vmatprep.subr.mxu0 0.0
        %5394 = vmatpush2.msra.mxu0 0.0
        %5395 = vmatprep.subr.mxu0 0.0
        %5396 = vmatpush2.msra.mxu0 0.0
        %5397 = vmatprep.subr.mxu0 0.0
        %5398 = vmatpush2.msra.mxu0 0.0
        %5399 = vmatprep.subr.mxu0 0.0
        %5400 = vmatpush2.msra.mxu0 0.0
        %5401 = vmatprep.subr.mxu0 0.0
        %5402 = vmatpush2.msra.mxu0 0.0
        %5403 = vmatprep.subr.mxu0 0.0
        %5404 = vmatpush2.msra.mxu0 0.0
        %5405 = vmatprep.subr.mxu0 0.0
        %5406 = vmatpush2.msra.mxu0 0.0
        %5407 = vmatprep.subr.mxu0 0.0
        %5408 = vmatpush2.msra.mxu0 0.0
        %5409 = vmatprep.subr.mxu0 0.0
        %5410 = vmatpush2.msra.mxu0 0.0
        %5411 = vmatprep.subr.mxu0 0.0
        %5412 = vmatpush2.msra.mxu0 0.0
        %5413 = vmatprep.subr.mxu0 0.0
        %5414 = vmatpush2.msra.mxu0 0.0
        %5415 = vmatprep.subr.mxu0 0.0
        %5416 = vmatpush2.msra.mxu0 0.0
        %5417 = vmatprep.mubr.f32.mxu0 0.0
        %5418 = vmatmul.mubr.f32.gmra.mxu0 %v4907
        %v5419 = vpop.f32.mrf.mxu0
        %v5420 = vadd.f32 %v5204, %v5419
        %v5421 = vpop.f32.mrf.mxu0
        %5422 = vdwg.mxu0
        %5423 = vmatprep.subr.mxu0 0.0
        %5424 = vmatpush1.msra.mxu0 0.0
        %5425 = vmatprep.subr.mxu0 0.0
        %5426 = vmatpush1.msra.mxu0 0.0
        %5427 = vmatprep.subr.mxu0 0.0
        %5428 = vmatpush1.msra.mxu0 0.0
        %5429 = vmatprep.subr.mxu0 0.0
        %5430 = vmatpush1.msra.mxu0 0.0
        %5431 = vmatprep.subr.mxu0 0.0
        %5432 = vmatpush1.msra.mxu0 0.0
        %5433 = vmatprep.subr.mxu0 0.0
        %5434 = vmatpush1.msra.mxu0 0.0
        %5435 = vmatprep.subr.mxu0 0.0
        %5436 = vmatpush1.msra.mxu0 0.0
        %5437 = vmatprep.subr.mxu0 0.0
        %5438 = vmatpush1.msra.mxu0 0.0
        %5439 = vmatprep.subr.mxu0 0.0
        %5440 = vmatpush1.msra.mxu0 0.0
        %5441 = vmatprep.subr.mxu0 0.0
        %5442 = vmatpush1.msra.mxu0 0.0
        %5443 = vmatprep.subr.mxu0 0.0
        %5444 = vmatpush1.msra.mxu0 0.0
        %5445 = vmatprep.subr.mxu0 0.0
        %5446 = vmatpush1.msra.mxu0 0.0
        %5447 = vmatprep.subr.mxu0 0.0
        %5448 = vmatpush1.msra.mxu0 %v4847
        %5449 = vmatprep.subr.mxu0 0.0
        %5450 = vmatpush1.msra.mxu0 %v4846
        %5451 = vmatprep.subr.mxu0 0.0
        %5452 = vmatpush1.msra.mxu0 %v4845
        %5453 = vmatprep.subr.mxu0 0.0
        %5454 = vmatpush1.msra.mxu0 %v4844
        %5455 = vmatprep.subr.mxu0 0.0
        %5456 = vmatpush2.msra.mxu0 0.0
        %5457 = vmatprep.subr.mxu0 0.0
        %5458 = vmatpush2.msra.mxu0 0.0
        %5459 = vmatprep.subr.mxu0 0.0
        %5460 = vmatpush2.msra.mxu0 0.0
        %5461 = vmatprep.subr.mxu0 0.0
        %5462 = vmatpush2.msra.mxu0 0.0
        %5463 = vmatprep.subr.mxu0 0.0
        %5464 = vmatpush2.msra.mxu0 0.0
        %5465 = vmatprep.subr.mxu0 0.0
        %5466 = vmatpush2.msra.mxu0 0.0
        %5467 = vmatprep.subr.mxu0 0.0
        %5468 = vmatpush2.msra.mxu0 0.0
        %5469 = vmatprep.subr.mxu0 0.0
        %5470 = vmatpush2.msra.mxu0 0.0
        %5471 = vmatprep.subr.mxu0 0.0
        %5472 = vmatpush2.msra.mxu0 0.0
        %5473 = vmatprep.subr.mxu0 0.0
        %5474 = vmatpush2.msra.mxu0 0.0
        %5475 = vmatprep.subr.mxu0 0.0
        %5476 = vmatpush2.msra.mxu0 0.0
        %5477 = vmatprep.subr.mxu0 0.0
        %5478 = vmatpush2.msra.mxu0 0.0
        %5479 = vmatprep.subr.mxu0 0.0
        %5480 = vmatpush2.msra.mxu0 0.0
        %5481 = vmatprep.subr.mxu0 0.0
        %5482 = vmatpush2.msra.mxu0 0.0
        %5483 = vmatprep.subr.mxu0 0.0
        %5484 = vmatpush2.msra.mxu0 0.0
        %5485 = vmatprep.subr.mxu0 0.0
        %5486 = vmatpush2.msra.mxu0 0.0
        %5487 = vmatprep.mubr.f32.mxu0 0.0
        %5488 = vmatmul.mubr.f32.gmra.mxu0 %v4907
        %v5489 = vpop.f32.mrf.mxu0
        %v5490 = vadd.f32 %v5208, %v5489
        %v5491 = vpop.f32.mrf.mxu0
        %5492 = vdwg.mxu0
        %v5497 = vlaneseq
        %v5498 = vshrl.u32 %v5497, 7
        %v5499 = vsub.s32 0, %v5498
        %v5500 = vrot.slane %v4871, %v5499
        %v5501 = vlaneseq
        %v5502 = vshrl.u32 %v5501, 7
        %v5503 = vsub.s32 0, %v5502
        %v5504 = vrot.slane %v4872, %v5503
        %v5505 = vlaneseq
        %v5506 = vshrl.u32 %v5505, 7
        %v5507 = vsub.s32 0, %v5506
        %v5508 = vrot.slane %v4873, %v5507
        %v5509 = vlaneseq
        %v5510 = vshrl.u32 %v5509, 7
        %v5511 = vsub.s32 0, %v5510
        %v5512 = vrot.slane %v4874, %v5511
        %5517 = vmatprep.subr.mxu0 0.0
        %5518 = vmatpush1.msra.mxu0 0.0
        %5519 = vmatprep.subr.mxu0 0.0
        %5520 = vmatpush1.msra.mxu0 0.0
        %5521 = vmatprep.subr.mxu0 0.0
        %5522 = vmatpush1.msra.mxu0 0.0
        %5523 = vmatprep.subr.mxu0 0.0
        %5524 = vmatpush1.msra.mxu0 0.0
        %5525 = vmatprep.subr.mxu0 0.0
        %5526 = vmatpush1.msra.mxu0 0.0
        %5527 = vmatprep.subr.mxu0 0.0
        %5528 = vmatpush1.msra.mxu0 0.0
        %5529 = vmatprep.subr.mxu0 0.0
        %5530 = vmatpush1.msra.mxu0 0.0
        %5531 = vmatprep.subr.mxu0 0.0
        %5532 = vmatpush1.msra.mxu0 0.0
        %5533 = vmatprep.subr.mxu0 0.0
        %5534 = vmatpush1.msra.mxu0 0.0
        %5535 = vmatprep.subr.mxu0 0.0
        %5536 = vmatpush1.msra.mxu0 0.0
        %5537 = vmatprep.subr.mxu0 0.0
        %5538 = vmatpush1.msra.mxu0 0.0
        %5539 = vmatprep.subr.mxu0 0.0
        %5540 = vmatpush1.msra.mxu0 0.0
        %5541 = vmatprep.subr.mxu0 0.0
        %5542 = vmatpush1.msra.mxu0 %v4857
        %5543 = vmatprep.subr.mxu0 0.0
        %5544 = vmatpush1.msra.mxu0 %v4856
        %5545 = vmatprep.subr.mxu0 0.0
        %5546 = vmatpush1.msra.mxu0 %v4855
        %5547 = vmatprep.subr.mxu0 0.0
        %5548 = vmatpush1.msra.mxu0 %v4854
        %5549 = vmatprep.subr.mxu0 0.0
        %5550 = vmatpush2.msra.mxu0 0.0
        %5551 = vmatprep.subr.mxu0 0.0
        %5552 = vmatpush2.msra.mxu0 0.0
        %5553 = vmatprep.subr.mxu0 0.0
        %5554 = vmatpush2.msra.mxu0 0.0
        %5555 = vmatprep.subr.mxu0 0.0
        %5556 = vmatpush2.msra.mxu0 0.0
        %5557 = vmatprep.subr.mxu0 0.0
        %5558 = vmatpush2.msra.mxu0 0.0
        %5559 = vmatprep.subr.mxu0 0.0
        %5560 = vmatpush2.msra.mxu0 0.0
        %5561 = vmatprep.subr.mxu0 0.0
        %5562 = vmatpush2.msra.mxu0 0.0
        %5563 = vmatprep.subr.mxu0 0.0
        %5564 = vmatpush2.msra.mxu0 0.0
        %5565 = vmatprep.subr.mxu0 0.0
        %5566 = vmatpush2.msra.mxu0 0.0
        %5567 = vmatprep.subr.mxu0 0.0
        %5568 = vmatpush2.msra.mxu0 0.0
        %5569 = vmatprep.subr.mxu0 0.0
        %5570 = vmatpush2.msra.mxu0 0.0
        %5571 = vmatprep.subr.mxu0 0.0
        %5572 = vmatpush2.msra.mxu0 0.0
        %5573 = vmatprep.subr.mxu0 0.0
        %5574 = vmatpush2.msra.mxu0 0.0
        %5575 = vmatprep.subr.mxu0 0.0
        %5576 = vmatpush2.msra.mxu0 0.0
        %5577 = vmatprep.subr.mxu0 0.0
        %5578 = vmatpush2.msra.mxu0 0.0
        %5579 = vmatprep.subr.mxu0 0.0
        %5580 = vmatpush2.msra.mxu0 0.0
        %5581 = vmatprep.mubr.f32.mxu0 0.0
        %5582 = vmatmul.mubr.f32.gmra.mxu0 %v4907
        %v5583 = vpop.f32.mrf.mxu0
        %v5584 = vadd.f32 %v5500, %v5583
        %v5585 = vpop.f32.mrf.mxu0
        %5586 = vdwg.mxu0
        %5587 = vmatprep.subr.mxu0 0.0
        %5588 = vmatpush1.msra.mxu0 0.0
        %5589 = vmatprep.subr.mxu0 0.0
        %5590 = vmatpush1.msra.mxu0 0.0
        %5591 = vmatprep.subr.mxu0 0.0
        %5592 = vmatpush1.msra.mxu0 0.0
        %5593 = vmatprep.subr.mxu0 0.0
        %5594 = vmatpush1.msra.mxu0 0.0
        %5595 = vmatprep.subr.mxu0 0.0
        %5596 = vmatpush1.msra.mxu0 0.0
        %5597 = vmatprep.subr.mxu0 0.0
        %5598 = vmatpush1.msra.mxu0 0.0
        %5599 = vmatprep.subr.mxu0 0.0
        %5600 = vmatpush1.msra.mxu0 0.0
        %5601 = vmatprep.subr.mxu0 0.0
        %5602 = vmatpush1.msra.mxu0 0.0
        %5603 = vmatprep.subr.mxu0 0.0
        %5604 = vmatpush1.msra.mxu0 0.0
        %5605 = vmatprep.subr.mxu0 0.0
        %5606 = vmatpush1.msra.mxu0 0.0
        %5607 = vmatprep.subr.mxu0 0.0
        %5608 = vmatpush1.msra.mxu0 0.0
        %5609 = vmatprep.subr.mxu0 0.0
        %5610 = vmatpush1.msra.mxu0 0.0
        %5611 = vmatprep.subr.mxu0 0.0
        %5612 = vmatpush1.msra.mxu0 %v4861
        %5613 = vmatprep.subr.mxu0 0.0
        %5614 = vmatpush1.msra.mxu0 %v4860
        %5615 = vmatprep.subr.mxu0 0.0
        %5616 = vmatpush1.msra.mxu0 %v4859
        %5617 = vmatprep.subr.mxu0 0.0
        %5618 = vmatpush1.msra.mxu0 %v4858
        %5619 = vmatprep.subr.mxu0 0.0
        %5620 = vmatpush2.msra.mxu0 0.0
        %5621 = vmatprep.subr.mxu0 0.0
        %5622 = vmatpush2.msra.mxu0 0.0
        %5623 = vmatprep.subr.mxu0 0.0
        %5624 = vmatpush2.msra.mxu0 0.0
        %5625 = vmatprep.subr.mxu0 0.0
        %5626 = vmatpush2.msra.mxu0 0.0
        %5627 = vmatprep.subr.mxu0 0.0
        %5628 = vmatpush2.msra.mxu0 0.0
        %5629 = vmatprep.subr.mxu0 0.0
        %5630 = vmatpush2.msra.mxu0 0.0
        %5631 = vmatprep.subr.mxu0 0.0
        %5632 = vmatpush2.msra.mxu0 0.0
        %5633 = vmatprep.subr.mxu0 0.0
        %5634 = vmatpush2.msra.mxu0 0.0
        %5635 = vmatprep.subr.mxu0 0.0
        %5636 = vmatpush2.msra.mxu0 0.0
        %5637 = vmatprep.subr.mxu0 0.0
        %5638 = vmatpush2.msra.mxu0 0.0
        %5639 = vmatprep.subr.mxu0 0.0
        %5640 = vmatpush2.msra.mxu0 0.0
        %5641 = vmatprep.subr.mxu0 0.0
        %5642 = vmatpush2.msra.mxu0 0.0
        %5643 = vmatprep.subr.mxu0 0.0
        %5644 = vmatpush2.msra.mxu0 0.0
        %5645 = vmatprep.subr.mxu0 0.0
        %5646 = vmatpush2.msra.mxu0 0.0
        %5647 = vmatprep.subr.mxu0 0.0
        %5648 = vmatpush2.msra.mxu0 0.0
        %5649 = vmatprep.subr.mxu0 0.0
        %5650 = vmatpush2.msra.mxu0 0.0
        %5651 = vmatprep.mubr.f32.mxu0 0.0
        %5652 = vmatmul.mubr.f32.gmra.mxu0 %v4907
        %v5653 = vpop.f32.mrf.mxu0
        %v5654 = vadd.f32 %v5504, %v5653
        %v5655 = vpop.f32.mrf.mxu0
        %5656 = vdwg.mxu0
        %5657 = vmatprep.subr.mxu0 0.0
        %5658 = vmatpush1.msra.mxu0 0.0
        %5659 = vmatprep.subr.mxu0 0.0
        %5660 = vmatpush1.msra.mxu0 0.0
        %5661 = vmatprep.subr.mxu0 0.0
        %5662 = vmatpush1.msra.mxu0 0.0
        %5663 = vmatprep.subr.mxu0 0.0
        %5664 = vmatpush1.msra.mxu0 0.0
        %5665 = vmatprep.subr.mxu0 0.0
        %5666 = vmatpush1.msra.mxu0 0.0
        %5667 = vmatprep.subr.mxu0 0.0
        %5668 = vmatpush1.msra.mxu0 0.0
        %5669 = vmatprep.subr.mxu0 0.0
        %5670 = vmatpush1.msra.mxu0 0.0
        %5671 = vmatprep.subr.mxu0 0.0
        %5672 = vmatpush1.msra.mxu0 0.0
        %5673 = vmatprep.subr.mxu0 0.0
        %5674 = vmatpush1.msra.mxu0 0.0
        %5675 = vmatprep.subr.mxu0 0.0
        %5676 = vmatpush1.msra.mxu0 0.0
        %5677 = vmatprep.subr.mxu0 0.0
        %5678 = vmatpush1.msra.mxu0 0.0
        %5679 = vmatprep.subr.mxu0 0.0
        %5680 = vmatpush1.msra.mxu0 0.0
        %5681 = vmatprep.subr.mxu0 0.0
        %5682 = vmatpush1.msra.mxu0 %v4865
        %5683 = vmatprep.subr.mxu0 0.0
        %5684 = vmatpush1.msra.mxu0 %v4864
        %5685 = vmatprep.subr.mxu0 0.0
        %5686 = vmatpush1.msra.mxu0 %v4863
        %5687 = vmatprep.subr.mxu0 0.0
        %5688 = vmatpush1.msra.mxu0 %v4862
        %5689 = vmatprep.subr.mxu0 0.0
        %5690 = vmatpush2.msra.mxu0 0.0
        %5691 = vmatprep.subr.mxu0 0.0
        %5692 = vmatpush2.msra.mxu0 0.0
        %5693 = vmatprep.subr.mxu0 0.0
        %5694 = vmatpush2.msra.mxu0 0.0
        %5695 = vmatprep.subr.mxu0 0.0
        %5696 = vmatpush2.msra.mxu0 0.0
        %5697 = vmatprep.subr.mxu0 0.0
        %5698 = vmatpush2.msra.mxu0 0.0
        %5699 = vmatprep.subr.mxu0 0.0
        %5700 = vmatpush2.msra.mxu0 0.0
        %5701 = vmatprep.subr.mxu0 0.0
        %5702 = vmatpush2.msra.mxu0 0.0
        %5703 = vmatprep.subr.mxu0 0.0
        %5704 = vmatpush2.msra.mxu0 0.0
        %5705 = vmatprep.subr.mxu0 0.0
        %5706 = vmatpush2.msra.mxu0 0.0
        %5707 = vmatprep.subr.mxu0 0.0
        %5708 = vmatpush2.msra.mxu0 0.0
        %5709 = vmatprep.subr.mxu0 0.0
        %5710 = vmatpush2.msra.mxu0 0.0
        %5711 = vmatprep.subr.mxu0 0.0
        %5712 = vmatpush2.msra.mxu0 0.0
        %5713 = vmatprep.subr.mxu0 0.0
        %5714 = vmatpush2.msra.mxu0 0.0
        %5715 = vmatprep.subr.mxu0 0.0
        %5716 = vmatpush2.msra.mxu0 0.0
        %5717 = vmatprep.subr.mxu0 0.0
        %5718 = vmatpush2.msra.mxu0 0.0
        %5719 = vmatprep.subr.mxu0 0.0
        %5720 = vmatpush2.msra.mxu0 0.0
        %5721 = vmatprep.mubr.f32.mxu0 0.0
        %5722 = vmatmul.mubr.f32.gmra.mxu0 %v4907
        %v5723 = vpop.f32.mrf.mxu0
        %v5724 = vadd.f32 %v5508, %v5723
        %v5725 = vpop.f32.mrf.mxu0
        %5726 = vdwg.mxu0
        %5727 = vmatprep.subr.mxu0 0.0
        %5728 = vmatpush1.msra.mxu0 0.0
        %5729 = vmatprep.subr.mxu0 0.0
        %5730 = vmatpush1.msra.mxu0 0.0
        %5731 = vmatprep.subr.mxu0 0.0
        %5732 = vmatpush1.msra.mxu0 0.0
        %5733 = vmatprep.subr.mxu0 0.0
        %5734 = vmatpush1.msra.mxu0 0.0
        %5735 = vmatprep.subr.mxu0 0.0
        %5736 = vmatpush1.msra.mxu0 0.0
        %5737 = vmatprep.subr.mxu0 0.0
        %5738 = vmatpush1.msra.mxu0 0.0
        %5739 = vmatprep.subr.mxu0 0.0
        %5740 = vmatpush1.msra.mxu0 0.0
        %5741 = vmatprep.subr.mxu0 0.0
        %5742 = vmatpush1.msra.mxu0 0.0
        %5743 = vmatprep.subr.mxu0 0.0
        %5744 = vmatpush1.msra.mxu0 0.0
        %5745 = vmatprep.subr.mxu0 0.0
        %5746 = vmatpush1.msra.mxu0 0.0
        %5747 = vmatprep.subr.mxu0 0.0
        %5748 = vmatpush1.msra.mxu0 0.0
        %5749 = vmatprep.subr.mxu0 0.0
        %5750 = vmatpush1.msra.mxu0 0.0
        %5751 = vmatprep.subr.mxu0 0.0
        %5752 = vmatpush1.msra.mxu0 %v4869
        %5753 = vmatprep.subr.mxu0 0.0
        %5754 = vmatpush1.msra.mxu0 %v4868
        %5755 = vmatprep.subr.mxu0 0.0
        %5756 = vmatpush1.msra.mxu0 %v4867
        %5757 = vmatprep.subr.mxu0 0.0
        %5758 = vmatpush1.msra.mxu0 %v4866
        %5759 = vmatprep.subr.mxu0 0.0
        %5760 = vmatpush2.msra.mxu0 0.0
        %5761 = vmatprep.subr.mxu0 0.0
        %5762 = vmatpush2.msra.mxu0 0.0
        %5763 = vmatprep.subr.mxu0 0.0
        %5764 = vmatpush2.msra.mxu0 0.0
        %5765 = vmatprep.subr.mxu0 0.0
        %5766 = vmatpush2.msra.mxu0 0.0
        %5767 = vmatprep.subr.mxu0 0.0
        %5768 = vmatpush2.msra.mxu0 0.0
        %5769 = vmatprep.subr.mxu0 0.0
        %5770 = vmatpush2.msra.mxu0 0.0
        %5771 = vmatprep.subr.mxu0 0.0
        %5772 = vmatpush2.msra.mxu0 0.0
        %5773 = vmatprep.subr.mxu0 0.0
        %5774 = vmatpush2.msra.mxu0 0.0
        %5775 = vmatprep.subr.mxu0 0.0
        %5776 = vmatpush2.msra.mxu0 0.0
        %5777 = vmatprep.subr.mxu0 0.0
        %5778 = vmatpush2.msra.mxu0 0.0
        %5779 = vmatprep.subr.mxu0 0.0
        %5780 = vmatpush2.msra.mxu0 0.0
        %5781 = vmatprep.subr.mxu0 0.0
        %5782 = vmatpush2.msra.mxu0 0.0
        %5783 = vmatprep.subr.mxu0 0.0
        %5784 = vmatpush2.msra.mxu0 0.0
        %5785 = vmatprep.subr.mxu0 0.0
        %5786 = vmatpush2.msra.mxu0 0.0
        %5787 = vmatprep.subr.mxu0 0.0
        %5788 = vmatpush2.msra.mxu0 0.0
        %5789 = vmatprep.subr.mxu0 0.0
        %5790 = vmatpush2.msra.mxu0 0.0
        %5791 = vmatprep.mubr.f32.mxu0 0.0
        %5792 = vmatmul.mubr.f32.gmra.mxu0 %v4907
        %v5793 = vpop.f32.mrf.mxu0
        %v5794 = vadd.f32 %v5512, %v5793
        %v5795 = vpop.f32.mrf.mxu0
        %5796 = vdwg.mxu0
        %v5798 = vsel %vm1708, %v4976, 0
        %v5801 = vsel %vm1708, %v5280, 0
        %5803 = vmatprep.subr.mxu0 0.0
        %5804 = vmatpush1.xpose.msra.mxu0 0.0
        %5805 = vmatprep.subr.mxu0 0.0
        %5806 = vmatpush1.xpose.msra.mxu0 0.0
        %5807 = vmatprep.subr.mxu0 0.0
        %5808 = vmatpush1.xpose.msra.mxu0 0.0
        %5809 = vmatprep.subr.mxu0 0.0
        %5810 = vmatpush1.xpose.msra.mxu0 0.0
        %5811 = vmatprep.subr.mxu0 0.0
        %5812 = vmatpush1.xpose.msra.mxu0 0.0
        %5813 = vmatprep.subr.mxu0 0.0
        %5814 = vmatpush1.xpose.msra.mxu0 0.0
        %5815 = vmatprep.subr.mxu0 0.0
        %5816 = vmatpush1.xpose.msra.mxu0 0.0
        %5817 = vmatprep.subr.mxu0 0.0
        %5818 = vmatpush1.xpose.msra.mxu0 0.0
        %5819 = vmatprep.subr.mxu0 0.0
        %5820 = vmatpush1.xpose.msra.mxu0 0.0
        %5821 = vmatprep.subr.mxu0 0.0
        %5822 = vmatpush1.xpose.msra.mxu0 0.0
        %5823 = vmatprep.subr.mxu0 0.0
        %5824 = vmatpush1.xpose.msra.mxu0 0.0
        %5825 = vmatprep.subr.mxu0 0.0
        %5826 = vmatpush1.xpose.msra.mxu0 0.0
        %5827 = vmatprep.subr.mxu0 0.0
        %5828 = vmatpush1.xpose.msra.mxu0 0.0
        %5829 = vmatprep.subr.mxu0 0.0
        %5830 = vmatpush1.xpose.msra.mxu0 0.0
        %5831 = vmatprep.subr.mxu0 0.0
        %5832 = vmatpush1.xpose.msra.mxu0 0.0
        %5833 = vmatprep.subr.mxu0 0.0
        %5834 = vmatpush1.xpose.msra.mxu0 %v5801
        %5835 = vmatprep.subr.mxu0 0.0
        %5836 = vmatpush2.xpose.msra.mxu0 0.0
        %5837 = vmatprep.subr.mxu0 0.0
        %5838 = vmatpush2.xpose.msra.mxu0 0.0
        %5839 = vmatprep.subr.mxu0 0.0
        %5840 = vmatpush2.xpose.msra.mxu0 0.0
        %5841 = vmatprep.subr.mxu0 0.0
        %5842 = vmatpush2.xpose.msra.mxu0 0.0
        %5843 = vmatprep.subr.mxu0 0.0
        %5844 = vmatpush2.xpose.msra.mxu0 0.0
        %5845 = vmatprep.subr.mxu0 0.0
        %5846 = vmatpush2.xpose.msra.mxu0 0.0
        %5847 = vmatprep.subr.mxu0 0.0
        %5848 = vmatpush2.xpose.msra.mxu0 0.0
        %5849 = vmatprep.subr.mxu0 0.0
        %5850 = vmatpush2.xpose.msra.mxu0 0.0
        %5851 = vmatprep.subr.mxu0 0.0
        %5852 = vmatpush2.xpose.msra.mxu0 0.0
        %5853 = vmatprep.subr.mxu0 0.0
        %5854 = vmatpush2.xpose.msra.mxu0 0.0
        %5855 = vmatprep.subr.mxu0 0.0
        %5856 = vmatpush2.xpose.msra.mxu0 0.0
        %5857 = vmatprep.subr.mxu0 0.0
        %5858 = vmatpush2.xpose.msra.mxu0 0.0
        %5859 = vmatprep.subr.mxu0 0.0
        %5860 = vmatpush2.xpose.msra.mxu0 0.0
        %5861 = vmatprep.subr.mxu0 0.0
        %5862 = vmatpush2.xpose.msra.mxu0 0.0
        %5863 = vmatprep.subr.mxu0 0.0
        %5864 = vmatpush2.xpose.msra.mxu0 0.0
        %5865 = vmatprep.subr.mxu0 0.0
        %5866 = vmatpush2.xpose.msra.mxu0 0.0
        %5867 = vmatprep.mubr.f32.mxu0 0.0
        %5868 = vmatmul.mubr.f32.gmra.mxu0 %v5798
        %v5869 = vpop.f32.mrf.mxu0
        %v5870 = vadd.f32 0.0, %v5869
        %v5871 = vpop.f32.mrf.mxu0
        %5872 = vdwg.mxu0
        %v5874 = vsel %vm1708, %v5046, 0
        %v5877 = vsel %vm1708, %v5350, 0
        %5879 = vmatprep.subr.mxu0 0.0
        %5880 = vmatpush1.xpose.msra.mxu0 0.0
        %5881 = vmatprep.subr.mxu0 0.0
        %5882 = vmatpush1.xpose.msra.mxu0 0.0
        %5883 = vmatprep.subr.mxu0 0.0
        %5884 = vmatpush1.xpose.msra.mxu0 0.0
        %5885 = vmatprep.subr.mxu0 0.0
        %5886 = vmatpush1.xpose.msra.mxu0 0.0
        %5887 = vmatprep.subr.mxu0 0.0
        %5888 = vmatpush1.xpose.msra.mxu0 0.0
        %5889 = vmatprep.subr.mxu0 0.0
        %5890 = vmatpush1.xpose.msra.mxu0 0.0
        %5891 = vmatprep.subr.mxu0 0.0
        %5892 = vmatpush1.xpose.msra.mxu0 0.0
        %5893 = vmatprep.subr.mxu0 0.0
        %5894 = vmatpush1.xpose.msra.mxu0 0.0
        %5895 = vmatprep.subr.mxu0 0.0
        %5896 = vmatpush1.xpose.msra.mxu0 0.0
        %5897 = vmatprep.subr.mxu0 0.0
        %5898 = vmatpush1.xpose.msra.mxu0 0.0
        %5899 = vmatprep.subr.mxu0 0.0
        %5900 = vmatpush1.xpose.msra.mxu0 0.0
        %5901 = vmatprep.subr.mxu0 0.0
        %5902 = vmatpush1.xpose.msra.mxu0 0.0
        %5903 = vmatprep.subr.mxu0 0.0
        %5904 = vmatpush1.xpose.msra.mxu0 0.0
        %5905 = vmatprep.subr.mxu0 0.0
        %5906 = vmatpush1.xpose.msra.mxu0 0.0
        %5907 = vmatprep.subr.mxu0 0.0
        %5908 = vmatpush1.xpose.msra.mxu0 0.0
        %5909 = vmatprep.subr.mxu0 0.0
        %5910 = vmatpush1.xpose.msra.mxu0 %v5877
        %5911 = vmatprep.subr.mxu0 0.0
        %5912 = vmatpush2.xpose.msra.mxu0 0.0
        %5913 = vmatprep.subr.mxu0 0.0
        %5914 = vmatpush2.xpose.msra.mxu0 0.0
        %5915 = vmatprep.subr.mxu0 0.0
        %5916 = vmatpush2.xpose.msra.mxu0 0.0
        %5917 = vmatprep.subr.mxu0 0.0
        %5918 = vmatpush2.xpose.msra.mxu0 0.0
        %5919 = vmatprep.subr.mxu0 0.0
        %5920 = vmatpush2.xpose.msra.mxu0 0.0
        %5921 = vmatprep.subr.mxu0 0.0
        %5922 = vmatpush2.xpose.msra.mxu0 0.0
        %5923 = vmatprep.subr.mxu0 0.0
        %5924 = vmatpush2.xpose.msra.mxu0 0.0
        %5925 = vmatprep.subr.mxu0 0.0
        %5926 = vmatpush2.xpose.msra.mxu0 0.0
        %5927 = vmatprep.subr.mxu0 0.0
        %5928 = vmatpush2.xpose.msra.mxu0 0.0
        %5929 = vmatprep.subr.mxu0 0.0
        %5930 = vmatpush2.xpose.msra.mxu0 0.0
        %5931 = vmatprep.subr.mxu0 0.0
        %5932 = vmatpush2.xpose.msra.mxu0 0.0
        %5933 = vmatprep.subr.mxu0 0.0
        %5934 = vmatpush2.xpose.msra.mxu0 0.0
        %5935 = vmatprep.subr.mxu0 0.0
        %5936 = vmatpush2.xpose.msra.mxu0 0.0
        %5937 = vmatprep.subr.mxu0 0.0
        %5938 = vmatpush2.xpose.msra.mxu0 0.0
        %5939 = vmatprep.subr.mxu0 0.0
        %5940 = vmatpush2.xpose.msra.mxu0 0.0
        %5941 = vmatprep.subr.mxu0 0.0
        %5942 = vmatpush2.xpose.msra.mxu0 0.0
        %5943 = vmatprep.mubr.f32.mxu0 0.0
        %5944 = vmatmul.mubr.f32.gmra.mxu0 %v5874
        %v5945 = vpop.f32.mrf.mxu0
        %v5946 = vadd.f32 0.0, %v5945
        %v5947 = vpop.f32.mrf.mxu0
        %5948 = vdwg.mxu0
        %v5950 = vsel %vm1708, %v5116, 0
        %v5953 = vsel %vm1708, %v5420, 0
        %5955 = vmatprep.subr.mxu0 0.0
        %5956 = vmatpush1.xpose.msra.mxu0 0.0
        %5957 = vmatprep.subr.mxu0 0.0
        %5958 = vmatpush1.xpose.msra.mxu0 0.0
        %5959 = vmatprep.subr.mxu0 0.0
        %5960 = vmatpush1.xpose.msra.mxu0 0.0
        %5961 = vmatprep.subr.mxu0 0.0
        %5962 = vmatpush1.xpose.msra.mxu0 0.0
        %5963 = vmatprep.subr.mxu0 0.0
        %5964 = vmatpush1.xpose.msra.mxu0 0.0
        %5965 = vmatprep.subr.mxu0 0.0
        %5966 = vmatpush1.xpose.msra.mxu0 0.0
        %5967 = vmatprep.subr.mxu0 0.0
        %5968 = vmatpush1.xpose.msra.mxu0 0.0
        %5969 = vmatprep.subr.mxu0 0.0
        %5970 = vmatpush1.xpose.msra.mxu0 0.0
        %5971 = vmatprep.subr.mxu0 0.0
        %5972 = vmatpush1.xpose.msra.mxu0 0.0
        %5973 = vmatprep.subr.mxu0 0.0
        %5974 = vmatpush1.xpose.msra.mxu0 0.0
        %5975 = vmatprep.subr.mxu0 0.0
        %5976 = vmatpush1.xpose.msra.mxu0 0.0
        %5977 = vmatprep.subr.mxu0 0.0
        %5978 = vmatpush1.xpose.msra.mxu0 0.0
        %5979 = vmatprep.subr.mxu0 0.0
        %5980 = vmatpush1.xpose.msra.mxu0 0.0
        %5981 = vmatprep.subr.mxu0 0.0
        %5982 = vmatpush1.xpose.msra.mxu0 0.0
        %5983 = vmatprep.subr.mxu0 0.0
        %5984 = vmatpush1.xpose.msra.mxu0 0.0
        %5985 = vmatprep.subr.mxu0 0.0
        %5986 = vmatpush1.xpose.msra.mxu0 %v5953
        %5987 = vmatprep.subr.mxu0 0.0
        %5988 = vmatpush2.xpose.msra.mxu0 0.0
        %5989 = vmatprep.subr.mxu0 0.0
        %5990 = vmatpush2.xpose.msra.mxu0 0.0
        %5991 = vmatprep.subr.mxu0 0.0
        %5992 = vmatpush2.xpose.msra.mxu0 0.0
        %5993 = vmatprep.subr.mxu0 0.0
        %5994 = vmatpush2.xpose.msra.mxu0 0.0
        %5995 = vmatprep.subr.mxu0 0.0
        %5996 = vmatpush2.xpose.msra.mxu0 0.0
        %5997 = vmatprep.subr.mxu0 0.0
        %5998 = vmatpush2.xpose.msra.mxu0 0.0
        %5999 = vmatprep.subr.mxu0 0.0
        %6000 = vmatpush2.xpose.msra.mxu0 0.0
        %6001 = vmatprep.subr.mxu0 0.0
        %6002 = vmatpush2.xpose.msra.mxu0 0.0
        %6003 = vmatprep.subr.mxu0 0.0
        %6004 = vmatpush2.xpose.msra.mxu0 0.0
        %6005 = vmatprep.subr.mxu0 0.0
        %6006 = vmatpush2.xpose.msra.mxu0 0.0
        %6007 = vmatprep.subr.mxu0 0.0
        %6008 = vmatpush2.xpose.msra.mxu0 0.0
        %6009 = vmatprep.subr.mxu0 0.0
        %6010 = vmatpush2.xpose.msra.mxu0 0.0
        %6011 = vmatprep.subr.mxu0 0.0
        %6012 = vmatpush2.xpose.msra.mxu0 0.0
        %6013 = vmatprep.subr.mxu0 0.0
        %6014 = vmatpush2.xpose.msra.mxu0 0.0
        %6015 = vmatprep.subr.mxu0 0.0
        %6016 = vmatpush2.xpose.msra.mxu0 0.0
        %6017 = vmatprep.subr.mxu0 0.0
        %6018 = vmatpush2.xpose.msra.mxu0 0.0
        %6019 = vmatprep.mubr.f32.mxu0 0.0
        %6020 = vmatmul.mubr.f32.gmra.mxu0 %v5950
        %v6021 = vpop.f32.mrf.mxu0
        %v6022 = vadd.f32 0.0, %v6021
        %v6023 = vpop.f32.mrf.mxu0
        %6024 = vdwg.mxu0
        %v6026 = vsel %vm1708, %v5186, 0
        %v6029 = vsel %vm1708, %v5490, 0
        %6031 = vmatprep.subr.mxu0 0.0
        %6032 = vmatpush1.xpose.msra.mxu0 0.0
        %6033 = vmatprep.subr.mxu0 0.0
        %6034 = vmatpush1.xpose.msra.mxu0 0.0
        %6035 = vmatprep.subr.mxu0 0.0
        %6036 = vmatpush1.xpose.msra.mxu0 0.0
        %6037 = vmatprep.subr.mxu0 0.0
        %6038 = vmatpush1.xpose.msra.mxu0 0.0
        %6039 = vmatprep.subr.mxu0 0.0
        %6040 = vmatpush1.xpose.msra.mxu0 0.0
        %6041 = vmatprep.subr.mxu0 0.0
        %6042 = vmatpush1.xpose.msra.mxu0 0.0
        %6043 = vmatprep.subr.mxu0 0.0
        %6044 = vmatpush1.xpose.msra.mxu0 0.0
        %6045 = vmatprep.subr.mxu0 0.0
        %6046 = vmatpush1.xpose.msra.mxu0 0.0
        %6047 = vmatprep.subr.mxu0 0.0
        %6048 = vmatpush1.xpose.msra.mxu0 0.0
        %6049 = vmatprep.subr.mxu0 0.0
        %6050 = vmatpush1.xpose.msra.mxu0 0.0
        %6051 = vmatprep.subr.mxu0 0.0
        %6052 = vmatpush1.xpose.msra.mxu0 0.0
        %6053 = vmatprep.subr.mxu0 0.0
        %6054 = vmatpush1.xpose.msra.mxu0 0.0
        %6055 = vmatprep.subr.mxu0 0.0
        %6056 = vmatpush1.xpose.msra.mxu0 0.0
        %6057 = vmatprep.subr.mxu0 0.0
        %6058 = vmatpush1.xpose.msra.mxu0 0.0
        %6059 = vmatprep.subr.mxu0 0.0
        %6060 = vmatpush1.xpose.msra.mxu0 0.0
        %6061 = vmatprep.subr.mxu0 0.0
        %6062 = vmatpush1.xpose.msra.mxu0 %v6029
        %6063 = vmatprep.subr.mxu0 0.0
        %6064 = vmatpush2.xpose.msra.mxu0 0.0
        %6065 = vmatprep.subr.mxu0 0.0
        %6066 = vmatpush2.xpose.msra.mxu0 0.0
        %6067 = vmatprep.subr.mxu0 0.0
        %6068 = vmatpush2.xpose.msra.mxu0 0.0
        %6069 = vmatprep.subr.mxu0 0.0
        %6070 = vmatpush2.xpose.msra.mxu0 0.0
        %6071 = vmatprep.subr.mxu0 0.0
        %6072 = vmatpush2.xpose.msra.mxu0 0.0
        %6073 = vmatprep.subr.mxu0 0.0
        %6074 = vmatpush2.xpose.msra.mxu0 0.0
        %6075 = vmatprep.subr.mxu0 0.0
        %6076 = vmatpush2.xpose.msra.mxu0 0.0
        %6077 = vmatprep.subr.mxu0 0.0
        %6078 = vmatpush2.xpose.msra.mxu0 0.0
        %6079 = vmatprep.subr.mxu0 0.0
        %6080 = vmatpush2.xpose.msra.mxu0 0.0
        %6081 = vmatprep.subr.mxu0 0.0
        %6082 = vmatpush2.xpose.msra.mxu0 0.0
        %6083 = vmatprep.subr.mxu0 0.0
        %6084 = vmatpush2.xpose.msra.mxu0 0.0
        %6085 = vmatprep.subr.mxu0 0.0
        %6086 = vmatpush2.xpose.msra.mxu0 0.0
        %6087 = vmatprep.subr.mxu0 0.0
        %6088 = vmatpush2.xpose.msra.mxu0 0.0
        %6089 = vmatprep.subr.mxu0 0.0
        %6090 = vmatpush2.xpose.msra.mxu0 0.0
        %6091 = vmatprep.subr.mxu0 0.0
        %6092 = vmatpush2.xpose.msra.mxu0 0.0
        %6093 = vmatprep.subr.mxu0 0.0
        %6094 = vmatpush2.xpose.msra.mxu0 0.0
        %6095 = vmatprep.mubr.f32.mxu0 0.0
        %6096 = vmatmul.mubr.f32.gmra.mxu0 %v6026
        %v6097 = vpop.f32.mrf.mxu0
        %v6098 = vadd.f32 0.0, %v6097
        %v6099 = vpop.f32.mrf.mxu0
        %6100 = vdwg.mxu0
        %v6101 = vmul.f32 %v5870, 0.35355338
        %v6102 = vmul.f32 %v5946, 0.35355338
        %v6103 = vmul.f32 %v6022, 0.35355338
        %v6104 = vmul.f32 %v6098, 0.35355338
        %v6105 = vsel %vm1708, %v6101, -inf
        %6106 = vmax.xlane.f32.xlu0 %v6105
        %v6107 = vpop.xlane.xlu0 %6106
        %v6108 = vsel %vm1708, %v6102, -inf
        %6109 = vmax.xlane.f32.xlu0 %v6108
        %v6110 = vpop.xlane.xlu0 %6109
        %v6111 = vsel %vm1708, %v6103, -inf
        %6112 = vmax.xlane.f32.xlu0 %v6111
        %v6113 = vpop.xlane.xlu0 %6112
        %v6114 = vsel %vm1708, %v6104, -inf
        %6115 = vmax.xlane.f32.xlu0 %v6114
        %v6116 = vpop.xlane.xlu0 %6115
        %v6117 = vsub.f32 %v6101, %v6107
        %v6118 = vsub.f32 %v6102, %v6110
        %v6119 = vsub.f32 %v6103, %v6113
        %v6120 = vsub.f32 %v6104, %v6116
        %v6121 = vmul.f32 %v6117, 1.442695
        %v6122 = vpow.pop %v6121
        %v6123 = vmul.f32 %v6118, 1.442695
        %v6124 = vpow.pop %v6123
        %v6125 = vmul.f32 %v6119, 1.442695
        %v6126 = vpow.pop %v6125
        %v6127 = vmul.f32 %v6120, 1.442695
        %v6128 = vpow.pop %v6127
        %v6129 = vsel %vm1708, %v6122, 0.0
        %6130 = vadd.xlane.f32.xlu0 %v6129
        %v6131 = vpop.xlane.xlu0 %6130
        %v6132 = vsel %vm1708, %v6124, 0.0
        %6133 = vadd.xlane.f32.xlu0 %v6132
        %v6134 = vpop.xlane.xlu0 %6133
        %v6135 = vsel %vm1708, %v6126, 0.0
        %6136 = vadd.xlane.f32.xlu0 %v6135
        %v6137 = vpop.xlane.xlu0 %6136
        %v6138 = vsel %vm1708, %v6128, 0.0
        %6139 = vadd.xlane.f32.xlu0 %v6138
        %v6140 = vpop.xlane.xlu0 %6139
        %v6141 = vrcp.pop %v6131
        %v6142 = vrcp.pop %v6134
        %v6143 = vrcp.pop %v6137
        %v6144 = vrcp.pop %v6140
        %v6145 = vmul.f32 %v6122, %v6141
        %v6146 = vmul.f32 %v6124, %v6142
        %v6147 = vmul.f32 %v6126, %v6143
        %v6148 = vmul.f32 %v6128, %v6144
        %v6150 = vsel %vm1708, %v6145, 0
        %6152 = vmatprep.subr.mxu0 0.0
        %6153 = vmatpush1.msra.mxu0 0.0
        %6154 = vmatprep.subr.mxu0 0.0
        %6155 = vmatpush1.msra.mxu0 0.0
        %6156 = vmatprep.subr.mxu0 0.0
        %6157 = vmatpush1.msra.mxu0 0.0
        %6158 = vmatprep.subr.mxu0 0.0
        %6159 = vmatpush1.msra.mxu0 0.0
        %6160 = vmatprep.subr.mxu0 0.0
        %6161 = vmatpush1.msra.mxu0 0.0
        %6162 = vmatprep.subr.mxu0 0.0
        %6163 = vmatpush1.msra.mxu0 0.0
        %6164 = vmatprep.subr.mxu0 0.0
        %6165 = vmatpush1.msra.mxu0 0.0
        %6166 = vmatprep.subr.mxu0 0.0
        %6167 = vmatpush1.msra.mxu0 0.0
        %6168 = vmatprep.subr.mxu0 0.0
        %6169 = vmatpush1.msra.mxu0 0.0
        %6170 = vmatprep.subr.mxu0 0.0
        %6171 = vmatpush1.msra.mxu0 0.0
        %6172 = vmatprep.subr.mxu0 0.0
        %6173 = vmatpush1.msra.mxu0 0.0
        %6174 = vmatprep.subr.mxu0 0.0
        %6175 = vmatpush1.msra.mxu0 0.0
        %6176 = vmatprep.subr.mxu0 0.0
        %6177 = vmatpush1.msra.mxu0 0.0
        %6178 = vmatprep.subr.mxu0 0.0
        %6179 = vmatpush1.msra.mxu0 0.0
        %6180 = vmatprep.subr.mxu0 0.0
        %6181 = vmatpush1.msra.mxu0 0.0
        %6182 = vmatprep.subr.mxu0 0.0
        %6183 = vmatpush1.msra.mxu0 %v5584
        %6184 = vmatprep.subr.mxu0 0.0
        %6185 = vmatpush2.msra.mxu0 0.0
        %6186 = vmatprep.subr.mxu0 0.0
        %6187 = vmatpush2.msra.mxu0 0.0
        %6188 = vmatprep.subr.mxu0 0.0
        %6189 = vmatpush2.msra.mxu0 0.0
        %6190 = vmatprep.subr.mxu0 0.0
        %6191 = vmatpush2.msra.mxu0 0.0
        %6192 = vmatprep.subr.mxu0 0.0
        %6193 = vmatpush2.msra.mxu0 0.0
        %6194 = vmatprep.subr.mxu0 0.0
        %6195 = vmatpush2.msra.mxu0 0.0
        %6196 = vmatprep.subr.mxu0 0.0
        %6197 = vmatpush2.msra.mxu0 0.0
        %6198 = vmatprep.subr.mxu0 0.0
        %6199 = vmatpush2.msra.mxu0 0.0
        %6200 = vmatprep.subr.mxu0 0.0
        %6201 = vmatpush2.msra.mxu0 0.0
        %6202 = vmatprep.subr.mxu0 0.0
        %6203 = vmatpush2.msra.mxu0 0.0
        %6204 = vmatprep.subr.mxu0 0.0
        %6205 = vmatpush2.msra.mxu0 0.0
        %6206 = vmatprep.subr.mxu0 0.0
        %6207 = vmatpush2.msra.mxu0 0.0
        %6208 = vmatprep.subr.mxu0 0.0
        %6209 = vmatpush2.msra.mxu0 0.0
        %6210 = vmatprep.subr.mxu0 0.0
        %6211 = vmatpush2.msra.mxu0 0.0
        %6212 = vmatprep.subr.mxu0 0.0
        %6213 = vmatpush2.msra.mxu0 0.0
        %6214 = vmatprep.subr.mxu0 0.0
        %6215 = vmatpush2.msra.mxu0 0.0
        %6216 = vmatprep.mubr.f32.mxu0 0.0
        %6217 = vmatmul.mubr.f32.gmra.mxu0 %v6150
        %v6218 = vpop.f32.mrf.mxu0
        %v6219 = vadd.f32 0.0, %v6218
        %v6220 = vpop.f32.mrf.mxu0
        %6221 = vdwg.mxu0
        %v6223 = vsel %vm1708, %v6146, 0
        %6225 = vmatprep.subr.mxu0 0.0
        %6226 = vmatpush1.msra.mxu0 0.0
        %6227 = vmatprep.subr.mxu0 0.0
        %6228 = vmatpush1.msra.mxu0 0.0
        %6229 = vmatprep.subr.mxu0 0.0
        %6230 = vmatpush1.msra.mxu0 0.0
        %6231 = vmatprep.subr.mxu0 0.0
        %6232 = vmatpush1.msra.mxu0 0.0
        %6233 = vmatprep.subr.mxu0 0.0
        %6234 = vmatpush1.msra.mxu0 0.0
        %6235 = vmatprep.subr.mxu0 0.0
        %6236 = vmatpush1.msra.mxu0 0.0
        %6237 = vmatprep.subr.mxu0 0.0
        %6238 = vmatpush1.msra.mxu0 0.0
        %6239 = vmatprep.subr.mxu0 0.0
        %6240 = vmatpush1.msra.mxu0 0.0
        %6241 = vmatprep.subr.mxu0 0.0
        %6242 = vmatpush1.msra.mxu0 0.0
        %6243 = vmatprep.subr.mxu0 0.0
        %6244 = vmatpush1.msra.mxu0 0.0
        %6245 = vmatprep.subr.mxu0 0.0
        %6246 = vmatpush1.msra.mxu0 0.0
        %6247 = vmatprep.subr.mxu0 0.0
        %6248 = vmatpush1.msra.mxu0 0.0
        %6249 = vmatprep.subr.mxu0 0.0
        %6250 = vmatpush1.msra.mxu0 0.0
        %6251 = vmatprep.subr.mxu0 0.0
        %6252 = vmatpush1.msra.mxu0 0.0
        %6253 = vmatprep.subr.mxu0 0.0
        %6254 = vmatpush1.msra.mxu0 0.0
        %6255 = vmatprep.subr.mxu0 0.0
        %6256 = vmatpush1.msra.mxu0 %v5654
        %6257 = vmatprep.subr.mxu0 0.0
        %6258 = vmatpush2.msra.mxu0 0.0
        %6259 = vmatprep.subr.mxu0 0.0
        %6260 = vmatpush2.msra.mxu0 0.0
        %6261 = vmatprep.subr.mxu0 0.0
        %6262 = vmatpush2.msra.mxu0 0.0
        %6263 = vmatprep.subr.mxu0 0.0
        %6264 = vmatpush2.msra.mxu0 0.0
        %6265 = vmatprep.subr.mxu0 0.0
        %6266 = vmatpush2.msra.mxu0 0.0
        %6267 = vmatprep.subr.mxu0 0.0
        %6268 = vmatpush2.msra.mxu0 0.0
        %6269 = vmatprep.subr.mxu0 0.0
        %6270 = vmatpush2.msra.mxu0 0.0
        %6271 = vmatprep.subr.mxu0 0.0
        %6272 = vmatpush2.msra.mxu0 0.0
        %6273 = vmatprep.subr.mxu0 0.0
        %6274 = vmatpush2.msra.mxu0 0.0
        %6275 = vmatprep.subr.mxu0 0.0
        %6276 = vmatpush2.msra.mxu0 0.0
        %6277 = vmatprep.subr.mxu0 0.0
        %6278 = vmatpush2.msra.mxu0 0.0
        %6279 = vmatprep.subr.mxu0 0.0
        %6280 = vmatpush2.msra.mxu0 0.0
        %6281 = vmatprep.subr.mxu0 0.0
        %6282 = vmatpush2.msra.mxu0 0.0
        %6283 = vmatprep.subr.mxu0 0.0
        %6284 = vmatpush2.msra.mxu0 0.0
        %6285 = vmatprep.subr.mxu0 0.0
        %6286 = vmatpush2.msra.mxu0 0.0
        %6287 = vmatprep.subr.mxu0 0.0
        %6288 = vmatpush2.msra.mxu0 0.0
        %6289 = vmatprep.mubr.f32.mxu0 0.0
        %6290 = vmatmul.mubr.f32.gmra.mxu0 %v6223
        %v6291 = vpop.f32.mrf.mxu0
        %v6292 = vadd.f32 0.0, %v6291
        %v6293 = vpop.f32.mrf.mxu0
        %6294 = vdwg.mxu0
        %v6296 = vsel %vm1708, %v6147, 0
        %6298 = vmatprep.subr.mxu0 0.0
        %6299 = vmatpush1.msra.mxu0 0.0
        %6300 = vmatprep.subr.mxu0 0.0
        %6301 = vmatpush1.msra.mxu0 0.0
        %6302 = vmatprep.subr.mxu0 0.0
        %6303 = vmatpush1.msra.mxu0 0.0
        %6304 = vmatprep.subr.mxu0 0.0
        %6305 = vmatpush1.msra.mxu0 0.0
        %6306 = vmatprep.subr.mxu0 0.0
        %6307 = vmatpush1.msra.mxu0 0.0
        %6308 = vmatprep.subr.mxu0 0.0
        %6309 = vmatpush1.msra.mxu0 0.0
        %6310 = vmatprep.subr.mxu0 0.0
        %6311 = vmatpush1.msra.mxu0 0.0
        %6312 = vmatprep.subr.mxu0 0.0
        %6313 = vmatpush1.msra.mxu0 0.0
        %6314 = vmatprep.subr.mxu0 0.0
        %6315 = vmatpush1.msra.mxu0 0.0
        %6316 = vmatprep.subr.mxu0 0.0
        %6317 = vmatpush1.msra.mxu0 0.0
        %6318 = vmatprep.subr.mxu0 0.0
        %6319 = vmatpush1.msra.mxu0 0.0
        %6320 = vmatprep.subr.mxu0 0.0
        %6321 = vmatpush1.msra.mxu0 0.0
        %6322 = vmatprep.subr.mxu0 0.0
        %6323 = vmatpush1.msra.mxu0 0.0
        %6324 = vmatprep.subr.mxu0 0.0
        %6325 = vmatpush1.msra.mxu0 0.0
        %6326 = vmatprep.subr.mxu0 0.0
        %6327 = vmatpush1.msra.mxu0 0.0
        %6328 = vmatprep.subr.mxu0 0.0
        %6329 = vmatpush1.msra.mxu0 %v5724
        %6330 = vmatprep.subr.mxu0 0.0
        %6331 = vmatpush2.msra.mxu0 0.0
        %6332 = vmatprep.subr.mxu0 0.0
        %6333 = vmatpush2.msra.mxu0 0.0
        %6334 = vmatprep.subr.mxu0 0.0
        %6335 = vmatpush2.msra.mxu0 0.0
        %6336 = vmatprep.subr.mxu0 0.0
        %6337 = vmatpush2.msra.mxu0 0.0
        %6338 = vmatprep.subr.mxu0 0.0
        %6339 = vmatpush2.msra.mxu0 0.0
        %6340 = vmatprep.subr.mxu0 0.0
        %6341 = vmatpush2.msra.mxu0 0.0
        %6342 = vmatprep.subr.mxu0 0.0
        %6343 = vmatpush2.msra.mxu0 0.0
        %6344 = vmatprep.subr.mxu0 0.0
        %6345 = vmatpush2.msra.mxu0 0.0
        %6346 = vmatprep.subr.mxu0 0.0
        %6347 = vmatpush2.msra.mxu0 0.0
        %6348 = vmatprep.subr.mxu0 0.0
        %6349 = vmatpush2.msra.mxu0 0.0
        %6350 = vmatprep.subr.mxu0 0.0
        %6351 = vmatpush2.msra.mxu0 0.0
        %6352 = vmatprep.subr.mxu0 0.0
        %6353 = vmatpush2.msra.mxu0 0.0
        %6354 = vmatprep.subr.mxu0 0.0
        %6355 = vmatpush2.msra.mxu0 0.0
        %6356 = vmatprep.subr.mxu0 0.0
        %6357 = vmatpush2.msra.mxu0 0.0
        %6358 = vmatprep.subr.mxu0 0.0
        %6359 = vmatpush2.msra.mxu0 0.0
        %6360 = vmatprep.subr.mxu0 0.0
        %6361 = vmatpush2.msra.mxu0 0.0
        %6362 = vmatprep.mubr.f32.mxu0 0.0
        %6363 = vmatmul.mubr.f32.gmra.mxu0 %v6296
        %v6364 = vpop.f32.mrf.mxu0
        %v6365 = vadd.f32 0.0, %v6364
        %v6366 = vpop.f32.mrf.mxu0
        %6367 = vdwg.mxu0
        %v6369 = vsel %vm1708, %v6148, 0
        %6371 = vmatprep.subr.mxu0 0.0
        %6372 = vmatpush1.msra.mxu0 0.0
        %6373 = vmatprep.subr.mxu0 0.0
        %6374 = vmatpush1.msra.mxu0 0.0
        %6375 = vmatprep.subr.mxu0 0.0
        %6376 = vmatpush1.msra.mxu0 0.0
        %6377 = vmatprep.subr.mxu0 0.0
        %6378 = vmatpush1.msra.mxu0 0.0
        %6379 = vmatprep.subr.mxu0 0.0
        %6380 = vmatpush1.msra.mxu0 0.0
        %6381 = vmatprep.subr.mxu0 0.0
        %6382 = vmatpush1.msra.mxu0 0.0
        %6383 = vmatprep.subr.mxu0 0.0
        %6384 = vmatpush1.msra.mxu0 0.0
        %6385 = vmatprep.subr.mxu0 0.0
        %6386 = vmatpush1.msra.mxu0 0.0
        %6387 = vmatprep.subr.mxu0 0.0
        %6388 = vmatpush1.msra.mxu0 0.0
        %6389 = vmatprep.subr.mxu0 0.0
        %6390 = vmatpush1.msra.mxu0 0.0
        %6391 = vmatprep.subr.mxu0 0.0
        %6392 = vmatpush1.msra.mxu0 0.0
        %6393 = vmatprep.subr.mxu0 0.0
        %6394 = vmatpush1.msra.mxu0 0.0
        %6395 = vmatprep.subr.mxu0 0.0
        %6396 = vmatpush1.msra.mxu0 0.0
        %6397 = vmatprep.subr.mxu0 0.0
        %6398 = vmatpush1.msra.mxu0 0.0
        %6399 = vmatprep.subr.mxu0 0.0
        %6400 = vmatpush1.msra.mxu0 0.0
        %6401 = vmatprep.subr.mxu0 0.0
        %6402 = vmatpush1.msra.mxu0 %v5794
        %6403 = vmatprep.subr.mxu0 0.0
        %6404 = vmatpush2.msra.mxu0 0.0
        %6405 = vmatprep.subr.mxu0 0.0
        %6406 = vmatpush2.msra.mxu0 0.0
        %6407 = vmatprep.subr.mxu0 0.0
        %6408 = vmatpush2.msra.mxu0 0.0
        %6409 = vmatprep.subr.mxu0 0.0
        %6410 = vmatpush2.msra.mxu0 0.0
        %6411 = vmatprep.subr.mxu0 0.0
        %6412 = vmatpush2.msra.mxu0 0.0
        %6413 = vmatprep.subr.mxu0 0.0
        %6414 = vmatpush2.msra.mxu0 0.0
        %6415 = vmatprep.subr.mxu0 0.0
        %6416 = vmatpush2.msra.mxu0 0.0
        %6417 = vmatprep.subr.mxu0 0.0
        %6418 = vmatpush2.msra.mxu0 0.0
        %6419 = vmatprep.subr.mxu0 0.0
        %6420 = vmatpush2.msra.mxu0 0.0
        %6421 = vmatprep.subr.mxu0 0.0
        %6422 = vmatpush2.msra.mxu0 0.0
        %6423 = vmatprep.subr.mxu0 0.0
        %6424 = vmatpush2.msra.mxu0 0.0
        %6425 = vmatprep.subr.mxu0 0.0
        %6426 = vmatpush2.msra.mxu0 0.0
        %6427 = vmatprep.subr.mxu0 0.0
        %6428 = vmatpush2.msra.mxu0 0.0
        %6429 = vmatprep.subr.mxu0 0.0
        %6430 = vmatpush2.msra.mxu0 0.0
        %6431 = vmatprep.subr.mxu0 0.0
        %6432 = vmatpush2.msra.mxu0 0.0
        %6433 = vmatprep.subr.mxu0 0.0
        %6434 = vmatpush2.msra.mxu0 0.0
        %6435 = vmatprep.mubr.f32.mxu0 0.0
        %6436 = vmatmul.mubr.f32.gmra.mxu0 %v6369
        %v6437 = vpop.f32.mrf.mxu0
        %v6438 = vadd.f32 0.0, %v6437
        %v6439 = vpop.f32.mrf.mxu0
        %6440 = vdwg.mxu0
        %v6442 = vsel %vm1708, %v6219, 0
        %6444 = vmatprep.subr.mxu0 0.0
        %6445 = vmatpush1.msra.mxu0 0.0
        %6446 = vmatprep.subr.mxu0 0.0
        %6447 = vmatpush1.msra.mxu0 0.0
        %6448 = vmatprep.subr.mxu0 0.0
        %6449 = vmatpush1.msra.mxu0 0.0
        %6450 = vmatprep.subr.mxu0 0.0
        %6451 = vmatpush1.msra.mxu0 0.0
        %6452 = vmatprep.subr.mxu0 0.0
        %6453 = vmatpush1.msra.mxu0 0.0
        %6454 = vmatprep.subr.mxu0 0.0
        %6455 = vmatpush1.msra.mxu0 0.0
        %6456 = vmatprep.subr.mxu0 0.0
        %6457 = vmatpush1.msra.mxu0 0.0
        %6458 = vmatprep.subr.mxu0 0.0
        %6459 = vmatpush1.msra.mxu0 0.0
        %6460 = vmatprep.subr.mxu0 0.0
        %6461 = vmatpush1.msra.mxu0 0.0
        %6462 = vmatprep.subr.mxu0 0.0
        %6463 = vmatpush1.msra.mxu0 0.0
        %6464 = vmatprep.subr.mxu0 0.0
        %6465 = vmatpush1.msra.mxu0 0.0
        %6466 = vmatprep.subr.mxu0 0.0
        %6467 = vmatpush1.msra.mxu0 0.0
        %6468 = vmatprep.subr.mxu0 0.0
        %6469 = vmatpush1.msra.mxu0 0.0
        %6470 = vmatprep.subr.mxu0 0.0
        %6471 = vmatpush1.msra.mxu0 0.0
        %6472 = vmatprep.subr.mxu0 0.0
        %6473 = vmatpush1.msra.mxu0 0.0
        %6474 = vmatprep.subr.mxu0 0.0
        %6475 = vmatpush1.msra.mxu0 %v4876
        %6476 = vmatprep.subr.mxu0 0.0
        %6477 = vmatpush2.msra.mxu0 0.0
        %6478 = vmatprep.subr.mxu0 0.0
        %6479 = vmatpush2.msra.mxu0 0.0
        %6480 = vmatprep.subr.mxu0 0.0
        %6481 = vmatpush2.msra.mxu0 0.0
        %6482 = vmatprep.subr.mxu0 0.0
        %6483 = vmatpush2.msra.mxu0 0.0
        %6484 = vmatprep.subr.mxu0 0.0
        %6485 = vmatpush2.msra.mxu0 0.0
        %6486 = vmatprep.subr.mxu0 0.0
        %6487 = vmatpush2.msra.mxu0 0.0
        %6488 = vmatprep.subr.mxu0 0.0
        %6489 = vmatpush2.msra.mxu0 0.0
        %6490 = vmatprep.subr.mxu0 0.0
        %6491 = vmatpush2.msra.mxu0 0.0
        %6492 = vmatprep.subr.mxu0 0.0
        %6493 = vmatpush2.msra.mxu0 0.0
        %6494 = vmatprep.subr.mxu0 0.0
        %6495 = vmatpush2.msra.mxu0 0.0
        %6496 = vmatprep.subr.mxu0 0.0
        %6497 = vmatpush2.msra.mxu0 0.0
        %6498 = vmatprep.subr.mxu0 0.0
        %6499 = vmatpush2.msra.mxu0 0.0
        %6500 = vmatprep.subr.mxu0 0.0
        %6501 = vmatpush2.msra.mxu0 0.0
        %6502 = vmatprep.subr.mxu0 0.0
        %6503 = vmatpush2.msra.mxu0 0.0
        %6504 = vmatprep.subr.mxu0 0.0
        %6505 = vmatpush2.msra.mxu0 0.0
        %6506 = vmatprep.subr.mxu0 0.0
        %6507 = vmatpush2.msra.mxu0 0.0
        %6508 = vmatprep.mubr.f32.mxu0 0.0
        %6509 = vmatmul.mubr.f32.gmra.mxu0 %v6442
        %v6510 = vpop.f32.mrf.mxu0
        %v6511 = vadd.f32 0.0, %v6510
        %v6512 = vpop.f32.mrf.mxu0
        %6513 = vdwg.mxu0
        %v6515 = vsel %vm1708, %v6292, 0
        %6517 = vmatprep.subr.mxu0 0.0
        %6518 = vmatpush1.msra.mxu0 0.0
        %6519 = vmatprep.subr.mxu0 0.0
        %6520 = vmatpush1.msra.mxu0 0.0
        %6521 = vmatprep.subr.mxu0 0.0
        %6522 = vmatpush1.msra.mxu0 0.0
        %6523 = vmatprep.subr.mxu0 0.0
        %6524 = vmatpush1.msra.mxu0 0.0
        %6525 = vmatprep.subr.mxu0 0.0
        %6526 = vmatpush1.msra.mxu0 0.0
        %6527 = vmatprep.subr.mxu0 0.0
        %6528 = vmatpush1.msra.mxu0 0.0
        %6529 = vmatprep.subr.mxu0 0.0
        %6530 = vmatpush1.msra.mxu0 0.0
        %6531 = vmatprep.subr.mxu0 0.0
        %6532 = vmatpush1.msra.mxu0 0.0
        %6533 = vmatprep.subr.mxu0 0.0
        %6534 = vmatpush1.msra.mxu0 0.0
        %6535 = vmatprep.subr.mxu0 0.0
        %6536 = vmatpush1.msra.mxu0 0.0
        %6537 = vmatprep.subr.mxu0 0.0
        %6538 = vmatpush1.msra.mxu0 0.0
        %6539 = vmatprep.subr.mxu0 0.0
        %6540 = vmatpush1.msra.mxu0 0.0
        %6541 = vmatprep.subr.mxu0 0.0
        %6542 = vmatpush1.msra.mxu0 0.0
        %6543 = vmatprep.subr.mxu0 0.0
        %6544 = vmatpush1.msra.mxu0 0.0
        %6545 = vmatprep.subr.mxu0 0.0
        %6546 = vmatpush1.msra.mxu0 0.0
        %6547 = vmatprep.subr.mxu0 0.0
        %6548 = vmatpush1.msra.mxu0 %v4877
        %6549 = vmatprep.subr.mxu0 0.0
        %6550 = vmatpush2.msra.mxu0 0.0
        %6551 = vmatprep.subr.mxu0 0.0
        %6552 = vmatpush2.msra.mxu0 0.0
        %6553 = vmatprep.subr.mxu0 0.0
        %6554 = vmatpush2.msra.mxu0 0.0
        %6555 = vmatprep.subr.mxu0 0.0
        %6556 = vmatpush2.msra.mxu0 0.0
        %6557 = vmatprep.subr.mxu0 0.0
        %6558 = vmatpush2.msra.mxu0 0.0
        %6559 = vmatprep.subr.mxu0 0.0
        %6560 = vmatpush2.msra.mxu0 0.0
        %6561 = vmatprep.subr.mxu0 0.0
        %6562 = vmatpush2.msra.mxu0 0.0
        %6563 = vmatprep.subr.mxu0 0.0
        %6564 = vmatpush2.msra.mxu0 0.0
        %6565 = vmatprep.subr.mxu0 0.0
        %6566 = vmatpush2.msra.mxu0 0.0
        %6567 = vmatprep.subr.mxu0 0.0
        %6568 = vmatpush2.msra.mxu0 0.0
        %6569 = vmatprep.subr.mxu0 0.0
        %6570 = vmatpush2.msra.mxu0 0.0
        %6571 = vmatprep.subr.mxu0 0.0
        %6572 = vmatpush2.msra.mxu0 0.0
        %6573 = vmatprep.subr.mxu0 0.0
        %6574 = vmatpush2.msra.mxu0 0.0
        %6575 = vmatprep.subr.mxu0 0.0
        %6576 = vmatpush2.msra.mxu0 0.0
        %6577 = vmatprep.subr.mxu0 0.0
        %6578 = vmatpush2.msra.mxu0 0.0
        %6579 = vmatprep.subr.mxu0 0.0
        %6580 = vmatpush2.msra.mxu0 0.0
        %6581 = vmatprep.mubr.f32.mxu0 0.0
        %6582 = vmatmul.mubr.f32.gmra.mxu0 %v6515
        %v6583 = vpop.f32.mrf.mxu0
        %v6584 = vadd.f32 0.0, %v6583
        %v6585 = vpop.f32.mrf.mxu0
        %6586 = vdwg.mxu0
        %v6588 = vsel %vm1708, %v6365, 0
        %6590 = vmatprep.subr.mxu0 0.0
        %6591 = vmatpush1.msra.mxu0 0.0
        %6592 = vmatprep.subr.mxu0 0.0
        %6593 = vmatpush1.msra.mxu0 0.0
        %6594 = vmatprep.subr.mxu0 0.0
        %6595 = vmatpush1.msra.mxu0 0.0
        %6596 = vmatprep.subr.mxu0 0.0
        %6597 = vmatpush1.msra.mxu0 0.0
        %6598 = vmatprep.subr.mxu0 0.0
        %6599 = vmatpush1.msra.mxu0 0.0
        %6600 = vmatprep.subr.mxu0 0.0
        %6601 = vmatpush1.msra.mxu0 0.0
        %6602 = vmatprep.subr.mxu0 0.0
        %6603 = vmatpush1.msra.mxu0 0.0
        %6604 = vmatprep.subr.mxu0 0.0
        %6605 = vmatpush1.msra.mxu0 0.0
        %6606 = vmatprep.subr.mxu0 0.0
        %6607 = vmatpush1.msra.mxu0 0.0
        %6608 = vmatprep.subr.mxu0 0.0
        %6609 = vmatpush1.msra.mxu0 0.0
        %6610 = vmatprep.subr.mxu0 0.0
        %6611 = vmatpush1.msra.mxu0 0.0
        %6612 = vmatprep.subr.mxu0 0.0
        %6613 = vmatpush1.msra.mxu0 0.0
        %6614 = vmatprep.subr.mxu0 0.0
        %6615 = vmatpush1.msra.mxu0 0.0
        %6616 = vmatprep.subr.mxu0 0.0
        %6617 = vmatpush1.msra.mxu0 0.0
        %6618 = vmatprep.subr.mxu0 0.0
        %6619 = vmatpush1.msra.mxu0 0.0
        %6620 = vmatprep.subr.mxu0 0.0
        %6621 = vmatpush1.msra.mxu0 %v4878
        %6622 = vmatprep.subr.mxu0 0.0
        %6623 = vmatpush2.msra.mxu0 0.0
        %6624 = vmatprep.subr.mxu0 0.0
        %6625 = vmatpush2.msra.mxu0 0.0
        %6626 = vmatprep.subr.mxu0 0.0
        %6627 = vmatpush2.msra.mxu0 0.0
        %6628 = vmatprep.subr.mxu0 0.0
        %6629 = vmatpush2.msra.mxu0 0.0
        %6630 = vmatprep.subr.mxu0 0.0
        %6631 = vmatpush2.msra.mxu0 0.0
        %6632 = vmatprep.subr.mxu0 0.0
        %6633 = vmatpush2.msra.mxu0 0.0
        %6634 = vmatprep.subr.mxu0 0.0
        %6635 = vmatpush2.msra.mxu0 0.0
        %6636 = vmatprep.subr.mxu0 0.0
        %6637 = vmatpush2.msra.mxu0 0.0
        %6638 = vmatprep.subr.mxu0 0.0
        %6639 = vmatpush2.msra.mxu0 0.0
        %6640 = vmatprep.subr.mxu0 0.0
        %6641 = vmatpush2.msra.mxu0 0.0
        %6642 = vmatprep.subr.mxu0 0.0
        %6643 = vmatpush2.msra.mxu0 0.0
        %6644 = vmatprep.subr.mxu0 0.0
        %6645 = vmatpush2.msra.mxu0 0.0
        %6646 = vmatprep.subr.mxu0 0.0
        %6647 = vmatpush2.msra.mxu0 0.0
        %6648 = vmatprep.subr.mxu0 0.0
        %6649 = vmatpush2.msra.mxu0 0.0
        %6650 = vmatprep.subr.mxu0 0.0
        %6651 = vmatpush2.msra.mxu0 0.0
        %6652 = vmatprep.subr.mxu0 0.0
        %6653 = vmatpush2.msra.mxu0 0.0
        %6654 = vmatprep.mubr.f32.mxu0 0.0
        %6655 = vmatmul.mubr.f32.gmra.mxu0 %v6588
        %v6656 = vpop.f32.mrf.mxu0
        %v6657 = vadd.f32 0.0, %v6656
        %v6658 = vpop.f32.mrf.mxu0
        %6659 = vdwg.mxu0
        %v6661 = vsel %vm1708, %v6438, 0
        %6663 = vmatprep.subr.mxu0 0.0
        %6664 = vmatpush1.msra.mxu0 0.0
        %6665 = vmatprep.subr.mxu0 0.0
        %6666 = vmatpush1.msra.mxu0 0.0
        %6667 = vmatprep.subr.mxu0 0.0
        %6668 = vmatpush1.msra.mxu0 0.0
        %6669 = vmatprep.subr.mxu0 0.0
        %6670 = vmatpush1.msra.mxu0 0.0
        %6671 = vmatprep.subr.mxu0 0.0
        %6672 = vmatpush1.msra.mxu0 0.0
        %6673 = vmatprep.subr.mxu0 0.0
        %6674 = vmatpush1.msra.mxu0 0.0
        %6675 = vmatprep.subr.mxu0 0.0
        %6676 = vmatpush1.msra.mxu0 0.0
        %6677 = vmatprep.subr.mxu0 0.0
        %6678 = vmatpush1.msra.mxu0 0.0
        %6679 = vmatprep.subr.mxu0 0.0
        %6680 = vmatpush1.msra.mxu0 0.0
        %6681 = vmatprep.subr.mxu0 0.0
        %6682 = vmatpush1.msra.mxu0 0.0
        %6683 = vmatprep.subr.mxu0 0.0
        %6684 = vmatpush1.msra.mxu0 0.0
        %6685 = vmatprep.subr.mxu0 0.0
        %6686 = vmatpush1.msra.mxu0 0.0
        %6687 = vmatprep.subr.mxu0 0.0
        %6688 = vmatpush1.msra.mxu0 0.0
        %6689 = vmatprep.subr.mxu0 0.0
        %6690 = vmatpush1.msra.mxu0 0.0
        %6691 = vmatprep.subr.mxu0 0.0
        %6692 = vmatpush1.msra.mxu0 0.0
        %6693 = vmatprep.subr.mxu0 0.0
        %6694 = vmatpush1.msra.mxu0 %v4879
        %6695 = vmatprep.subr.mxu0 0.0
        %6696 = vmatpush2.msra.mxu0 0.0
        %6697 = vmatprep.subr.mxu0 0.0
        %6698 = vmatpush2.msra.mxu0 0.0
        %6699 = vmatprep.subr.mxu0 0.0
        %6700 = vmatpush2.msra.mxu0 0.0
        %6701 = vmatprep.subr.mxu0 0.0
        %6702 = vmatpush2.msra.mxu0 0.0
        %6703 = vmatprep.subr.mxu0 0.0
        %6704 = vmatpush2.msra.mxu0 0.0
        %6705 = vmatprep.subr.mxu0 0.0
        %6706 = vmatpush2.msra.mxu0 0.0
        %6707 = vmatprep.subr.mxu0 0.0
        %6708 = vmatpush2.msra.mxu0 0.0
        %6709 = vmatprep.subr.mxu0 0.0
        %6710 = vmatpush2.msra.mxu0 0.0
        %6711 = vmatprep.subr.mxu0 0.0
        %6712 = vmatpush2.msra.mxu0 0.0
        %6713 = vmatprep.subr.mxu0 0.0
        %6714 = vmatpush2.msra.mxu0 0.0
        %6715 = vmatprep.subr.mxu0 0.0
        %6716 = vmatpush2.msra.mxu0 0.0
        %6717 = vmatprep.subr.mxu0 0.0
        %6718 = vmatpush2.msra.mxu0 0.0
        %6719 = vmatprep.subr.mxu0 0.0
        %6720 = vmatpush2.msra.mxu0 0.0
        %6721 = vmatprep.subr.mxu0 0.0
        %6722 = vmatpush2.msra.mxu0 0.0
        %6723 = vmatprep.subr.mxu0 0.0
        %6724 = vmatpush2.msra.mxu0 0.0
        %6725 = vmatprep.subr.mxu0 0.0
        %6726 = vmatpush2.msra.mxu0 0.0
        %6727 = vmatprep.mubr.f32.mxu0 0.0
        %6728 = vmatmul.mubr.f32.gmra.mxu0 %v6661
        %v6729 = vpop.f32.mrf.mxu0
        %v6730 = vadd.f32 0.0, %v6729
        %v6731 = vpop.f32.mrf.mxu0
        %6732 = vdwg.mxu0
        %v6733 = vsel %vm816, %v6511, 0.0
        %v6734 = vsel %vm816, %v6584, 0.0
        %v6735 = vadd.f32 %v6733, %v6734
        %v6736 = vsel %vm816, %v6657, 0.0
        %v6737 = vadd.f32 %v6735, %v6736
        %v6738 = vsel %vm816, %v6730, 0.0
        %v6739 = vadd.f32 %v6737, %v6738
        %v6741 = vlaneseq
        %v6742 = vshrl.u32 %v6741, 7
        %v6743 = vsub.s32 0, %v6742
        %v6744 = vrot.slane %v4881, %v6743
        %v6746 = vadd.f32 %v6739, %v6744
        %v6747 = vadd.f32 %v4808, %v6746
        %v6748 = vsel %vm816, %v6747, 0.0
        %6749 = vadd.xlane.f32.xlu0 %v6748
        %v6750 = vpop.xlane.xlu0 %6749
        %v6751 = vmul.f32 %v6750, %v2663
        %v6752 = vsub.f32 %v6747, %v6751
        %v6753 = vmul.f32 %v6752, %v6752
        %v6754 = vsel %vm816, %v6753, 0.0
        %6755 = vadd.xlane.f32.xlu0 %v6754
        %v6756 = vpop.xlane.xlu0 %6755
        %v6757 = vmul.f32 %v6756, %v2663
        %v6758 = vadd.f32 %v6757, 1e-05
        %v6759 = vrsqrt.pop %v6758
        %v6760 = vmul.f32 %v6752, %v6759
        %s6761 = scalar_lea.vmem %s11, 128
        %v6762 = vld [vmem:[%s6761] sm:$0xff]
        %v6763 = vld [vmem:[%s6761 + $0x8] sm:$0xff]
        %v6764 = vld [vmem:[%s6761 + $0x10] sm:$0xff]
        %v6765 = vld [vmem:[%s6761 + $0x18] sm:$0xff]
        %v6766 = vld [vmem:[%s6761 + $0x20] sm:$0xff]
        %v6767 = vld [vmem:[%s6761 + $0x28] sm:$0xff]
        %v6768 = vld [vmem:[%s6761 + $0x30] sm:$0xff]
        %v6769 = vld [vmem:[%s6761 + $0x38] sm:$0xff]
        %v6770 = vld [vmem:[%s6761 + $0x40] sm:$0xff]
        %v6771 = vld [vmem:[%s6761 + $0x48] sm:$0xff]
        %v6772 = vld [vmem:[%s6761 + $0x50] sm:$0xff]
        %v6773 = vld [vmem:[%s6761 + $0x58] sm:$0xff]
        %v6774 = vld [vmem:[%s6761 + $0x60] sm:$0xff]
        %v6775 = vld [vmem:[%s6761 + $0x68] sm:$0xff]
        %v6776 = vld [vmem:[%s6761 + $0x70] sm:$0xff]
        %v6777 = vld [vmem:[%s6761 + $0x78] sm:$0xff]
        %s6778 = scalar_lea.vmem %s12, 4
        %v6779 = vld [vmem:[%s6778] sm:$0x1]
        %v6780 = vld [vmem:[%s6778 + $0x1] sm:$0x1]
        %v6781 = vld [vmem:[%s6778 + $0x2] sm:$0x1]
        %v6782 = vld [vmem:[%s6778 + $0x3] sm:$0x1]
        %s6783 = scalar_lea.vmem %s13, 128
        %v6784 = vld [vmem:[%s6783] sm:$0xff]
        %v6785 = vld [vmem:[%s6783 + $0x8] sm:$0xff]
        %v6786 = vld [vmem:[%s6783 + $0x10] sm:$0xff]
        %v6787 = vld [vmem:[%s6783 + $0x18] sm:$0xff]
        %v6788 = vld [vmem:[%s6783 + $0x20] sm:$0xff]
        %v6789 = vld [vmem:[%s6783 + $0x28] sm:$0xff]
        %v6790 = vld [vmem:[%s6783 + $0x30] sm:$0xff]
        %v6791 = vld [vmem:[%s6783 + $0x38] sm:$0xff]
        %v6792 = vld [vmem:[%s6783 + $0x40] sm:$0xff]
        %v6793 = vld [vmem:[%s6783 + $0x48] sm:$0xff]
        %v6794 = vld [vmem:[%s6783 + $0x50] sm:$0xff]
        %v6795 = vld [vmem:[%s6783 + $0x58] sm:$0xff]
        %v6796 = vld [vmem:[%s6783 + $0x60] sm:$0xff]
        %v6797 = vld [vmem:[%s6783 + $0x68] sm:$0xff]
        %v6798 = vld [vmem:[%s6783 + $0x70] sm:$0xff]
        %v6799 = vld [vmem:[%s6783 + $0x78] sm:$0xff]
        %s6800 = scalar_lea.vmem %s14, 4
        %v6801 = vld [vmem:[%s6800] sm:$0x1]
        %v6802 = vld [vmem:[%s6800 + $0x1] sm:$0x1]
        %v6803 = vld [vmem:[%s6800 + $0x2] sm:$0x1]
        %v6804 = vld [vmem:[%s6800 + $0x3] sm:$0x1]
        %s6805 = scalar_lea.vmem %s15, 128
        %v6806 = vld [vmem:[%s6805] sm:$0xff]
        %v6807 = vld [vmem:[%s6805 + $0x8] sm:$0xff]
        %v6808 = vld [vmem:[%s6805 + $0x10] sm:$0xff]
        %v6809 = vld [vmem:[%s6805 + $0x18] sm:$0xff]
        %v6810 = vld [vmem:[%s6805 + $0x20] sm:$0xff]
        %v6811 = vld [vmem:[%s6805 + $0x28] sm:$0xff]
        %v6812 = vld [vmem:[%s6805 + $0x30] sm:$0xff]
        %v6813 = vld [vmem:[%s6805 + $0x38] sm:$0xff]
        %v6814 = vld [vmem:[%s6805 + $0x40] sm:$0xff]
        %v6815 = vld [vmem:[%s6805 + $0x48] sm:$0xff]
        %v6816 = vld [vmem:[%s6805 + $0x50] sm:$0xff]
        %v6817 = vld [vmem:[%s6805 + $0x58] sm:$0xff]
        %v6818 = vld [vmem:[%s6805 + $0x60] sm:$0xff]
        %v6819 = vld [vmem:[%s6805 + $0x68] sm:$0xff]
        %v6820 = vld [vmem:[%s6805 + $0x70] sm:$0xff]
        %v6821 = vld [vmem:[%s6805 + $0x78] sm:$0xff]
        %s6822 = scalar_lea.vmem %s16, 4
        %v6823 = vld [vmem:[%s6822] sm:$0x1]
        %v6824 = vld [vmem:[%s6822 + $0x1] sm:$0x1]
        %v6825 = vld [vmem:[%s6822 + $0x2] sm:$0x1]
        %v6826 = vld [vmem:[%s6822 + $0x3] sm:$0x1]
        %s6827 = scalar_lea.vmem %s17, 32
        %v6828 = vld [vmem:[%s6827] sm:$0xff]
        %v6829 = vld [vmem:[%s6827 + $0x8] sm:$0xff]
        %v6830 = vld [vmem:[%s6827 + $0x10] sm:$0xff]
        %v6831 = vld [vmem:[%s6827 + $0x18] sm:$0xff]
        %s6832 = scalar_lea.vmem %s18, 1
        %v6833 = vld [vmem:[%s6832] sm:$0x1]
        %v6838 = vlaneseq
        %v6839 = vshrl.u32 %v6838, 7
        %v6840 = vsub.s32 0, %v6839
        %v6841 = vrot.slane %v6779, %v6840
        %v6842 = vlaneseq
        %v6843 = vshrl.u32 %v6842, 7
        %v6844 = vsub.s32 0, %v6843
        %v6845 = vrot.slane %v6780, %v6844
        %v6846 = vlaneseq
        %v6847 = vshrl.u32 %v6846, 7
        %v6848 = vsub.s32 0, %v6847
        %v6849 = vrot.slane %v6781, %v6848
        %v6850 = vlaneseq
        %v6851 = vshrl.u32 %v6850, 7
        %v6852 = vsub.s32 0, %v6851
        %v6853 = vrot.slane %v6782, %v6852
        %v6859 = vsel %vm816, %v6760, 0
        %6861 = vmatprep.subr.mxu0 0.0
        %6862 = vmatpush1.msra.mxu0 0.0
        %6863 = vmatprep.subr.mxu0 0.0
        %6864 = vmatpush1.msra.mxu0 0.0
        %6865 = vmatprep.subr.mxu0 0.0
        %6866 = vmatpush1.msra.mxu0 0.0
        %6867 = vmatprep.subr.mxu0 0.0
        %6868 = vmatpush1.msra.mxu0 0.0
        %6869 = vmatprep.subr.mxu0 0.0
        %6870 = vmatpush1.msra.mxu0 0.0
        %6871 = vmatprep.subr.mxu0 0.0
        %6872 = vmatpush1.msra.mxu0 0.0
        %6873 = vmatprep.subr.mxu0 0.0
        %6874 = vmatpush1.msra.mxu0 0.0
        %6875 = vmatprep.subr.mxu0 0.0
        %6876 = vmatpush1.msra.mxu0 0.0
        %6877 = vmatprep.subr.mxu0 0.0
        %6878 = vmatpush1.msra.mxu0 0.0
        %6879 = vmatprep.subr.mxu0 0.0
        %6880 = vmatpush1.msra.mxu0 0.0
        %6881 = vmatprep.subr.mxu0 0.0
        %6882 = vmatpush1.msra.mxu0 0.0
        %6883 = vmatprep.subr.mxu0 0.0
        %6884 = vmatpush1.msra.mxu0 0.0
        %6885 = vmatprep.subr.mxu0 0.0
        %6886 = vmatpush1.msra.mxu0 %v6765
        %6887 = vmatprep.subr.mxu0 0.0
        %6888 = vmatpush1.msra.mxu0 %v6764
        %6889 = vmatprep.subr.mxu0 0.0
        %6890 = vmatpush1.msra.mxu0 %v6763
        %6891 = vmatprep.subr.mxu0 0.0
        %6892 = vmatpush1.msra.mxu0 %v6762
        %6893 = vmatprep.subr.mxu0 0.0
        %6894 = vmatpush2.msra.mxu0 0.0
        %6895 = vmatprep.subr.mxu0 0.0
        %6896 = vmatpush2.msra.mxu0 0.0
        %6897 = vmatprep.subr.mxu0 0.0
        %6898 = vmatpush2.msra.mxu0 0.0
        %6899 = vmatprep.subr.mxu0 0.0
        %6900 = vmatpush2.msra.mxu0 0.0
        %6901 = vmatprep.subr.mxu0 0.0
        %6902 = vmatpush2.msra.mxu0 0.0
        %6903 = vmatprep.subr.mxu0 0.0
        %6904 = vmatpush2.msra.mxu0 0.0
        %6905 = vmatprep.subr.mxu0 0.0
        %6906 = vmatpush2.msra.mxu0 0.0
        %6907 = vmatprep.subr.mxu0 0.0
        %6908 = vmatpush2.msra.mxu0 0.0
        %6909 = vmatprep.subr.mxu0 0.0
        %6910 = vmatpush2.msra.mxu0 0.0
        %6911 = vmatprep.subr.mxu0 0.0
        %6912 = vmatpush2.msra.mxu0 0.0
        %6913 = vmatprep.subr.mxu0 0.0
        %6914 = vmatpush2.msra.mxu0 0.0
        %6915 = vmatprep.subr.mxu0 0.0
        %6916 = vmatpush2.msra.mxu0 0.0
        %6917 = vmatprep.subr.mxu0 0.0
        %6918 = vmatpush2.msra.mxu0 0.0
        %6919 = vmatprep.subr.mxu0 0.0
        %6920 = vmatpush2.msra.mxu0 0.0
        %6921 = vmatprep.subr.mxu0 0.0
        %6922 = vmatpush2.msra.mxu0 0.0
        %6923 = vmatprep.subr.mxu0 0.0
        %6924 = vmatpush2.msra.mxu0 0.0
        %6925 = vmatprep.mubr.f32.mxu0 0.0
        %6926 = vmatmul.mubr.f32.gmra.mxu0 %v6859
        %v6927 = vpop.f32.mrf.mxu0
        %v6928 = vadd.f32 %v6841, %v6927
        %v6929 = vpop.f32.mrf.mxu0
        %6930 = vdwg.mxu0
        %6931 = vmatprep.subr.mxu0 0.0
        %6932 = vmatpush1.msra.mxu0 0.0
        %6933 = vmatprep.subr.mxu0 0.0
        %6934 = vmatpush1.msra.mxu0 0.0
        %6935 = vmatprep.subr.mxu0 0.0
        %6936 = vmatpush1.msra.mxu0 0.0
        %6937 = vmatprep.subr.mxu0 0.0
        %6938 = vmatpush1.msra.mxu0 0.0
        %6939 = vmatprep.subr.mxu0 0.0
        %6940 = vmatpush1.msra.mxu0 0.0
        %6941 = vmatprep.subr.mxu0 0.0
        %6942 = vmatpush1.msra.mxu0 0.0
        %6943 = vmatprep.subr.mxu0 0.0
        %6944 = vmatpush1.msra.mxu0 0.0
        %6945 = vmatprep.subr.mxu0 0.0
        %6946 = vmatpush1.msra.mxu0 0.0
        %6947 = vmatprep.subr.mxu0 0.0
        %6948 = vmatpush1.msra.mxu0 0.0
        %6949 = vmatprep.subr.mxu0 0.0
        %6950 = vmatpush1.msra.mxu0 0.0
        %6951 = vmatprep.subr.mxu0 0.0
        %6952 = vmatpush1.msra.mxu0 0.0
        %6953 = vmatprep.subr.mxu0 0.0
        %6954 = vmatpush1.msra.mxu0 0.0
        %6955 = vmatprep.subr.mxu0 0.0
        %6956 = vmatpush1.msra.mxu0 %v6769
        %6957 = vmatprep.subr.mxu0 0.0
        %6958 = vmatpush1.msra.mxu0 %v6768
        %6959 = vmatprep.subr.mxu0 0.0
        %6960 = vmatpush1.msra.mxu0 %v6767
        %6961 = vmatprep.subr.mxu0 0.0
        %6962 = vmatpush1.msra.mxu0 %v6766
        %6963 = vmatprep.subr.mxu0 0.0
        %6964 = vmatpush2.msra.mxu0 0.0
        %6965 = vmatprep.subr.mxu0 0.0
        %6966 = vmatpush2.msra.mxu0 0.0
        %6967 = vmatprep.subr.mxu0 0.0
        %6968 = vmatpush2.msra.mxu0 0.0
        %6969 = vmatprep.subr.mxu0 0.0
        %6970 = vmatpush2.msra.mxu0 0.0
        %6971 = vmatprep.subr.mxu0 0.0
        %6972 = vmatpush2.msra.mxu0 0.0
        %6973 = vmatprep.subr.mxu0 0.0
        %6974 = vmatpush2.msra.mxu0 0.0
        %6975 = vmatprep.subr.mxu0 0.0
        %6976 = vmatpush2.msra.mxu0 0.0
        %6977 = vmatprep.subr.mxu0 0.0
        %6978 = vmatpush2.msra.mxu0 0.0
        %6979 = vmatprep.subr.mxu0 0.0
        %6980 = vmatpush2.msra.mxu0 0.0
        %6981 = vmatprep.subr.mxu0 0.0
        %6982 = vmatpush2.msra.mxu0 0.0
        %6983 = vmatprep.subr.mxu0 0.0
        %6984 = vmatpush2.msra.mxu0 0.0
        %6985 = vmatprep.subr.mxu0 0.0
        %6986 = vmatpush2.msra.mxu0 0.0
        %6987 = vmatprep.subr.mxu0 0.0
        %6988 = vmatpush2.msra.mxu0 0.0
        %6989 = vmatprep.subr.mxu0 0.0
        %6990 = vmatpush2.msra.mxu0 0.0
        %6991 = vmatprep.subr.mxu0 0.0
        %6992 = vmatpush2.msra.mxu0 0.0
        %6993 = vmatprep.subr.mxu0 0.0
        %6994 = vmatpush2.msra.mxu0 0.0
        %6995 = vmatprep.mubr.f32.mxu0 0.0
        %6996 = vmatmul.mubr.f32.gmra.mxu0 %v6859
        %v6997 = vpop.f32.mrf.mxu0
        %v6998 = vadd.f32 %v6845, %v6997
        %v6999 = vpop.f32.mrf.mxu0
        %7000 = vdwg.mxu0
        %7001 = vmatprep.subr.mxu0 0.0
        %7002 = vmatpush1.msra.mxu0 0.0
        %7003 = vmatprep.subr.mxu0 0.0
        %7004 = vmatpush1.msra.mxu0 0.0
        %7005 = vmatprep.subr.mxu0 0.0
        %7006 = vmatpush1.msra.mxu0 0.0
        %7007 = vmatprep.subr.mxu0 0.0
        %7008 = vmatpush1.msra.mxu0 0.0
        %7009 = vmatprep.subr.mxu0 0.0
        %7010 = vmatpush1.msra.mxu0 0.0
        %7011 = vmatprep.subr.mxu0 0.0
        %7012 = vmatpush1.msra.mxu0 0.0
        %7013 = vmatprep.subr.mxu0 0.0
        %7014 = vmatpush1.msra.mxu0 0.0
        %7015 = vmatprep.subr.mxu0 0.0
        %7016 = vmatpush1.msra.mxu0 0.0
        %7017 = vmatprep.subr.mxu0 0.0
        %7018 = vmatpush1.msra.mxu0 0.0
        %7019 = vmatprep.subr.mxu0 0.0
        %7020 = vmatpush1.msra.mxu0 0.0
        %7021 = vmatprep.subr.mxu0 0.0
        %7022 = vmatpush1.msra.mxu0 0.0
        %7023 = vmatprep.subr.mxu0 0.0
        %7024 = vmatpush1.msra.mxu0 0.0
        %7025 = vmatprep.subr.mxu0 0.0
        %7026 = vmatpush1.msra.mxu0 %v6773
        %7027 = vmatprep.subr.mxu0 0.0
        %7028 = vmatpush1.msra.mxu0 %v6772
        %7029 = vmatprep.subr.mxu0 0.0
        %7030 = vmatpush1.msra.mxu0 %v6771
        %7031 = vmatprep.subr.mxu0 0.0
        %7032 = vmatpush1.msra.mxu0 %v6770
        %7033 = vmatprep.subr.mxu0 0.0
        %7034 = vmatpush2.msra.mxu0 0.0
        %7035 = vmatprep.subr.mxu0 0.0
        %7036 = vmatpush2.msra.mxu0 0.0
        %7037 = vmatprep.subr.mxu0 0.0
        %7038 = vmatpush2.msra.mxu0 0.0
        %7039 = vmatprep.subr.mxu0 0.0
        %7040 = vmatpush2.msra.mxu0 0.0
        %7041 = vmatprep.subr.mxu0 0.0
        %7042 = vmatpush2.msra.mxu0 0.0
        %7043 = vmatprep.subr.mxu0 0.0
        %7044 = vmatpush2.msra.mxu0 0.0
        %7045 = vmatprep.subr.mxu0 0.0
        %7046 = vmatpush2.msra.mxu0 0.0
        %7047 = vmatprep.subr.mxu0 0.0
        %7048 = vmatpush2.msra.mxu0 0.0
        %7049 = vmatprep.subr.mxu0 0.0
        %7050 = vmatpush2.msra.mxu0 0.0
        %7051 = vmatprep.subr.mxu0 0.0
        %7052 = vmatpush2.msra.mxu0 0.0
        %7053 = vmatprep.subr.mxu0 0.0
        %7054 = vmatpush2.msra.mxu0 0.0
        %7055 = vmatprep.subr.mxu0 0.0
        %7056 = vmatpush2.msra.mxu0 0.0
        %7057 = vmatprep.subr.mxu0 0.0
        %7058 = vmatpush2.msra.mxu0 0.0
        %7059 = vmatprep.subr.mxu0 0.0
        %7060 = vmatpush2.msra.mxu0 0.0
        %7061 = vmatprep.subr.mxu0 0.0
        %7062 = vmatpush2.msra.mxu0 0.0
        %7063 = vmatprep.subr.mxu0 0.0
        %7064 = vmatpush2.msra.mxu0 0.0
        %7065 = vmatprep.mubr.f32.mxu0 0.0
        %7066 = vmatmul.mubr.f32.gmra.mxu0 %v6859
        %v7067 = vpop.f32.mrf.mxu0
        %v7068 = vadd.f32 %v6849, %v7067
        %v7069 = vpop.f32.mrf.mxu0
        %7070 = vdwg.mxu0
        %7071 = vmatprep.subr.mxu0 0.0
        %7072 = vmatpush1.msra.mxu0 0.0
        %7073 = vmatprep.subr.mxu0 0.0
        %7074 = vmatpush1.msra.mxu0 0.0
        %7075 = vmatprep.subr.mxu0 0.0
        %7076 = vmatpush1.msra.mxu0 0.0
        %7077 = vmatprep.subr.mxu0 0.0
        %7078 = vmatpush1.msra.mxu0 0.0
        %7079 = vmatprep.subr.mxu0 0.0
        %7080 = vmatpush1.msra.mxu0 0.0
        %7081 = vmatprep.subr.mxu0 0.0
        %7082 = vmatpush1.msra.mxu0 0.0
        %7083 = vmatprep.subr.mxu0 0.0
        %7084 = vmatpush1.msra.mxu0 0.0
        %7085 = vmatprep.subr.mxu0 0.0
        %7086 = vmatpush1.msra.mxu0 0.0
        %7087 = vmatprep.subr.mxu0 0.0
        %7088 = vmatpush1.msra.mxu0 0.0
        %7089 = vmatprep.subr.mxu0 0.0
        %7090 = vmatpush1.msra.mxu0 0.0
        %7091 = vmatprep.subr.mxu0 0.0
        %7092 = vmatpush1.msra.mxu0 0.0
        %7093 = vmatprep.subr.mxu0 0.0
        %7094 = vmatpush1.msra.mxu0 0.0
        %7095 = vmatprep.subr.mxu0 0.0
        %7096 = vmatpush1.msra.mxu0 %v6777
        %7097 = vmatprep.subr.mxu0 0.0
        %7098 = vmatpush1.msra.mxu0 %v6776
        %7099 = vmatprep.subr.mxu0 0.0
        %7100 = vmatpush1.msra.mxu0 %v6775
        %7101 = vmatprep.subr.mxu0 0.0
        %7102 = vmatpush1.msra.mxu0 %v6774
        %7103 = vmatprep.subr.mxu0 0.0
        %7104 = vmatpush2.msra.mxu0 0.0
        %7105 = vmatprep.subr.mxu0 0.0
        %7106 = vmatpush2.msra.mxu0 0.0
        %7107 = vmatprep.subr.mxu0 0.0
        %7108 = vmatpush2.msra.mxu0 0.0
        %7109 = vmatprep.subr.mxu0 0.0
        %7110 = vmatpush2.msra.mxu0 0.0
        %7111 = vmatprep.subr.mxu0 0.0
        %7112 = vmatpush2.msra.mxu0 0.0
        %7113 = vmatprep.subr.mxu0 0.0
        %7114 = vmatpush2.msra.mxu0 0.0
        %7115 = vmatprep.subr.mxu0 0.0
        %7116 = vmatpush2.msra.mxu0 0.0
        %7117 = vmatprep.subr.mxu0 0.0
        %7118 = vmatpush2.msra.mxu0 0.0
        %7119 = vmatprep.subr.mxu0 0.0
        %7120 = vmatpush2.msra.mxu0 0.0
        %7121 = vmatprep.subr.mxu0 0.0
        %7122 = vmatpush2.msra.mxu0 0.0
        %7123 = vmatprep.subr.mxu0 0.0
        %7124 = vmatpush2.msra.mxu0 0.0
        %7125 = vmatprep.subr.mxu0 0.0
        %7126 = vmatpush2.msra.mxu0 0.0
        %7127 = vmatprep.subr.mxu0 0.0
        %7128 = vmatpush2.msra.mxu0 0.0
        %7129 = vmatprep.subr.mxu0 0.0
        %7130 = vmatpush2.msra.mxu0 0.0
        %7131 = vmatprep.subr.mxu0 0.0
        %7132 = vmatpush2.msra.mxu0 0.0
        %7133 = vmatprep.subr.mxu0 0.0
        %7134 = vmatpush2.msra.mxu0 0.0
        %7135 = vmatprep.mubr.f32.mxu0 0.0
        %7136 = vmatmul.mubr.f32.gmra.mxu0 %v6859
        %v7137 = vpop.f32.mrf.mxu0
        %v7138 = vadd.f32 %v6853, %v7137
        %v7139 = vpop.f32.mrf.mxu0
        %7140 = vdwg.mxu0
        %v7145 = vlaneseq
        %v7146 = vshrl.u32 %v7145, 7
        %v7147 = vsub.s32 0, %v7146
        %v7148 = vrot.slane %v6801, %v7147
        %v7149 = vlaneseq
        %v7150 = vshrl.u32 %v7149, 7
        %v7151 = vsub.s32 0, %v7150
        %v7152 = vrot.slane %v6802, %v7151
        %v7153 = vlaneseq
        %v7154 = vshrl.u32 %v7153, 7
        %v7155 = vsub.s32 0, %v7154
        %v7156 = vrot.slane %v6803, %v7155
        %v7157 = vlaneseq
        %v7158 = vshrl.u32 %v7157, 7
        %v7159 = vsub.s32 0, %v7158
        %v7160 = vrot.slane %v6804, %v7159
        %7165 = vmatprep.subr.mxu0 0.0
        %7166 = vmatpush1.msra.mxu0 0.0
        %7167 = vmatprep.subr.mxu0 0.0
        %7168 = vmatpush1.msra.mxu0 0.0
        %7169 = vmatprep.subr.mxu0 0.0
        %7170 = vmatpush1.msra.mxu0 0.0
        %7171 = vmatprep.subr.mxu0 0.0
        %7172 = vmatpush1.msra.mxu0 0.0
        %7173 = vmatprep.subr.mxu0 0.0
        %7174 = vmatpush1.msra.mxu0 0.0
        %7175 = vmatprep.subr.mxu0 0.0
        %7176 = vmatpush1.msra.mxu0 0.0
        %7177 = vmatprep.subr.mxu0 0.0
        %7178 = vmatpush1.msra.mxu0 0.0
        %7179 = vmatprep.subr.mxu0 0.0
        %7180 = vmatpush1.msra.mxu0 0.0
        %7181 = vmatprep.subr.mxu0 0.0
        %7182 = vmatpush1.msra.mxu0 0.0
        %7183 = vmatprep.subr.mxu0 0.0
        %7184 = vmatpush1.msra.mxu0 0.0
        %7185 = vmatprep.subr.mxu0 0.0
        %7186 = vmatpush1.msra.mxu0 0.0
        %7187 = vmatprep.subr.mxu0 0.0
        %7188 = vmatpush1.msra.mxu0 0.0
        %7189 = vmatprep.subr.mxu0 0.0
        %7190 = vmatpush1.msra.mxu0 %v6787
        %7191 = vmatprep.subr.mxu0 0.0
        %7192 = vmatpush1.msra.mxu0 %v6786
        %7193 = vmatprep.subr.mxu0 0.0
        %7194 = vmatpush1.msra.mxu0 %v6785
        %7195 = vmatprep.subr.mxu0 0.0
        %7196 = vmatpush1.msra.mxu0 %v6784
        %7197 = vmatprep.subr.mxu0 0.0
        %7198 = vmatpush2.msra.mxu0 0.0
        %7199 = vmatprep.subr.mxu0 0.0
        %7200 = vmatpush2.msra.mxu0 0.0
        %7201 = vmatprep.subr.mxu0 0.0
        %7202 = vmatpush2.msra.mxu0 0.0
        %7203 = vmatprep.subr.mxu0 0.0
        %7204 = vmatpush2.msra.mxu0 0.0
        %7205 = vmatprep.subr.mxu0 0.0
        %7206 = vmatpush2.msra.mxu0 0.0
        %7207 = vmatprep.subr.mxu0 0.0
        %7208 = vmatpush2.msra.mxu0 0.0
        %7209 = vmatprep.subr.mxu0 0.0
        %7210 = vmatpush2.msra.mxu0 0.0
        %7211 = vmatprep.subr.mxu0 0.0
        %7212 = vmatpush2.msra.mxu0 0.0
        %7213 = vmatprep.subr.mxu0 0.0
        %7214 = vmatpush2.msra.mxu0 0.0
        %7215 = vmatprep.subr.mxu0 0.0
        %7216 = vmatpush2.msra.mxu0 0.0
        %7217 = vmatprep.subr.mxu0 0.0
        %7218 = vmatpush2.msra.mxu0 0.0
        %7219 = vmatprep.subr.mxu0 0.0
        %7220 = vmatpush2.msra.mxu0 0.0
        %7221 = vmatprep.subr.mxu0 0.0
        %7222 = vmatpush2.msra.mxu0 0.0
        %7223 = vmatprep.subr.mxu0 0.0
        %7224 = vmatpush2.msra.mxu0 0.0
        %7225 = vmatprep.subr.mxu0 0.0
        %7226 = vmatpush2.msra.mxu0 0.0
        %7227 = vmatprep.subr.mxu0 0.0
        %7228 = vmatpush2.msra.mxu0 0.0
        %7229 = vmatprep.mubr.f32.mxu0 0.0
        %7230 = vmatmul.mubr.f32.gmra.mxu0 %v3071
        %v7231 = vpop.f32.mrf.mxu0
        %v7232 = vadd.f32 %v7148, %v7231
        %v7233 = vpop.f32.mrf.mxu0
        %7234 = vdwg.mxu0
        %7235 = vmatprep.subr.mxu0 0.0
        %7236 = vmatpush1.msra.mxu0 0.0
        %7237 = vmatprep.subr.mxu0 0.0
        %7238 = vmatpush1.msra.mxu0 0.0
        %7239 = vmatprep.subr.mxu0 0.0
        %7240 = vmatpush1.msra.mxu0 0.0
        %7241 = vmatprep.subr.mxu0 0.0
        %7242 = vmatpush1.msra.mxu0 0.0
        %7243 = vmatprep.subr.mxu0 0.0
        %7244 = vmatpush1.msra.mxu0 0.0
        %7245 = vmatprep.subr.mxu0 0.0
        %7246 = vmatpush1.msra.mxu0 0.0
        %7247 = vmatprep.subr.mxu0 0.0
        %7248 = vmatpush1.msra.mxu0 0.0
        %7249 = vmatprep.subr.mxu0 0.0
        %7250 = vmatpush1.msra.mxu0 0.0
        %7251 = vmatprep.subr.mxu0 0.0
        %7252 = vmatpush1.msra.mxu0 0.0
        %7253 = vmatprep.subr.mxu0 0.0
        %7254 = vmatpush1.msra.mxu0 0.0
        %7255 = vmatprep.subr.mxu0 0.0
        %7256 = vmatpush1.msra.mxu0 0.0
        %7257 = vmatprep.subr.mxu0 0.0
        %7258 = vmatpush1.msra.mxu0 0.0
        %7259 = vmatprep.subr.mxu0 0.0
        %7260 = vmatpush1.msra.mxu0 %v6791
        %7261 = vmatprep.subr.mxu0 0.0
        %7262 = vmatpush1.msra.mxu0 %v6790
        %7263 = vmatprep.subr.mxu0 0.0
        %7264 = vmatpush1.msra.mxu0 %v6789
        %7265 = vmatprep.subr.mxu0 0.0
        %7266 = vmatpush1.msra.mxu0 %v6788
        %7267 = vmatprep.subr.mxu0 0.0
        %7268 = vmatpush2.msra.mxu0 0.0
        %7269 = vmatprep.subr.mxu0 0.0
        %7270 = vmatpush2.msra.mxu0 0.0
        %7271 = vmatprep.subr.mxu0 0.0
        %7272 = vmatpush2.msra.mxu0 0.0
        %7273 = vmatprep.subr.mxu0 0.0
        %7274 = vmatpush2.msra.mxu0 0.0
        %7275 = vmatprep.subr.mxu0 0.0
        %7276 = vmatpush2.msra.mxu0 0.0
        %7277 = vmatprep.subr.mxu0 0.0
        %7278 = vmatpush2.msra.mxu0 0.0
        %7279 = vmatprep.subr.mxu0 0.0
        %7280 = vmatpush2.msra.mxu0 0.0
        %7281 = vmatprep.subr.mxu0 0.0
        %7282 = vmatpush2.msra.mxu0 0.0
        %7283 = vmatprep.subr.mxu0 0.0
        %7284 = vmatpush2.msra.mxu0 0.0
        %7285 = vmatprep.subr.mxu0 0.0
        %7286 = vmatpush2.msra.mxu0 0.0
        %7287 = vmatprep.subr.mxu0 0.0
        %7288 = vmatpush2.msra.mxu0 0.0
        %7289 = vmatprep.subr.mxu0 0.0
        %7290 = vmatpush2.msra.mxu0 0.0
        %7291 = vmatprep.subr.mxu0 0.0
        %7292 = vmatpush2.msra.mxu0 0.0
        %7293 = vmatprep.subr.mxu0 0.0
        %7294 = vmatpush2.msra.mxu0 0.0
        %7295 = vmatprep.subr.mxu0 0.0
        %7296 = vmatpush2.msra.mxu0 0.0
        %7297 = vmatprep.subr.mxu0 0.0
        %7298 = vmatpush2.msra.mxu0 0.0
        %7299 = vmatprep.mubr.f32.mxu0 0.0
        %7300 = vmatmul.mubr.f32.gmra.mxu0 %v3071
        %v7301 = vpop.f32.mrf.mxu0
        %v7302 = vadd.f32 %v7152, %v7301
        %v7303 = vpop.f32.mrf.mxu0
        %7304 = vdwg.mxu0
        %7305 = vmatprep.subr.mxu0 0.0
        %7306 = vmatpush1.msra.mxu0 0.0
        %7307 = vmatprep.subr.mxu0 0.0
        %7308 = vmatpush1.msra.mxu0 0.0
        %7309 = vmatprep.subr.mxu0 0.0
        %7310 = vmatpush1.msra.mxu0 0.0
        %7311 = vmatprep.subr.mxu0 0.0
        %7312 = vmatpush1.msra.mxu0 0.0
        %7313 = vmatprep.subr.mxu0 0.0
        %7314 = vmatpush1.msra.mxu0 0.0
        %7315 = vmatprep.subr.mxu0 0.0
        %7316 = vmatpush1.msra.mxu0 0.0
        %7317 = vmatprep.subr.mxu0 0.0
        %7318 = vmatpush1.msra.mxu0 0.0
        %7319 = vmatprep.subr.mxu0 0.0
        %7320 = vmatpush1.msra.mxu0 0.0
        %7321 = vmatprep.subr.mxu0 0.0
        %7322 = vmatpush1.msra.mxu0 0.0
        %7323 = vmatprep.subr.mxu0 0.0
        %7324 = vmatpush1.msra.mxu0 0.0
        %7325 = vmatprep.subr.mxu0 0.0
        %7326 = vmatpush1.msra.mxu0 0.0
        %7327 = vmatprep.subr.mxu0 0.0
        %7328 = vmatpush1.msra.mxu0 0.0
        %7329 = vmatprep.subr.mxu0 0.0
        %7330 = vmatpush1.msra.mxu0 %v6795
        %7331 = vmatprep.subr.mxu0 0.0
        %7332 = vmatpush1.msra.mxu0 %v6794
        %7333 = vmatprep.subr.mxu0 0.0
        %7334 = vmatpush1.msra.mxu0 %v6793
        %7335 = vmatprep.subr.mxu0 0.0
        %7336 = vmatpush1.msra.mxu0 %v6792
        %7337 = vmatprep.subr.mxu0 0.0
        %7338 = vmatpush2.msra.mxu0 0.0
        %7339 = vmatprep.subr.mxu0 0.0
        %7340 = vmatpush2.msra.mxu0 0.0
        %7341 = vmatprep.subr.mxu0 0.0
        %7342 = vmatpush2.msra.mxu0 0.0
        %7343 = vmatprep.subr.mxu0 0.0
        %7344 = vmatpush2.msra.mxu0 0.0
        %7345 = vmatprep.subr.mxu0 0.0
        %7346 = vmatpush2.msra.mxu0 0.0
        %7347 = vmatprep.subr.mxu0 0.0
        %7348 = vmatpush2.msra.mxu0 0.0
        %7349 = vmatprep.subr.mxu0 0.0
        %7350 = vmatpush2.msra.mxu0 0.0
        %7351 = vmatprep.subr.mxu0 0.0
        %7352 = vmatpush2.msra.mxu0 0.0
        %7353 = vmatprep.subr.mxu0 0.0
        %7354 = vmatpush2.msra.mxu0 0.0
        %7355 = vmatprep.subr.mxu0 0.0
        %7356 = vmatpush2.msra.mxu0 0.0
        %7357 = vmatprep.subr.mxu0 0.0
        %7358 = vmatpush2.msra.mxu0 0.0
        %7359 = vmatprep.subr.mxu0 0.0
        %7360 = vmatpush2.msra.mxu0 0.0
        %7361 = vmatprep.subr.mxu0 0.0
        %7362 = vmatpush2.msra.mxu0 0.0
        %7363 = vmatprep.subr.mxu0 0.0
        %7364 = vmatpush2.msra.mxu0 0.0
        %7365 = vmatprep.subr.mxu0 0.0
        %7366 = vmatpush2.msra.mxu0 0.0
        %7367 = vmatprep.subr.mxu0 0.0
        %7368 = vmatpush2.msra.mxu0 0.0
        %7369 = vmatprep.mubr.f32.mxu0 0.0
        %7370 = vmatmul.mubr.f32.gmra.mxu0 %v3071
        %v7371 = vpop.f32.mrf.mxu0
        %v7372 = vadd.f32 %v7156, %v7371
        %v7373 = vpop.f32.mrf.mxu0
        %7374 = vdwg.mxu0
        %7375 = vmatprep.subr.mxu0 0.0
        %7376 = vmatpush1.msra.mxu0 0.0
        %7377 = vmatprep.subr.mxu0 0.0
        %7378 = vmatpush1.msra.mxu0 0.0
        %7379 = vmatprep.subr.mxu0 0.0
        %7380 = vmatpush1.msra.mxu0 0.0
        %7381 = vmatprep.subr.mxu0 0.0
        %7382 = vmatpush1.msra.mxu0 0.0
        %7383 = vmatprep.subr.mxu0 0.0
        %7384 = vmatpush1.msra.mxu0 0.0
        %7385 = vmatprep.subr.mxu0 0.0
        %7386 = vmatpush1.msra.mxu0 0.0
        %7387 = vmatprep.subr.mxu0 0.0
        %7388 = vmatpush1.msra.mxu0 0.0
        %7389 = vmatprep.subr.mxu0 0.0
        %7390 = vmatpush1.msra.mxu0 0.0
        %7391 = vmatprep.subr.mxu0 0.0
        %7392 = vmatpush1.msra.mxu0 0.0
        %7393 = vmatprep.subr.mxu0 0.0
        %7394 = vmatpush1.msra.mxu0 0.0
        %7395 = vmatprep.subr.mxu0 0.0
        %7396 = vmatpush1.msra.mxu0 0.0
        %7397 = vmatprep.subr.mxu0 0.0
        %7398 = vmatpush1.msra.mxu0 0.0
        %7399 = vmatprep.subr.mxu0 0.0
        %7400 = vmatpush1.msra.mxu0 %v6799
        %7401 = vmatprep.subr.mxu0 0.0
        %7402 = vmatpush1.msra.mxu0 %v6798
        %7403 = vmatprep.subr.mxu0 0.0
        %7404 = vmatpush1.msra.mxu0 %v6797
        %7405 = vmatprep.subr.mxu0 0.0
        %7406 = vmatpush1.msra.mxu0 %v6796
        %7407 = vmatprep.subr.mxu0 0.0
        %7408 = vmatpush2.msra.mxu0 0.0
        %7409 = vmatprep.subr.mxu0 0.0
        %7410 = vmatpush2.msra.mxu0 0.0
        %7411 = vmatprep.subr.mxu0 0.0
        %7412 = vmatpush2.msra.mxu0 0.0
        %7413 = vmatprep.subr.mxu0 0.0
        %7414 = vmatpush2.msra.mxu0 0.0
        %7415 = vmatprep.subr.mxu0 0.0
        %7416 = vmatpush2.msra.mxu0 0.0
        %7417 = vmatprep.subr.mxu0 0.0
        %7418 = vmatpush2.msra.mxu0 0.0
        %7419 = vmatprep.subr.mxu0 0.0
        %7420 = vmatpush2.msra.mxu0 0.0
        %7421 = vmatprep.subr.mxu0 0.0
        %7422 = vmatpush2.msra.mxu0 0.0
        %7423 = vmatprep.subr.mxu0 0.0
        %7424 = vmatpush2.msra.mxu0 0.0
        %7425 = vmatprep.subr.mxu0 0.0
        %7426 = vmatpush2.msra.mxu0 0.0
        %7427 = vmatprep.subr.mxu0 0.0
        %7428 = vmatpush2.msra.mxu0 0.0
        %7429 = vmatprep.subr.mxu0 0.0
        %7430 = vmatpush2.msra.mxu0 0.0
        %7431 = vmatprep.subr.mxu0 0.0
        %7432 = vmatpush2.msra.mxu0 0.0
        %7433 = vmatprep.subr.mxu0 0.0
        %7434 = vmatpush2.msra.mxu0 0.0
        %7435 = vmatprep.subr.mxu0 0.0
        %7436 = vmatpush2.msra.mxu0 0.0
        %7437 = vmatprep.subr.mxu0 0.0
        %7438 = vmatpush2.msra.mxu0 0.0
        %7439 = vmatprep.mubr.f32.mxu0 0.0
        %7440 = vmatmul.mubr.f32.gmra.mxu0 %v3071
        %v7441 = vpop.f32.mrf.mxu0
        %v7442 = vadd.f32 %v7160, %v7441
        %v7443 = vpop.f32.mrf.mxu0
        %7444 = vdwg.mxu0
        %v7449 = vlaneseq
        %v7450 = vshrl.u32 %v7449, 7
        %v7451 = vsub.s32 0, %v7450
        %v7452 = vrot.slane %v6823, %v7451
        %v7453 = vlaneseq
        %v7454 = vshrl.u32 %v7453, 7
        %v7455 = vsub.s32 0, %v7454
        %v7456 = vrot.slane %v6824, %v7455
        %v7457 = vlaneseq
        %v7458 = vshrl.u32 %v7457, 7
        %v7459 = vsub.s32 0, %v7458
        %v7460 = vrot.slane %v6825, %v7459
        %v7461 = vlaneseq
        %v7462 = vshrl.u32 %v7461, 7
        %v7463 = vsub.s32 0, %v7462
        %v7464 = vrot.slane %v6826, %v7463
        %7469 = vmatprep.subr.mxu0 0.0
        %7470 = vmatpush1.msra.mxu0 0.0
        %7471 = vmatprep.subr.mxu0 0.0
        %7472 = vmatpush1.msra.mxu0 0.0
        %7473 = vmatprep.subr.mxu0 0.0
        %7474 = vmatpush1.msra.mxu0 0.0
        %7475 = vmatprep.subr.mxu0 0.0
        %7476 = vmatpush1.msra.mxu0 0.0
        %7477 = vmatprep.subr.mxu0 0.0
        %7478 = vmatpush1.msra.mxu0 0.0
        %7479 = vmatprep.subr.mxu0 0.0
        %7480 = vmatpush1.msra.mxu0 0.0
        %7481 = vmatprep.subr.mxu0 0.0
        %7482 = vmatpush1.msra.mxu0 0.0
        %7483 = vmatprep.subr.mxu0 0.0
        %7484 = vmatpush1.msra.mxu0 0.0
        %7485 = vmatprep.subr.mxu0 0.0
        %7486 = vmatpush1.msra.mxu0 0.0
        %7487 = vmatprep.subr.mxu0 0.0
        %7488 = vmatpush1.msra.mxu0 0.0
        %7489 = vmatprep.subr.mxu0 0.0
        %7490 = vmatpush1.msra.mxu0 0.0
        %7491 = vmatprep.subr.mxu0 0.0
        %7492 = vmatpush1.msra.mxu0 0.0
        %7493 = vmatprep.subr.mxu0 0.0
        %7494 = vmatpush1.msra.mxu0 %v6809
        %7495 = vmatprep.subr.mxu0 0.0
        %7496 = vmatpush1.msra.mxu0 %v6808
        %7497 = vmatprep.subr.mxu0 0.0
        %7498 = vmatpush1.msra.mxu0 %v6807
        %7499 = vmatprep.subr.mxu0 0.0
        %7500 = vmatpush1.msra.mxu0 %v6806
        %7501 = vmatprep.subr.mxu0 0.0
        %7502 = vmatpush2.msra.mxu0 0.0
        %7503 = vmatprep.subr.mxu0 0.0
        %7504 = vmatpush2.msra.mxu0 0.0
        %7505 = vmatprep.subr.mxu0 0.0
        %7506 = vmatpush2.msra.mxu0 0.0
        %7507 = vmatprep.subr.mxu0 0.0
        %7508 = vmatpush2.msra.mxu0 0.0
        %7509 = vmatprep.subr.mxu0 0.0
        %7510 = vmatpush2.msra.mxu0 0.0
        %7511 = vmatprep.subr.mxu0 0.0
        %7512 = vmatpush2.msra.mxu0 0.0
        %7513 = vmatprep.subr.mxu0 0.0
        %7514 = vmatpush2.msra.mxu0 0.0
        %7515 = vmatprep.subr.mxu0 0.0
        %7516 = vmatpush2.msra.mxu0 0.0
        %7517 = vmatprep.subr.mxu0 0.0
        %7518 = vmatpush2.msra.mxu0 0.0
        %7519 = vmatprep.subr.mxu0 0.0
        %7520 = vmatpush2.msra.mxu0 0.0
        %7521 = vmatprep.subr.mxu0 0.0
        %7522 = vmatpush2.msra.mxu0 0.0
        %7523 = vmatprep.subr.mxu0 0.0
        %7524 = vmatpush2.msra.mxu0 0.0
        %7525 = vmatprep.subr.mxu0 0.0
        %7526 = vmatpush2.msra.mxu0 0.0
        %7527 = vmatprep.subr.mxu0 0.0
        %7528 = vmatpush2.msra.mxu0 0.0
        %7529 = vmatprep.subr.mxu0 0.0
        %7530 = vmatpush2.msra.mxu0 0.0
        %7531 = vmatprep.subr.mxu0 0.0
        %7532 = vmatpush2.msra.mxu0 0.0
        %7533 = vmatprep.mubr.f32.mxu0 0.0
        %7534 = vmatmul.mubr.f32.gmra.mxu0 %v3071
        %v7535 = vpop.f32.mrf.mxu0
        %v7536 = vadd.f32 %v7452, %v7535
        %v7537 = vpop.f32.mrf.mxu0
        %7538 = vdwg.mxu0
        %7539 = vmatprep.subr.mxu0 0.0
        %7540 = vmatpush1.msra.mxu0 0.0
        %7541 = vmatprep.subr.mxu0 0.0
        %7542 = vmatpush1.msra.mxu0 0.0
        %7543 = vmatprep.subr.mxu0 0.0
        %7544 = vmatpush1.msra.mxu0 0.0
        %7545 = vmatprep.subr.mxu0 0.0
        %7546 = vmatpush1.msra.mxu0 0.0
        %7547 = vmatprep.subr.mxu0 0.0
        %7548 = vmatpush1.msra.mxu0 0.0
        %7549 = vmatprep.subr.mxu0 0.0
        %7550 = vmatpush1.msra.mxu0 0.0
        %7551 = vmatprep.subr.mxu0 0.0
        %7552 = vmatpush1.msra.mxu0 0.0
        %7553 = vmatprep.subr.mxu0 0.0
        %7554 = vmatpush1.msra.mxu0 0.0
        %7555 = vmatprep.subr.mxu0 0.0
        %7556 = vmatpush1.msra.mxu0 0.0
        %7557 = vmatprep.subr.mxu0 0.0
        %7558 = vmatpush1.msra.mxu0 0.0
        %7559 = vmatprep.subr.mxu0 0.0
        %7560 = vmatpush1.msra.mxu0 0.0
        %7561 = vmatprep.subr.mxu0 0.0
        %7562 = vmatpush1.msra.mxu0 0.0
        %7563 = vmatprep.subr.mxu0 0.0
        %7564 = vmatpush1.msra.mxu0 %v6813
        %7565 = vmatprep.subr.mxu0 0.0
        %7566 = vmatpush1.msra.mxu0 %v6812
        %7567 = vmatprep.subr.mxu0 0.0
        %7568 = vmatpush1.msra.mxu0 %v6811
        %7569 = vmatprep.subr.mxu0 0.0
        %7570 = vmatpush1.msra.mxu0 %v6810
        %7571 = vmatprep.subr.mxu0 0.0
        %7572 = vmatpush2.msra.mxu0 0.0
        %7573 = vmatprep.subr.mxu0 0.0
        %7574 = vmatpush2.msra.mxu0 0.0
        %7575 = vmatprep.subr.mxu0 0.0
        %7576 = vmatpush2.msra.mxu0 0.0
        %7577 = vmatprep.subr.mxu0 0.0
        %7578 = vmatpush2.msra.mxu0 0.0
        %7579 = vmatprep.subr.mxu0 0.0
        %7580 = vmatpush2.msra.mxu0 0.0
        %7581 = vmatprep.subr.mxu0 0.0
        %7582 = vmatpush2.msra.mxu0 0.0
        %7583 = vmatprep.subr.mxu0 0.0
        %7584 = vmatpush2.msra.mxu0 0.0
        %7585 = vmatprep.subr.mxu0 0.0
        %7586 = vmatpush2.msra.mxu0 0.0
        %7587 = vmatprep.subr.mxu0 0.0
        %7588 = vmatpush2.msra.mxu0 0.0
        %7589 = vmatprep.subr.mxu0 0.0
        %7590 = vmatpush2.msra.mxu0 0.0
        %7591 = vmatprep.subr.mxu0 0.0
        %7592 = vmatpush2.msra.mxu0 0.0
        %7593 = vmatprep.subr.mxu0 0.0
        %7594 = vmatpush2.msra.mxu0 0.0
        %7595 = vmatprep.subr.mxu0 0.0
        %7596 = vmatpush2.msra.mxu0 0.0
        %7597 = vmatprep.subr.mxu0 0.0
        %7598 = vmatpush2.msra.mxu0 0.0
        %7599 = vmatprep.subr.mxu0 0.0
        %7600 = vmatpush2.msra.mxu0 0.0
        %7601 = vmatprep.subr.mxu0 0.0
        %7602 = vmatpush2.msra.mxu0 0.0
        %7603 = vmatprep.mubr.f32.mxu0 0.0
        %7604 = vmatmul.mubr.f32.gmra.mxu0 %v3071
        %v7605 = vpop.f32.mrf.mxu0
        %v7606 = vadd.f32 %v7456, %v7605
        %v7607 = vpop.f32.mrf.mxu0
        %7608 = vdwg.mxu0
        %7609 = vmatprep.subr.mxu0 0.0
        %7610 = vmatpush1.msra.mxu0 0.0
        %7611 = vmatprep.subr.mxu0 0.0
        %7612 = vmatpush1.msra.mxu0 0.0
        %7613 = vmatprep.subr.mxu0 0.0
        %7614 = vmatpush1.msra.mxu0 0.0
        %7615 = vmatprep.subr.mxu0 0.0
        %7616 = vmatpush1.msra.mxu0 0.0
        %7617 = vmatprep.subr.mxu0 0.0
        %7618 = vmatpush1.msra.mxu0 0.0
        %7619 = vmatprep.subr.mxu0 0.0
        %7620 = vmatpush1.msra.mxu0 0.0
        %7621 = vmatprep.subr.mxu0 0.0
        %7622 = vmatpush1.msra.mxu0 0.0
        %7623 = vmatprep.subr.mxu0 0.0
        %7624 = vmatpush1.msra.mxu0 0.0
        %7625 = vmatprep.subr.mxu0 0.0
        %7626 = vmatpush1.msra.mxu0 0.0
        %7627 = vmatprep.subr.mxu0 0.0
        %7628 = vmatpush1.msra.mxu0 0.0
        %7629 = vmatprep.subr.mxu0 0.0
        %7630 = vmatpush1.msra.mxu0 0.0
        %7631 = vmatprep.subr.mxu0 0.0
        %7632 = vmatpush1.msra.mxu0 0.0
        %7633 = vmatprep.subr.mxu0 0.0
        %7634 = vmatpush1.msra.mxu0 %v6817
        %7635 = vmatprep.subr.mxu0 0.0
        %7636 = vmatpush1.msra.mxu0 %v6816
        %7637 = vmatprep.subr.mxu0 0.0
        %7638 = vmatpush1.msra.mxu0 %v6815
        %7639 = vmatprep.subr.mxu0 0.0
        %7640 = vmatpush1.msra.mxu0 %v6814
        %7641 = vmatprep.subr.mxu0 0.0
        %7642 = vmatpush2.msra.mxu0 0.0
        %7643 = vmatprep.subr.mxu0 0.0
        %7644 = vmatpush2.msra.mxu0 0.0
        %7645 = vmatprep.subr.mxu0 0.0
        %7646 = vmatpush2.msra.mxu0 0.0
        %7647 = vmatprep.subr.mxu0 0.0
        %7648 = vmatpush2.msra.mxu0 0.0
        %7649 = vmatprep.subr.mxu0 0.0
        %7650 = vmatpush2.msra.mxu0 0.0
        %7651 = vmatprep.subr.mxu0 0.0
        %7652 = vmatpush2.msra.mxu0 0.0
        %7653 = vmatprep.subr.mxu0 0.0
        %7654 = vmatpush2.msra.mxu0 0.0
        %7655 = vmatprep.subr.mxu0 0.0
        %7656 = vmatpush2.msra.mxu0 0.0
        %7657 = vmatprep.subr.mxu0 0.0
        %7658 = vmatpush2.msra.mxu0 0.0
        %7659 = vmatprep.subr.mxu0 0.0
        %7660 = vmatpush2.msra.mxu0 0.0
        %7661 = vmatprep.subr.mxu0 0.0
        %7662 = vmatpush2.msra.mxu0 0.0
        %7663 = vmatprep.subr.mxu0 0.0
        %7664 = vmatpush2.msra.mxu0 0.0
        %7665 = vmatprep.subr.mxu0 0.0
        %7666 = vmatpush2.msra.mxu0 0.0
        %7667 = vmatprep.subr.mxu0 0.0
        %7668 = vmatpush2.msra.mxu0 0.0
        %7669 = vmatprep.subr.mxu0 0.0
        %7670 = vmatpush2.msra.mxu0 0.0
        %7671 = vmatprep.subr.mxu0 0.0
        %7672 = vmatpush2.msra.mxu0 0.0
        %7673 = vmatprep.mubr.f32.mxu0 0.0
        %7674 = vmatmul.mubr.f32.gmra.mxu0 %v3071
        %v7675 = vpop.f32.mrf.mxu0
        %v7676 = vadd.f32 %v7460, %v7675
        %v7677 = vpop.f32.mrf.mxu0
        %7678 = vdwg.mxu0
        %7679 = vmatprep.subr.mxu0 0.0
        %7680 = vmatpush1.msra.mxu0 0.0
        %7681 = vmatprep.subr.mxu0 0.0
        %7682 = vmatpush1.msra.mxu0 0.0
        %7683 = vmatprep.subr.mxu0 0.0
        %7684 = vmatpush1.msra.mxu0 0.0
        %7685 = vmatprep.subr.mxu0 0.0
        %7686 = vmatpush1.msra.mxu0 0.0
        %7687 = vmatprep.subr.mxu0 0.0
        %7688 = vmatpush1.msra.mxu0 0.0
        %7689 = vmatprep.subr.mxu0 0.0
        %7690 = vmatpush1.msra.mxu0 0.0
        %7691 = vmatprep.subr.mxu0 0.0
        %7692 = vmatpush1.msra.mxu0 0.0
        %7693 = vmatprep.subr.mxu0 0.0
        %7694 = vmatpush1.msra.mxu0 0.0
        %7695 = vmatprep.subr.mxu0 0.0
        %7696 = vmatpush1.msra.mxu0 0.0
        %7697 = vmatprep.subr.mxu0 0.0
        %7698 = vmatpush1.msra.mxu0 0.0
        %7699 = vmatprep.subr.mxu0 0.0
        %7700 = vmatpush1.msra.mxu0 0.0
        %7701 = vmatprep.subr.mxu0 0.0
        %7702 = vmatpush1.msra.mxu0 0.0
        %7703 = vmatprep.subr.mxu0 0.0
        %7704 = vmatpush1.msra.mxu0 %v6821
        %7705 = vmatprep.subr.mxu0 0.0
        %7706 = vmatpush1.msra.mxu0 %v6820
        %7707 = vmatprep.subr.mxu0 0.0
        %7708 = vmatpush1.msra.mxu0 %v6819
        %7709 = vmatprep.subr.mxu0 0.0
        %7710 = vmatpush1.msra.mxu0 %v6818
        %7711 = vmatprep.subr.mxu0 0.0
        %7712 = vmatpush2.msra.mxu0 0.0
        %7713 = vmatprep.subr.mxu0 0.0
        %7714 = vmatpush2.msra.mxu0 0.0
        %7715 = vmatprep.subr.mxu0 0.0
        %7716 = vmatpush2.msra.mxu0 0.0
        %7717 = vmatprep.subr.mxu0 0.0
        %7718 = vmatpush2.msra.mxu0 0.0
        %7719 = vmatprep.subr.mxu0 0.0
        %7720 = vmatpush2.msra.mxu0 0.0
        %7721 = vmatprep.subr.mxu0 0.0
        %7722 = vmatpush2.msra.mxu0 0.0
        %7723 = vmatprep.subr.mxu0 0.0
        %7724 = vmatpush2.msra.mxu0 0.0
        %7725 = vmatprep.subr.mxu0 0.0
        %7726 = vmatpush2.msra.mxu0 0.0
        %7727 = vmatprep.subr.mxu0 0.0
        %7728 = vmatpush2.msra.mxu0 0.0
        %7729 = vmatprep.subr.mxu0 0.0
        %7730 = vmatpush2.msra.mxu0 0.0
        %7731 = vmatprep.subr.mxu0 0.0
        %7732 = vmatpush2.msra.mxu0 0.0
        %7733 = vmatprep.subr.mxu0 0.0
        %7734 = vmatpush2.msra.mxu0 0.0
        %7735 = vmatprep.subr.mxu0 0.0
        %7736 = vmatpush2.msra.mxu0 0.0
        %7737 = vmatprep.subr.mxu0 0.0
        %7738 = vmatpush2.msra.mxu0 0.0
        %7739 = vmatprep.subr.mxu0 0.0
        %7740 = vmatpush2.msra.mxu0 0.0
        %7741 = vmatprep.subr.mxu0 0.0
        %7742 = vmatpush2.msra.mxu0 0.0
        %7743 = vmatprep.mubr.f32.mxu0 0.0
        %7744 = vmatmul.mubr.f32.gmra.mxu0 %v3071
        %v7745 = vpop.f32.mrf.mxu0
        %v7746 = vadd.f32 %v7464, %v7745
        %v7747 = vpop.f32.mrf.mxu0
        %7748 = vdwg.mxu0
        %v7750 = vsel %vm1708, %v6928, 0
        %v7753 = vsel %vm1708, %v7232, 0
        %7755 = vmatprep.subr.mxu0 0.0
        %7756 = vmatpush1.xpose.msra.mxu0 0.0
        %7757 = vmatprep.subr.mxu0 0.0
        %7758 = vmatpush1.xpose.msra.mxu0 0.0
        %7759 = vmatprep.subr.mxu0 0.0
        %7760 = vmatpush1.xpose.msra.mxu0 0.0
        %7761 = vmatprep.subr.mxu0 0.0
        %7762 = vmatpush1.xpose.msra.mxu0 0.0
        %7763 = vmatprep.subr.mxu0 0.0
        %7764 = vmatpush1.xpose.msra.mxu0 0.0
        %7765 = vmatprep.subr.mxu0 0.0
        %7766 = vmatpush1.xpose.msra.mxu0 0.0
        %7767 = vmatprep.subr.mxu0 0.0
        %7768 = vmatpush1.xpose.msra.mxu0 0.0
        %7769 = vmatprep.subr.mxu0 0.0
        %7770 = vmatpush1.xpose.msra.mxu0 0.0
        %7771 = vmatprep.subr.mxu0 0.0
        %7772 = vmatpush1.xpose.msra.mxu0 0.0
        %7773 = vmatprep.subr.mxu0 0.0
        %7774 = vmatpush1.xpose.msra.mxu0 0.0
        %7775 = vmatprep.subr.mxu0 0.0
        %7776 = vmatpush1.xpose.msra.mxu0 0.0
        %7777 = vmatprep.subr.mxu0 0.0
        %7778 = vmatpush1.xpose.msra.mxu0 0.0
        %7779 = vmatprep.subr.mxu0 0.0
        %7780 = vmatpush1.xpose.msra.mxu0 0.0
        %7781 = vmatprep.subr.mxu0 0.0
        %7782 = vmatpush1.xpose.msra.mxu0 0.0
        %7783 = vmatprep.subr.mxu0 0.0
        %7784 = vmatpush1.xpose.msra.mxu0 0.0
        %7785 = vmatprep.subr.mxu0 0.0
        %7786 = vmatpush1.xpose.msra.mxu0 %v7753
        %7787 = vmatprep.subr.mxu0 0.0
        %7788 = vmatpush2.xpose.msra.mxu0 0.0
        %7789 = vmatprep.subr.mxu0 0.0
        %7790 = vmatpush2.xpose.msra.mxu0 0.0
        %7791 = vmatprep.subr.mxu0 0.0
        %7792 = vmatpush2.xpose.msra.mxu0 0.0
        %7793 = vmatprep.subr.mxu0 0.0
        %7794 = vmatpush2.xpose.msra.mxu0 0.0
        %7795 = vmatprep.subr.mxu0 0.0
        %7796 = vmatpush2.xpose.msra.mxu0 0.0
        %7797 = vmatprep.subr.mxu0 0.0
        %7798 = vmatpush2.xpose.msra.mxu0 0.0
        %7799 = vmatprep.subr.mxu0 0.0
        %7800 = vmatpush2.xpose.msra.mxu0 0.0
        %7801 = vmatprep.subr.mxu0 0.0
        %7802 = vmatpush2.xpose.msra.mxu0 0.0
        %7803 = vmatprep.subr.mxu0 0.0
        %7804 = vmatpush2.xpose.msra.mxu0 0.0
        %7805 = vmatprep.subr.mxu0 0.0
        %7806 = vmatpush2.xpose.msra.mxu0 0.0
        %7807 = vmatprep.subr.mxu0 0.0
        %7808 = vmatpush2.xpose.msra.mxu0 0.0
        %7809 = vmatprep.subr.mxu0 0.0
        %7810 = vmatpush2.xpose.msra.mxu0 0.0
        %7811 = vmatprep.subr.mxu0 0.0
        %7812 = vmatpush2.xpose.msra.mxu0 0.0
        %7813 = vmatprep.subr.mxu0 0.0
        %7814 = vmatpush2.xpose.msra.mxu0 0.0
        %7815 = vmatprep.subr.mxu0 0.0
        %7816 = vmatpush2.xpose.msra.mxu0 0.0
        %7817 = vmatprep.subr.mxu0 0.0
        %7818 = vmatpush2.xpose.msra.mxu0 0.0
        %7819 = vmatprep.mubr.f32.mxu0 0.0
        %7820 = vmatmul.mubr.f32.gmra.mxu0 %v7750
        %v7821 = vpop.f32.mrf.mxu0
        %v7822 = vadd.f32 0.0, %v7821
        %v7823 = vpop.f32.mrf.mxu0
        %7824 = vdwg.mxu0
        %v7826 = vsel %vm1708, %v6998, 0
        %v7829 = vsel %vm1708, %v7302, 0
        %7831 = vmatprep.subr.mxu0 0.0
        %7832 = vmatpush1.xpose.msra.mxu0 0.0
        %7833 = vmatprep.subr.mxu0 0.0
        %7834 = vmatpush1.xpose.msra.mxu0 0.0
        %7835 = vmatprep.subr.mxu0 0.0
        %7836 = vmatpush1.xpose.msra.mxu0 0.0
        %7837 = vmatprep.subr.mxu0 0.0
        %7838 = vmatpush1.xpose.msra.mxu0 0.0
        %7839 = vmatprep.subr.mxu0 0.0
        %7840 = vmatpush1.xpose.msra.mxu0 0.0
        %7841 = vmatprep.subr.mxu0 0.0
        %7842 = vmatpush1.xpose.msra.mxu0 0.0
        %7843 = vmatprep.subr.mxu0 0.0
        %7844 = vmatpush1.xpose.msra.mxu0 0.0
        %7845 = vmatprep.subr.mxu0 0.0
        %7846 = vmatpush1.xpose.msra.mxu0 0.0
        %7847 = vmatprep.subr.mxu0 0.0
        %7848 = vmatpush1.xpose.msra.mxu0 0.0
        %7849 = vmatprep.subr.mxu0 0.0
        %7850 = vmatpush1.xpose.msra.mxu0 0.0
        %7851 = vmatprep.subr.mxu0 0.0
        %7852 = vmatpush1.xpose.msra.mxu0 0.0
        %7853 = vmatprep.subr.mxu0 0.0
        %7854 = vmatpush1.xpose.msra.mxu0 0.0
        %7855 = vmatprep.subr.mxu0 0.0
        %7856 = vmatpush1.xpose.msra.mxu0 0.0
        %7857 = vmatprep.subr.mxu0 0.0
        %7858 = vmatpush1.xpose.msra.mxu0 0.0
        %7859 = vmatprep.subr.mxu0 0.0
        %7860 = vmatpush1.xpose.msra.mxu0 0.0
        %7861 = vmatprep.subr.mxu0 0.0
        %7862 = vmatpush1.xpose.msra.mxu0 %v7829
        %7863 = vmatprep.subr.mxu0 0.0
        %7864 = vmatpush2.xpose.msra.mxu0 0.0
        %7865 = vmatprep.subr.mxu0 0.0
        %7866 = vmatpush2.xpose.msra.mxu0 0.0
        %7867 = vmatprep.subr.mxu0 0.0
        %7868 = vmatpush2.xpose.msra.mxu0 0.0
        %7869 = vmatprep.subr.mxu0 0.0
        %7870 = vmatpush2.xpose.msra.mxu0 0.0
        %7871 = vmatprep.subr.mxu0 0.0
        %7872 = vmatpush2.xpose.msra.mxu0 0.0
        %7873 = vmatprep.subr.mxu0 0.0
        %7874 = vmatpush2.xpose.msra.mxu0 0.0
        %7875 = vmatprep.subr.mxu0 0.0
        %7876 = vmatpush2.xpose.msra.mxu0 0.0
        %7877 = vmatprep.subr.mxu0 0.0
        %7878 = vmatpush2.xpose.msra.mxu0 0.0
        %7879 = vmatprep.subr.mxu0 0.0
        %7880 = vmatpush2.xpose.msra.mxu0 0.0
        %7881 = vmatprep.subr.mxu0 0.0
        %7882 = vmatpush2.xpose.msra.mxu0 0.0
        %7883 = vmatprep.subr.mxu0 0.0
        %7884 = vmatpush2.xpose.msra.mxu0 0.0
        %7885 = vmatprep.subr.mxu0 0.0
        %7886 = vmatpush2.xpose.msra.mxu0 0.0
        %7887 = vmatprep.subr.mxu0 0.0
        %7888 = vmatpush2.xpose.msra.mxu0 0.0
        %7889 = vmatprep.subr.mxu0 0.0
        %7890 = vmatpush2.xpose.msra.mxu0 0.0
        %7891 = vmatprep.subr.mxu0 0.0
        %7892 = vmatpush2.xpose.msra.mxu0 0.0
        %7893 = vmatprep.subr.mxu0 0.0
        %7894 = vmatpush2.xpose.msra.mxu0 0.0
        %7895 = vmatprep.mubr.f32.mxu0 0.0
        %7896 = vmatmul.mubr.f32.gmra.mxu0 %v7826
        %v7897 = vpop.f32.mrf.mxu0
        %v7898 = vadd.f32 0.0, %v7897
        %v7899 = vpop.f32.mrf.mxu0
        %7900 = vdwg.mxu0
        %v7902 = vsel %vm1708, %v7068, 0
        %v7905 = vsel %vm1708, %v7372, 0
        %7907 = vmatprep.subr.mxu0 0.0
        %7908 = vmatpush1.xpose.msra.mxu0 0.0
        %7909 = vmatprep.subr.mxu0 0.0
        %7910 = vmatpush1.xpose.msra.mxu0 0.0
        %7911 = vmatprep.subr.mxu0 0.0
        %7912 = vmatpush1.xpose.msra.mxu0 0.0
        %7913 = vmatprep.subr.mxu0 0.0
        %7914 = vmatpush1.xpose.msra.mxu0 0.0
        %7915 = vmatprep.subr.mxu0 0.0
        %7916 = vmatpush1.xpose.msra.mxu0 0.0
        %7917 = vmatprep.subr.mxu0 0.0
        %7918 = vmatpush1.xpose.msra.mxu0 0.0
        %7919 = vmatprep.subr.mxu0 0.0
        %7920 = vmatpush1.xpose.msra.mxu0 0.0
        %7921 = vmatprep.subr.mxu0 0.0
        %7922 = vmatpush1.xpose.msra.mxu0 0.0
        %7923 = vmatprep.subr.mxu0 0.0
        %7924 = vmatpush1.xpose.msra.mxu0 0.0
        %7925 = vmatprep.subr.mxu0 0.0
        %7926 = vmatpush1.xpose.msra.mxu0 0.0
        %7927 = vmatprep.subr.mxu0 0.0
        %7928 = vmatpush1.xpose.msra.mxu0 0.0
        %7929 = vmatprep.subr.mxu0 0.0
        %7930 = vmatpush1.xpose.msra.mxu0 0.0
        %7931 = vmatprep.subr.mxu0 0.0
        %7932 = vmatpush1.xpose.msra.mxu0 0.0
        %7933 = vmatprep.subr.mxu0 0.0
        %7934 = vmatpush1.xpose.msra.mxu0 0.0
        %7935 = vmatprep.subr.mxu0 0.0
        %7936 = vmatpush1.xpose.msra.mxu0 0.0
        %7937 = vmatprep.subr.mxu0 0.0
        %7938 = vmatpush1.xpose.msra.mxu0 %v7905
        %7939 = vmatprep.subr.mxu0 0.0
        %7940 = vmatpush2.xpose.msra.mxu0 0.0
        %7941 = vmatprep.subr.mxu0 0.0
        %7942 = vmatpush2.xpose.msra.mxu0 0.0
        %7943 = vmatprep.subr.mxu0 0.0
        %7944 = vmatpush2.xpose.msra.mxu0 0.0
        %7945 = vmatprep.subr.mxu0 0.0
        %7946 = vmatpush2.xpose.msra.mxu0 0.0
        %7947 = vmatprep.subr.mxu0 0.0
        %7948 = vmatpush2.xpose.msra.mxu0 0.0
        %7949 = vmatprep.subr.mxu0 0.0
        %7950 = vmatpush2.xpose.msra.mxu0 0.0
        %7951 = vmatprep.subr.mxu0 0.0
        %7952 = vmatpush2.xpose.msra.mxu0 0.0
        %7953 = vmatprep.subr.mxu0 0.0
        %7954 = vmatpush2.xpose.msra.mxu0 0.0
        %7955 = vmatprep.subr.mxu0 0.0
        %7956 = vmatpush2.xpose.msra.mxu0 0.0
        %7957 = vmatprep.subr.mxu0 0.0
        %7958 = vmatpush2.xpose.msra.mxu0 0.0
        %7959 = vmatprep.subr.mxu0 0.0
        %7960 = vmatpush2.xpose.msra.mxu0 0.0
        %7961 = vmatprep.subr.mxu0 0.0
        %7962 = vmatpush2.xpose.msra.mxu0 0.0
        %7963 = vmatprep.subr.mxu0 0.0
        %7964 = vmatpush2.xpose.msra.mxu0 0.0
        %7965 = vmatprep.subr.mxu0 0.0
        %7966 = vmatpush2.xpose.msra.mxu0 0.0
        %7967 = vmatprep.subr.mxu0 0.0
        %7968 = vmatpush2.xpose.msra.mxu0 0.0
        %7969 = vmatprep.subr.mxu0 0.0
        %7970 = vmatpush2.xpose.msra.mxu0 0.0
        %7971 = vmatprep.mubr.f32.mxu0 0.0
        %7972 = vmatmul.mubr.f32.gmra.mxu0 %v7902
        %v7973 = vpop.f32.mrf.mxu0
        %v7974 = vadd.f32 0.0, %v7973
        %v7975 = vpop.f32.mrf.mxu0
        %7976 = vdwg.mxu0
        %v7978 = vsel %vm1708, %v7138, 0
        %v7981 = vsel %vm1708, %v7442, 0
        %7983 = vmatprep.subr.mxu0 0.0
        %7984 = vmatpush1.xpose.msra.mxu0 0.0
        %7985 = vmatprep.subr.mxu0 0.0
        %7986 = vmatpush1.xpose.msra.mxu0 0.0
        %7987 = vmatprep.subr.mxu0 0.0
        %7988 = vmatpush1.xpose.msra.mxu0 0.0
        %7989 = vmatprep.subr.mxu0 0.0
        %7990 = vmatpush1.xpose.msra.mxu0 0.0
        %7991 = vmatprep.subr.mxu0 0.0
        %7992 = vmatpush1.xpose.msra.mxu0 0.0
        %7993 = vmatprep.subr.mxu0 0.0
        %7994 = vmatpush1.xpose.msra.mxu0 0.0
        %7995 = vmatprep.subr.mxu0 0.0
        %7996 = vmatpush1.xpose.msra.mxu0 0.0
        %7997 = vmatprep.subr.mxu0 0.0
        %7998 = vmatpush1.xpose.msra.mxu0 0.0
        %7999 = vmatprep.subr.mxu0 0.0
        %8000 = vmatpush1.xpose.msra.mxu0 0.0
        %8001 = vmatprep.subr.mxu0 0.0
        %8002 = vmatpush1.xpose.msra.mxu0 0.0
        %8003 = vmatprep.subr.mxu0 0.0
        %8004 = vmatpush1.xpose.msra.mxu0 0.0
        %8005 = vmatprep.subr.mxu0 0.0
        %8006 = vmatpush1.xpose.msra.mxu0 0.0
        %8007 = vmatprep.subr.mxu0 0.0
        %8008 = vmatpush1.xpose.msra.mxu0 0.0
        %8009 = vmatprep.subr.mxu0 0.0
        %8010 = vmatpush1.xpose.msra.mxu0 0.0
        %8011 = vmatprep.subr.mxu0 0.0
        %8012 = vmatpush1.xpose.msra.mxu0 0.0
        %8013 = vmatprep.subr.mxu0 0.0
        %8014 = vmatpush1.xpose.msra.mxu0 %v7981
        %8015 = vmatprep.subr.mxu0 0.0
        %8016 = vmatpush2.xpose.msra.mxu0 0.0
        %8017 = vmatprep.subr.mxu0 0.0
        %8018 = vmatpush2.xpose.msra.mxu0 0.0
        %8019 = vmatprep.subr.mxu0 0.0
        %8020 = vmatpush2.xpose.msra.mxu0 0.0
        %8021 = vmatprep.subr.mxu0 0.0
        %8022 = vmatpush2.xpose.msra.mxu0 0.0
        %8023 = vmatprep.subr.mxu0 0.0
        %8024 = vmatpush2.xpose.msra.mxu0 0.0
        %8025 = vmatprep.subr.mxu0 0.0
        %8026 = vmatpush2.xpose.msra.mxu0 0.0
        %8027 = vmatprep.subr.mxu0 0.0
        %8028 = vmatpush2.xpose.msra.mxu0 0.0
        %8029 = vmatprep.subr.mxu0 0.0
        %8030 = vmatpush2.xpose.msra.mxu0 0.0
        %8031 = vmatprep.subr.mxu0 0.0
        %8032 = vmatpush2.xpose.msra.mxu0 0.0
        %8033 = vmatprep.subr.mxu0 0.0
        %8034 = vmatpush2.xpose.msra.mxu0 0.0
        %8035 = vmatprep.subr.mxu0 0.0
        %8036 = vmatpush2.xpose.msra.mxu0 0.0
        %8037 = vmatprep.subr.mxu0 0.0
        %8038 = vmatpush2.xpose.msra.mxu0 0.0
        %8039 = vmatprep.subr.mxu0 0.0
        %8040 = vmatpush2.xpose.msra.mxu0 0.0
        %8041 = vmatprep.subr.mxu0 0.0
        %8042 = vmatpush2.xpose.msra.mxu0 0.0
        %8043 = vmatprep.subr.mxu0 0.0
        %8044 = vmatpush2.xpose.msra.mxu0 0.0
        %8045 = vmatprep.subr.mxu0 0.0
        %8046 = vmatpush2.xpose.msra.mxu0 0.0
        %8047 = vmatprep.mubr.f32.mxu0 0.0
        %8048 = vmatmul.mubr.f32.gmra.mxu0 %v7978
        %v8049 = vpop.f32.mrf.mxu0
        %v8050 = vadd.f32 0.0, %v8049
        %v8051 = vpop.f32.mrf.mxu0
        %8052 = vdwg.mxu0
        %v8053 = vmul.f32 %v7822, 0.35355338
        %v8054 = vmul.f32 %v7898, 0.35355338
        %v8055 = vmul.f32 %v7974, 0.35355338
        %v8056 = vmul.f32 %v8050, 0.35355338
        %v8057 = vsel %vm1708, %v8053, -inf
        %8058 = vmax.xlane.f32.xlu0 %v8057
        %v8059 = vpop.xlane.xlu0 %8058
        %v8060 = vsel %vm1708, %v8054, -inf
        %8061 = vmax.xlane.f32.xlu0 %v8060
        %v8062 = vpop.xlane.xlu0 %8061
        %v8063 = vsel %vm1708, %v8055, -inf
        %8064 = vmax.xlane.f32.xlu0 %v8063
        %v8065 = vpop.xlane.xlu0 %8064
        %v8066 = vsel %vm1708, %v8056, -inf
        %8067 = vmax.xlane.f32.xlu0 %v8066
        %v8068 = vpop.xlane.xlu0 %8067
        %v8069 = vsub.f32 %v8053, %v8059
        %v8070 = vsub.f32 %v8054, %v8062
        %v8071 = vsub.f32 %v8055, %v8065
        %v8072 = vsub.f32 %v8056, %v8068
        %v8073 = vmul.f32 %v8069, 1.442695
        %v8074 = vpow.pop %v8073
        %v8075 = vmul.f32 %v8070, 1.442695
        %v8076 = vpow.pop %v8075
        %v8077 = vmul.f32 %v8071, 1.442695
        %v8078 = vpow.pop %v8077
        %v8079 = vmul.f32 %v8072, 1.442695
        %v8080 = vpow.pop %v8079
        %v8081 = vsel %vm1708, %v8074, 0.0
        %8082 = vadd.xlane.f32.xlu0 %v8081
        %v8083 = vpop.xlane.xlu0 %8082
        %v8084 = vsel %vm1708, %v8076, 0.0
        %8085 = vadd.xlane.f32.xlu0 %v8084
        %v8086 = vpop.xlane.xlu0 %8085
        %v8087 = vsel %vm1708, %v8078, 0.0
        %8088 = vadd.xlane.f32.xlu0 %v8087
        %v8089 = vpop.xlane.xlu0 %8088
        %v8090 = vsel %vm1708, %v8080, 0.0
        %8091 = vadd.xlane.f32.xlu0 %v8090
        %v8092 = vpop.xlane.xlu0 %8091
        %v8093 = vrcp.pop %v8083
        %v8094 = vrcp.pop %v8086
        %v8095 = vrcp.pop %v8089
        %v8096 = vrcp.pop %v8092
        %v8097 = vmul.f32 %v8074, %v8093
        %v8098 = vmul.f32 %v8076, %v8094
        %v8099 = vmul.f32 %v8078, %v8095
        %v8100 = vmul.f32 %v8080, %v8096
        %v8102 = vsel %vm1708, %v8097, 0
        %8104 = vmatprep.subr.mxu0 0.0
        %8105 = vmatpush1.msra.mxu0 0.0
        %8106 = vmatprep.subr.mxu0 0.0
        %8107 = vmatpush1.msra.mxu0 0.0
        %8108 = vmatprep.subr.mxu0 0.0
        %8109 = vmatpush1.msra.mxu0 0.0
        %8110 = vmatprep.subr.mxu0 0.0
        %8111 = vmatpush1.msra.mxu0 0.0
        %8112 = vmatprep.subr.mxu0 0.0
        %8113 = vmatpush1.msra.mxu0 0.0
        %8114 = vmatprep.subr.mxu0 0.0
        %8115 = vmatpush1.msra.mxu0 0.0
        %8116 = vmatprep.subr.mxu0 0.0
        %8117 = vmatpush1.msra.mxu0 0.0
        %8118 = vmatprep.subr.mxu0 0.0
        %8119 = vmatpush1.msra.mxu0 0.0
        %8120 = vmatprep.subr.mxu0 0.0
        %8121 = vmatpush1.msra.mxu0 0.0
        %8122 = vmatprep.subr.mxu0 0.0
        %8123 = vmatpush1.msra.mxu0 0.0
        %8124 = vmatprep.subr.mxu0 0.0
        %8125 = vmatpush1.msra.mxu0 0.0
        %8126 = vmatprep.subr.mxu0 0.0
        %8127 = vmatpush1.msra.mxu0 0.0
        %8128 = vmatprep.subr.mxu0 0.0
        %8129 = vmatpush1.msra.mxu0 0.0
        %8130 = vmatprep.subr.mxu0 0.0
        %8131 = vmatpush1.msra.mxu0 0.0
        %8132 = vmatprep.subr.mxu0 0.0
        %8133 = vmatpush1.msra.mxu0 0.0
        %8134 = vmatprep.subr.mxu0 0.0
        %8135 = vmatpush1.msra.mxu0 %v7536
        %8136 = vmatprep.subr.mxu0 0.0
        %8137 = vmatpush2.msra.mxu0 0.0
        %8138 = vmatprep.subr.mxu0 0.0
        %8139 = vmatpush2.msra.mxu0 0.0
        %8140 = vmatprep.subr.mxu0 0.0
        %8141 = vmatpush2.msra.mxu0 0.0
        %8142 = vmatprep.subr.mxu0 0.0
        %8143 = vmatpush2.msra.mxu0 0.0
        %8144 = vmatprep.subr.mxu0 0.0
        %8145 = vmatpush2.msra.mxu0 0.0
        %8146 = vmatprep.subr.mxu0 0.0
        %8147 = vmatpush2.msra.mxu0 0.0
        %8148 = vmatprep.subr.mxu0 0.0
        %8149 = vmatpush2.msra.mxu0 0.0
        %8150 = vmatprep.subr.mxu0 0.0
        %8151 = vmatpush2.msra.mxu0 0.0
        %8152 = vmatprep.subr.mxu0 0.0
        %8153 = vmatpush2.msra.mxu0 0.0
        %8154 = vmatprep.subr.mxu0 0.0
        %8155 = vmatpush2.msra.mxu0 0.0
        %8156 = vmatprep.subr.mxu0 0.0
        %8157 = vmatpush2.msra.mxu0 0.0
        %8158 = vmatprep.subr.mxu0 0.0
        %8159 = vmatpush2.msra.mxu0 0.0
        %8160 = vmatprep.subr.mxu0 0.0
        %8161 = vmatpush2.msra.mxu0 0.0
        %8162 = vmatprep.subr.mxu0 0.0
        %8163 = vmatpush2.msra.mxu0 0.0
        %8164 = vmatprep.subr.mxu0 0.0
        %8165 = vmatpush2.msra.mxu0 0.0
        %8166 = vmatprep.subr.mxu0 0.0
        %8167 = vmatpush2.msra.mxu0 0.0
        %8168 = vmatprep.mubr.f32.mxu0 0.0
        %8169 = vmatmul.mubr.f32.gmra.mxu0 %v8102
        %v8170 = vpop.f32.mrf.mxu0
        %v8171 = vadd.f32 0.0, %v8170
        %v8172 = vpop.f32.mrf.mxu0
        %8173 = vdwg.mxu0
        %v8175 = vsel %vm1708, %v8098, 0
        %8177 = vmatprep.subr.mxu0 0.0
        %8178 = vmatpush1.msra.mxu0 0.0
        %8179 = vmatprep.subr.mxu0 0.0
        %8180 = vmatpush1.msra.mxu0 0.0
        %8181 = vmatprep.subr.mxu0 0.0
        %8182 = vmatpush1.msra.mxu0 0.0
        %8183 = vmatprep.subr.mxu0 0.0
        %8184 = vmatpush1.msra.mxu0 0.0
        %8185 = vmatprep.subr.mxu0 0.0
        %8186 = vmatpush1.msra.mxu0 0.0
        %8187 = vmatprep.subr.mxu0 0.0
        %8188 = vmatpush1.msra.mxu0 0.0
        %8189 = vmatprep.subr.mxu0 0.0
        %8190 = vmatpush1.msra.mxu0 0.0
        %8191 = vmatprep.subr.mxu0 0.0
        %8192 = vmatpush1.msra.mxu0 0.0
        %8193 = vmatprep.subr.mxu0 0.0
        %8194 = vmatpush1.msra.mxu0 0.0
        %8195 = vmatprep.subr.mxu0 0.0
        %8196 = vmatpush1.msra.mxu0 0.0
        %8197 = vmatprep.subr.mxu0 0.0
        %8198 = vmatpush1.msra.mxu0 0.0
        %8199 = vmatprep.subr.mxu0 0.0
        %8200 = vmatpush1.msra.mxu0 0.0
        %8201 = vmatprep.subr.mxu0 0.0
        %8202 = vmatpush1.msra.mxu0 0.0
        %8203 = vmatprep.subr.mxu0 0.0
        %8204 = vmatpush1.msra.mxu0 0.0
        %8205 = vmatprep.subr.mxu0 0.0
        %8206 = vmatpush1.msra.mxu0 0.0
        %8207 = vmatprep.subr.mxu0 0.0
        %8208 = vmatpush1.msra.mxu0 %v7606
        %8209 = vmatprep.subr.mxu0 0.0
        %8210 = vmatpush2.msra.mxu0 0.0
        %8211 = vmatprep.subr.mxu0 0.0
        %8212 = vmatpush2.msra.mxu0 0.0
        %8213 = vmatprep.subr.mxu0 0.0
        %8214 = vmatpush2.msra.mxu0 0.0
        %8215 = vmatprep.subr.mxu0 0.0
        %8216 = vmatpush2.msra.mxu0 0.0
        %8217 = vmatprep.subr.mxu0 0.0
        %8218 = vmatpush2.msra.mxu0 0.0
        %8219 = vmatprep.subr.mxu0 0.0
        %8220 = vmatpush2.msra.mxu0 0.0
        %8221 = vmatprep.subr.mxu0 0.0
        %8222 = vmatpush2.msra.mxu0 0.0
        %8223 = vmatprep.subr.mxu0 0.0
        %8224 = vmatpush2.msra.mxu0 0.0
        %8225 = vmatprep.subr.mxu0 0.0
        %8226 = vmatpush2.msra.mxu0 0.0
        %8227 = vmatprep.subr.mxu0 0.0
        %8228 = vmatpush2.msra.mxu0 0.0
        %8229 = vmatprep.subr.mxu0 0.0
        %8230 = vmatpush2.msra.mxu0 0.0
        %8231 = vmatprep.subr.mxu0 0.0
        %8232 = vmatpush2.msra.mxu0 0.0
        %8233 = vmatprep.subr.mxu0 0.0
        %8234 = vmatpush2.msra.mxu0 0.0
        %8235 = vmatprep.subr.mxu0 0.0
        %8236 = vmatpush2.msra.mxu0 0.0
        %8237 = vmatprep.subr.mxu0 0.0
        %8238 = vmatpush2.msra.mxu0 0.0
        %8239 = vmatprep.subr.mxu0 0.0
        %8240 = vmatpush2.msra.mxu0 0.0
        %8241 = vmatprep.mubr.f32.mxu0 0.0
        %8242 = vmatmul.mubr.f32.gmra.mxu0 %v8175
        %v8243 = vpop.f32.mrf.mxu0
        %v8244 = vadd.f32 0.0, %v8243
        %v8245 = vpop.f32.mrf.mxu0
        %8246 = vdwg.mxu0
        %v8248 = vsel %vm1708, %v8099, 0
        %8250 = vmatprep.subr.mxu0 0.0
        %8251 = vmatpush1.msra.mxu0 0.0
        %8252 = vmatprep.subr.mxu0 0.0
        %8253 = vmatpush1.msra.mxu0 0.0
        %8254 = vmatprep.subr.mxu0 0.0
        %8255 = vmatpush1.msra.mxu0 0.0
        %8256 = vmatprep.subr.mxu0 0.0
        %8257 = vmatpush1.msra.mxu0 0.0
        %8258 = vmatprep.subr.mxu0 0.0
        %8259 = vmatpush1.msra.mxu0 0.0
        %8260 = vmatprep.subr.mxu0 0.0
        %8261 = vmatpush1.msra.mxu0 0.0
        %8262 = vmatprep.subr.mxu0 0.0
        %8263 = vmatpush1.msra.mxu0 0.0
        %8264 = vmatprep.subr.mxu0 0.0
        %8265 = vmatpush1.msra.mxu0 0.0
        %8266 = vmatprep.subr.mxu0 0.0
        %8267 = vmatpush1.msra.mxu0 0.0
        %8268 = vmatprep.subr.mxu0 0.0
        %8269 = vmatpush1.msra.mxu0 0.0
        %8270 = vmatprep.subr.mxu0 0.0
        %8271 = vmatpush1.msra.mxu0 0.0
        %8272 = vmatprep.subr.mxu0 0.0
        %8273 = vmatpush1.msra.mxu0 0.0
        %8274 = vmatprep.subr.mxu0 0.0
        %8275 = vmatpush1.msra.mxu0 0.0
        %8276 = vmatprep.subr.mxu0 0.0
        %8277 = vmatpush1.msra.mxu0 0.0
        %8278 = vmatprep.subr.mxu0 0.0
        %8279 = vmatpush1.msra.mxu0 0.0
        %8280 = vmatprep.subr.mxu0 0.0
        %8281 = vmatpush1.msra.mxu0 %v7676
        %8282 = vmatprep.subr.mxu0 0.0
        %8283 = vmatpush2.msra.mxu0 0.0
        %8284 = vmatprep.subr.mxu0 0.0
        %8285 = vmatpush2.msra.mxu0 0.0
        %8286 = vmatprep.subr.mxu0 0.0
        %8287 = vmatpush2.msra.mxu0 0.0
        %8288 = vmatprep.subr.mxu0 0.0
        %8289 = vmatpush2.msra.mxu0 0.0
        %8290 = vmatprep.subr.mxu0 0.0
        %8291 = vmatpush2.msra.mxu0 0.0
        %8292 = vmatprep.subr.mxu0 0.0
        %8293 = vmatpush2.msra.mxu0 0.0
        %8294 = vmatprep.subr.mxu0 0.0
        %8295 = vmatpush2.msra.mxu0 0.0
        %8296 = vmatprep.subr.mxu0 0.0
        %8297 = vmatpush2.msra.mxu0 0.0
        %8298 = vmatprep.subr.mxu0 0.0
        %8299 = vmatpush2.msra.mxu0 0.0
        %8300 = vmatprep.subr.mxu0 0.0
        %8301 = vmatpush2.msra.mxu0 0.0
        %8302 = vmatprep.subr.mxu0 0.0
        %8303 = vmatpush2.msra.mxu0 0.0
        %8304 = vmatprep.subr.mxu0 0.0
        %8305 = vmatpush2.msra.mxu0 0.0
        %8306 = vmatprep.subr.mxu0 0.0
        %8307 = vmatpush2.msra.mxu0 0.0
        %8308 = vmatprep.subr.mxu0 0.0
        %8309 = vmatpush2.msra.mxu0 0.0
        %8310 = vmatprep.subr.mxu0 0.0
        %8311 = vmatpush2.msra.mxu0 0.0
        %8312 = vmatprep.subr.mxu0 0.0
        %8313 = vmatpush2.msra.mxu0 0.0
        %8314 = vmatprep.mubr.f32.mxu0 0.0
        %8315 = vmatmul.mubr.f32.gmra.mxu0 %v8248
        %v8316 = vpop.f32.mrf.mxu0
        %v8317 = vadd.f32 0.0, %v8316
        %v8318 = vpop.f32.mrf.mxu0
        %8319 = vdwg.mxu0
        %v8321 = vsel %vm1708, %v8100, 0
        %8323 = vmatprep.subr.mxu0 0.0
        %8324 = vmatpush1.msra.mxu0 0.0
        %8325 = vmatprep.subr.mxu0 0.0
        %8326 = vmatpush1.msra.mxu0 0.0
        %8327 = vmatprep.subr.mxu0 0.0
        %8328 = vmatpush1.msra.mxu0 0.0
        %8329 = vmatprep.subr.mxu0 0.0
        %8330 = vmatpush1.msra.mxu0 0.0
        %8331 = vmatprep.subr.mxu0 0.0
        %8332 = vmatpush1.msra.mxu0 0.0
        %8333 = vmatprep.subr.mxu0 0.0
        %8334 = vmatpush1.msra.mxu0 0.0
        %8335 = vmatprep.subr.mxu0 0.0
        %8336 = vmatpush1.msra.mxu0 0.0
        %8337 = vmatprep.subr.mxu0 0.0
        %8338 = vmatpush1.msra.mxu0 0.0
        %8339 = vmatprep.subr.mxu0 0.0
        %8340 = vmatpush1.msra.mxu0 0.0
        %8341 = vmatprep.subr.mxu0 0.0
        %8342 = vmatpush1.msra.mxu0 0.0
        %8343 = vmatprep.subr.mxu0 0.0
        %8344 = vmatpush1.msra.mxu0 0.0
        %8345 = vmatprep.subr.mxu0 0.0
        %8346 = vmatpush1.msra.mxu0 0.0
        %8347 = vmatprep.subr.mxu0 0.0
        %8348 = vmatpush1.msra.mxu0 0.0
        %8349 = vmatprep.subr.mxu0 0.0
        %8350 = vmatpush1.msra.mxu0 0.0
        %8351 = vmatprep.subr.mxu0 0.0
        %8352 = vmatpush1.msra.mxu0 0.0
        %8353 = vmatprep.subr.mxu0 0.0
        %8354 = vmatpush1.msra.mxu0 %v7746
        %8355 = vmatprep.subr.mxu0 0.0
        %8356 = vmatpush2.msra.mxu0 0.0
        %8357 = vmatprep.subr.mxu0 0.0
        %8358 = vmatpush2.msra.mxu0 0.0
        %8359 = vmatprep.subr.mxu0 0.0
        %8360 = vmatpush2.msra.mxu0 0.0
        %8361 = vmatprep.subr.mxu0 0.0
        %8362 = vmatpush2.msra.mxu0 0.0
        %8363 = vmatprep.subr.mxu0 0.0
        %8364 = vmatpush2.msra.mxu0 0.0
        %8365 = vmatprep.subr.mxu0 0.0
        %8366 = vmatpush2.msra.mxu0 0.0
        %8367 = vmatprep.subr.mxu0 0.0
        %8368 = vmatpush2.msra.mxu0 0.0
        %8369 = vmatprep.subr.mxu0 0.0
        %8370 = vmatpush2.msra.mxu0 0.0
        %8371 = vmatprep.subr.mxu0 0.0
        %8372 = vmatpush2.msra.mxu0 0.0
        %8373 = vmatprep.subr.mxu0 0.0
        %8374 = vmatpush2.msra.mxu0 0.0
        %8375 = vmatprep.subr.mxu0 0.0
        %8376 = vmatpush2.msra.mxu0 0.0
        %8377 = vmatprep.subr.mxu0 0.0
        %8378 = vmatpush2.msra.mxu0 0.0
        %8379 = vmatprep.subr.mxu0 0.0
        %8380 = vmatpush2.msra.mxu0 0.0
        %8381 = vmatprep.subr.mxu0 0.0
        %8382 = vmatpush2.msra.mxu0 0.0
        %8383 = vmatprep.subr.mxu0 0.0
        %8384 = vmatpush2.msra.mxu0 0.0
        %8385 = vmatprep.subr.mxu0 0.0
        %8386 = vmatpush2.msra.mxu0 0.0
        %8387 = vmatprep.mubr.f32.mxu0 0.0
        %8388 = vmatmul.mubr.f32.gmra.mxu0 %v8321
        %v8389 = vpop.f32.mrf.mxu0
        %v8390 = vadd.f32 0.0, %v8389
        %v8391 = vpop.f32.mrf.mxu0
        %8392 = vdwg.mxu0
        %v8394 = vsel %vm1708, %v8171, 0
        %8396 = vmatprep.subr.mxu0 0.0
        %8397 = vmatpush1.msra.mxu0 0.0
        %8398 = vmatprep.subr.mxu0 0.0
        %8399 = vmatpush1.msra.mxu0 0.0
        %8400 = vmatprep.subr.mxu0 0.0
        %8401 = vmatpush1.msra.mxu0 0.0
        %8402 = vmatprep.subr.mxu0 0.0
        %8403 = vmatpush1.msra.mxu0 0.0
        %8404 = vmatprep.subr.mxu0 0.0
        %8405 = vmatpush1.msra.mxu0 0.0
        %8406 = vmatprep.subr.mxu0 0.0
        %8407 = vmatpush1.msra.mxu0 0.0
        %8408 = vmatprep.subr.mxu0 0.0
        %8409 = vmatpush1.msra.mxu0 0.0
        %8410 = vmatprep.subr.mxu0 0.0
        %8411 = vmatpush1.msra.mxu0 0.0
        %8412 = vmatprep.subr.mxu0 0.0
        %8413 = vmatpush1.msra.mxu0 0.0
        %8414 = vmatprep.subr.mxu0 0.0
        %8415 = vmatpush1.msra.mxu0 0.0
        %8416 = vmatprep.subr.mxu0 0.0
        %8417 = vmatpush1.msra.mxu0 0.0
        %8418 = vmatprep.subr.mxu0 0.0
        %8419 = vmatpush1.msra.mxu0 0.0
        %8420 = vmatprep.subr.mxu0 0.0
        %8421 = vmatpush1.msra.mxu0 0.0
        %8422 = vmatprep.subr.mxu0 0.0
        %8423 = vmatpush1.msra.mxu0 0.0
        %8424 = vmatprep.subr.mxu0 0.0
        %8425 = vmatpush1.msra.mxu0 0.0
        %8426 = vmatprep.subr.mxu0 0.0
        %8427 = vmatpush1.msra.mxu0 %v6828
        %8428 = vmatprep.subr.mxu0 0.0
        %8429 = vmatpush2.msra.mxu0 0.0
        %8430 = vmatprep.subr.mxu0 0.0
        %8431 = vmatpush2.msra.mxu0 0.0
        %8432 = vmatprep.subr.mxu0 0.0
        %8433 = vmatpush2.msra.mxu0 0.0
        %8434 = vmatprep.subr.mxu0 0.0
        %8435 = vmatpush2.msra.mxu0 0.0
        %8436 = vmatprep.subr.mxu0 0.0
        %8437 = vmatpush2.msra.mxu0 0.0
        %8438 = vmatprep.subr.mxu0 0.0
        %8439 = vmatpush2.msra.mxu0 0.0
        %8440 = vmatprep.subr.mxu0 0.0
        %8441 = vmatpush2.msra.mxu0 0.0
        %8442 = vmatprep.subr.mxu0 0.0
        %8443 = vmatpush2.msra.mxu0 0.0
        %8444 = vmatprep.subr.mxu0 0.0
        %8445 = vmatpush2.msra.mxu0 0.0
        %8446 = vmatprep.subr.mxu0 0.0
        %8447 = vmatpush2.msra.mxu0 0.0
        %8448 = vmatprep.subr.mxu0 0.0
        %8449 = vmatpush2.msra.mxu0 0.0
        %8450 = vmatprep.subr.mxu0 0.0
        %8451 = vmatpush2.msra.mxu0 0.0
        %8452 = vmatprep.subr.mxu0 0.0
        %8453 = vmatpush2.msra.mxu0 0.0
        %8454 = vmatprep.subr.mxu0 0.0
        %8455 = vmatpush2.msra.mxu0 0.0
        %8456 = vmatprep.subr.mxu0 0.0
        %8457 = vmatpush2.msra.mxu0 0.0
        %8458 = vmatprep.subr.mxu0 0.0
        %8459 = vmatpush2.msra.mxu0 0.0
        %8460 = vmatprep.mubr.f32.mxu0 0.0
        %8461 = vmatmul.mubr.f32.gmra.mxu0 %v8394
        %v8462 = vpop.f32.mrf.mxu0
        %v8463 = vadd.f32 0.0, %v8462
        %v8464 = vpop.f32.mrf.mxu0
        %8465 = vdwg.mxu0
        %v8467 = vsel %vm1708, %v8244, 0
        %8469 = vmatprep.subr.mxu0 0.0
        %8470 = vmatpush1.msra.mxu0 0.0
        %8471 = vmatprep.subr.mxu0 0.0
        %8472 = vmatpush1.msra.mxu0 0.0
        %8473 = vmatprep.subr.mxu0 0.0
        %8474 = vmatpush1.msra.mxu0 0.0
        %8475 = vmatprep.subr.mxu0 0.0
        %8476 = vmatpush1.msra.mxu0 0.0
        %8477 = vmatprep.subr.mxu0 0.0
        %8478 = vmatpush1.msra.mxu0 0.0
        %8479 = vmatprep.subr.mxu0 0.0
        %8480 = vmatpush1.msra.mxu0 0.0
        %8481 = vmatprep.subr.mxu0 0.0
        %8482 = vmatpush1.msra.mxu0 0.0
        %8483 = vmatprep.subr.mxu0 0.0
        %8484 = vmatpush1.msra.mxu0 0.0
        %8485 = vmatprep.subr.mxu0 0.0
        %8486 = vmatpush1.msra.mxu0 0.0
        %8487 = vmatprep.subr.mxu0 0.0
        %8488 = vmatpush1.msra.mxu0 0.0
        %8489 = vmatprep.subr.mxu0 0.0
        %8490 = vmatpush1.msra.mxu0 0.0
        %8491 = vmatprep.subr.mxu0 0.0
        %8492 = vmatpush1.msra.mxu0 0.0
        %8493 = vmatprep.subr.mxu0 0.0
        %8494 = vmatpush1.msra.mxu0 0.0
        %8495 = vmatprep.subr.mxu0 0.0
        %8496 = vmatpush1.msra.mxu0 0.0
        %8497 = vmatprep.subr.mxu0 0.0
        %8498 = vmatpush1.msra.mxu0 0.0
        %8499 = vmatprep.subr.mxu0 0.0
        %8500 = vmatpush1.msra.mxu0 %v6829
        %8501 = vmatprep.subr.mxu0 0.0
        %8502 = vmatpush2.msra.mxu0 0.0
        %8503 = vmatprep.subr.mxu0 0.0
        %8504 = vmatpush2.msra.mxu0 0.0
        %8505 = vmatprep.subr.mxu0 0.0
        %8506 = vmatpush2.msra.mxu0 0.0
        %8507 = vmatprep.subr.mxu0 0.0
        %8508 = vmatpush2.msra.mxu0 0.0
        %8509 = vmatprep.subr.mxu0 0.0
        %8510 = vmatpush2.msra.mxu0 0.0
        %8511 = vmatprep.subr.mxu0 0.0
        %8512 = vmatpush2.msra.mxu0 0.0
        %8513 = vmatprep.subr.mxu0 0.0
        %8514 = vmatpush2.msra.mxu0 0.0
        %8515 = vmatprep.subr.mxu0 0.0
        %8516 = vmatpush2.msra.mxu0 0.0
        %8517 = vmatprep.subr.mxu0 0.0
        %8518 = vmatpush2.msra.mxu0 0.0
        %8519 = vmatprep.subr.mxu0 0.0
        %8520 = vmatpush2.msra.mxu0 0.0
        %8521 = vmatprep.subr.mxu0 0.0
        %8522 = vmatpush2.msra.mxu0 0.0
        %8523 = vmatprep.subr.mxu0 0.0
        %8524 = vmatpush2.msra.mxu0 0.0
        %8525 = vmatprep.subr.mxu0 0.0
        %8526 = vmatpush2.msra.mxu0 0.0
        %8527 = vmatprep.subr.mxu0 0.0
        %8528 = vmatpush2.msra.mxu0 0.0
        %8529 = vmatprep.subr.mxu0 0.0
        %8530 = vmatpush2.msra.mxu0 0.0
        %8531 = vmatprep.subr.mxu0 0.0
        %8532 = vmatpush2.msra.mxu0 0.0
        %8533 = vmatprep.mubr.f32.mxu0 0.0
        %8534 = vmatmul.mubr.f32.gmra.mxu0 %v8467
        %v8535 = vpop.f32.mrf.mxu0
        %v8536 = vadd.f32 0.0, %v8535
        %v8537 = vpop.f32.mrf.mxu0
        %8538 = vdwg.mxu0
        %v8540 = vsel %vm1708, %v8317, 0
        %8542 = vmatprep.subr.mxu0 0.0
        %8543 = vmatpush1.msra.mxu0 0.0
        %8544 = vmatprep.subr.mxu0 0.0
        %8545 = vmatpush1.msra.mxu0 0.0
        %8546 = vmatprep.subr.mxu0 0.0
        %8547 = vmatpush1.msra.mxu0 0.0
        %8548 = vmatprep.subr.mxu0 0.0
        %8549 = vmatpush1.msra.mxu0 0.0
        %8550 = vmatprep.subr.mxu0 0.0
        %8551 = vmatpush1.msra.mxu0 0.0
        %8552 = vmatprep.subr.mxu0 0.0
        %8553 = vmatpush1.msra.mxu0 0.0
        %8554 = vmatprep.subr.mxu0 0.0
        %8555 = vmatpush1.msra.mxu0 0.0
        %8556 = vmatprep.subr.mxu0 0.0
        %8557 = vmatpush1.msra.mxu0 0.0
        %8558 = vmatprep.subr.mxu0 0.0
        %8559 = vmatpush1.msra.mxu0 0.0
        %8560 = vmatprep.subr.mxu0 0.0
        %8561 = vmatpush1.msra.mxu0 0.0
        %8562 = vmatprep.subr.mxu0 0.0
        %8563 = vmatpush1.msra.mxu0 0.0
        %8564 = vmatprep.subr.mxu0 0.0
        %8565 = vmatpush1.msra.mxu0 0.0
        %8566 = vmatprep.subr.mxu0 0.0
        %8567 = vmatpush1.msra.mxu0 0.0
        %8568 = vmatprep.subr.mxu0 0.0
        %8569 = vmatpush1.msra.mxu0 0.0
        %8570 = vmatprep.subr.mxu0 0.0
        %8571 = vmatpush1.msra.mxu0 0.0
        %8572 = vmatprep.subr.mxu0 0.0
        %8573 = vmatpush1.msra.mxu0 %v6830
        %8574 = vmatprep.subr.mxu0 0.0
        %8575 = vmatpush2.msra.mxu0 0.0
        %8576 = vmatprep.subr.mxu0 0.0
        %8577 = vmatpush2.msra.mxu0 0.0
        %8578 = vmatprep.subr.mxu0 0.0
        %8579 = vmatpush2.msra.mxu0 0.0
        %8580 = vmatprep.subr.mxu0 0.0
        %8581 = vmatpush2.msra.mxu0 0.0
        %8582 = vmatprep.subr.mxu0 0.0
        %8583 = vmatpush2.msra.mxu0 0.0
        %8584 = vmatprep.subr.mxu0 0.0
        %8585 = vmatpush2.msra.mxu0 0.0
        %8586 = vmatprep.subr.mxu0 0.0
        %8587 = vmatpush2.msra.mxu0 0.0
        %8588 = vmatprep.subr.mxu0 0.0
        %8589 = vmatpush2.msra.mxu0 0.0
        %8590 = vmatprep.subr.mxu0 0.0
        %8591 = vmatpush2.msra.mxu0 0.0
        %8592 = vmatprep.subr.mxu0 0.0
        %8593 = vmatpush2.msra.mxu0 0.0
        %8594 = vmatprep.subr.mxu0 0.0
        %8595 = vmatpush2.msra.mxu0 0.0
        %8596 = vmatprep.subr.mxu0 0.0
        %8597 = vmatpush2.msra.mxu0 0.0
        %8598 = vmatprep.subr.mxu0 0.0
        %8599 = vmatpush2.msra.mxu0 0.0
        %8600 = vmatprep.subr.mxu0 0.0
        %8601 = vmatpush2.msra.mxu0 0.0
        %8602 = vmatprep.subr.mxu0 0.0
        %8603 = vmatpush2.msra.mxu0 0.0
        %8604 = vmatprep.subr.mxu0 0.0
        %8605 = vmatpush2.msra.mxu0 0.0
        %8606 = vmatprep.mubr.f32.mxu0 0.0
        %8607 = vmatmul.mubr.f32.gmra.mxu0 %v8540
        %v8608 = vpop.f32.mrf.mxu0
        %v8609 = vadd.f32 0.0, %v8608
        %v8610 = vpop.f32.mrf.mxu0
        %8611 = vdwg.mxu0
        %v8613 = vsel %vm1708, %v8390, 0
        %8615 = vmatprep.subr.mxu0 0.0
        %8616 = vmatpush1.msra.mxu0 0.0
        %8617 = vmatprep.subr.mxu0 0.0
        %8618 = vmatpush1.msra.mxu0 0.0
        %8619 = vmatprep.subr.mxu0 0.0
        %8620 = vmatpush1.msra.mxu0 0.0
        %8621 = vmatprep.subr.mxu0 0.0
        %8622 = vmatpush1.msra.mxu0 0.0
        %8623 = vmatprep.subr.mxu0 0.0
        %8624 = vmatpush1.msra.mxu0 0.0
        %8625 = vmatprep.subr.mxu0 0.0
        %8626 = vmatpush1.msra.mxu0 0.0
        %8627 = vmatprep.subr.mxu0 0.0
        %8628 = vmatpush1.msra.mxu0 0.0
        %8629 = vmatprep.subr.mxu0 0.0
        %8630 = vmatpush1.msra.mxu0 0.0
        %8631 = vmatprep.subr.mxu0 0.0
        %8632 = vmatpush1.msra.mxu0 0.0
        %8633 = vmatprep.subr.mxu0 0.0
        %8634 = vmatpush1.msra.mxu0 0.0
        %8635 = vmatprep.subr.mxu0 0.0
        %8636 = vmatpush1.msra.mxu0 0.0
        %8637 = vmatprep.subr.mxu0 0.0
        %8638 = vmatpush1.msra.mxu0 0.0
        %8639 = vmatprep.subr.mxu0 0.0
        %8640 = vmatpush1.msra.mxu0 0.0
        %8641 = vmatprep.subr.mxu0 0.0
        %8642 = vmatpush1.msra.mxu0 0.0
        %8643 = vmatprep.subr.mxu0 0.0
        %8644 = vmatpush1.msra.mxu0 0.0
        %8645 = vmatprep.subr.mxu0 0.0
        %8646 = vmatpush1.msra.mxu0 %v6831
        %8647 = vmatprep.subr.mxu0 0.0
        %8648 = vmatpush2.msra.mxu0 0.0
        %8649 = vmatprep.subr.mxu0 0.0
        %8650 = vmatpush2.msra.mxu0 0.0
        %8651 = vmatprep.subr.mxu0 0.0
        %8652 = vmatpush2.msra.mxu0 0.0
        %8653 = vmatprep.subr.mxu0 0.0
        %8654 = vmatpush2.msra.mxu0 0.0
        %8655 = vmatprep.subr.mxu0 0.0
        %8656 = vmatpush2.msra.mxu0 0.0
        %8657 = vmatprep.subr.mxu0 0.0
        %8658 = vmatpush2.msra.mxu0 0.0
        %8659 = vmatprep.subr.mxu0 0.0
        %8660 = vmatpush2.msra.mxu0 0.0
        %8661 = vmatprep.subr.mxu0 0.0
        %8662 = vmatpush2.msra.mxu0 0.0
        %8663 = vmatprep.subr.mxu0 0.0
        %8664 = vmatpush2.msra.mxu0 0.0
        %8665 = vmatprep.subr.mxu0 0.0
        %8666 = vmatpush2.msra.mxu0 0.0
        %8667 = vmatprep.subr.mxu0 0.0
        %8668 = vmatpush2.msra.mxu0 0.0
        %8669 = vmatprep.subr.mxu0 0.0
        %8670 = vmatpush2.msra.mxu0 0.0
        %8671 = vmatprep.subr.mxu0 0.0
        %8672 = vmatpush2.msra.mxu0 0.0
        %8673 = vmatprep.subr.mxu0 0.0
        %8674 = vmatpush2.msra.mxu0 0.0
        %8675 = vmatprep.subr.mxu0 0.0
        %8676 = vmatpush2.msra.mxu0 0.0
        %8677 = vmatprep.subr.mxu0 0.0
        %8678 = vmatpush2.msra.mxu0 0.0
        %8679 = vmatprep.mubr.f32.mxu0 0.0
        %8680 = vmatmul.mubr.f32.gmra.mxu0 %v8613
        %v8681 = vpop.f32.mrf.mxu0
        %v8682 = vadd.f32 0.0, %v8681
        %v8683 = vpop.f32.mrf.mxu0
        %8684 = vdwg.mxu0
        %v8685 = vsel %vm816, %v8463, 0.0
        %v8686 = vsel %vm816, %v8536, 0.0
        %v8687 = vadd.f32 %v8685, %v8686
        %v8688 = vsel %vm816, %v8609, 0.0
        %v8689 = vadd.f32 %v8687, %v8688
        %v8690 = vsel %vm816, %v8682, 0.0
        %v8691 = vadd.f32 %v8689, %v8690
        %v8693 = vlaneseq
        %v8694 = vshrl.u32 %v8693, 7
        %v8695 = vsub.s32 0, %v8694
        %v8696 = vrot.slane %v6833, %v8695
        %v8698 = vadd.f32 %v8691, %v8696
        %v8699 = vadd.f32 %v6760, %v8698
        %v8700 = vsel %vm816, %v8699, 0.0
        %8701 = vadd.xlane.f32.xlu0 %v8700
        %v8702 = vpop.xlane.xlu0 %8701
        %v8703 = vmul.f32 %v8702, %v2663
        %v8704 = vsub.f32 %v8699, %v8703
        %v8705 = vmul.f32 %v8704, %v8704
        %v8706 = vsel %vm816, %v8705, 0.0
        %8707 = vadd.xlane.f32.xlu0 %v8706
        %v8708 = vpop.xlane.xlu0 %8707
        %v8709 = vmul.f32 %v8708, %v2663
        %v8710 = vadd.f32 %v8709, 1e-05
        %v8711 = vrsqrt.pop %v8710
        %v8712 = vmul.f32 %v8704, %v8711
        %s8713 = scalar_lea.vmem %s19, 32
        %v8714 = vld [vmem:[%s8713] sm:$0xff]
        %v8715 = vld [vmem:[%s8713 + $0x8] sm:$0xff]
        %v8716 = vld [vmem:[%s8713 + $0x10] sm:$0xff]
        %v8717 = vld [vmem:[%s8713 + $0x18] sm:$0xff]
        %s8718 = scalar_lea.vmem %s20, 1
        %v8719 = vld [vmem:[%s8718] sm:$0x1]
        %v8721 = vlaneseq
        %v8722 = vshrl.u32 %v8721, 7
        %v8723 = vsub.s32 0, %v8722
        %v8724 = vrot.slane %v8719, %v8723
        %v8727 = vsel %vm816, %v8712, 0
        %8729 = vmatprep.subr.mxu0 0.0
        %8730 = vmatpush1.msra.mxu0 0.0
        %8731 = vmatprep.subr.mxu0 0.0
        %8732 = vmatpush1.msra.mxu0 0.0
        %8733 = vmatprep.subr.mxu0 0.0
        %8734 = vmatpush1.msra.mxu0 0.0
        %8735 = vmatprep.subr.mxu0 0.0
        %8736 = vmatpush1.msra.mxu0 0.0
        %8737 = vmatprep.subr.mxu0 0.0
        %8738 = vmatpush1.msra.mxu0 0.0
        %8739 = vmatprep.subr.mxu0 0.0
        %8740 = vmatpush1.msra.mxu0 0.0
        %8741 = vmatprep.subr.mxu0 0.0
        %8742 = vmatpush1.msra.mxu0 0.0
        %8743 = vmatprep.subr.mxu0 0.0
        %8744 = vmatpush1.msra.mxu0 0.0
        %8745 = vmatprep.subr.mxu0 0.0
        %8746 = vmatpush1.msra.mxu0 0.0
        %8747 = vmatprep.subr.mxu0 0.0
        %8748 = vmatpush1.msra.mxu0 0.0
        %8749 = vmatprep.subr.mxu0 0.0
        %8750 = vmatpush1.msra.mxu0 0.0
        %8751 = vmatprep.subr.mxu0 0.0
        %8752 = vmatpush1.msra.mxu0 0.0
        %8753 = vmatprep.subr.mxu0 0.0
        %8754 = vmatpush1.msra.mxu0 %v8717
        %8755 = vmatprep.subr.mxu0 0.0
        %8756 = vmatpush1.msra.mxu0 %v8716
        %8757 = vmatprep.subr.mxu0 0.0
        %8758 = vmatpush1.msra.mxu0 %v8715
        %8759 = vmatprep.subr.mxu0 0.0
        %8760 = vmatpush1.msra.mxu0 %v8714
        %8761 = vmatprep.subr.mxu0 0.0
        %8762 = vmatpush2.msra.mxu0 0.0
        %8763 = vmatprep.subr.mxu0 0.0
        %8764 = vmatpush2.msra.mxu0 0.0
        %8765 = vmatprep.subr.mxu0 0.0
        %8766 = vmatpush2.msra.mxu0 0.0
        %8767 = vmatprep.subr.mxu0 0.0
        %8768 = vmatpush2.msra.mxu0 0.0
        %8769 = vmatprep.subr.mxu0 0.0
        %8770 = vmatpush2.msra.mxu0 0.0
        %8771 = vmatprep.subr.mxu0 0.0
        %8772 = vmatpush2.msra.mxu0 0.0
        %8773 = vmatprep.subr.mxu0 0.0
        %8774 = vmatpush2.msra.mxu0 0.0
        %8775 = vmatprep.subr.mxu0 0.0
        %8776 = vmatpush2.msra.mxu0 0.0
        %8777 = vmatprep.subr.mxu0 0.0
        %8778 = vmatpush2.msra.mxu0 0.0
        %8779 = vmatprep.subr.mxu0 0.0
        %8780 = vmatpush2.msra.mxu0 0.0
        %8781 = vmatprep.subr.mxu0 0.0
        %8782 = vmatpush2.msra.mxu0 0.0
        %8783 = vmatprep.subr.mxu0 0.0
        %8784 = vmatpush2.msra.mxu0 0.0
        %8785 = vmatprep.subr.mxu0 0.0
        %8786 = vmatpush2.msra.mxu0 0.0
        %8787 = vmatprep.subr.mxu0 0.0
        %8788 = vmatpush2.msra.mxu0 0.0
        %8789 = vmatprep.subr.mxu0 0.0
        %8790 = vmatpush2.msra.mxu0 0.0
        %8791 = vmatprep.subr.mxu0 0.0
        %8792 = vmatpush2.msra.mxu0 0.0
        %8793 = vmatprep.mubr.f32.mxu0 0.0
        %8794 = vmatmul.mubr.f32.gmra.mxu0 %v8727
        %v8795 = vpop.f32.mrf.mxu0
        %v8796 = vadd.f32 %v8724, %v8795
        %v8797 = vpop.f32.mrf.mxu0
        %8798 = vdwg.mxu0
        %v8799 = vmax.f32 %v8796, 0.0
        %s8800 = scalar_lea.vmem %s21, 64
        %v8801 = vld [vmem:[%s8800] sm:$0xff]
        %v8802 = vld [vmem:[%s8800 + $0x8] sm:$0xff]
        %v8803 = vld [vmem:[%s8800 + $0x10] sm:$0xff]
        %v8804 = vld [vmem:[%s8800 + $0x18] sm:$0xff]
        %v8805 = vld [vmem:[%s8800 + $0x20] sm:$0xff]
        %v8806 = vld [vmem:[%s8800 + $0x28] sm:$0xff]
        %v8807 = vld [vmem:[%s8800 + $0x30] sm:$0xff]
        %v8808 = vld [vmem:[%s8800 + $0x38] sm:$0xff]
        %s8809 = scalar_lea.vmem %s22, 1
        %v8810 = vld [vmem:[%s8809] sm:$0x1]
        %v8812 = vlaneseq
        %v8813 = vshrl.u32 %v8812, 7
        %v8814 = vsub.s32 0, %v8813
        %v8815 = vrot.slane %v8810, %v8814
        %v8818 = vsel %vm4721, %v8799, 0
        %8820 = vmatprep.subr.mxu0 0.0
        %8821 = vmatpush1.msra.mxu0 0.0
        %8822 = vmatprep.subr.mxu0 0.0
        %8823 = vmatpush1.msra.mxu0 0.0
        %8824 = vmatprep.subr.mxu0 0.0
        %8825 = vmatpush1.msra.mxu0 0.0
        %8826 = vmatprep.subr.mxu0 0.0
        %8827 = vmatpush1.msra.mxu0 0.0
        %8828 = vmatprep.subr.mxu0 0.0
        %8829 = vmatpush1.msra.mxu0 0.0
        %8830 = vmatprep.subr.mxu0 0.0
        %8831 = vmatpush1.msra.mxu0 0.0
        %8832 = vmatprep.subr.mxu0 0.0
        %8833 = vmatpush1.msra.mxu0 0.0
        %8834 = vmatprep.subr.mxu0 0.0
        %8835 = vmatpush1.msra.mxu0 0.0
        %8836 = vmatprep.subr.mxu0 0.0
        %8837 = vmatpush1.msra.mxu0 %v8808
        %8838 = vmatprep.subr.mxu0 0.0
        %8839 = vmatpush1.msra.mxu0 %v8807
        %8840 = vmatprep.subr.mxu0 0.0
        %8841 = vmatpush1.msra.mxu0 %v8806
        %8842 = vmatprep.subr.mxu0 0.0
        %8843 = vmatpush1.msra.mxu0 %v8805
        %8844 = vmatprep.subr.mxu0 0.0
        %8845 = vmatpush1.msra.mxu0 %v8804
        %8846 = vmatprep.subr.mxu0 0.0
        %8847 = vmatpush1.msra.mxu0 %v8803
        %8848 = vmatprep.subr.mxu0 0.0
        %8849 = vmatpush1.msra.mxu0 %v8802
        %8850 = vmatprep.subr.mxu0 0.0
        %8851 = vmatpush1.msra.mxu0 %v8801
        %8852 = vmatprep.subr.mxu0 0.0
        %8853 = vmatpush2.msra.mxu0 0.0
        %8854 = vmatprep.subr.mxu0 0.0
        %8855 = vmatpush2.msra.mxu0 0.0
        %8856 = vmatprep.subr.mxu0 0.0
        %8857 = vmatpush2.msra.mxu0 0.0
        %8858 = vmatprep.subr.mxu0 0.0
        %8859 = vmatpush2.msra.mxu0 0.0
        %8860 = vmatprep.subr.mxu0 0.0
        %8861 = vmatpush2.msra.mxu0 0.0
        %8862 = vmatprep.subr.mxu0 0.0
        %8863 = vmatpush2.msra.mxu0 0.0
        %8864 = vmatprep.subr.mxu0 0.0
        %8865 = vmatpush2.msra.mxu0 0.0
        %8866 = vmatprep.subr.mxu0 0.0
        %8867 = vmatpush2.msra.mxu0 0.0
        %8868 = vmatprep.subr.mxu0 0.0
        %8869 = vmatpush2.msra.mxu0 0.0
        %8870 = vmatprep.subr.mxu0 0.0
        %8871 = vmatpush2.msra.mxu0 0.0
        %8872 = vmatprep.subr.mxu0 0.0
        %8873 = vmatpush2.msra.mxu0 0.0
        %8874 = vmatprep.subr.mxu0 0.0
        %8875 = vmatpush2.msra.mxu0 0.0
        %8876 = vmatprep.subr.mxu0 0.0
        %8877 = vmatpush2.msra.mxu0 0.0
        %8878 = vmatprep.subr.mxu0 0.0
        %8879 = vmatpush2.msra.mxu0 0.0
        %8880 = vmatprep.subr.mxu0 0.0
        %8881 = vmatpush2.msra.mxu0 0.0
        %8882 = vmatprep.subr.mxu0 0.0
        %8883 = vmatpush2.msra.mxu0 0.0
        %8884 = vmatprep.mubr.f32.mxu0 0.0
        %8885 = vmatmul.mubr.f32.gmra.mxu0 %v8818
        %v8886 = vpop.f32.mrf.mxu0
        %v8887 = vadd.f32 %v8815, %v8886
        %v8888 = vpop.f32.mrf.mxu0
        %8889 = vdwg.mxu0
        %v8890 = vadd.f32 %v8712, %v8887
        %v8891 = vsel %vm816, %v8890, 0.0
        %8892 = vadd.xlane.f32.xlu0 %v8891
        %v8893 = vpop.xlane.xlu0 %8892
        %v8894 = vmul.f32 %v8893, %v2663
        %v8895 = vsub.f32 %v8890, %v8894
        %v8896 = vmul.f32 %v8895, %v8895
        %v8897 = vsel %vm816, %v8896, 0.0
        %8898 = vadd.xlane.f32.xlu0 %v8897
        %v8899 = vpop.xlane.xlu0 %8898
        %v8900 = vmul.f32 %v8899, %v2663
        %v8901 = vadd.f32 %v8900, 1e-05
        %v8902 = vrsqrt.pop %v8901
        %v8903 = vmul.f32 %v8895, %v8902
        %8904 = vst.msk [vmem:[%s714] sm:$0xff] %vm816, %v8903
        %s8905 = sand.u32 %s538, 1
        %s8906 = scalar_lea.sflag [#allocation3], %s8905
        %s8907 = sand.u32 %s538, 1
        %s8908 = smul.addr %s8907, 8
        %s8909 = scalar_lea.vmem [#allocation2], %s8908
        // Predicated region
        $region113: #{decoder_forward.1} parent=111 // pred_check
          %p8910 = pneg %p548
        $region114: #{decoder_forward.1} parent=111 // pred_check_branch
          %8912 = sbr.rel (%p8910) target = $region116
        $region115: #{decoder_forward.1} parent=111 // pred_region
          %s8914 = ssub.s32 128, 128
          %8915 = vsyncadd %s8906, %s8914
          %s8916 = smul.addr %s37, 128
          %s8917 = scalar_lea.hbm %s23, %s8916
          %s8919 = sshll.u32 %s8909, 4
          %s8920 = int_to_ptr.vmem [resolvable:$true] %s8919
          %8922 = dma.vmem_to_hbm [thread:$0]  %s8920, 128, %s8917, %s8906
        $region116: #{decoder_forward.1} parent=111 // pred_fallthru
          _
      $region112: #{decoder_forward.1} parent=5 // pred_fallthru
        _
      %p8923 = scmp.le.s32.totalorder 2, %s32
      // Predicated region
      $region117: #{decoder_forward.1} parent=5 // pred_check
        %p8924 = pneg %p8923
      $region118: #{decoder_forward.1} parent=5 // pred_check_branch
        %8926 = sbr.rel (%p8924) target = $region120
      $region119: #{decoder_forward.1} parent=5 // pred_region
        %s8927 = ssub.s32 %s32, 2
        // Predicated region
        $region121: #{decoder_forward.1} parent=119 // pred_check
          %p8928 = pneg %p554
        $region122: #{decoder_forward.1} parent=119 // pred_check_branch
          %8930 = sbr.rel (%p8928) target = $region124
        $region123: #{decoder_forward.1} parent=119 // pred_region
          %s8931 = sand.u32 %s539, 1
          %s8932 = scalar_lea.sflag [#allocation3], %s8931
          %s8933 = sand.u32 %s539, 1
          %s8934 = smul.addr %s8933, 8
          %s8935 = scalar_lea.vmem [#allocation2], %s8934
          %8936 = dma.done %s8932, 128
        $region124: #{decoder_forward.1} parent=119 // pred_fallthru
          _
      $region120: #{decoder_forward.1} parent=5 // pred_fallthru
        _
    $region6: #{decoder_forward.1} parent=1 // loop_footer
      %s36 = sadd.s32 1, %s32
    $region7: #{decoder_forward.1} parent=1 // loop_footer_branch
      %31 = sbr.rel target = $region3
    $region8: #{decoder_forward.1} parent=1 // loop_exit
      _
    %8937 = vsyncpa [#allocation3], 1
    %s8938 = scalar_lea.sflag [#allocation3], 1
    %8939 = vsyncpa %s8938, 1

</llo_original>
